<compile_context>
chip_gen: v5e
topology: v5e:2x2
jax: 0.10.0
libtpu: 0.0.40
codegen_flags: <defaults>
</compile_context>

<pallas_src>
import functools
import math

import jax
import jax.numpy as jnp
from jax.experimental import pallas as pl
from jax.experimental.pallas import tpu as pltpu  # noqa: F401  (TPU backend)

# ---------------- model config (small, deterministic) ----------------
VOCAB = 64
B, S = 2, 8
HIDDEN = 128
N_HEADS = 4
HEAD_DIM = HIDDEN // N_HEADS
FFN = 256
N_LAYERS = 4          # hidden_states has N_LAYERS+1 entries; we mean the last 4
MAX_POS = 32
EPS = 1e-12


# ---------------- fused Pallas kernel ----------------
def _fused_bert_kernel(emb_ref, addmask_ref, eg_ref, eb_ref,
                       wqkv_ref, bqkv_ref, wo_ref, bo_ref, l1g_ref, l1b_ref,
                       wi_ref, bi_ref, wo2_ref, bo2_ref, l2g_ref, l2b_ref,
                       out_ref, *, batch, seq):
    """Whole mini-BERT forward on a [batch*seq, HIDDEN] activation in VMEM."""

    def layernorm(h, g, b):
        mu = jnp.mean(h, axis=-1, keepdims=True)
        var = jnp.mean((h - mu) ** 2, axis=-1, keepdims=True)
        return (h - mu) * jax.lax.rsqrt(var + EPS) * g + b

    scale = 1.0 / math.sqrt(HEAD_DIM)
    addmask = addmask_ref[...]                       # [B, S], already (1-m)*(-1e9)

    # embeddings -> LayerNorm (hidden_states[0])
    h = layernorm(emb_ref[...], eg_ref[...], eb_ref[...])

    # hidden_states = [emb_out, layer_1, ..., layer_N]; we mean the last 4.
    n_hidden = N_LAYERS + 1
    take_from = n_hidden - 4                          # first hidden-state index kept
    last4 = jnp.zeros_like(h)
    if take_from <= 0:
        last4 = last4 + h                             # embedding output counts

    for l in range(N_LAYERS):                         # unrolled, static
        # ---- fused QKV projection: [B*S,H] @ [H,3H] -> [B*S,3H] ----
        qkv = jnp.dot(h, wqkv_ref[l], preferred_element_type=jnp.float32) + bqkv_ref[l]

        # ---- multi-head self-attention, all (batch, head) pairs unrolled ----
        ctx_rows = []
        for bb in range(batch):
            r0 = bb * seq
            q_b = qkv[r0:r0 + seq, 0:HIDDEN]          # [S, H]
            k_b = qkv[r0:r0 + seq, HIDDEN:2 * HIDDEN]
            v_b = qkv[r0:r0 + seq, 2 * HIDDEN:3 * HIDDEN]
            am = addmask[bb:bb + 1, :]                # [1, S] -> broadcast over queries
            heads = []
            for hh in range(N_HEADS):
                c0 = hh * HEAD_DIM
                qh = q_b[:, c0:c0 + HEAD_DIM]         # [S, Dh]
                kh = k_b[:, c0:c0 + HEAD_DIM]
                vh = v_b[:, c0:c0 + HEAD_DIM]
                s = jnp.dot(qh, kh.T, preferred_element_type=jnp.float32) * scale + am
                s = s - jnp.max(s, axis=-1, keepdims=True)
                p = jnp.exp(s)
                p = p / jnp.sum(p, axis=-1, keepdims=True)
                heads.append(jnp.dot(p, vh, preferred_element_type=jnp.float32))
            # lane-dense [S, H] context per batch (heads packed along lanes)
            ctx_rows.append(jnp.concatenate(heads, axis=-1))
        ctx = jnp.concatenate(ctx_rows, axis=0)       # [B*S, H]

        attn = jnp.dot(ctx, wo_ref[l], preferred_element_type=jnp.float32) + bo_ref[l]
        h1 = layernorm(attn + h, l1g_ref[l], l1b_ref[l])

        # ---- FFN ----
        f = jnp.dot(h1, wi_ref[l], preferred_element_type=jnp.float32) + bi_ref[l]
        f = jax.nn.gelu(f, approximate=True)
        f = jnp.dot(f, wo2_ref[l], preferred_element_type=jnp.float32) + bo2_ref[l]
        h = layernorm(f + h1, l2g_ref[l], l2b_ref[l])

        if (l + 1) >= take_from:
            last4 = last4 + h                         # accumulate last-4 hidden states

    out_ref[...] = (last4 * 0.25).astype(out_ref.dtype)


# ---------------- parameter init (deterministic, synthetic, stacked) ----------------
def init_params(key):
    def normal(k, shape, scale=0.02):
        return scale * jax.random.normal(k, shape, dtype=jnp.float32)

    keys = iter(jax.random.split(key, 3 + N_LAYERS * 6))
    params = {
        "word_emb": normal(next(keys), (VOCAB, HIDDEN)),
        "pos_emb": normal(next(keys), (MAX_POS, HIDDEN)),
        "type_emb": normal(next(keys), (2, HIDDEN)),
        "emb_ln_g": jnp.ones((1, HIDDEN), jnp.float32),
        "emb_ln_b": jnp.zeros((1, HIDDEN), jnp.float32),
    }
    wqkv, wo, wi, wo2 = [], [], [], []
    for _ in range(N_LAYERS):
        wq = normal(next(keys), (HIDDEN, HIDDEN))
        wk = normal(next(keys), (HIDDEN, HIDDEN))
        wv = normal(next(keys), (HIDDEN, HIDDEN))
        wqkv.append(jnp.concatenate([wq, wk, wv], axis=1))   # fused QKV weight [H, 3H]
        wo.append(normal(next(keys), (HIDDEN, HIDDEN)))
        wi.append(normal(next(keys), (HIDDEN, FFN)))
        wo2.append(normal(next(keys), (FFN, HIDDEN)))
    params.update({
        "wqkv": jnp.stack(wqkv),                              # [L, H, 3H]
        "bqkv": jnp.zeros((N_LAYERS, 1, 3 * HIDDEN), jnp.float32),
        "wo":   jnp.stack(wo),                                # [L, H, H]
        "bo":   jnp.zeros((N_LAYERS, 1, HIDDEN), jnp.float32),
        "ln1_g": jnp.ones((N_LAYERS, 1, HIDDEN), jnp.float32),
        "ln1_b": jnp.zeros((N_LAYERS, 1, HIDDEN), jnp.float32),
        "wi":   jnp.stack(wi),                                # [L, H, FFN]
        "bi":   jnp.zeros((N_LAYERS, 1, FFN), jnp.float32),
        "wo2":  jnp.stack(wo2),                               # [L, FFN, H]
        "bo2":  jnp.zeros((N_LAYERS, 1, HIDDEN), jnp.float32),
        "ln2_g": jnp.ones((N_LAYERS, 1, HIDDEN), jnp.float32),
        "ln2_b": jnp.zeros((N_LAYERS, 1, HIDDEN), jnp.float32),
    })
    return params


# ---------------- forward pass (mirrors BERTWordEncoder.forward) ----------------
@jax.jit
def bert_word_encoder_forward(params, words, masks):
    """words: int32 [B, S], masks: {0,1} [B, S] -> word_embeddings [B, S, H]."""
    b, s = words.shape
    # Embedding gathers are glue (plain JAX); everything downstream is one Pallas call.
    emb = (params["word_emb"][words]
           + params["pos_emb"][:s][None, :, :]
           + params["type_emb"][0][None, None, :])
    emb_flat = emb.reshape(b * s, HIDDEN).astype(jnp.float32)
    addmask = (1.0 - masks.astype(jnp.float32)) * (-1e9)     # [B, S], precomputed once

    out_flat = pl.pallas_call(
        functools.partial(_fused_bert_kernel, batch=b, seq=s),
        out_shape=jax.ShapeDtypeStruct((b * s, HIDDEN), jnp.float32),
    )(emb_flat, addmask,
      params["emb_ln_g"], params["emb_ln_b"],
      params["wqkv"], params["bqkv"],
      params["wo"], params["bo"],
      params["ln1_g"], params["ln1_b"],
      params["wi"], params["bi"],
      params["wo2"], params["bo2"],
      params["ln2_g"], params["ln2_b"])

    return out_flat.reshape(b, s, HIDDEN)


# ---------------- main ----------------
if __name__ == "__main__":
    key = jax.random.PRNGKey(0)
    pkey, wkey = jax.random.split(key)
    params = init_params(pkey)

    words = jax.random.randint(wkey, (B, S), 0, VOCAB, dtype=jnp.int32)
    masks = jnp.array([[1, 1, 1, 1, 1, 1, 1, 1],
                       [1, 1, 1, 1, 1, 0, 0, 0]], dtype=jnp.int32)

    out = bert_word_encoder_forward(params, words, masks)
    out = jax.block_until_ready(out)
    assert out.shape == (B, S, HIDDEN)
    assert bool(jnp.all(jnp.isfinite(out)))
    print("KERNEL_OK")
</pallas_src>

<mosaic_0001>
module attributes {stable_mosaic.version = 11 : i64} {
  func.func @_fused_bert_kernel(%arg0: memref<16x128xf32, #tpu.memory_space<vmem>>, %arg1: memref<2x8xf32, #tpu.memory_space<vmem>>, %arg2: memref<1x128xf32, #tpu.memory_space<vmem>>, %arg3: memref<1x128xf32, #tpu.memory_space<vmem>>, %arg4: memref<4x128x384xf32, #tpu.memory_space<vmem>>, %arg5: memref<4x1x384xf32, #tpu.memory_space<vmem>>, %arg6: memref<4x128x128xf32, #tpu.memory_space<vmem>>, %arg7: memref<4x1x128xf32, #tpu.memory_space<vmem>>, %arg8: memref<4x1x128xf32, #tpu.memory_space<vmem>>, %arg9: memref<4x1x128xf32, #tpu.memory_space<vmem>>, %arg10: memref<4x128x256xf32, #tpu.memory_space<vmem>>, %arg11: memref<4x1x256xf32, #tpu.memory_space<vmem>>, %arg12: memref<4x256x128xf32, #tpu.memory_space<vmem>>, %arg13: memref<4x1x128xf32, #tpu.memory_space<vmem>>, %arg14: memref<4x1x128xf32, #tpu.memory_space<vmem>>, %arg15: memref<4x1x128xf32, #tpu.memory_space<vmem>>, %arg16: memref<16x128xf32, #tpu.memory_space<vmem>>) attributes {dimension_semantics = [], scalar_prefetch = 0 : i64, scratch_operands = 0 : i64, tpu.core_type = #tpu.core_type<tc>} {
    %c0 = arith.constant 0 : index
    %c0_0 = arith.constant 0 : index
    %0 = vector.load %arg1[%c0, %c0_0] : memref<2x8xf32, #tpu.memory_space<vmem>>, vector<2x8xf32>
    %c0_1 = arith.constant 0 : index
    %c0_2 = arith.constant 0 : index
    %1 = vector.load %arg0[%c0_1, %c0_2] : memref<16x128xf32, #tpu.memory_space<vmem>>, vector<16x128xf32>
    %c0_3 = arith.constant 0 : index
    %c0_4 = arith.constant 0 : index
    %2 = vector.load %arg2[%c0_3, %c0_4] : memref<1x128xf32, #tpu.memory_space<vmem>>, vector<1x128xf32>
    %c0_5 = arith.constant 0 : index
    %c0_6 = arith.constant 0 : index
    %3 = vector.load %arg3[%c0_5, %c0_6] : memref<1x128xf32, #tpu.memory_space<vmem>>, vector<1x128xf32>
    %cst = arith.constant dense<0.000000e+00> : vector<16xf32>
    %4 = vector.multi_reduction <add>, %1, %cst [1] : vector<16x128xf32> to vector<16xf32>
    %5 = vector.shape_cast %4 : vector<16xf32> to vector<16x1xf32>
    %cst_7 = arith.constant 1.280000e+02 : f32
    %6 = vector.broadcast %cst_7 : f32 to vector<16x1xf32>
    %7 = arith.divf %5, %6 : vector<16x1xf32>
    %8 = vector.broadcast %7 : vector<16x1xf32> to vector<16x128xf32>
    %9 = arith.subf %1, %8 : vector<16x128xf32>
    %10 = arith.mulf %9, %9 : vector<16x128xf32>
    %cst_8 = arith.constant dense<0.000000e+00> : vector<16xf32>
    %11 = vector.multi_reduction <add>, %10, %cst_8 [1] : vector<16x128xf32> to vector<16xf32>
    %12 = vector.shape_cast %11 : vector<16xf32> to vector<16x1xf32>
    %cst_9 = arith.constant 1.280000e+02 : f32
    %13 = vector.broadcast %cst_9 : f32 to vector<16x1xf32>
    %14 = arith.divf %12, %13 : vector<16x1xf32>
    %15 = vector.broadcast %7 : vector<16x1xf32> to vector<16x128xf32>
    %16 = arith.subf %1, %15 : vector<16x128xf32>
    %cst_10 = arith.constant 9.99999996E-13 : f32
    %17 = vector.broadcast %cst_10 : f32 to vector<16x1xf32>
    %18 = arith.addf %14, %17 : vector<16x1xf32>
    %19 = math.rsqrt %18 : vector<16x1xf32>
    %20 = vector.broadcast %19 : vector<16x1xf32> to vector<16x128xf32>
    %21 = arith.mulf %16, %20 : vector<16x128xf32>
    %22 = vector.broadcast %2 : vector<1x128xf32> to vector<16x128xf32>
    %23 = arith.mulf %21, %22 : vector<16x128xf32>
    %24 = vector.broadcast %3 : vector<1x128xf32> to vector<16x128xf32>
    %25 = arith.addf %23, %24 : vector<16x128xf32>
    %cst_11 = arith.constant 0.000000e+00 : f32
    %26 = vector.broadcast %cst_11 : f32 to vector<16x128xf32>
    %c0_12 = arith.constant 0 : index
    %c0_13 = arith.constant 0 : index
    %c0_14 = arith.constant 0 : index
    %27 = vector.load %arg4[%c0_12, %c0_13, %c0_14] : memref<4x128x384xf32, #tpu.memory_space<vmem>>, vector<1x128x384xf32>
    %28 = vector.shape_cast %27 : vector<1x128x384xf32> to vector<128x384xf32>
    %cst_15 = arith.constant dense<0.000000e+00> : vector<16x384xf32>
    %29 = tpu.matmul %25, %28, %cst_15 {dimension_numbers = #tpu.dot_dimension_numbers<[1], [0], [0], [1], [0, 0, 1, 1], [], []>} : vector<16x128xf32>, vector<128x384xf32>, vector<16x384xf32> -> vector<16x384xf32>
    %c0_16 = arith.constant 0 : index
    %c0_17 = arith.constant 0 : index
    %c0_18 = arith.constant 0 : index
    %30 = vector.load %arg5[%c0_16, %c0_17, %c0_18] : memref<4x1x384xf32, #tpu.memory_space<vmem>>, vector<1x1x384xf32>
    %31 = vector.shape_cast %30 : vector<1x1x384xf32> to vector<1x384xf32>
    %32 = vector.broadcast %31 : vector<1x384xf32> to vector<16x384xf32>
    %33 = arith.addf %29, %32 : vector<16x384xf32>
    %34 = vector.extract_strided_slice %33 {offsets = [0, 0], sizes = [8, 128], strides = [1, 1]} : vector<16x384xf32> to vector<8x128xf32>
    %35 = vector.extract_strided_slice %33 {offsets = [0, 128], sizes = [8, 128], strides = [1, 1]} : vector<16x384xf32> to vector<8x128xf32>
    %36 = vector.extract_strided_slice %33 {offsets = [0, 256], sizes = [8, 128], strides = [1, 1]} : vector<16x384xf32> to vector<8x128xf32>
    %37 = vector.extract_strided_slice %0 {offsets = [0, 0], sizes = [1, 8], strides = [1, 1]} : vector<2x8xf32> to vector<1x8xf32>
    %38 = vector.extract_strided_slice %34 {offsets = [0, 0], sizes = [8, 32], strides = [1, 1]} : vector<8x128xf32> to vector<8x32xf32>
    %39 = vector.extract_strided_slice %35 {offsets = [0, 0], sizes = [8, 32], strides = [1, 1]} : vector<8x128xf32> to vector<8x32xf32>
    %40 = vector.extract_strided_slice %36 {offsets = [0, 0], sizes = [8, 32], strides = [1, 1]} : vector<8x128xf32> to vector<8x32xf32>
    %41 = tpu.transpose %39, [1, 0] : vector<8x32xf32> -> vector<32x8xf32>
    %cst_19 = arith.constant dense<0.000000e+00> : vector<8x8xf32>
    %42 = tpu.matmul %38, %41, %cst_19 {dimension_numbers = #tpu.dot_dimension_numbers<[1], [0], [0], [1], [0, 0, 1, 1], [], []>} : vector<8x32xf32>, vector<32x8xf32>, vector<8x8xf32> -> vector<8x8xf32>
    %cst_20 = arith.constant 0.176776692 : f32
    %43 = vector.broadcast %cst_20 : f32 to vector<8x8xf32>
    %44 = arith.mulf %42, %43 : vector<8x8xf32>
    %45 = vector.broadcast %37 : vector<1x8xf32> to vector<8x8xf32>
    %46 = arith.addf %44, %45 : vector<8x8xf32>
    %cst_21 = arith.constant dense<0xFF800000> : vector<8xf32>
    %47 = vector.multi_reduction <maximumf>, %46, %cst_21 [1] : vector<8x8xf32> to vector<8xf32>
    %48 = vector.shape_cast %47 : vector<8xf32> to vector<8x1xf32>
    %49 = vector.broadcast %48 : vector<8x1xf32> to vector<8x8xf32>
    %50 = arith.subf %46, %49 : vector<8x8xf32>
    %51 = math.exp %50 : vector<8x8xf32>
    %cst_22 = arith.constant dense<0.000000e+00> : vector<8xf32>
    %52 = vector.multi_reduction <add>, %51, %cst_22 [1] : vector<8x8xf32> to vector<8xf32>
    %53 = vector.shape_cast %52 : vector<8xf32> to vector<8x1xf32>
    %54 = vector.broadcast %53 : vector<8x1xf32> to vector<8x8xf32>
    %55 = arith.divf %51, %54 : vector<8x8xf32>
    %cst_23 = arith.constant dense<0.000000e+00> : vector<8x32xf32>
    %56 = tpu.matmul %55, %40, %cst_23 {dimension_numbers = #tpu.dot_dimension_numbers<[1], [0], [0], [1], [0, 0, 1, 1], [], []>} : vector<8x8xf32>, vector<8x32xf32>, vector<8x32xf32> -> vector<8x32xf32>
    %57 = vector.extract_strided_slice %34 {offsets = [0, 32], sizes = [8, 32], strides = [1, 1]} : vector<8x128xf32> to vector<8x32xf32>
    %58 = vector.extract_strided_slice %35 {offsets = [0, 32], sizes = [8, 32], strides = [1, 1]} : vector<8x128xf32> to vector<8x32xf32>
    %59 = vector.extract_strided_slice %36 {offsets = [0, 32], sizes = [8, 32], strides = [1, 1]} : vector<8x128xf32> to vector<8x32xf32>
    %60 = tpu.transpose %58, [1, 0] : vector<8x32xf32> -> vector<32x8xf32>
    %cst_24 = arith.constant dense<0.000000e+00> : vector<8x8xf32>
    %61 = tpu.matmul %57, %60, %cst_24 {dimension_numbers = #tpu.dot_dimension_numbers<[1], [0], [0], [1], [0, 0, 1, 1], [], []>} : vector<8x32xf32>, vector<32x8xf32>, vector<8x8xf32> -> vector<8x8xf32>
    %cst_25 = arith.constant 0.176776692 : f32
    %62 = vector.broadcast %cst_25 : f32 to vector<8x8xf32>
    %63 = arith.mulf %61, %62 : vector<8x8xf32>
    %64 = vector.broadcast %37 : vector<1x8xf32> to vector<8x8xf32>
    %65 = arith.addf %63, %64 : vector<8x8xf32>
    %cst_26 = arith.constant dense<0xFF800000> : vector<8xf32>
    %66 = vector.multi_reduction <maximumf>, %65, %cst_26 [1] : vector<8x8xf32> to vector<8xf32>
    %67 = vector.shape_cast %66 : vector<8xf32> to vector<8x1xf32>
    %68 = vector.broadcast %67 : vector<8x1xf32> to vector<8x8xf32>
    %69 = arith.subf %65, %68 : vector<8x8xf32>
    %70 = math.exp %69 : vector<8x8xf32>
    %cst_27 = arith.constant dense<0.000000e+00> : vector<8xf32>
    %71 = vector.multi_reduction <add>, %70, %cst_27 [1] : vector<8x8xf32> to vector<8xf32>
    %72 = vector.shape_cast %71 : vector<8xf32> to vector<8x1xf32>
    %73 = vector.broadcast %72 : vector<8x1xf32> to vector<8x8xf32>
    %74 = arith.divf %70, %73 : vector<8x8xf32>
    %cst_28 = arith.constant dense<0.000000e+00> : vector<8x32xf32>
    %75 = tpu.matmul %74, %59, %cst_28 {dimension_numbers = #tpu.dot_dimension_numbers<[1], [0], [0], [1], [0, 0, 1, 1], [], []>} : vector<8x8xf32>, vector<8x32xf32>, vector<8x32xf32> -> vector<8x32xf32>
    %76 = vector.extract_strided_slice %34 {offsets = [0, 64], sizes = [8, 32], strides = [1, 1]} : vector<8x128xf32> to vector<8x32xf32>
    %77 = vector.extract_strided_slice %35 {offsets = [0, 64], sizes = [8, 32], strides = [1, 1]} : vector<8x128xf32> to vector<8x32xf32>
    %78 = vector.extract_strided_slice %36 {offsets = [0, 64], sizes = [8, 32], strides = [1, 1]} : vector<8x128xf32> to vector<8x32xf32>
    %79 = tpu.transpose %77, [1, 0] : vector<8x32xf32> -> vector<32x8xf32>
    %cst_29 = arith.constant dense<0.000000e+00> : vector<8x8xf32>
    %80 = tpu.matmul %76, %79, %cst_29 {dimension_numbers = #tpu.dot_dimension_numbers<[1], [0], [0], [1], [0, 0, 1, 1], [], []>} : vector<8x32xf32>, vector<32x8xf32>, vector<8x8xf32> -> vector<8x8xf32>
    %cst_30 = arith.constant 0.176776692 : f32
    %81 = vector.broadcast %cst_30 : f32 to vector<8x8xf32>
    %82 = arith.mulf %80, %81 : vector<8x8xf32>
    %83 = vector.broadcast %37 : vector<1x8xf32> to vector<8x8xf32>
    %84 = arith.addf %82, %83 : vector<8x8xf32>
    %cst_31 = arith.constant dense<0xFF800000> : vector<8xf32>
    %85 = vector.multi_reduction <maximumf>, %84, %cst_31 [1] : vector<8x8xf32> to vector<8xf32>
    %86 = vector.shape_cast %85 : vector<8xf32> to vector<8x1xf32>
    %87 = vector.broadcast %86 : vector<8x1xf32> to vector<8x8xf32>
    %88 = arith.subf %84, %87 : vector<8x8xf32>
    %89 = math.exp %88 : vector<8x8xf32>
    %cst_32 = arith.constant dense<0.000000e+00> : vector<8xf32>
    %90 = vector.multi_reduction <add>, %89, %cst_32 [1] : vector<8x8xf32> to vector<8xf32>
    %91 = vector.shape_cast %90 : vector<8xf32> to vector<8x1xf32>
    %92 = vector.broadcast %91 : vector<8x1xf32> to vector<8x8xf32>
    %93 = arith.divf %89, %92 : vector<8x8xf32>
    %cst_33 = arith.constant dense<0.000000e+00> : vector<8x32xf32>
    %94 = tpu.matmul %93, %78, %cst_33 {dimension_numbers = #tpu.dot_dimension_numbers<[1], [0], [0], [1], [0, 0, 1, 1], [], []>} : vector<8x8xf32>, vector<8x32xf32>, vector<8x32xf32> -> vector<8x32xf32>
    %95 = vector.extract_strided_slice %34 {offsets = [0, 96], sizes = [8, 32], strides = [1, 1]} : vector<8x128xf32> to vector<8x32xf32>
    %96 = vector.extract_strided_slice %35 {offsets = [0, 96], sizes = [8, 32], strides = [1, 1]} : vector<8x128xf32> to vector<8x32xf32>
    %97 = vector.extract_strided_slice %36 {offsets = [0, 96], sizes = [8, 32], strides = [1, 1]} : vector<8x128xf32> to vector<8x32xf32>
    %98 = tpu.transpose %96, [1, 0] : vector<8x32xf32> -> vector<32x8xf32>
    %cst_34 = arith.constant dense<0.000000e+00> : vector<8x8xf32>
    %99 = tpu.matmul %95, %98, %cst_34 {dimension_numbers = #tpu.dot_dimension_numbers<[1], [0], [0], [1], [0, 0, 1, 1], [], []>} : vector<8x32xf32>, vector<32x8xf32>, vector<8x8xf32> -> vector<8x8xf32>
    %cst_35 = arith.constant 0.176776692 : f32
    %100 = vector.broadcast %cst_35 : f32 to vector<8x8xf32>
    %101 = arith.mulf %99, %100 : vector<8x8xf32>
    %102 = vector.broadcast %37 : vector<1x8xf32> to vector<8x8xf32>
    %103 = arith.addf %101, %102 : vector<8x8xf32>
    %cst_36 = arith.constant dense<0xFF800000> : vector<8xf32>
    %104 = vector.multi_reduction <maximumf>, %103, %cst_36 [1] : vector<8x8xf32> to vector<8xf32>
    %105 = vector.shape_cast %104 : vector<8xf32> to vector<8x1xf32>
    %106 = vector.broadcast %105 : vector<8x1xf32> to vector<8x8xf32>
    %107 = arith.subf %103, %106 : vector<8x8xf32>
    %108 = math.exp %107 : vector<8x8xf32>
    %cst_37 = arith.constant dense<0.000000e+00> : vector<8xf32>
    %109 = vector.multi_reduction <add>, %108, %cst_37 [1] : vector<8x8xf32> to vector<8xf32>
    %110 = vector.shape_cast %109 : vector<8xf32> to vector<8x1xf32>
    %111 = vector.broadcast %110 : vector<8x1xf32> to vector<8x8xf32>
    %112 = arith.divf %108, %111 : vector<8x8xf32>
    %cst_38 = arith.constant dense<0.000000e+00> : vector<8x32xf32>
    %113 = tpu.matmul %112, %97, %cst_38 {dimension_numbers = #tpu.dot_dimension_numbers<[1], [0], [0], [1], [0, 0, 1, 1], [], []>} : vector<8x8xf32>, vector<8x32xf32>, vector<8x32xf32> -> vector<8x32xf32>
    %114 = tpu.concatenate %56, %75, %94, %113 in 1 : vector<8x32xf32>, vector<8x32xf32>, vector<8x32xf32>, vector<8x32xf32> -> vector<8x128xf32>
    %115 = vector.extract_strided_slice %33 {offsets = [8, 0], sizes = [8, 128], strides = [1, 1]} : vector<16x384xf32> to vector<8x128xf32>
    %116 = vector.extract_strided_slice %33 {offsets = [8, 128], sizes = [8, 128], strides = [1, 1]} : vector<16x384xf32> to vector<8x128xf32>
    %117 = vector.extract_strided_slice %33 {offsets = [8, 256], sizes = [8, 128], strides = [1, 1]} : vector<16x384xf32> to vector<8x128xf32>
    %118 = vector.extract_strided_slice %0 {offsets = [1, 0], sizes = [1, 8], strides = [1, 1]} : vector<2x8xf32> to vector<1x8xf32>
    %119 = vector.extract_strided_slice %115 {offsets = [0, 0], sizes = [8, 32], strides = [1, 1]} : vector<8x128xf32> to vector<8x32xf32>
    %120 = vector.extract_strided_slice %116 {offsets = [0, 0], sizes = [8, 32], strides = [1, 1]} : vector<8x128xf32> to vector<8x32xf32>
    %121 = vector.extract_strided_slice %117 {offsets = [0, 0], sizes = [8, 32], strides = [1, 1]} : vector<8x128xf32> to vector<8x32xf32>
    %122 = tpu.transpose %120, [1, 0] : vector<8x32xf32> -> vector<32x8xf32>
    %cst_39 = arith.constant dense<0.000000e+00> : vector<8x8xf32>
    %123 = tpu.matmul %119, %122, %cst_39 {dimension_numbers = #tpu.dot_dimension_numbers<[1], [0], [0], [1], [0, 0, 1, 1], [], []>} : vector<8x32xf32>, vector<32x8xf32>, vector<8x8xf32> -> vector<8x8xf32>
    %cst_40 = arith.constant 0.176776692 : f32
    %124 = vector.broadcast %cst_40 : f32 to vector<8x8xf32>
    %125 = arith.mulf %123, %124 : vector<8x8xf32>
    %126 = vector.broadcast %118 : vector<1x8xf32> to vector<8x8xf32>
    %127 = arith.addf %125, %126 : vector<8x8xf32>
    %cst_41 = arith.constant dense<0xFF800000> : vector<8xf32>
    %128 = vector.multi_reduction <maximumf>, %127, %cst_41 [1] : vector<8x8xf32> to vector<8xf32>
    %129 = vector.shape_cast %128 : vector<8xf32> to vector<8x1xf32>
    %130 = vector.broadcast %129 : vector<8x1xf32> to vector<8x8xf32>
    %131 = arith.subf %127, %130 : vector<8x8xf32>
    %132 = math.exp %131 : vector<8x8xf32>
    %cst_42 = arith.constant dense<0.000000e+00> : vector<8xf32>
    %133 = vector.multi_reduction <add>, %132, %cst_42 [1] : vector<8x8xf32> to vector<8xf32>
    %134 = vector.shape_cast %133 : vector<8xf32> to vector<8x1xf32>
    %135 = vector.broadcast %134 : vector<8x1xf32> to vector<8x8xf32>
    %136 = arith.divf %132, %135 : vector<8x8xf32>
    %cst_43 = arith.constant dense<0.000000e+00> : vector<8x32xf32>
    %137 = tpu.matmul %136, %121, %cst_43 {dimension_numbers = #tpu.dot_dimension_numbers<[1], [0], [0], [1], [0, 0, 1, 1], [], []>} : vector<8x8xf32>, vector<8x32xf32>, vector<8x32xf32> -> vector<8x32xf32>
    %138 = vector.extract_strided_slice %115 {offsets = [0, 32], sizes = [8, 32], strides = [1, 1]} : vector<8x128xf32> to vector<8x32xf32>
    %139 = vector.extract_strided_slice %116 {offsets = [0, 32], sizes = [8, 32], strides = [1, 1]} : vector<8x128xf32> to vector<8x32xf32>
    %140 = vector.extract_strided_slice %117 {offsets = [0, 32], sizes = [8, 32], strides = [1, 1]} : vector<8x128xf32> to vector<8x32xf32>
    %141 = tpu.transpose %139, [1, 0] : vector<8x32xf32> -> vector<32x8xf32>
    %cst_44 = arith.constant dense<0.000000e+00> : vector<8x8xf32>
    %142 = tpu.matmul %138, %141, %cst_44 {dimension_numbers = #tpu.dot_dimension_numbers<[1], [0], [0], [1], [0, 0, 1, 1], [], []>} : vector<8x32xf32>, vector<32x8xf32>, vector<8x8xf32> -> vector<8x8xf32>
    %cst_45 = arith.constant 0.176776692 : f32
    %143 = vector.broadcast %cst_45 : f32 to vector<8x8xf32>
    %144 = arith.mulf %142, %143 : vector<8x8xf32>
    %145 = vector.broadcast %118 : vector<1x8xf32> to vector<8x8xf32>
    %146 = arith.addf %144, %145 : vector<8x8xf32>
    %cst_46 = arith.constant dense<0xFF800000> : vector<8xf32>
    %147 = vector.multi_reduction <maximumf>, %146, %cst_46 [1] : vector<8x8xf32> to vector<8xf32>
    %148 = vector.shape_cast %147 : vector<8xf32> to vector<8x1xf32>
    %149 = vector.broadcast %148 : vector<8x1xf32> to vector<8x8xf32>
    %150 = arith.subf %146, %149 : vector<8x8xf32>
    %151 = math.exp %150 : vector<8x8xf32>
    %cst_47 = arith.constant dense<0.000000e+00> : vector<8xf32>
    %152 = vector.multi_reduction <add>, %151, %cst_47 [1] : vector<8x8xf32> to vector<8xf32>
    %153 = vector.shape_cast %152 : vector<8xf32> to vector<8x1xf32>
    %154 = vector.broadcast %153 : vector<8x1xf32> to vector<8x8xf32>
    %155 = arith.divf %151, %154 : vector<8x8xf32>
    %cst_48 = arith.constant dense<0.000000e+00> : vector<8x32xf32>
    %156 = tpu.matmul %155, %140, %cst_48 {dimension_numbers = #tpu.dot_dimension_numbers<[1], [0], [0], [1], [0, 0, 1, 1], [], []>} : vector<8x8xf32>, vector<8x32xf32>, vector<8x32xf32> -> vector<8x32xf32>
    %157 = vector.extract_strided_slice %115 {offsets = [0, 64], sizes = [8, 32], strides = [1, 1]} : vector<8x128xf32> to vector<8x32xf32>
    %158 = vector.extract_strided_slice %116 {offsets = [0, 64], sizes = [8, 32], strides = [1, 1]} : vector<8x128xf32> to vector<8x32xf32>
    %159 = vector.extract_strided_slice %117 {offsets = [0, 64], sizes = [8, 32], strides = [1, 1]} : vector<8x128xf32> to vector<8x32xf32>
    %160 = tpu.transpose %158, [1, 0] : vector<8x32xf32> -> vector<32x8xf32>
    %cst_49 = arith.constant dense<0.000000e+00> : vector<8x8xf32>
    %161 = tpu.matmul %157, %160, %cst_49 {dimension_numbers = #tpu.dot_dimension_numbers<[1], [0], [0], [1], [0, 0, 1, 1], [], []>} : vector<8x32xf32>, vector<32x8xf32>, vector<8x8xf32> -> vector<8x8xf32>
    %cst_50 = arith.constant 0.176776692 : f32
    %162 = vector.broadcast %cst_50 : f32 to vector<8x8xf32>
    %163 = arith.mulf %161, %162 : vector<8x8xf32>
    %164 = vector.broadcast %118 : vector<1x8xf32> to vector<8x8xf32>
    %165 = arith.addf %163, %164 : vector<8x8xf32>
    %cst_51 = arith.constant dense<0xFF800000> : vector<8xf32>
    %166 = vector.multi_reduction <maximumf>, %165, %cst_51 [1] : vector<8x8xf32> to vector<8xf32>
    %167 = vector.shape_cast %166 : vector<8xf32> to vector<8x1xf32>
    %168 = vector.broadcast %167 : vector<8x1xf32> to vector<8x8xf32>
    %169 = arith.subf %165, %168 : vector<8x8xf32>
    %170 = math.exp %169 : vector<8x8xf32>
    %cst_52 = arith.constant dense<0.000000e+00> : vector<8xf32>
    %171 = vector.multi_reduction <add>, %170, %cst_52 [1] : vector<8x8xf32> to vector<8xf32>
    %172 = vector.shape_cast %171 : vector<8xf32> to vector<8x1xf32>
    %173 = vector.broadcast %172 : vector<8x1xf32> to vector<8x8xf32>
    %174 = arith.divf %170, %173 : vector<8x8xf32>
    %cst_53 = arith.constant dense<0.000000e+00> : vector<8x32xf32>
    %175 = tpu.matmul %174, %159, %cst_53 {dimension_numbers = #tpu.dot_dimension_numbers<[1], [0], [0], [1], [0, 0, 1, 1], [], []>} : vector<8x8xf32>, vector<8x32xf32>, vector<8x32xf32> -> vector<8x32xf32>
    %176 = vector.extract_strided_slice %115 {offsets = [0, 96], sizes = [8, 32], strides = [1, 1]} : vector<8x128xf32> to vector<8x32xf32>
    %177 = vector.extract_strided_slice %116 {offsets = [0, 96], sizes = [8, 32], strides = [1, 1]} : vector<8x128xf32> to vector<8x32xf32>
    %178 = vector.extract_strided_slice %117 {offsets = [0, 96], sizes = [8, 32], strides = [1, 1]} : vector<8x128xf32> to vector<8x32xf32>
    %179 = tpu.transpose %177, [1, 0] : vector<8x32xf32> -> vector<32x8xf32>
    %cst_54 = arith.constant dense<0.000000e+00> : vector<8x8xf32>
    %180 = tpu.matmul %176, %179, %cst_54 {dimension_numbers = #tpu.dot_dimension_numbers<[1], [0], [0], [1], [0, 0, 1, 1], [], []>} : vector<8x32xf32>, vector<32x8xf32>, vector<8x8xf32> -> vector<8x8xf32>
    %cst_55 = arith.constant 0.176776692 : f32
    %181 = vector.broadcast %cst_55 : f32 to vector<8x8xf32>
    %182 = arith.mulf %180, %181 : vector<8x8xf32>
    %183 = vector.broadcast %118 : vector<1x8xf32> to vector<8x8xf32>
    %184 = arith.addf %182, %183 : vector<8x8xf32>
    %cst_56 = arith.constant dense<0xFF800000> : vector<8xf32>
    %185 = vector.multi_reduction <maximumf>, %184, %cst_56 [1] : vector<8x8xf32> to vector<8xf32>
    %186 = vector.shape_cast %185 : vector<8xf32> to vector<8x1xf32>
    %187 = vector.broadcast %186 : vector<8x1xf32> to vector<8x8xf32>
    %188 = arith.subf %184, %187 : vector<8x8xf32>
    %189 = math.exp %188 : vector<8x8xf32>
    %cst_57 = arith.constant dense<0.000000e+00> : vector<8xf32>
    %190 = vector.multi_reduction <add>, %189, %cst_57 [1] : vector<8x8xf32> to vector<8xf32>
    %191 = vector.shape_cast %190 : vector<8xf32> to vector<8x1xf32>
    %192 = vector.broadcast %191 : vector<8x1xf32> to vector<8x8xf32>
    %193 = arith.divf %189, %192 : vector<8x8xf32>
    %cst_58 = arith.constant dense<0.000000e+00> : vector<8x32xf32>
    %194 = tpu.matmul %193, %178, %cst_58 {dimension_numbers = #tpu.dot_dimension_numbers<[1], [0], [0], [1], [0, 0, 1, 1], [], []>} : vector<8x8xf32>, vector<8x32xf32>, vector<8x32xf32> -> vector<8x32xf32>
    %195 = tpu.concatenate %137, %156, %175, %194 in 1 : vector<8x32xf32>, vector<8x32xf32>, vector<8x32xf32>, vector<8x32xf32> -> vector<8x128xf32>
    %196 = tpu.concatenate %114, %195 in 0 : vector<8x128xf32>, vector<8x128xf32> -> vector<16x128xf32>
    %c0_59 = arith.constant 0 : index
    %c0_60 = arith.constant 0 : index
    %c0_61 = arith.constant 0 : index
    %197 = vector.load %arg6[%c0_59, %c0_60, %c0_61] : memref<4x128x128xf32, #tpu.memory_space<vmem>>, vector<1x128x128xf32>
    %198 = vector.shape_cast %197 : vector<1x128x128xf32> to vector<128x128xf32>
    %cst_62 = arith.constant dense<0.000000e+00> : vector<16x128xf32>
    %199 = tpu.matmul %196, %198, %cst_62 {dimension_numbers = #tpu.dot_dimension_numbers<[1], [0], [0], [1], [0, 0, 1, 1], [], []>} : vector<16x128xf32>, vector<128x128xf32>, vector<16x128xf32> -> vector<16x128xf32>
    %c0_63 = arith.constant 0 : index
    %c0_64 = arith.constant 0 : index
    %c0_65 = arith.constant 0 : index
    %200 = vector.load %arg7[%c0_63, %c0_64, %c0_65] : memref<4x1x128xf32, #tpu.memory_space<vmem>>, vector<1x1x128xf32>
    %201 = vector.shape_cast %200 : vector<1x1x128xf32> to vector<1x128xf32>
    %202 = vector.broadcast %201 : vector<1x128xf32> to vector<16x128xf32>
    %203 = arith.addf %199, %202 : vector<16x128xf32>
    %204 = arith.addf %203, %25 : vector<16x128xf32>
    %c0_66 = arith.constant 0 : index
    %c0_67 = arith.constant 0 : index
    %c0_68 = arith.constant 0 : index
    %205 = vector.load %arg8[%c0_66, %c0_67, %c0_68] : memref<4x1x128xf32, #tpu.memory_space<vmem>>, vector<1x1x128xf32>
    %206 = vector.shape_cast %205 : vector<1x1x128xf32> to vector<1x128xf32>
    %c0_69 = arith.constant 0 : index
    %c0_70 = arith.constant 0 : index
    %c0_71 = arith.constant 0 : index
    %207 = vector.load %arg9[%c0_69, %c0_70, %c0_71] : memref<4x1x128xf32, #tpu.memory_space<vmem>>, vector<1x1x128xf32>
    %208 = vector.shape_cast %207 : vector<1x1x128xf32> to vector<1x128xf32>
    %cst_72 = arith.constant dense<0.000000e+00> : vector<16xf32>
    %209 = vector.multi_reduction <add>, %204, %cst_72 [1] : vector<16x128xf32> to vector<16xf32>
    %210 = vector.shape_cast %209 : vector<16xf32> to vector<16x1xf32>
    %cst_73 = arith.constant 1.280000e+02 : f32
    %211 = vector.broadcast %cst_73 : f32 to vector<16x1xf32>
    %212 = arith.divf %210, %211 : vector<16x1xf32>
    %213 = vector.broadcast %212 : vector<16x1xf32> to vector<16x128xf32>
    %214 = arith.subf %204, %213 : vector<16x128xf32>
    %215 = arith.mulf %214, %214 : vector<16x128xf32>
    %cst_74 = arith.constant dense<0.000000e+00> : vector<16xf32>
    %216 = vector.multi_reduction <add>, %215, %cst_74 [1] : vector<16x128xf32> to vector<16xf32>
    %217 = vector.shape_cast %216 : vector<16xf32> to vector<16x1xf32>
    %cst_75 = arith.constant 1.280000e+02 : f32
    %218 = vector.broadcast %cst_75 : f32 to vector<16x1xf32>
    %219 = arith.divf %217, %218 : vector<16x1xf32>
    %220 = vector.broadcast %212 : vector<16x1xf32> to vector<16x128xf32>
    %221 = arith.subf %204, %220 : vector<16x128xf32>
    %cst_76 = arith.constant 9.99999996E-13 : f32
    %222 = vector.broadcast %cst_76 : f32 to vector<16x1xf32>
    %223 = arith.addf %219, %222 : vector<16x1xf32>
    %224 = math.rsqrt %223 : vector<16x1xf32>
    %225 = vector.broadcast %224 : vector<16x1xf32> to vector<16x128xf32>
    %226 = arith.mulf %221, %225 : vector<16x128xf32>
    %227 = vector.broadcast %206 : vector<1x128xf32> to vector<16x128xf32>
    %228 = arith.mulf %226, %227 : vector<16x128xf32>
    %229 = vector.broadcast %208 : vector<1x128xf32> to vector<16x128xf32>
    %230 = arith.addf %228, %229 : vector<16x128xf32>
    %c0_77 = arith.constant 0 : index
    %c0_78 = arith.constant 0 : index
    %c0_79 = arith.constant 0 : index
    %231 = vector.load %arg10[%c0_77, %c0_78, %c0_79] : memref<4x128x256xf32, #tpu.memory_space<vmem>>, vector<1x128x256xf32>
    %232 = vector.shape_cast %231 : vector<1x128x256xf32> to vector<128x256xf32>
    %cst_80 = arith.constant dense<0.000000e+00> : vector<16x256xf32>
    %233 = tpu.matmul %230, %232, %cst_80 {dimension_numbers = #tpu.dot_dimension_numbers<[1], [0], [0], [1], [0, 0, 1, 1], [], []>} : vector<16x128xf32>, vector<128x256xf32>, vector<16x256xf32> -> vector<16x256xf32>
    %c0_81 = arith.constant 0 : index
    %c0_82 = arith.constant 0 : index
    %c0_83 = arith.constant 0 : index
    %234 = vector.load %arg11[%c0_81, %c0_82, %c0_83] : memref<4x1x256xf32, #tpu.memory_space<vmem>>, vector<1x1x256xf32>
    %235 = vector.shape_cast %234 : vector<1x1x256xf32> to vector<1x256xf32>
    %236 = vector.broadcast %235 : vector<1x256xf32> to vector<16x256xf32>
    %237 = arith.addf %233, %236 : vector<16x256xf32>
    %238 = arith.mulf %237, %237 : vector<16x256xf32>
    %239 = arith.mulf %237, %238 : vector<16x256xf32>
    %cst_84 = arith.constant 4.471500e-02 : f32
    %240 = vector.broadcast %cst_84 : f32 to vector<16x256xf32>
    %241 = arith.mulf %240, %239 : vector<16x256xf32>
    %242 = arith.addf %237, %241 : vector<16x256xf32>
    %cst_85 = arith.constant 0.797884583 : f32
    %243 = vector.broadcast %cst_85 : f32 to vector<16x256xf32>
    %244 = arith.mulf %243, %242 : vector<16x256xf32>
    %245 = math.tanh %244 : vector<16x256xf32>
    %cst_86 = arith.constant 1.000000e+00 : f32
    %246 = vector.broadcast %cst_86 : f32 to vector<16x256xf32>
    %247 = arith.addf %246, %245 : vector<16x256xf32>
    %cst_87 = arith.constant 5.000000e-01 : f32
    %248 = vector.broadcast %cst_87 : f32 to vector<16x256xf32>
    %249 = arith.mulf %248, %247 : vector<16x256xf32>
    %250 = arith.mulf %237, %249 : vector<16x256xf32>
    %c0_88 = arith.constant 0 : index
    %c0_89 = arith.constant 0 : index
    %c0_90 = arith.constant 0 : index
    %251 = vector.load %arg12[%c0_88, %c0_89, %c0_90] : memref<4x256x128xf32, #tpu.memory_space<vmem>>, vector<1x256x128xf32>
    %252 = vector.shape_cast %251 : vector<1x256x128xf32> to vector<256x128xf32>
    %cst_91 = arith.constant dense<0.000000e+00> : vector<16x128xf32>
    %253 = tpu.matmul %250, %252, %cst_91 {dimension_numbers = #tpu.dot_dimension_numbers<[1], [0], [0], [1], [0, 0, 1, 1], [], []>} : vector<16x256xf32>, vector<256x128xf32>, vector<16x128xf32> -> vector<16x128xf32>
    %c0_92 = arith.constant 0 : index
    %c0_93 = arith.constant 0 : index
    %c0_94 = arith.constant 0 : index
    %254 = vector.load %arg13[%c0_92, %c0_93, %c0_94] : memref<4x1x128xf32, #tpu.memory_space<vmem>>, vector<1x1x128xf32>
    %255 = vector.shape_cast %254 : vector<1x1x128xf32> to vector<1x128xf32>
    %256 = vector.broadcast %255 : vector<1x128xf32> to vector<16x128xf32>
    %257 = arith.addf %253, %256 : vector<16x128xf32>
    %258 = arith.addf %257, %230 : vector<16x128xf32>
    %c0_95 = arith.constant 0 : index
    %c0_96 = arith.constant 0 : index
    %c0_97 = arith.constant 0 : index
    %259 = vector.load %arg14[%c0_95, %c0_96, %c0_97] : memref<4x1x128xf32, #tpu.memory_space<vmem>>, vector<1x1x128xf32>
    %260 = vector.shape_cast %259 : vector<1x1x128xf32> to vector<1x128xf32>
    %c0_98 = arith.constant 0 : index
    %c0_99 = arith.constant 0 : index
    %c0_100 = arith.constant 0 : index
    %261 = vector.load %arg15[%c0_98, %c0_99, %c0_100] : memref<4x1x128xf32, #tpu.memory_space<vmem>>, vector<1x1x128xf32>
    %262 = vector.shape_cast %261 : vector<1x1x128xf32> to vector<1x128xf32>
    %cst_101 = arith.constant dense<0.000000e+00> : vector<16xf32>
    %263 = vector.multi_reduction <add>, %258, %cst_101 [1] : vector<16x128xf32> to vector<16xf32>
    %264 = vector.shape_cast %263 : vector<16xf32> to vector<16x1xf32>
    %cst_102 = arith.constant 1.280000e+02 : f32
    %265 = vector.broadcast %cst_102 : f32 to vector<16x1xf32>
    %266 = arith.divf %264, %265 : vector<16x1xf32>
    %267 = vector.broadcast %266 : vector<16x1xf32> to vector<16x128xf32>
    %268 = arith.subf %258, %267 : vector<16x128xf32>
    %269 = arith.mulf %268, %268 : vector<16x128xf32>
    %cst_103 = arith.constant dense<0.000000e+00> : vector<16xf32>
    %270 = vector.multi_reduction <add>, %269, %cst_103 [1] : vector<16x128xf32> to vector<16xf32>
    %271 = vector.shape_cast %270 : vector<16xf32> to vector<16x1xf32>
    %cst_104 = arith.constant 1.280000e+02 : f32
    %272 = vector.broadcast %cst_104 : f32 to vector<16x1xf32>
    %273 = arith.divf %271, %272 : vector<16x1xf32>
    %274 = vector.broadcast %266 : vector<16x1xf32> to vector<16x128xf32>
    %275 = arith.subf %258, %274 : vector<16x128xf32>
    %cst_105 = arith.constant 9.99999996E-13 : f32
    %276 = vector.broadcast %cst_105 : f32 to vector<16x1xf32>
    %277 = arith.addf %273, %276 : vector<16x1xf32>
    %278 = math.rsqrt %277 : vector<16x1xf32>
    %279 = vector.broadcast %278 : vector<16x1xf32> to vector<16x128xf32>
    %280 = arith.mulf %275, %279 : vector<16x128xf32>
    %281 = vector.broadcast %260 : vector<1x128xf32> to vector<16x128xf32>
    %282 = arith.mulf %280, %281 : vector<16x128xf32>
    %283 = vector.broadcast %262 : vector<1x128xf32> to vector<16x128xf32>
    %284 = arith.addf %282, %283 : vector<16x128xf32>
    %285 = arith.addf %26, %284 : vector<16x128xf32>
    %c1 = arith.constant 1 : index
    %c0_106 = arith.constant 0 : index
    %c0_107 = arith.constant 0 : index
    %286 = vector.load %arg4[%c1, %c0_106, %c0_107] : memref<4x128x384xf32, #tpu.memory_space<vmem>>, vector<1x128x384xf32>
    %287 = vector.shape_cast %286 : vector<1x128x384xf32> to vector<128x384xf32>
    %cst_108 = arith.constant dense<0.000000e+00> : vector<16x384xf32>
    %288 = tpu.matmul %284, %287, %cst_108 {dimension_numbers = #tpu.dot_dimension_numbers<[1], [0], [0], [1], [0, 0, 1, 1], [], []>} : vector<16x128xf32>, vector<128x384xf32>, vector<16x384xf32> -> vector<16x384xf32>
    %c1_109 = arith.constant 1 : index
    %c0_110 = arith.constant 0 : index
    %c0_111 = arith.constant 0 : index
    %289 = vector.load %arg5[%c1_109, %c0_110, %c0_111] : memref<4x1x384xf32, #tpu.memory_space<vmem>>, vector<1x1x384xf32>
    %290 = vector.shape_cast %289 : vector<1x1x384xf32> to vector<1x384xf32>
    %291 = vector.broadcast %290 : vector<1x384xf32> to vector<16x384xf32>
    %292 = arith.addf %288, %291 : vector<16x384xf32>
    %293 = vector.extract_strided_slice %292 {offsets = [0, 0], sizes = [8, 128], strides = [1, 1]} : vector<16x384xf32> to vector<8x128xf32>
    %294 = vector.extract_strided_slice %292 {offsets = [0, 128], sizes = [8, 128], strides = [1, 1]} : vector<16x384xf32> to vector<8x128xf32>
    %295 = vector.extract_strided_slice %292 {offsets = [0, 256], sizes = [8, 128], strides = [1, 1]} : vector<16x384xf32> to vector<8x128xf32>
    %296 = vector.extract_strided_slice %0 {offsets = [0, 0], sizes = [1, 8], strides = [1, 1]} : vector<2x8xf32> to vector<1x8xf32>
    %297 = vector.extract_strided_slice %293 {offsets = [0, 0], sizes = [8, 32], strides = [1, 1]} : vector<8x128xf32> to vector<8x32xf32>
    %298 = vector.extract_strided_slice %294 {offsets = [0, 0], sizes = [8, 32], strides = [1, 1]} : vector<8x128xf32> to vector<8x32xf32>
    %299 = vector.extract_strided_slice %295 {offsets = [0, 0], sizes = [8, 32], strides = [1, 1]} : vector<8x128xf32> to vector<8x32xf32>
    %300 = tpu.transpose %298, [1, 0] : vector<8x32xf32> -> vector<32x8xf32>
    %cst_112 = arith.constant dense<0.000000e+00> : vector<8x8xf32>
    %301 = tpu.matmul %297, %300, %cst_112 {dimension_numbers = #tpu.dot_dimension_numbers<[1], [0], [0], [1], [0, 0, 1, 1], [], []>} : vector<8x32xf32>, vector<32x8xf32>, vector<8x8xf32> -> vector<8x8xf32>
    %cst_113 = arith.constant 0.176776692 : f32
    %302 = vector.broadcast %cst_113 : f32 to vector<8x8xf32>
    %303 = arith.mulf %301, %302 : vector<8x8xf32>
    %304 = vector.broadcast %296 : vector<1x8xf32> to vector<8x8xf32>
    %305 = arith.addf %303, %304 : vector<8x8xf32>
    %cst_114 = arith.constant dense<0xFF800000> : vector<8xf32>
    %306 = vector.multi_reduction <maximumf>, %305, %cst_114 [1] : vector<8x8xf32> to vector<8xf32>
    %307 = vector.shape_cast %306 : vector<8xf32> to vector<8x1xf32>
    %308 = vector.broadcast %307 : vector<8x1xf32> to vector<8x8xf32>
    %309 = arith.subf %305, %308 : vector<8x8xf32>
    %310 = math.exp %309 : vector<8x8xf32>
    %cst_115 = arith.constant dense<0.000000e+00> : vector<8xf32>
    %311 = vector.multi_reduction <add>, %310, %cst_115 [1] : vector<8x8xf32> to vector<8xf32>
    %312 = vector.shape_cast %311 : vector<8xf32> to vector<8x1xf32>
    %313 = vector.broadcast %312 : vector<8x1xf32> to vector<8x8xf32>
    %314 = arith.divf %310, %313 : vector<8x8xf32>
    %cst_116 = arith.constant dense<0.000000e+00> : vector<8x32xf32>
    %315 = tpu.matmul %314, %299, %cst_116 {dimension_numbers = #tpu.dot_dimension_numbers<[1], [0], [0], [1], [0, 0, 1, 1], [], []>} : vector<8x8xf32>, vector<8x32xf32>, vector<8x32xf32> -> vector<8x32xf32>
    %316 = vector.extract_strided_slice %293 {offsets = [0, 32], sizes = [8, 32], strides = [1, 1]} : vector<8x128xf32> to vector<8x32xf32>
    %317 = vector.extract_strided_slice %294 {offsets = [0, 32], sizes = [8, 32], strides = [1, 1]} : vector<8x128xf32> to vector<8x32xf32>
    %318 = vector.extract_strided_slice %295 {offsets = [0, 32], sizes = [8, 32], strides = [1, 1]} : vector<8x128xf32> to vector<8x32xf32>
    %319 = tpu.transpose %317, [1, 0] : vector<8x32xf32> -> vector<32x8xf32>
    %cst_117 = arith.constant dense<0.000000e+00> : vector<8x8xf32>
    %320 = tpu.matmul %316, %319, %cst_117 {dimension_numbers = #tpu.dot_dimension_numbers<[1], [0], [0], [1], [0, 0, 1, 1], [], []>} : vector<8x32xf32>, vector<32x8xf32>, vector<8x8xf32> -> vector<8x8xf32>
    %cst_118 = arith.constant 0.176776692 : f32
    %321 = vector.broadcast %cst_118 : f32 to vector<8x8xf32>
    %322 = arith.mulf %320, %321 : vector<8x8xf32>
    %323 = vector.broadcast %296 : vector<1x8xf32> to vector<8x8xf32>
    %324 = arith.addf %322, %323 : vector<8x8xf32>
    %cst_119 = arith.constant dense<0xFF800000> : vector<8xf32>
    %325 = vector.multi_reduction <maximumf>, %324, %cst_119 [1] : vector<8x8xf32> to vector<8xf32>
    %326 = vector.shape_cast %325 : vector<8xf32> to vector<8x1xf32>
    %327 = vector.broadcast %326 : vector<8x1xf32> to vector<8x8xf32>
    %328 = arith.subf %324, %327 : vector<8x8xf32>
    %329 = math.exp %328 : vector<8x8xf32>
    %cst_120 = arith.constant dense<0.000000e+00> : vector<8xf32>
    %330 = vector.multi_reduction <add>, %329, %cst_120 [1] : vector<8x8xf32> to vector<8xf32>
    %331 = vector.shape_cast %330 : vector<8xf32> to vector<8x1xf32>
    %332 = vector.broadcast %331 : vector<8x1xf32> to vector<8x8xf32>
    %333 = arith.divf %329, %332 : vector<8x8xf32>
    %cst_121 = arith.constant dense<0.000000e+00> : vector<8x32xf32>
    %334 = tpu.matmul %333, %318, %cst_121 {dimension_numbers = #tpu.dot_dimension_numbers<[1], [0], [0], [1], [0, 0, 1, 1], [], []>} : vector<8x8xf32>, vector<8x32xf32>, vector<8x32xf32> -> vector<8x32xf32>
    %335 = vector.extract_strided_slice %293 {offsets = [0, 64], sizes = [8, 32], strides = [1, 1]} : vector<8x128xf32> to vector<8x32xf32>
    %336 = vector.extract_strided_slice %294 {offsets = [0, 64], sizes = [8, 32], strides = [1, 1]} : vector<8x128xf32> to vector<8x32xf32>
    %337 = vector.extract_strided_slice %295 {offsets = [0, 64], sizes = [8, 32], strides = [1, 1]} : vector<8x128xf32> to vector<8x32xf32>
    %338 = tpu.transpose %336, [1, 0] : vector<8x32xf32> -> vector<32x8xf32>
    %cst_122 = arith.constant dense<0.000000e+00> : vector<8x8xf32>
    %339 = tpu.matmul %335, %338, %cst_122 {dimension_numbers = #tpu.dot_dimension_numbers<[1], [0], [0], [1], [0, 0, 1, 1], [], []>} : vector<8x32xf32>, vector<32x8xf32>, vector<8x8xf32> -> vector<8x8xf32>
    %cst_123 = arith.constant 0.176776692 : f32
    %340 = vector.broadcast %cst_123 : f32 to vector<8x8xf32>
    %341 = arith.mulf %339, %340 : vector<8x8xf32>
    %342 = vector.broadcast %296 : vector<1x8xf32> to vector<8x8xf32>
    %343 = arith.addf %341, %342 : vector<8x8xf32>
    %cst_124 = arith.constant dense<0xFF800000> : vector<8xf32>
    %344 = vector.multi_reduction <maximumf>, %343, %cst_124 [1] : vector<8x8xf32> to vector<8xf32>
    %345 = vector.shape_cast %344 : vector<8xf32> to vector<8x1xf32>
    %346 = vector.broadcast %345 : vector<8x1xf32> to vector<8x8xf32>
    %347 = arith.subf %343, %346 : vector<8x8xf32>
    %348 = math.exp %347 : vector<8x8xf32>
    %cst_125 = arith.constant dense<0.000000e+00> : vector<8xf32>
    %349 = vector.multi_reduction <add>, %348, %cst_125 [1] : vector<8x8xf32> to vector<8xf32>
    %350 = vector.shape_cast %349 : vector<8xf32> to vector<8x1xf32>
    %351 = vector.broadcast %350 : vector<8x1xf32> to vector<8x8xf32>
    %352 = arith.divf %348, %351 : vector<8x8xf32>
    %cst_126 = arith.constant dense<0.000000e+00> : vector<8x32xf32>
    %353 = tpu.matmul %352, %337, %cst_126 {dimension_numbers = #tpu.dot_dimension_numbers<[1], [0], [0], [1], [0, 0, 1, 1], [], []>} : vector<8x8xf32>, vector<8x32xf32>, vector<8x32xf32> -> vector<8x32xf32>
    %354 = vector.extract_strided_slice %293 {offsets = [0, 96], sizes = [8, 32], strides = [1, 1]} : vector<8x128xf32> to vector<8x32xf32>
    %355 = vector.extract_strided_slice %294 {offsets = [0, 96], sizes = [8, 32], strides = [1, 1]} : vector<8x128xf32> to vector<8x32xf32>
    %356 = vector.extract_strided_slice %295 {offsets = [0, 96], sizes = [8, 32], strides = [1, 1]} : vector<8x128xf32> to vector<8x32xf32>
    %357 = tpu.transpose %355, [1, 0] : vector<8x32xf32> -> vector<32x8xf32>
    %cst_127 = arith.constant dense<0.000000e+00> : vector<8x8xf32>
    %358 = tpu.matmul %354, %357, %cst_127 {dimension_numbers = #tpu.dot_dimension_numbers<[1], [0], [0], [1], [0, 0, 1, 1], [], []>} : vector<8x32xf32>, vector<32x8xf32>, vector<8x8xf32> -> vector<8x8xf32>
    %cst_128 = arith.constant 0.176776692 : f32
    %359 = vector.broadcast %cst_128 : f32 to vector<8x8xf32>
    %360 = arith.mulf %358, %359 : vector<8x8xf32>
    %361 = vector.broadcast %296 : vector<1x8xf32> to vector<8x8xf32>
    %362 = arith.addf %360, %361 : vector<8x8xf32>
    %cst_129 = arith.constant dense<0xFF800000> : vector<8xf32>
    %363 = vector.multi_reduction <maximumf>, %362, %cst_129 [1] : vector<8x8xf32> to vector<8xf32>
    %364 = vector.shape_cast %363 : vector<8xf32> to vector<8x1xf32>
    %365 = vector.broadcast %364 : vector<8x1xf32> to vector<8x8xf32>
    %366 = arith.subf %362, %365 : vector<8x8xf32>
    %367 = math.exp %366 : vector<8x8xf32>
    %cst_130 = arith.constant dense<0.000000e+00> : vector<8xf32>
    %368 = vector.multi_reduction <add>, %367, %cst_130 [1] : vector<8x8xf32> to vector<8xf32>
    %369 = vector.shape_cast %368 : vector<8xf32> to vector<8x1xf32>
    %370 = vector.broadcast %369 : vector<8x1xf32> to vector<8x8xf32>
    %371 = arith.divf %367, %370 : vector<8x8xf32>
    %cst_131 = arith.constant dense<0.000000e+00> : vector<8x32xf32>
    %372 = tpu.matmul %371, %356, %cst_131 {dimension_numbers = #tpu.dot_dimension_numbers<[1], [0], [0], [1], [0, 0, 1, 1], [], []>} : vector<8x8xf32>, vector<8x32xf32>, vector<8x32xf32> -> vector<8x32xf32>
    %373 = tpu.concatenate %315, %334, %353, %372 in 1 : vector<8x32xf32>, vector<8x32xf32>, vector<8x32xf32>, vector<8x32xf32> -> vector<8x128xf32>
    %374 = vector.extract_strided_slice %292 {offsets = [8, 0], sizes = [8, 128], strides = [1, 1]} : vector<16x384xf32> to vector<8x128xf32>
    %375 = vector.extract_strided_slice %292 {offsets = [8, 128], sizes = [8, 128], strides = [1, 1]} : vector<16x384xf32> to vector<8x128xf32>
    %376 = vector.extract_strided_slice %292 {offsets = [8, 256], sizes = [8, 128], strides = [1, 1]} : vector<16x384xf32> to vector<8x128xf32>
    %377 = vector.extract_strided_slice %0 {offsets = [1, 0], sizes = [1, 8], strides = [1, 1]} : vector<2x8xf32> to vector<1x8xf32>
    %378 = vector.extract_strided_slice %374 {offsets = [0, 0], sizes = [8, 32], strides = [1, 1]} : vector<8x128xf32> to vector<8x32xf32>
    %379 = vector.extract_strided_slice %375 {offsets = [0, 0], sizes = [8, 32], strides = [1, 1]} : vector<8x128xf32> to vector<8x32xf32>
    %380 = vector.extract_strided_slice %376 {offsets = [0, 0], sizes = [8, 32], strides = [1, 1]} : vector<8x128xf32> to vector<8x32xf32>
    %381 = tpu.transpose %379, [1, 0] : vector<8x32xf32> -> vector<32x8xf32>
    %cst_132 = arith.constant dense<0.000000e+00> : vector<8x8xf32>
    %382 = tpu.matmul %378, %381, %cst_132 {dimension_numbers = #tpu.dot_dimension_numbers<[1], [0], [0], [1], [0, 0, 1, 1], [], []>} : vector<8x32xf32>, vector<32x8xf32>, vector<8x8xf32> -> vector<8x8xf32>
    %cst_133 = arith.constant 0.176776692 : f32
    %383 = vector.broadcast %cst_133 : f32 to vector<8x8xf32>
    %384 = arith.mulf %382, %383 : vector<8x8xf32>
    %385 = vector.broadcast %377 : vector<1x8xf32> to vector<8x8xf32>
    %386 = arith.addf %384, %385 : vector<8x8xf32>
    %cst_134 = arith.constant dense<0xFF800000> : vector<8xf32>
    %387 = vector.multi_reduction <maximumf>, %386, %cst_134 [1] : vector<8x8xf32> to vector<8xf32>
    %388 = vector.shape_cast %387 : vector<8xf32> to vector<8x1xf32>
    %389 = vector.broadcast %388 : vector<8x1xf32> to vector<8x8xf32>
    %390 = arith.subf %386, %389 : vector<8x8xf32>
    %391 = math.exp %390 : vector<8x8xf32>
    %cst_135 = arith.constant dense<0.000000e+00> : vector<8xf32>
    %392 = vector.multi_reduction <add>, %391, %cst_135 [1] : vector<8x8xf32> to vector<8xf32>
    %393 = vector.shape_cast %392 : vector<8xf32> to vector<8x1xf32>
    %394 = vector.broadcast %393 : vector<8x1xf32> to vector<8x8xf32>
    %395 = arith.divf %391, %394 : vector<8x8xf32>
    %cst_136 = arith.constant dense<0.000000e+00> : vector<8x32xf32>
    %396 = tpu.matmul %395, %380, %cst_136 {dimension_numbers = #tpu.dot_dimension_numbers<[1], [0], [0], [1], [0, 0, 1, 1], [], []>} : vector<8x8xf32>, vector<8x32xf32>, vector<8x32xf32> -> vector<8x32xf32>
    %397 = vector.extract_strided_slice %374 {offsets = [0, 32], sizes = [8, 32], strides = [1, 1]} : vector<8x128xf32> to vector<8x32xf32>
    %398 = vector.extract_strided_slice %375 {offsets = [0, 32], sizes = [8, 32], strides = [1, 1]} : vector<8x128xf32> to vector<8x32xf32>
    %399 = vector.extract_strided_slice %376 {offsets = [0, 32], sizes = [8, 32], strides = [1, 1]} : vector<8x128xf32> to vector<8x32xf32>
    %400 = tpu.transpose %398, [1, 0] : vector<8x32xf32> -> vector<32x8xf32>
    %cst_137 = arith.constant dense<0.000000e+00> : vector<8x8xf32>
    %401 = tpu.matmul %397, %400, %cst_137 {dimension_numbers = #tpu.dot_dimension_numbers<[1], [0], [0], [1], [0, 0, 1, 1], [], []>} : vector<8x32xf32>, vector<32x8xf32>, vector<8x8xf32> -> vector<8x8xf32>
    %cst_138 = arith.constant 0.176776692 : f32
    %402 = vector.broadcast %cst_138 : f32 to vector<8x8xf32>
    %403 = arith.mulf %401, %402 : vector<8x8xf32>
    %404 = vector.broadcast %377 : vector<1x8xf32> to vector<8x8xf32>
    %405 = arith.addf %403, %404 : vector<8x8xf32>
    %cst_139 = arith.constant dense<0xFF800000> : vector<8xf32>
    %406 = vector.multi_reduction <maximumf>, %405, %cst_139 [1] : vector<8x8xf32> to vector<8xf32>
    %407 = vector.shape_cast %406 : vector<8xf32> to vector<8x1xf32>
    %408 = vector.broadcast %407 : vector<8x1xf32> to vector<8x8xf32>
    %409 = arith.subf %405, %408 : vector<8x8xf32>
    %410 = math.exp %409 : vector<8x8xf32>
    %cst_140 = arith.constant dense<0.000000e+00> : vector<8xf32>
    %411 = vector.multi_reduction <add>, %410, %cst_140 [1] : vector<8x8xf32> to vector<8xf32>
    %412 = vector.shape_cast %411 : vector<8xf32> to vector<8x1xf32>
    %413 = vector.broadcast %412 : vector<8x1xf32> to vector<8x8xf32>
    %414 = arith.divf %410, %413 : vector<8x8xf32>
    %cst_141 = arith.constant dense<0.000000e+00> : vector<8x32xf32>
    %415 = tpu.matmul %414, %399, %cst_141 {dimension_numbers = #tpu.dot_dimension_numbers<[1], [0], [0], [1], [0, 0, 1, 1], [], []>} : vector<8x8xf32>, vector<8x32xf32>, vector<8x32xf32> -> vector<8x32xf32>
    %416 = vector.extract_strided_slice %374 {offsets = [0, 64], sizes = [8, 32], strides = [1, 1]} : vector<8x128xf32> to vector<8x32xf32>
    %417 = vector.extract_strided_slice %375 {offsets = [0, 64], sizes = [8, 32], strides = [1, 1]} : vector<8x128xf32> to vector<8x32xf32>
    %418 = vector.extract_strided_slice %376 {offsets = [0, 64], sizes = [8, 32], strides = [1, 1]} : vector<8x128xf32> to vector<8x32xf32>
    %419 = tpu.transpose %417, [1, 0] : vector<8x32xf32> -> vector<32x8xf32>
    %cst_142 = arith.constant dense<0.000000e+00> : vector<8x8xf32>
    %420 = tpu.matmul %416, %419, %cst_142 {dimension_numbers = #tpu.dot_dimension_numbers<[1], [0], [0], [1], [0, 0, 1, 1], [], []>} : vector<8x32xf32>, vector<32x8xf32>, vector<8x8xf32> -> vector<8x8xf32>
    %cst_143 = arith.constant 0.176776692 : f32
    %421 = vector.broadcast %cst_143 : f32 to vector<8x8xf32>
    %422 = arith.mulf %420, %421 : vector<8x8xf32>
    %423 = vector.broadcast %377 : vector<1x8xf32> to vector<8x8xf32>
    %424 = arith.addf %422, %423 : vector<8x8xf32>
    %cst_144 = arith.constant dense<0xFF800000> : vector<8xf32>
    %425 = vector.multi_reduction <maximumf>, %424, %cst_144 [1] : vector<8x8xf32> to vector<8xf32>
    %426 = vector.shape_cast %425 : vector<8xf32> to vector<8x1xf32>
    %427 = vector.broadcast %426 : vector<8x1xf32> to vector<8x8xf32>
    %428 = arith.subf %424, %427 : vector<8x8xf32>
    %429 = math.exp %428 : vector<8x8xf32>
    %cst_145 = arith.constant dense<0.000000e+00> : vector<8xf32>
    %430 = vector.multi_reduction <add>, %429, %cst_145 [1] : vector<8x8xf32> to vector<8xf32>
    %431 = vector.shape_cast %430 : vector<8xf32> to vector<8x1xf32>
    %432 = vector.broadcast %431 : vector<8x1xf32> to vector<8x8xf32>
    %433 = arith.divf %429, %432 : vector<8x8xf32>
    %cst_146 = arith.constant dense<0.000000e+00> : vector<8x32xf32>
    %434 = tpu.matmul %433, %418, %cst_146 {dimension_numbers = #tpu.dot_dimension_numbers<[1], [0], [0], [1], [0, 0, 1, 1], [], []>} : vector<8x8xf32>, vector<8x32xf32>, vector<8x32xf32> -> vector<8x32xf32>
    %435 = vector.extract_strided_slice %374 {offsets = [0, 96], sizes = [8, 32], strides = [1, 1]} : vector<8x128xf32> to vector<8x32xf32>
    %436 = vector.extract_strided_slice %375 {offsets = [0, 96], sizes = [8, 32], strides = [1, 1]} : vector<8x128xf32> to vector<8x32xf32>
    %437 = vector.extract_strided_slice %376 {offsets = [0, 96], sizes = [8, 32], strides = [1, 1]} : vector<8x128xf32> to vector<8x32xf32>
    %438 = tpu.transpose %436, [1, 0] : vector<8x32xf32> -> vector<32x8xf32>
    %cst_147 = arith.constant dense<0.000000e+00> : vector<8x8xf32>
    %439 = tpu.matmul %435, %438, %cst_147 {dimension_numbers = #tpu.dot_dimension_numbers<[1], [0], [0], [1], [0, 0, 1, 1], [], []>} : vector<8x32xf32>, vector<32x8xf32>, vector<8x8xf32> -> vector<8x8xf32>
    %cst_148 = arith.constant 0.176776692 : f32
    %440 = vector.broadcast %cst_148 : f32 to vector<8x8xf32>
    %441 = arith.mulf %439, %440 : vector<8x8xf32>
    %442 = vector.broadcast %377 : vector<1x8xf32> to vector<8x8xf32>
    %443 = arith.addf %441, %442 : vector<8x8xf32>
    %cst_149 = arith.constant dense<0xFF800000> : vector<8xf32>
    %444 = vector.multi_reduction <maximumf>, %443, %cst_149 [1] : vector<8x8xf32> to vector<8xf32>
    %445 = vector.shape_cast %444 : vector<8xf32> to vector<8x1xf32>
    %446 = vector.broadcast %445 : vector<8x1xf32> to vector<8x8xf32>
    %447 = arith.subf %443, %446 : vector<8x8xf32>
    %448 = math.exp %447 : vector<8x8xf32>
    %cst_150 = arith.constant dense<0.000000e+00> : vector<8xf32>
    %449 = vector.multi_reduction <add>, %448, %cst_150 [1] : vector<8x8xf32> to vector<8xf32>
    %450 = vector.shape_cast %449 : vector<8xf32> to vector<8x1xf32>
    %451 = vector.broadcast %450 : vector<8x1xf32> to vector<8x8xf32>
    %452 = arith.divf %448, %451 : vector<8x8xf32>
    %cst_151 = arith.constant dense<0.000000e+00> : vector<8x32xf32>
    %453 = tpu.matmul %452, %437, %cst_151 {dimension_numbers = #tpu.dot_dimension_numbers<[1], [0], [0], [1], [0, 0, 1, 1], [], []>} : vector<8x8xf32>, vector<8x32xf32>, vector<8x32xf32> -> vector<8x32xf32>
    %454 = tpu.concatenate %396, %415, %434, %453 in 1 : vector<8x32xf32>, vector<8x32xf32>, vector<8x32xf32>, vector<8x32xf32> -> vector<8x128xf32>
    %455 = tpu.concatenate %373, %454 in 0 : vector<8x128xf32>, vector<8x128xf32> -> vector<16x128xf32>
    %c1_152 = arith.constant 1 : index
    %c0_153 = arith.constant 0 : index
    %c0_154 = arith.constant 0 : index
    %456 = vector.load %arg6[%c1_152, %c0_153, %c0_154] : memref<4x128x128xf32, #tpu.memory_space<vmem>>, vector<1x128x128xf32>
    %457 = vector.shape_cast %456 : vector<1x128x128xf32> to vector<128x128xf32>
    %cst_155 = arith.constant dense<0.000000e+00> : vector<16x128xf32>
    %458 = tpu.matmul %455, %457, %cst_155 {dimension_numbers = #tpu.dot_dimension_numbers<[1], [0], [0], [1], [0, 0, 1, 1], [], []>} : vector<16x128xf32>, vector<128x128xf32>, vector<16x128xf32> -> vector<16x128xf32>
    %c1_156 = arith.constant 1 : index
    %c0_157 = arith.constant 0 : index
    %c0_158 = arith.constant 0 : index
    %459 = vector.load %arg7[%c1_156, %c0_157, %c0_158] : memref<4x1x128xf32, #tpu.memory_space<vmem>>, vector<1x1x128xf32>
    %460 = vector.shape_cast %459 : vector<1x1x128xf32> to vector<1x128xf32>
    %461 = vector.broadcast %460 : vector<1x128xf32> to vector<16x128xf32>
    %462 = arith.addf %458, %461 : vector<16x128xf32>
    %463 = arith.addf %462, %284 : vector<16x128xf32>
    %c1_159 = arith.constant 1 : index
    %c0_160 = arith.constant 0 : index
    %c0_161 = arith.constant 0 : index
    %464 = vector.load %arg8[%c1_159, %c0_160, %c0_161] : memref<4x1x128xf32, #tpu.memory_space<vmem>>, vector<1x1x128xf32>
    %465 = vector.shape_cast %464 : vector<1x1x128xf32> to vector<1x128xf32>
    %c1_162 = arith.constant 1 : index
    %c0_163 = arith.constant 0 : index
    %c0_164 = arith.constant 0 : index
    %466 = vector.load %arg9[%c1_162, %c0_163, %c0_164] : memref<4x1x128xf32, #tpu.memory_space<vmem>>, vector<1x1x128xf32>
    %467 = vector.shape_cast %466 : vector<1x1x128xf32> to vector<1x128xf32>
    %cst_165 = arith.constant dense<0.000000e+00> : vector<16xf32>
    %468 = vector.multi_reduction <add>, %463, %cst_165 [1] : vector<16x128xf32> to vector<16xf32>
    %469 = vector.shape_cast %468 : vector<16xf32> to vector<16x1xf32>
    %cst_166 = arith.constant 1.280000e+02 : f32
    %470 = vector.broadcast %cst_166 : f32 to vector<16x1xf32>
    %471 = arith.divf %469, %470 : vector<16x1xf32>
    %472 = vector.broadcast %471 : vector<16x1xf32> to vector<16x128xf32>
    %473 = arith.subf %463, %472 : vector<16x128xf32>
    %474 = arith.mulf %473, %473 : vector<16x128xf32>
    %cst_167 = arith.constant dense<0.000000e+00> : vector<16xf32>
    %475 = vector.multi_reduction <add>, %474, %cst_167 [1] : vector<16x128xf32> to vector<16xf32>
    %476 = vector.shape_cast %475 : vector<16xf32> to vector<16x1xf32>
    %cst_168 = arith.constant 1.280000e+02 : f32
    %477 = vector.broadcast %cst_168 : f32 to vector<16x1xf32>
    %478 = arith.divf %476, %477 : vector<16x1xf32>
    %479 = vector.broadcast %471 : vector<16x1xf32> to vector<16x128xf32>
    %480 = arith.subf %463, %479 : vector<16x128xf32>
    %cst_169 = arith.constant 9.99999996E-13 : f32
    %481 = vector.broadcast %cst_169 : f32 to vector<16x1xf32>
    %482 = arith.addf %478, %481 : vector<16x1xf32>
    %483 = math.rsqrt %482 : vector<16x1xf32>
    %484 = vector.broadcast %483 : vector<16x1xf32> to vector<16x128xf32>
    %485 = arith.mulf %480, %484 : vector<16x128xf32>
    %486 = vector.broadcast %465 : vector<1x128xf32> to vector<16x128xf32>
    %487 = arith.mulf %485, %486 : vector<16x128xf32>
    %488 = vector.broadcast %467 : vector<1x128xf32> to vector<16x128xf32>
    %489 = arith.addf %487, %488 : vector<16x128xf32>
    %c1_170 = arith.constant 1 : index
    %c0_171 = arith.constant 0 : index
    %c0_172 = arith.constant 0 : index
    %490 = vector.load %arg10[%c1_170, %c0_171, %c0_172] : memref<4x128x256xf32, #tpu.memory_space<vmem>>, vector<1x128x256xf32>
    %491 = vector.shape_cast %490 : vector<1x128x256xf32> to vector<128x256xf32>
    %cst_173 = arith.constant dense<0.000000e+00> : vector<16x256xf32>
    %492 = tpu.matmul %489, %491, %cst_173 {dimension_numbers = #tpu.dot_dimension_numbers<[1], [0], [0], [1], [0, 0, 1, 1], [], []>} : vector<16x128xf32>, vector<128x256xf32>, vector<16x256xf32> -> vector<16x256xf32>
    %c1_174 = arith.constant 1 : index
    %c0_175 = arith.constant 0 : index
    %c0_176 = arith.constant 0 : index
    %493 = vector.load %arg11[%c1_174, %c0_175, %c0_176] : memref<4x1x256xf32, #tpu.memory_space<vmem>>, vector<1x1x256xf32>
    %494 = vector.shape_cast %493 : vector<1x1x256xf32> to vector<1x256xf32>
    %495 = vector.broadcast %494 : vector<1x256xf32> to vector<16x256xf32>
    %496 = arith.addf %492, %495 : vector<16x256xf32>
    %497 = arith.mulf %496, %496 : vector<16x256xf32>
    %498 = arith.mulf %496, %497 : vector<16x256xf32>
    %cst_177 = arith.constant 4.471500e-02 : f32
    %499 = vector.broadcast %cst_177 : f32 to vector<16x256xf32>
    %500 = arith.mulf %499, %498 : vector<16x256xf32>
    %501 = arith.addf %496, %500 : vector<16x256xf32>
    %cst_178 = arith.constant 0.797884583 : f32
    %502 = vector.broadcast %cst_178 : f32 to vector<16x256xf32>
    %503 = arith.mulf %502, %501 : vector<16x256xf32>
    %504 = math.tanh %503 : vector<16x256xf32>
    %cst_179 = arith.constant 1.000000e+00 : f32
    %505 = vector.broadcast %cst_179 : f32 to vector<16x256xf32>
    %506 = arith.addf %505, %504 : vector<16x256xf32>
    %cst_180 = arith.constant 5.000000e-01 : f32
    %507 = vector.broadcast %cst_180 : f32 to vector<16x256xf32>
    %508 = arith.mulf %507, %506 : vector<16x256xf32>
    %509 = arith.mulf %496, %508 : vector<16x256xf32>
    %c1_181 = arith.constant 1 : index
    %c0_182 = arith.constant 0 : index
    %c0_183 = arith.constant 0 : index
    %510 = vector.load %arg12[%c1_181, %c0_182, %c0_183] : memref<4x256x128xf32, #tpu.memory_space<vmem>>, vector<1x256x128xf32>
    %511 = vector.shape_cast %510 : vector<1x256x128xf32> to vector<256x128xf32>
    %cst_184 = arith.constant dense<0.000000e+00> : vector<16x128xf32>
    %512 = tpu.matmul %509, %511, %cst_184 {dimension_numbers = #tpu.dot_dimension_numbers<[1], [0], [0], [1], [0, 0, 1, 1], [], []>} : vector<16x256xf32>, vector<256x128xf32>, vector<16x128xf32> -> vector<16x128xf32>
    %c1_185 = arith.constant 1 : index
    %c0_186 = arith.constant 0 : index
    %c0_187 = arith.constant 0 : index
    %513 = vector.load %arg13[%c1_185, %c0_186, %c0_187] : memref<4x1x128xf32, #tpu.memory_space<vmem>>, vector<1x1x128xf32>
    %514 = vector.shape_cast %513 : vector<1x1x128xf32> to vector<1x128xf32>
    %515 = vector.broadcast %514 : vector<1x128xf32> to vector<16x128xf32>
    %516 = arith.addf %512, %515 : vector<16x128xf32>
    %517 = arith.addf %516, %489 : vector<16x128xf32>
    %c1_188 = arith.constant 1 : index
    %c0_189 = arith.constant 0 : index
    %c0_190 = arith.constant 0 : index
    %518 = vector.load %arg14[%c1_188, %c0_189, %c0_190] : memref<4x1x128xf32, #tpu.memory_space<vmem>>, vector<1x1x128xf32>
    %519 = vector.shape_cast %518 : vector<1x1x128xf32> to vector<1x128xf32>
    %c1_191 = arith.constant 1 : index
    %c0_192 = arith.constant 0 : index
    %c0_193 = arith.constant 0 : index
    %520 = vector.load %arg15[%c1_191, %c0_192, %c0_193] : memref<4x1x128xf32, #tpu.memory_space<vmem>>, vector<1x1x128xf32>
    %521 = vector.shape_cast %520 : vector<1x1x128xf32> to vector<1x128xf32>
    %cst_194 = arith.constant dense<0.000000e+00> : vector<16xf32>
    %522 = vector.multi_reduction <add>, %517, %cst_194 [1] : vector<16x128xf32> to vector<16xf32>
    %523 = vector.shape_cast %522 : vector<16xf32> to vector<16x1xf32>
    %cst_195 = arith.constant 1.280000e+02 : f32
    %524 = vector.broadcast %cst_195 : f32 to vector<16x1xf32>
    %525 = arith.divf %523, %524 : vector<16x1xf32>
    %526 = vector.broadcast %525 : vector<16x1xf32> to vector<16x128xf32>
    %527 = arith.subf %517, %526 : vector<16x128xf32>
    %528 = arith.mulf %527, %527 : vector<16x128xf32>
    %cst_196 = arith.constant dense<0.000000e+00> : vector<16xf32>
    %529 = vector.multi_reduction <add>, %528, %cst_196 [1] : vector<16x128xf32> to vector<16xf32>
    %530 = vector.shape_cast %529 : vector<16xf32> to vector<16x1xf32>
    %cst_197 = arith.constant 1.280000e+02 : f32
    %531 = vector.broadcast %cst_197 : f32 to vector<16x1xf32>
    %532 = arith.divf %530, %531 : vector<16x1xf32>
    %533 = vector.broadcast %525 : vector<16x1xf32> to vector<16x128xf32>
    %534 = arith.subf %517, %533 : vector<16x128xf32>
    %cst_198 = arith.constant 9.99999996E-13 : f32
    %535 = vector.broadcast %cst_198 : f32 to vector<16x1xf32>
    %536 = arith.addf %532, %535 : vector<16x1xf32>
    %537 = math.rsqrt %536 : vector<16x1xf32>
    %538 = vector.broadcast %537 : vector<16x1xf32> to vector<16x128xf32>
    %539 = arith.mulf %534, %538 : vector<16x128xf32>
    %540 = vector.broadcast %519 : vector<1x128xf32> to vector<16x128xf32>
    %541 = arith.mulf %539, %540 : vector<16x128xf32>
    %542 = vector.broadcast %521 : vector<1x128xf32> to vector<16x128xf32>
    %543 = arith.addf %541, %542 : vector<16x128xf32>
    %544 = arith.addf %285, %543 : vector<16x128xf32>
    %c2 = arith.constant 2 : index
    %c0_199 = arith.constant 0 : index
    %c0_200 = arith.constant 0 : index
    %545 = vector.load %arg4[%c2, %c0_199, %c0_200] : memref<4x128x384xf32, #tpu.memory_space<vmem>>, vector<1x128x384xf32>
    %546 = vector.shape_cast %545 : vector<1x128x384xf32> to vector<128x384xf32>
    %cst_201 = arith.constant dense<0.000000e+00> : vector<16x384xf32>
    %547 = tpu.matmul %543, %546, %cst_201 {dimension_numbers = #tpu.dot_dimension_numbers<[1], [0], [0], [1], [0, 0, 1, 1], [], []>} : vector<16x128xf32>, vector<128x384xf32>, vector<16x384xf32> -> vector<16x384xf32>
    %c2_202 = arith.constant 2 : index
    %c0_203 = arith.constant 0 : index
    %c0_204 = arith.constant 0 : index
    %548 = vector.load %arg5[%c2_202, %c0_203, %c0_204] : memref<4x1x384xf32, #tpu.memory_space<vmem>>, vector<1x1x384xf32>
    %549 = vector.shape_cast %548 : vector<1x1x384xf32> to vector<1x384xf32>
    %550 = vector.broadcast %549 : vector<1x384xf32> to vector<16x384xf32>
    %551 = arith.addf %547, %550 : vector<16x384xf32>
    %552 = vector.extract_strided_slice %551 {offsets = [0, 0], sizes = [8, 128], strides = [1, 1]} : vector<16x384xf32> to vector<8x128xf32>
    %553 = vector.extract_strided_slice %551 {offsets = [0, 128], sizes = [8, 128], strides = [1, 1]} : vector<16x384xf32> to vector<8x128xf32>
    %554 = vector.extract_strided_slice %551 {offsets = [0, 256], sizes = [8, 128], strides = [1, 1]} : vector<16x384xf32> to vector<8x128xf32>
    %555 = vector.extract_strided_slice %0 {offsets = [0, 0], sizes = [1, 8], strides = [1, 1]} : vector<2x8xf32> to vector<1x8xf32>
    %556 = vector.extract_strided_slice %552 {offsets = [0, 0], sizes = [8, 32], strides = [1, 1]} : vector<8x128xf32> to vector<8x32xf32>
    %557 = vector.extract_strided_slice %553 {offsets = [0, 0], sizes = [8, 32], strides = [1, 1]} : vector<8x128xf32> to vector<8x32xf32>
    %558 = vector.extract_strided_slice %554 {offsets = [0, 0], sizes = [8, 32], strides = [1, 1]} : vector<8x128xf32> to vector<8x32xf32>
    %559 = tpu.transpose %557, [1, 0] : vector<8x32xf32> -> vector<32x8xf32>
    %cst_205 = arith.constant dense<0.000000e+00> : vector<8x8xf32>
    %560 = tpu.matmul %556, %559, %cst_205 {dimension_numbers = #tpu.dot_dimension_numbers<[1], [0], [0], [1], [0, 0, 1, 1], [], []>} : vector<8x32xf32>, vector<32x8xf32>, vector<8x8xf32> -> vector<8x8xf32>
    %cst_206 = arith.constant 0.176776692 : f32
    %561 = vector.broadcast %cst_206 : f32 to vector<8x8xf32>
    %562 = arith.mulf %560, %561 : vector<8x8xf32>
    %563 = vector.broadcast %555 : vector<1x8xf32> to vector<8x8xf32>
    %564 = arith.addf %562, %563 : vector<8x8xf32>
    %cst_207 = arith.constant dense<0xFF800000> : vector<8xf32>
    %565 = vector.multi_reduction <maximumf>, %564, %cst_207 [1] : vector<8x8xf32> to vector<8xf32>
    %566 = vector.shape_cast %565 : vector<8xf32> to vector<8x1xf32>
    %567 = vector.broadcast %566 : vector<8x1xf32> to vector<8x8xf32>
    %568 = arith.subf %564, %567 : vector<8x8xf32>
    %569 = math.exp %568 : vector<8x8xf32>
    %cst_208 = arith.constant dense<0.000000e+00> : vector<8xf32>
    %570 = vector.multi_reduction <add>, %569, %cst_208 [1] : vector<8x8xf32> to vector<8xf32>
    %571 = vector.shape_cast %570 : vector<8xf32> to vector<8x1xf32>
    %572 = vector.broadcast %571 : vector<8x1xf32> to vector<8x8xf32>
    %573 = arith.divf %569, %572 : vector<8x8xf32>
    %cst_209 = arith.constant dense<0.000000e+00> : vector<8x32xf32>
    %574 = tpu.matmul %573, %558, %cst_209 {dimension_numbers = #tpu.dot_dimension_numbers<[1], [0], [0], [1], [0, 0, 1, 1], [], []>} : vector<8x8xf32>, vector<8x32xf32>, vector<8x32xf32> -> vector<8x32xf32>
    %575 = vector.extract_strided_slice %552 {offsets = [0, 32], sizes = [8, 32], strides = [1, 1]} : vector<8x128xf32> to vector<8x32xf32>
    %576 = vector.extract_strided_slice %553 {offsets = [0, 32], sizes = [8, 32], strides = [1, 1]} : vector<8x128xf32> to vector<8x32xf32>
    %577 = vector.extract_strided_slice %554 {offsets = [0, 32], sizes = [8, 32], strides = [1, 1]} : vector<8x128xf32> to vector<8x32xf32>
    %578 = tpu.transpose %576, [1, 0] : vector<8x32xf32> -> vector<32x8xf32>
    %cst_210 = arith.constant dense<0.000000e+00> : vector<8x8xf32>
    %579 = tpu.matmul %575, %578, %cst_210 {dimension_numbers = #tpu.dot_dimension_numbers<[1], [0], [0], [1], [0, 0, 1, 1], [], []>} : vector<8x32xf32>, vector<32x8xf32>, vector<8x8xf32> -> vector<8x8xf32>
    %cst_211 = arith.constant 0.176776692 : f32
    %580 = vector.broadcast %cst_211 : f32 to vector<8x8xf32>
    %581 = arith.mulf %579, %580 : vector<8x8xf32>
    %582 = vector.broadcast %555 : vector<1x8xf32> to vector<8x8xf32>
    %583 = arith.addf %581, %582 : vector<8x8xf32>
    %cst_212 = arith.constant dense<0xFF800000> : vector<8xf32>
    %584 = vector.multi_reduction <maximumf>, %583, %cst_212 [1] : vector<8x8xf32> to vector<8xf32>
    %585 = vector.shape_cast %584 : vector<8xf32> to vector<8x1xf32>
    %586 = vector.broadcast %585 : vector<8x1xf32> to vector<8x8xf32>
    %587 = arith.subf %583, %586 : vector<8x8xf32>
    %588 = math.exp %587 : vector<8x8xf32>
    %cst_213 = arith.constant dense<0.000000e+00> : vector<8xf32>
    %589 = vector.multi_reduction <add>, %588, %cst_213 [1] : vector<8x8xf32> to vector<8xf32>
    %590 = vector.shape_cast %589 : vector<8xf32> to vector<8x1xf32>
    %591 = vector.broadcast %590 : vector<8x1xf32> to vector<8x8xf32>
    %592 = arith.divf %588, %591 : vector<8x8xf32>
    %cst_214 = arith.constant dense<0.000000e+00> : vector<8x32xf32>
    %593 = tpu.matmul %592, %577, %cst_214 {dimension_numbers = #tpu.dot_dimension_numbers<[1], [0], [0], [1], [0, 0, 1, 1], [], []>} : vector<8x8xf32>, vector<8x32xf32>, vector<8x32xf32> -> vector<8x32xf32>
    %594 = vector.extract_strided_slice %552 {offsets = [0, 64], sizes = [8, 32], strides = [1, 1]} : vector<8x128xf32> to vector<8x32xf32>
    %595 = vector.extract_strided_slice %553 {offsets = [0, 64], sizes = [8, 32], strides = [1, 1]} : vector<8x128xf32> to vector<8x32xf32>
    %596 = vector.extract_strided_slice %554 {offsets = [0, 64], sizes = [8, 32], strides = [1, 1]} : vector<8x128xf32> to vector<8x32xf32>
    %597 = tpu.transpose %595, [1, 0] : vector<8x32xf32> -> vector<32x8xf32>
    %cst_215 = arith.constant dense<0.000000e+00> : vector<8x8xf32>
    %598 = tpu.matmul %594, %597, %cst_215 {dimension_numbers = #tpu.dot_dimension_numbers<[1], [0], [0], [1], [0, 0, 1, 1], [], []>} : vector<8x32xf32>, vector<32x8xf32>, vector<8x8xf32> -> vector<8x8xf32>
    %cst_216 = arith.constant 0.176776692 : f32
    %599 = vector.broadcast %cst_216 : f32 to vector<8x8xf32>
    %600 = arith.mulf %598, %599 : vector<8x8xf32>
    %601 = vector.broadcast %555 : vector<1x8xf32> to vector<8x8xf32>
    %602 = arith.addf %600, %601 : vector<8x8xf32>
    %cst_217 = arith.constant dense<0xFF800000> : vector<8xf32>
    %603 = vector.multi_reduction <maximumf>, %602, %cst_217 [1] : vector<8x8xf32> to vector<8xf32>
    %604 = vector.shape_cast %603 : vector<8xf32> to vector<8x1xf32>
    %605 = vector.broadcast %604 : vector<8x1xf32> to vector<8x8xf32>
    %606 = arith.subf %602, %605 : vector<8x8xf32>
    %607 = math.exp %606 : vector<8x8xf32>
    %cst_218 = arith.constant dense<0.000000e+00> : vector<8xf32>
    %608 = vector.multi_reduction <add>, %607, %cst_218 [1] : vector<8x8xf32> to vector<8xf32>
    %609 = vector.shape_cast %608 : vector<8xf32> to vector<8x1xf32>
    %610 = vector.broadcast %609 : vector<8x1xf32> to vector<8x8xf32>
    %611 = arith.divf %607, %610 : vector<8x8xf32>
    %cst_219 = arith.constant dense<0.000000e+00> : vector<8x32xf32>
    %612 = tpu.matmul %611, %596, %cst_219 {dimension_numbers = #tpu.dot_dimension_numbers<[1], [0], [0], [1], [0, 0, 1, 1], [], []>} : vector<8x8xf32>, vector<8x32xf32>, vector<8x32xf32> -> vector<8x32xf32>
    %613 = vector.extract_strided_slice %552 {offsets = [0, 96], sizes = [8, 32], strides = [1, 1]} : vector<8x128xf32> to vector<8x32xf32>
    %614 = vector.extract_strided_slice %553 {offsets = [0, 96], sizes = [8, 32], strides = [1, 1]} : vector<8x128xf32> to vector<8x32xf32>
    %615 = vector.extract_strided_slice %554 {offsets = [0, 96], sizes = [8, 32], strides = [1, 1]} : vector<8x128xf32> to vector<8x32xf32>
    %616 = tpu.transpose %614, [1, 0] : vector<8x32xf32> -> vector<32x8xf32>
    %cst_220 = arith.constant dense<0.000000e+00> : vector<8x8xf32>
    %617 = tpu.matmul %613, %616, %cst_220 {dimension_numbers = #tpu.dot_dimension_numbers<[1], [0], [0], [1], [0, 0, 1, 1], [], []>} : vector<8x32xf32>, vector<32x8xf32>, vector<8x8xf32> -> vector<8x8xf32>
    %cst_221 = arith.constant 0.176776692 : f32
    %618 = vector.broadcast %cst_221 : f32 to vector<8x8xf32>
    %619 = arith.mulf %617, %618 : vector<8x8xf32>
    %620 = vector.broadcast %555 : vector<1x8xf32> to vector<8x8xf32>
    %621 = arith.addf %619, %620 : vector<8x8xf32>
    %cst_222 = arith.constant dense<0xFF800000> : vector<8xf32>
    %622 = vector.multi_reduction <maximumf>, %621, %cst_222 [1] : vector<8x8xf32> to vector<8xf32>
    %623 = vector.shape_cast %622 : vector<8xf32> to vector<8x1xf32>
    %624 = vector.broadcast %623 : vector<8x1xf32> to vector<8x8xf32>
    %625 = arith.subf %621, %624 : vector<8x8xf32>
    %626 = math.exp %625 : vector<8x8xf32>
    %cst_223 = arith.constant dense<0.000000e+00> : vector<8xf32>
    %627 = vector.multi_reduction <add>, %626, %cst_223 [1] : vector<8x8xf32> to vector<8xf32>
    %628 = vector.shape_cast %627 : vector<8xf32> to vector<8x1xf32>
    %629 = vector.broadcast %628 : vector<8x1xf32> to vector<8x8xf32>
    %630 = arith.divf %626, %629 : vector<8x8xf32>
    %cst_224 = arith.constant dense<0.000000e+00> : vector<8x32xf32>
    %631 = tpu.matmul %630, %615, %cst_224 {dimension_numbers = #tpu.dot_dimension_numbers<[1], [0], [0], [1], [0, 0, 1, 1], [], []>} : vector<8x8xf32>, vector<8x32xf32>, vector<8x32xf32> -> vector<8x32xf32>
    %632 = tpu.concatenate %574, %593, %612, %631 in 1 : vector<8x32xf32>, vector<8x32xf32>, vector<8x32xf32>, vector<8x32xf32> -> vector<8x128xf32>
    %633 = vector.extract_strided_slice %551 {offsets = [8, 0], sizes = [8, 128], strides = [1, 1]} : vector<16x384xf32> to vector<8x128xf32>
    %634 = vector.extract_strided_slice %551 {offsets = [8, 128], sizes = [8, 128], strides = [1, 1]} : vector<16x384xf32> to vector<8x128xf32>
    %635 = vector.extract_strided_slice %551 {offsets = [8, 256], sizes = [8, 128], strides = [1, 1]} : vector<16x384xf32> to vector<8x128xf32>
    %636 = vector.extract_strided_slice %0 {offsets = [1, 0], sizes = [1, 8], strides = [1, 1]} : vector<2x8xf32> to vector<1x8xf32>
    %637 = vector.extract_strided_slice %633 {offsets = [0, 0], sizes = [8, 32], strides = [1, 1]} : vector<8x128xf32> to vector<8x32xf32>
    %638 = vector.extract_strided_slice %634 {offsets = [0, 0], sizes = [8, 32], strides = [1, 1]} : vector<8x128xf32> to vector<8x32xf32>
    %639 = vector.extract_strided_slice %635 {offsets = [0, 0], sizes = [8, 32], strides = [1, 1]} : vector<8x128xf32> to vector<8x32xf32>
    %640 = tpu.transpose %638, [1, 0] : vector<8x32xf32> -> vector<32x8xf32>
    %cst_225 = arith.constant dense<0.000000e+00> : vector<8x8xf32>
    %641 = tpu.matmul %637, %640, %cst_225 {dimension_numbers = #tpu.dot_dimension_numbers<[1], [0], [0], [1], [0, 0, 1, 1], [], []>} : vector<8x32xf32>, vector<32x8xf32>, vector<8x8xf32> -> vector<8x8xf32>
    %cst_226 = arith.constant 0.176776692 : f32
    %642 = vector.broadcast %cst_226 : f32 to vector<8x8xf32>
    %643 = arith.mulf %641, %642 : vector<8x8xf32>
    %644 = vector.broadcast %636 : vector<1x8xf32> to vector<8x8xf32>
    %645 = arith.addf %643, %644 : vector<8x8xf32>
    %cst_227 = arith.constant dense<0xFF800000> : vector<8xf32>
    %646 = vector.multi_reduction <maximumf>, %645, %cst_227 [1] : vector<8x8xf32> to vector<8xf32>
    %647 = vector.shape_cast %646 : vector<8xf32> to vector<8x1xf32>
    %648 = vector.broadcast %647 : vector<8x1xf32> to vector<8x8xf32>
    %649 = arith.subf %645, %648 : vector<8x8xf32>
    %650 = math.exp %649 : vector<8x8xf32>
    %cst_228 = arith.constant dense<0.000000e+00> : vector<8xf32>
    %651 = vector.multi_reduction <add>, %650, %cst_228 [1] : vector<8x8xf32> to vector<8xf32>
    %652 = vector.shape_cast %651 : vector<8xf32> to vector<8x1xf32>
    %653 = vector.broadcast %652 : vector<8x1xf32> to vector<8x8xf32>
    %654 = arith.divf %650, %653 : vector<8x8xf32>
    %cst_229 = arith.constant dense<0.000000e+00> : vector<8x32xf32>
    %655 = tpu.matmul %654, %639, %cst_229 {dimension_numbers = #tpu.dot_dimension_numbers<[1], [0], [0], [1], [0, 0, 1, 1], [], []>} : vector<8x8xf32>, vector<8x32xf32>, vector<8x32xf32> -> vector<8x32xf32>
    %656 = vector.extract_strided_slice %633 {offsets = [0, 32], sizes = [8, 32], strides = [1, 1]} : vector<8x128xf32> to vector<8x32xf32>
    %657 = vector.extract_strided_slice %634 {offsets = [0, 32], sizes = [8, 32], strides = [1, 1]} : vector<8x128xf32> to vector<8x32xf32>
    %658 = vector.extract_strided_slice %635 {offsets = [0, 32], sizes = [8, 32], strides = [1, 1]} : vector<8x128xf32> to vector<8x32xf32>
    %659 = tpu.transpose %657, [1, 0] : vector<8x32xf32> -> vector<32x8xf32>
    %cst_230 = arith.constant dense<0.000000e+00> : vector<8x8xf32>
    %660 = tpu.matmul %656, %659, %cst_230 {dimension_numbers = #tpu.dot_dimension_numbers<[1], [0], [0], [1], [0, 0, 1, 1], [], []>} : vector<8x32xf32>, vector<32x8xf32>, vector<8x8xf32> -> vector<8x8xf32>
    %cst_231 = arith.constant 0.176776692 : f32
    %661 = vector.broadcast %cst_231 : f32 to vector<8x8xf32>
    %662 = arith.mulf %660, %661 : vector<8x8xf32>
    %663 = vector.broadcast %636 : vector<1x8xf32> to vector<8x8xf32>
    %664 = arith.addf %662, %663 : vector<8x8xf32>
    %cst_232 = arith.constant dense<0xFF800000> : vector<8xf32>
    %665 = vector.multi_reduction <maximumf>, %664, %cst_232 [1] : vector<8x8xf32> to vector<8xf32>
    %666 = vector.shape_cast %665 : vector<8xf32> to vector<8x1xf32>
    %667 = vector.broadcast %666 : vector<8x1xf32> to vector<8x8xf32>
    %668 = arith.subf %664, %667 : vector<8x8xf32>
    %669 = math.exp %668 : vector<8x8xf32>
    %cst_233 = arith.constant dense<0.000000e+00> : vector<8xf32>
    %670 = vector.multi_reduction <add>, %669, %cst_233 [1] : vector<8x8xf32> to vector<8xf32>
    %671 = vector.shape_cast %670 : vector<8xf32> to vector<8x1xf32>
    %672 = vector.broadcast %671 : vector<8x1xf32> to vector<8x8xf32>
    %673 = arith.divf %669, %672 : vector<8x8xf32>
    %cst_234 = arith.constant dense<0.000000e+00> : vector<8x32xf32>
    %674 = tpu.matmul %673, %658, %cst_234 {dimension_numbers = #tpu.dot_dimension_numbers<[1], [0], [0], [1], [0, 0, 1, 1], [], []>} : vector<8x8xf32>, vector<8x32xf32>, vector<8x32xf32> -> vector<8x32xf32>
    %675 = vector.extract_strided_slice %633 {offsets = [0, 64], sizes = [8, 32], strides = [1, 1]} : vector<8x128xf32> to vector<8x32xf32>
    %676 = vector.extract_strided_slice %634 {offsets = [0, 64], sizes = [8, 32], strides = [1, 1]} : vector<8x128xf32> to vector<8x32xf32>
    %677 = vector.extract_strided_slice %635 {offsets = [0, 64], sizes = [8, 32], strides = [1, 1]} : vector<8x128xf32> to vector<8x32xf32>
    %678 = tpu.transpose %676, [1, 0] : vector<8x32xf32> -> vector<32x8xf32>
    %cst_235 = arith.constant dense<0.000000e+00> : vector<8x8xf32>
    %679 = tpu.matmul %675, %678, %cst_235 {dimension_numbers = #tpu.dot_dimension_numbers<[1], [0], [0], [1], [0, 0, 1, 1], [], []>} : vector<8x32xf32>, vector<32x8xf32>, vector<8x8xf32> -> vector<8x8xf32>
    %cst_236 = arith.constant 0.176776692 : f32
    %680 = vector.broadcast %cst_236 : f32 to vector<8x8xf32>
    %681 = arith.mulf %679, %680 : vector<8x8xf32>
    %682 = vector.broadcast %636 : vector<1x8xf32> to vector<8x8xf32>
    %683 = arith.addf %681, %682 : vector<8x8xf32>
    %cst_237 = arith.constant dense<0xFF800000> : vector<8xf32>
    %684 = vector.multi_reduction <maximumf>, %683, %cst_237 [1] : vector<8x8xf32> to vector<8xf32>
    %685 = vector.shape_cast %684 : vector<8xf32> to vector<8x1xf32>
    %686 = vector.broadcast %685 : vector<8x1xf32> to vector<8x8xf32>
    %687 = arith.subf %683, %686 : vector<8x8xf32>
    %688 = math.exp %687 : vector<8x8xf32>
    %cst_238 = arith.constant dense<0.000000e+00> : vector<8xf32>
    %689 = vector.multi_reduction <add>, %688, %cst_238 [1] : vector<8x8xf32> to vector<8xf32>
    %690 = vector.shape_cast %689 : vector<8xf32> to vector<8x1xf32>
    %691 = vector.broadcast %690 : vector<8x1xf32> to vector<8x8xf32>
    %692 = arith.divf %688, %691 : vector<8x8xf32>
    %cst_239 = arith.constant dense<0.000000e+00> : vector<8x32xf32>
    %693 = tpu.matmul %692, %677, %cst_239 {dimension_numbers = #tpu.dot_dimension_numbers<[1], [0], [0], [1], [0, 0, 1, 1], [], []>} : vector<8x8xf32>, vector<8x32xf32>, vector<8x32xf32> -> vector<8x32xf32>
    %694 = vector.extract_strided_slice %633 {offsets = [0, 96], sizes = [8, 32], strides = [1, 1]} : vector<8x128xf32> to vector<8x32xf32>
    %695 = vector.extract_strided_slice %634 {offsets = [0, 96], sizes = [8, 32], strides = [1, 1]} : vector<8x128xf32> to vector<8x32xf32>
    %696 = vector.extract_strided_slice %635 {offsets = [0, 96], sizes = [8, 32], strides = [1, 1]} : vector<8x128xf32> to vector<8x32xf32>
    %697 = tpu.transpose %695, [1, 0] : vector<8x32xf32> -> vector<32x8xf32>
    %cst_240 = arith.constant dense<0.000000e+00> : vector<8x8xf32>
    %698 = tpu.matmul %694, %697, %cst_240 {dimension_numbers = #tpu.dot_dimension_numbers<[1], [0], [0], [1], [0, 0, 1, 1], [], []>} : vector<8x32xf32>, vector<32x8xf32>, vector<8x8xf32> -> vector<8x8xf32>
    %cst_241 = arith.constant 0.176776692 : f32
    %699 = vector.broadcast %cst_241 : f32 to vector<8x8xf32>
    %700 = arith.mulf %698, %699 : vector<8x8xf32>
    %701 = vector.broadcast %636 : vector<1x8xf32> to vector<8x8xf32>
    %702 = arith.addf %700, %701 : vector<8x8xf32>
    %cst_242 = arith.constant dense<0xFF800000> : vector<8xf32>
    %703 = vector.multi_reduction <maximumf>, %702, %cst_242 [1] : vector<8x8xf32> to vector<8xf32>
    %704 = vector.shape_cast %703 : vector<8xf32> to vector<8x1xf32>
    %705 = vector.broadcast %704 : vector<8x1xf32> to vector<8x8xf32>
    %706 = arith.subf %702, %705 : vector<8x8xf32>
    %707 = math.exp %706 : vector<8x8xf32>
    %cst_243 = arith.constant dense<0.000000e+00> : vector<8xf32>
    %708 = vector.multi_reduction <add>, %707, %cst_243 [1] : vector<8x8xf32> to vector<8xf32>
    %709 = vector.shape_cast %708 : vector<8xf32> to vector<8x1xf32>
    %710 = vector.broadcast %709 : vector<8x1xf32> to vector<8x8xf32>
    %711 = arith.divf %707, %710 : vector<8x8xf32>
    %cst_244 = arith.constant dense<0.000000e+00> : vector<8x32xf32>
    %712 = tpu.matmul %711, %696, %cst_244 {dimension_numbers = #tpu.dot_dimension_numbers<[1], [0], [0], [1], [0, 0, 1, 1], [], []>} : vector<8x8xf32>, vector<8x32xf32>, vector<8x32xf32> -> vector<8x32xf32>
    %713 = tpu.concatenate %655, %674, %693, %712 in 1 : vector<8x32xf32>, vector<8x32xf32>, vector<8x32xf32>, vector<8x32xf32> -> vector<8x128xf32>
    %714 = tpu.concatenate %632, %713 in 0 : vector<8x128xf32>, vector<8x128xf32> -> vector<16x128xf32>
    %c2_245 = arith.constant 2 : index
    %c0_246 = arith.constant 0 : index
    %c0_247 = arith.constant 0 : index
    %715 = vector.load %arg6[%c2_245, %c0_246, %c0_247] : memref<4x128x128xf32, #tpu.memory_space<vmem>>, vector<1x128x128xf32>
    %716 = vector.shape_cast %715 : vector<1x128x128xf32> to vector<128x128xf32>
    %cst_248 = arith.constant dense<0.000000e+00> : vector<16x128xf32>
    %717 = tpu.matmul %714, %716, %cst_248 {dimension_numbers = #tpu.dot_dimension_numbers<[1], [0], [0], [1], [0, 0, 1, 1], [], []>} : vector<16x128xf32>, vector<128x128xf32>, vector<16x128xf32> -> vector<16x128xf32>
    %c2_249 = arith.constant 2 : index
    %c0_250 = arith.constant 0 : index
    %c0_251 = arith.constant 0 : index
    %718 = vector.load %arg7[%c2_249, %c0_250, %c0_251] : memref<4x1x128xf32, #tpu.memory_space<vmem>>, vector<1x1x128xf32>
    %719 = vector.shape_cast %718 : vector<1x1x128xf32> to vector<1x128xf32>
    %720 = vector.broadcast %719 : vector<1x128xf32> to vector<16x128xf32>
    %721 = arith.addf %717, %720 : vector<16x128xf32>
    %722 = arith.addf %721, %543 : vector<16x128xf32>
    %c2_252 = arith.constant 2 : index
    %c0_253 = arith.constant 0 : index
    %c0_254 = arith.constant 0 : index
    %723 = vector.load %arg8[%c2_252, %c0_253, %c0_254] : memref<4x1x128xf32, #tpu.memory_space<vmem>>, vector<1x1x128xf32>
    %724 = vector.shape_cast %723 : vector<1x1x128xf32> to vector<1x128xf32>
    %c2_255 = arith.constant 2 : index
    %c0_256 = arith.constant 0 : index
    %c0_257 = arith.constant 0 : index
    %725 = vector.load %arg9[%c2_255, %c0_256, %c0_257] : memref<4x1x128xf32, #tpu.memory_space<vmem>>, vector<1x1x128xf32>
    %726 = vector.shape_cast %725 : vector<1x1x128xf32> to vector<1x128xf32>
    %cst_258 = arith.constant dense<0.000000e+00> : vector<16xf32>
    %727 = vector.multi_reduction <add>, %722, %cst_258 [1] : vector<16x128xf32> to vector<16xf32>
    %728 = vector.shape_cast %727 : vector<16xf32> to vector<16x1xf32>
    %cst_259 = arith.constant 1.280000e+02 : f32
    %729 = vector.broadcast %cst_259 : f32 to vector<16x1xf32>
    %730 = arith.divf %728, %729 : vector<16x1xf32>
    %731 = vector.broadcast %730 : vector<16x1xf32> to vector<16x128xf32>
    %732 = arith.subf %722, %731 : vector<16x128xf32>
    %733 = arith.mulf %732, %732 : vector<16x128xf32>
    %cst_260 = arith.constant dense<0.000000e+00> : vector<16xf32>
    %734 = vector.multi_reduction <add>, %733, %cst_260 [1] : vector<16x128xf32> to vector<16xf32>
    %735 = vector.shape_cast %734 : vector<16xf32> to vector<16x1xf32>
    %cst_261 = arith.constant 1.280000e+02 : f32
    %736 = vector.broadcast %cst_261 : f32 to vector<16x1xf32>
    %737 = arith.divf %735, %736 : vector<16x1xf32>
    %738 = vector.broadcast %730 : vector<16x1xf32> to vector<16x128xf32>
    %739 = arith.subf %722, %738 : vector<16x128xf32>
    %cst_262 = arith.constant 9.99999996E-13 : f32
    %740 = vector.broadcast %cst_262 : f32 to vector<16x1xf32>
    %741 = arith.addf %737, %740 : vector<16x1xf32>
    %742 = math.rsqrt %741 : vector<16x1xf32>
    %743 = vector.broadcast %742 : vector<16x1xf32> to vector<16x128xf32>
    %744 = arith.mulf %739, %743 : vector<16x128xf32>
    %745 = vector.broadcast %724 : vector<1x128xf32> to vector<16x128xf32>
    %746 = arith.mulf %744, %745 : vector<16x128xf32>
    %747 = vector.broadcast %726 : vector<1x128xf32> to vector<16x128xf32>
    %748 = arith.addf %746, %747 : vector<16x128xf32>
    %c2_263 = arith.constant 2 : index
    %c0_264 = arith.constant 0 : index
    %c0_265 = arith.constant 0 : index
    %749 = vector.load %arg10[%c2_263, %c0_264, %c0_265] : memref<4x128x256xf32, #tpu.memory_space<vmem>>, vector<1x128x256xf32>
    %750 = vector.shape_cast %749 : vector<1x128x256xf32> to vector<128x256xf32>
    %cst_266 = arith.constant dense<0.000000e+00> : vector<16x256xf32>
    %751 = tpu.matmul %748, %750, %cst_266 {dimension_numbers = #tpu.dot_dimension_numbers<[1], [0], [0], [1], [0, 0, 1, 1], [], []>} : vector<16x128xf32>, vector<128x256xf32>, vector<16x256xf32> -> vector<16x256xf32>
    %c2_267 = arith.constant 2 : index
    %c0_268 = arith.constant 0 : index
    %c0_269 = arith.constant 0 : index
    %752 = vector.load %arg11[%c2_267, %c0_268, %c0_269] : memref<4x1x256xf32, #tpu.memory_space<vmem>>, vector<1x1x256xf32>
    %753 = vector.shape_cast %752 : vector<1x1x256xf32> to vector<1x256xf32>
    %754 = vector.broadcast %753 : vector<1x256xf32> to vector<16x256xf32>
    %755 = arith.addf %751, %754 : vector<16x256xf32>
    %756 = arith.mulf %755, %755 : vector<16x256xf32>
    %757 = arith.mulf %755, %756 : vector<16x256xf32>
    %cst_270 = arith.constant 4.471500e-02 : f32
    %758 = vector.broadcast %cst_270 : f32 to vector<16x256xf32>
    %759 = arith.mulf %758, %757 : vector<16x256xf32>
    %760 = arith.addf %755, %759 : vector<16x256xf32>
    %cst_271 = arith.constant 0.797884583 : f32
    %761 = vector.broadcast %cst_271 : f32 to vector<16x256xf32>
    %762 = arith.mulf %761, %760 : vector<16x256xf32>
    %763 = math.tanh %762 : vector<16x256xf32>
    %cst_272 = arith.constant 1.000000e+00 : f32
    %764 = vector.broadcast %cst_272 : f32 to vector<16x256xf32>
    %765 = arith.addf %764, %763 : vector<16x256xf32>
    %cst_273 = arith.constant 5.000000e-01 : f32
    %766 = vector.broadcast %cst_273 : f32 to vector<16x256xf32>
    %767 = arith.mulf %766, %765 : vector<16x256xf32>
    %768 = arith.mulf %755, %767 : vector<16x256xf32>
    %c2_274 = arith.constant 2 : index
    %c0_275 = arith.constant 0 : index
    %c0_276 = arith.constant 0 : index
    %769 = vector.load %arg12[%c2_274, %c0_275, %c0_276] : memref<4x256x128xf32, #tpu.memory_space<vmem>>, vector<1x256x128xf32>
    %770 = vector.shape_cast %769 : vector<1x256x128xf32> to vector<256x128xf32>
    %cst_277 = arith.constant dense<0.000000e+00> : vector<16x128xf32>
    %771 = tpu.matmul %768, %770, %cst_277 {dimension_numbers = #tpu.dot_dimension_numbers<[1], [0], [0], [1], [0, 0, 1, 1], [], []>} : vector<16x256xf32>, vector<256x128xf32>, vector<16x128xf32> -> vector<16x128xf32>
    %c2_278 = arith.constant 2 : index
    %c0_279 = arith.constant 0 : index
    %c0_280 = arith.constant 0 : index
    %772 = vector.load %arg13[%c2_278, %c0_279, %c0_280] : memref<4x1x128xf32, #tpu.memory_space<vmem>>, vector<1x1x128xf32>
    %773 = vector.shape_cast %772 : vector<1x1x128xf32> to vector<1x128xf32>
    %774 = vector.broadcast %773 : vector<1x128xf32> to vector<16x128xf32>
    %775 = arith.addf %771, %774 : vector<16x128xf32>
    %776 = arith.addf %775, %748 : vector<16x128xf32>
    %c2_281 = arith.constant 2 : index
    %c0_282 = arith.constant 0 : index
    %c0_283 = arith.constant 0 : index
    %777 = vector.load %arg14[%c2_281, %c0_282, %c0_283] : memref<4x1x128xf32, #tpu.memory_space<vmem>>, vector<1x1x128xf32>
    %778 = vector.shape_cast %777 : vector<1x1x128xf32> to vector<1x128xf32>
    %c2_284 = arith.constant 2 : index
    %c0_285 = arith.constant 0 : index
    %c0_286 = arith.constant 0 : index
    %779 = vector.load %arg15[%c2_284, %c0_285, %c0_286] : memref<4x1x128xf32, #tpu.memory_space<vmem>>, vector<1x1x128xf32>
    %780 = vector.shape_cast %779 : vector<1x1x128xf32> to vector<1x128xf32>
    %cst_287 = arith.constant dense<0.000000e+00> : vector<16xf32>
    %781 = vector.multi_reduction <add>, %776, %cst_287 [1] : vector<16x128xf32> to vector<16xf32>
    %782 = vector.shape_cast %781 : vector<16xf32> to vector<16x1xf32>
    %cst_288 = arith.constant 1.280000e+02 : f32
    %783 = vector.broadcast %cst_288 : f32 to vector<16x1xf32>
    %784 = arith.divf %782, %783 : vector<16x1xf32>
    %785 = vector.broadcast %784 : vector<16x1xf32> to vector<16x128xf32>
    %786 = arith.subf %776, %785 : vector<16x128xf32>
    %787 = arith.mulf %786, %786 : vector<16x128xf32>
    %cst_289 = arith.constant dense<0.000000e+00> : vector<16xf32>
    %788 = vector.multi_reduction <add>, %787, %cst_289 [1] : vector<16x128xf32> to vector<16xf32>
    %789 = vector.shape_cast %788 : vector<16xf32> to vector<16x1xf32>
    %cst_290 = arith.constant 1.280000e+02 : f32
    %790 = vector.broadcast %cst_290 : f32 to vector<16x1xf32>
    %791 = arith.divf %789, %790 : vector<16x1xf32>
    %792 = vector.broadcast %784 : vector<16x1xf32> to vector<16x128xf32>
    %793 = arith.subf %776, %792 : vector<16x128xf32>
    %cst_291 = arith.constant 9.99999996E-13 : f32
    %794 = vector.broadcast %cst_291 : f32 to vector<16x1xf32>
    %795 = arith.addf %791, %794 : vector<16x1xf32>
    %796 = math.rsqrt %795 : vector<16x1xf32>
    %797 = vector.broadcast %796 : vector<16x1xf32> to vector<16x128xf32>
    %798 = arith.mulf %793, %797 : vector<16x128xf32>
    %799 = vector.broadcast %778 : vector<1x128xf32> to vector<16x128xf32>
    %800 = arith.mulf %798, %799 : vector<16x128xf32>
    %801 = vector.broadcast %780 : vector<1x128xf32> to vector<16x128xf32>
    %802 = arith.addf %800, %801 : vector<16x128xf32>
    %803 = arith.addf %544, %802 : vector<16x128xf32>
    %c3 = arith.constant 3 : index
    %c0_292 = arith.constant 0 : index
    %c0_293 = arith.constant 0 : index
    %804 = vector.load %arg4[%c3, %c0_292, %c0_293] : memref<4x128x384xf32, #tpu.memory_space<vmem>>, vector<1x128x384xf32>
    %805 = vector.shape_cast %804 : vector<1x128x384xf32> to vector<128x384xf32>
    %cst_294 = arith.constant dense<0.000000e+00> : vector<16x384xf32>
    %806 = tpu.matmul %802, %805, %cst_294 {dimension_numbers = #tpu.dot_dimension_numbers<[1], [0], [0], [1], [0, 0, 1, 1], [], []>} : vector<16x128xf32>, vector<128x384xf32>, vector<16x384xf32> -> vector<16x384xf32>
    %c3_295 = arith.constant 3 : index
    %c0_296 = arith.constant 0 : index
    %c0_297 = arith.constant 0 : index
    %807 = vector.load %arg5[%c3_295, %c0_296, %c0_297] : memref<4x1x384xf32, #tpu.memory_space<vmem>>, vector<1x1x384xf32>
    %808 = vector.shape_cast %807 : vector<1x1x384xf32> to vector<1x384xf32>
    %809 = vector.broadcast %808 : vector<1x384xf32> to vector<16x384xf32>
    %810 = arith.addf %806, %809 : vector<16x384xf32>
    %811 = vector.extract_strided_slice %810 {offsets = [0, 0], sizes = [8, 128], strides = [1, 1]} : vector<16x384xf32> to vector<8x128xf32>
    %812 = vector.extract_strided_slice %810 {offsets = [0, 128], sizes = [8, 128], strides = [1, 1]} : vector<16x384xf32> to vector<8x128xf32>
    %813 = vector.extract_strided_slice %810 {offsets = [0, 256], sizes = [8, 128], strides = [1, 1]} : vector<16x384xf32> to vector<8x128xf32>
    %814 = vector.extract_strided_slice %0 {offsets = [0, 0], sizes = [1, 8], strides = [1, 1]} : vector<2x8xf32> to vector<1x8xf32>
    %815 = vector.extract_strided_slice %811 {offsets = [0, 0], sizes = [8, 32], strides = [1, 1]} : vector<8x128xf32> to vector<8x32xf32>
    %816 = vector.extract_strided_slice %812 {offsets = [0, 0], sizes = [8, 32], strides = [1, 1]} : vector<8x128xf32> to vector<8x32xf32>
    %817 = vector.extract_strided_slice %813 {offsets = [0, 0], sizes = [8, 32], strides = [1, 1]} : vector<8x128xf32> to vector<8x32xf32>
    %818 = tpu.transpose %816, [1, 0] : vector<8x32xf32> -> vector<32x8xf32>
    %cst_298 = arith.constant dense<0.000000e+00> : vector<8x8xf32>
    %819 = tpu.matmul %815, %818, %cst_298 {dimension_numbers = #tpu.dot_dimension_numbers<[1], [0], [0], [1], [0, 0, 1, 1], [], []>} : vector<8x32xf32>, vector<32x8xf32>, vector<8x8xf32> -> vector<8x8xf32>
    %cst_299 = arith.constant 0.176776692 : f32
    %820 = vector.broadcast %cst_299 : f32 to vector<8x8xf32>
    %821 = arith.mulf %819, %820 : vector<8x8xf32>
    %822 = vector.broadcast %814 : vector<1x8xf32> to vector<8x8xf32>
    %823 = arith.addf %821, %822 : vector<8x8xf32>
    %cst_300 = arith.constant dense<0xFF800000> : vector<8xf32>
    %824 = vector.multi_reduction <maximumf>, %823, %cst_300 [1] : vector<8x8xf32> to vector<8xf32>
    %825 = vector.shape_cast %824 : vector<8xf32> to vector<8x1xf32>
    %826 = vector.broadcast %825 : vector<8x1xf32> to vector<8x8xf32>
    %827 = arith.subf %823, %826 : vector<8x8xf32>
    %828 = math.exp %827 : vector<8x8xf32>
    %cst_301 = arith.constant dense<0.000000e+00> : vector<8xf32>
    %829 = vector.multi_reduction <add>, %828, %cst_301 [1] : vector<8x8xf32> to vector<8xf32>
    %830 = vector.shape_cast %829 : vector<8xf32> to vector<8x1xf32>
    %831 = vector.broadcast %830 : vector<8x1xf32> to vector<8x8xf32>
    %832 = arith.divf %828, %831 : vector<8x8xf32>
    %cst_302 = arith.constant dense<0.000000e+00> : vector<8x32xf32>
    %833 = tpu.matmul %832, %817, %cst_302 {dimension_numbers = #tpu.dot_dimension_numbers<[1], [0], [0], [1], [0, 0, 1, 1], [], []>} : vector<8x8xf32>, vector<8x32xf32>, vector<8x32xf32> -> vector<8x32xf32>
    %834 = vector.extract_strided_slice %811 {offsets = [0, 32], sizes = [8, 32], strides = [1, 1]} : vector<8x128xf32> to vector<8x32xf32>
    %835 = vector.extract_strided_slice %812 {offsets = [0, 32], sizes = [8, 32], strides = [1, 1]} : vector<8x128xf32> to vector<8x32xf32>
    %836 = vector.extract_strided_slice %813 {offsets = [0, 32], sizes = [8, 32], strides = [1, 1]} : vector<8x128xf32> to vector<8x32xf32>
    %837 = tpu.transpose %835, [1, 0] : vector<8x32xf32> -> vector<32x8xf32>
    %cst_303 = arith.constant dense<0.000000e+00> : vector<8x8xf32>
    %838 = tpu.matmul %834, %837, %cst_303 {dimension_numbers = #tpu.dot_dimension_numbers<[1], [0], [0], [1], [0, 0, 1, 1], [], []>} : vector<8x32xf32>, vector<32x8xf32>, vector<8x8xf32> -> vector<8x8xf32>
    %cst_304 = arith.constant 0.176776692 : f32
    %839 = vector.broadcast %cst_304 : f32 to vector<8x8xf32>
    %840 = arith.mulf %838, %839 : vector<8x8xf32>
    %841 = vector.broadcast %814 : vector<1x8xf32> to vector<8x8xf32>
    %842 = arith.addf %840, %841 : vector<8x8xf32>
    %cst_305 = arith.constant dense<0xFF800000> : vector<8xf32>
    %843 = vector.multi_reduction <maximumf>, %842, %cst_305 [1] : vector<8x8xf32> to vector<8xf32>
    %844 = vector.shape_cast %843 : vector<8xf32> to vector<8x1xf32>
    %845 = vector.broadcast %844 : vector<8x1xf32> to vector<8x8xf32>
    %846 = arith.subf %842, %845 : vector<8x8xf32>
    %847 = math.exp %846 : vector<8x8xf32>
    %cst_306 = arith.constant dense<0.000000e+00> : vector<8xf32>
    %848 = vector.multi_reduction <add>, %847, %cst_306 [1] : vector<8x8xf32> to vector<8xf32>
    %849 = vector.shape_cast %848 : vector<8xf32> to vector<8x1xf32>
    %850 = vector.broadcast %849 : vector<8x1xf32> to vector<8x8xf32>
    %851 = arith.divf %847, %850 : vector<8x8xf32>
    %cst_307 = arith.constant dense<0.000000e+00> : vector<8x32xf32>
    %852 = tpu.matmul %851, %836, %cst_307 {dimension_numbers = #tpu.dot_dimension_numbers<[1], [0], [0], [1], [0, 0, 1, 1], [], []>} : vector<8x8xf32>, vector<8x32xf32>, vector<8x32xf32> -> vector<8x32xf32>
    %853 = vector.extract_strided_slice %811 {offsets = [0, 64], sizes = [8, 32], strides = [1, 1]} : vector<8x128xf32> to vector<8x32xf32>
    %854 = vector.extract_strided_slice %812 {offsets = [0, 64], sizes = [8, 32], strides = [1, 1]} : vector<8x128xf32> to vector<8x32xf32>
    %855 = vector.extract_strided_slice %813 {offsets = [0, 64], sizes = [8, 32], strides = [1, 1]} : vector<8x128xf32> to vector<8x32xf32>
    %856 = tpu.transpose %854, [1, 0] : vector<8x32xf32> -> vector<32x8xf32>
    %cst_308 = arith.constant dense<0.000000e+00> : vector<8x8xf32>
    %857 = tpu.matmul %853, %856, %cst_308 {dimension_numbers = #tpu.dot_dimension_numbers<[1], [0], [0], [1], [0, 0, 1, 1], [], []>} : vector<8x32xf32>, vector<32x8xf32>, vector<8x8xf32> -> vector<8x8xf32>
    %cst_309 = arith.constant 0.176776692 : f32
    %858 = vector.broadcast %cst_309 : f32 to vector<8x8xf32>
    %859 = arith.mulf %857, %858 : vector<8x8xf32>
    %860 = vector.broadcast %814 : vector<1x8xf32> to vector<8x8xf32>
    %861 = arith.addf %859, %860 : vector<8x8xf32>
    %cst_310 = arith.constant dense<0xFF800000> : vector<8xf32>
    %862 = vector.multi_reduction <maximumf>, %861, %cst_310 [1] : vector<8x8xf32> to vector<8xf32>
    %863 = vector.shape_cast %862 : vector<8xf32> to vector<8x1xf32>
    %864 = vector.broadcast %863 : vector<8x1xf32> to vector<8x8xf32>
    %865 = arith.subf %861, %864 : vector<8x8xf32>
    %866 = math.exp %865 : vector<8x8xf32>
    %cst_311 = arith.constant dense<0.000000e+00> : vector<8xf32>
    %867 = vector.multi_reduction <add>, %866, %cst_311 [1] : vector<8x8xf32> to vector<8xf32>
    %868 = vector.shape_cast %867 : vector<8xf32> to vector<8x1xf32>
    %869 = vector.broadcast %868 : vector<8x1xf32> to vector<8x8xf32>
    %870 = arith.divf %866, %869 : vector<8x8xf32>
    %cst_312 = arith.constant dense<0.000000e+00> : vector<8x32xf32>
    %871 = tpu.matmul %870, %855, %cst_312 {dimension_numbers = #tpu.dot_dimension_numbers<[1], [0], [0], [1], [0, 0, 1, 1], [], []>} : vector<8x8xf32>, vector<8x32xf32>, vector<8x32xf32> -> vector<8x32xf32>
    %872 = vector.extract_strided_slice %811 {offsets = [0, 96], sizes = [8, 32], strides = [1, 1]} : vector<8x128xf32> to vector<8x32xf32>
    %873 = vector.extract_strided_slice %812 {offsets = [0, 96], sizes = [8, 32], strides = [1, 1]} : vector<8x128xf32> to vector<8x32xf32>
    %874 = vector.extract_strided_slice %813 {offsets = [0, 96], sizes = [8, 32], strides = [1, 1]} : vector<8x128xf32> to vector<8x32xf32>
    %875 = tpu.transpose %873, [1, 0] : vector<8x32xf32> -> vector<32x8xf32>
    %cst_313 = arith.constant dense<0.000000e+00> : vector<8x8xf32>
    %876 = tpu.matmul %872, %875, %cst_313 {dimension_numbers = #tpu.dot_dimension_numbers<[1], [0], [0], [1], [0, 0, 1, 1], [], []>} : vector<8x32xf32>, vector<32x8xf32>, vector<8x8xf32> -> vector<8x8xf32>
    %cst_314 = arith.constant 0.176776692 : f32
    %877 = vector.broadcast %cst_314 : f32 to vector<8x8xf32>
    %878 = arith.mulf %876, %877 : vector<8x8xf32>
    %879 = vector.broadcast %814 : vector<1x8xf32> to vector<8x8xf32>
    %880 = arith.addf %878, %879 : vector<8x8xf32>
    %cst_315 = arith.constant dense<0xFF800000> : vector<8xf32>
    %881 = vector.multi_reduction <maximumf>, %880, %cst_315 [1] : vector<8x8xf32> to vector<8xf32>
    %882 = vector.shape_cast %881 : vector<8xf32> to vector<8x1xf32>
    %883 = vector.broadcast %882 : vector<8x1xf32> to vector<8x8xf32>
    %884 = arith.subf %880, %883 : vector<8x8xf32>
    %885 = math.exp %884 : vector<8x8xf32>
    %cst_316 = arith.constant dense<0.000000e+00> : vector<8xf32>
    %886 = vector.multi_reduction <add>, %885, %cst_316 [1] : vector<8x8xf32> to vector<8xf32>
    %887 = vector.shape_cast %886 : vector<8xf32> to vector<8x1xf32>
    %888 = vector.broadcast %887 : vector<8x1xf32> to vector<8x8xf32>
    %889 = arith.divf %885, %888 : vector<8x8xf32>
    %cst_317 = arith.constant dense<0.000000e+00> : vector<8x32xf32>
    %890 = tpu.matmul %889, %874, %cst_317 {dimension_numbers = #tpu.dot_dimension_numbers<[1], [0], [0], [1], [0, 0, 1, 1], [], []>} : vector<8x8xf32>, vector<8x32xf32>, vector<8x32xf32> -> vector<8x32xf32>
    %891 = tpu.concatenate %833, %852, %871, %890 in 1 : vector<8x32xf32>, vector<8x32xf32>, vector<8x32xf32>, vector<8x32xf32> -> vector<8x128xf32>
    %892 = vector.extract_strided_slice %810 {offsets = [8, 0], sizes = [8, 128], strides = [1, 1]} : vector<16x384xf32> to vector<8x128xf32>
    %893 = vector.extract_strided_slice %810 {offsets = [8, 128], sizes = [8, 128], strides = [1, 1]} : vector<16x384xf32> to vector<8x128xf32>
    %894 = vector.extract_strided_slice %810 {offsets = [8, 256], sizes = [8, 128], strides = [1, 1]} : vector<16x384xf32> to vector<8x128xf32>
    %895 = vector.extract_strided_slice %0 {offsets = [1, 0], sizes = [1, 8], strides = [1, 1]} : vector<2x8xf32> to vector<1x8xf32>
    %896 = vector.extract_strided_slice %892 {offsets = [0, 0], sizes = [8, 32], strides = [1, 1]} : vector<8x128xf32> to vector<8x32xf32>
    %897 = vector.extract_strided_slice %893 {offsets = [0, 0], sizes = [8, 32], strides = [1, 1]} : vector<8x128xf32> to vector<8x32xf32>
    %898 = vector.extract_strided_slice %894 {offsets = [0, 0], sizes = [8, 32], strides = [1, 1]} : vector<8x128xf32> to vector<8x32xf32>
    %899 = tpu.transpose %897, [1, 0] : vector<8x32xf32> -> vector<32x8xf32>
    %cst_318 = arith.constant dense<0.000000e+00> : vector<8x8xf32>
    %900 = tpu.matmul %896, %899, %cst_318 {dimension_numbers = #tpu.dot_dimension_numbers<[1], [0], [0], [1], [0, 0, 1, 1], [], []>} : vector<8x32xf32>, vector<32x8xf32>, vector<8x8xf32> -> vector<8x8xf32>
    %cst_319 = arith.constant 0.176776692 : f32
    %901 = vector.broadcast %cst_319 : f32 to vector<8x8xf32>
    %902 = arith.mulf %900, %901 : vector<8x8xf32>
    %903 = vector.broadcast %895 : vector<1x8xf32> to vector<8x8xf32>
    %904 = arith.addf %902, %903 : vector<8x8xf32>
    %cst_320 = arith.constant dense<0xFF800000> : vector<8xf32>
    %905 = vector.multi_reduction <maximumf>, %904, %cst_320 [1] : vector<8x8xf32> to vector<8xf32>
    %906 = vector.shape_cast %905 : vector<8xf32> to vector<8x1xf32>
    %907 = vector.broadcast %906 : vector<8x1xf32> to vector<8x8xf32>
    %908 = arith.subf %904, %907 : vector<8x8xf32>
    %909 = math.exp %908 : vector<8x8xf32>
    %cst_321 = arith.constant dense<0.000000e+00> : vector<8xf32>
    %910 = vector.multi_reduction <add>, %909, %cst_321 [1] : vector<8x8xf32> to vector<8xf32>
    %911 = vector.shape_cast %910 : vector<8xf32> to vector<8x1xf32>
    %912 = vector.broadcast %911 : vector<8x1xf32> to vector<8x8xf32>
    %913 = arith.divf %909, %912 : vector<8x8xf32>
    %cst_322 = arith.constant dense<0.000000e+00> : vector<8x32xf32>
    %914 = tpu.matmul %913, %898, %cst_322 {dimension_numbers = #tpu.dot_dimension_numbers<[1], [0], [0], [1], [0, 0, 1, 1], [], []>} : vector<8x8xf32>, vector<8x32xf32>, vector<8x32xf32> -> vector<8x32xf32>
    %915 = vector.extract_strided_slice %892 {offsets = [0, 32], sizes = [8, 32], strides = [1, 1]} : vector<8x128xf32> to vector<8x32xf32>
    %916 = vector.extract_strided_slice %893 {offsets = [0, 32], sizes = [8, 32], strides = [1, 1]} : vector<8x128xf32> to vector<8x32xf32>
    %917 = vector.extract_strided_slice %894 {offsets = [0, 32], sizes = [8, 32], strides = [1, 1]} : vector<8x128xf32> to vector<8x32xf32>
    %918 = tpu.transpose %916, [1, 0] : vector<8x32xf32> -> vector<32x8xf32>
    %cst_323 = arith.constant dense<0.000000e+00> : vector<8x8xf32>
    %919 = tpu.matmul %915, %918, %cst_323 {dimension_numbers = #tpu.dot_dimension_numbers<[1], [0], [0], [1], [0, 0, 1, 1], [], []>} : vector<8x32xf32>, vector<32x8xf32>, vector<8x8xf32> -> vector<8x8xf32>
    %cst_324 = arith.constant 0.176776692 : f32
    %920 = vector.broadcast %cst_324 : f32 to vector<8x8xf32>
    %921 = arith.mulf %919, %920 : vector<8x8xf32>
    %922 = vector.broadcast %895 : vector<1x8xf32> to vector<8x8xf32>
    %923 = arith.addf %921, %922 : vector<8x8xf32>
    %cst_325 = arith.constant dense<0xFF800000> : vector<8xf32>
    %924 = vector.multi_reduction <maximumf>, %923, %cst_325 [1] : vector<8x8xf32> to vector<8xf32>
    %925 = vector.shape_cast %924 : vector<8xf32> to vector<8x1xf32>
    %926 = vector.broadcast %925 : vector<8x1xf32> to vector<8x8xf32>
    %927 = arith.subf %923, %926 : vector<8x8xf32>
    %928 = math.exp %927 : vector<8x8xf32>
    %cst_326 = arith.constant dense<0.000000e+00> : vector<8xf32>
    %929 = vector.multi_reduction <add>, %928, %cst_326 [1] : vector<8x8xf32> to vector<8xf32>
    %930 = vector.shape_cast %929 : vector<8xf32> to vector<8x1xf32>
    %931 = vector.broadcast %930 : vector<8x1xf32> to vector<8x8xf32>
    %932 = arith.divf %928, %931 : vector<8x8xf32>
    %cst_327 = arith.constant dense<0.000000e+00> : vector<8x32xf32>
    %933 = tpu.matmul %932, %917, %cst_327 {dimension_numbers = #tpu.dot_dimension_numbers<[1], [0], [0], [1], [0, 0, 1, 1], [], []>} : vector<8x8xf32>, vector<8x32xf32>, vector<8x32xf32> -> vector<8x32xf32>
    %934 = vector.extract_strided_slice %892 {offsets = [0, 64], sizes = [8, 32], strides = [1, 1]} : vector<8x128xf32> to vector<8x32xf32>
    %935 = vector.extract_strided_slice %893 {offsets = [0, 64], sizes = [8, 32], strides = [1, 1]} : vector<8x128xf32> to vector<8x32xf32>
    %936 = vector.extract_strided_slice %894 {offsets = [0, 64], sizes = [8, 32], strides = [1, 1]} : vector<8x128xf32> to vector<8x32xf32>
    %937 = tpu.transpose %935, [1, 0] : vector<8x32xf32> -> vector<32x8xf32>
    %cst_328 = arith.constant dense<0.000000e+00> : vector<8x8xf32>
    %938 = tpu.matmul %934, %937, %cst_328 {dimension_numbers = #tpu.dot_dimension_numbers<[1], [0], [0], [1], [0, 0, 1, 1], [], []>} : vector<8x32xf32>, vector<32x8xf32>, vector<8x8xf32> -> vector<8x8xf32>
    %cst_329 = arith.constant 0.176776692 : f32
    %939 = vector.broadcast %cst_329 : f32 to vector<8x8xf32>
    %940 = arith.mulf %938, %939 : vector<8x8xf32>
    %941 = vector.broadcast %895 : vector<1x8xf32> to vector<8x8xf32>
    %942 = arith.addf %940, %941 : vector<8x8xf32>
    %cst_330 = arith.constant dense<0xFF800000> : vector<8xf32>
    %943 = vector.multi_reduction <maximumf>, %942, %cst_330 [1] : vector<8x8xf32> to vector<8xf32>
    %944 = vector.shape_cast %943 : vector<8xf32> to vector<8x1xf32>
    %945 = vector.broadcast %944 : vector<8x1xf32> to vector<8x8xf32>
    %946 = arith.subf %942, %945 : vector<8x8xf32>
    %947 = math.exp %946 : vector<8x8xf32>
    %cst_331 = arith.constant dense<0.000000e+00> : vector<8xf32>
    %948 = vector.multi_reduction <add>, %947, %cst_331 [1] : vector<8x8xf32> to vector<8xf32>
    %949 = vector.shape_cast %948 : vector<8xf32> to vector<8x1xf32>
    %950 = vector.broadcast %949 : vector<8x1xf32> to vector<8x8xf32>
    %951 = arith.divf %947, %950 : vector<8x8xf32>
    %cst_332 = arith.constant dense<0.000000e+00> : vector<8x32xf32>
    %952 = tpu.matmul %951, %936, %cst_332 {dimension_numbers = #tpu.dot_dimension_numbers<[1], [0], [0], [1], [0, 0, 1, 1], [], []>} : vector<8x8xf32>, vector<8x32xf32>, vector<8x32xf32> -> vector<8x32xf32>
    %953 = vector.extract_strided_slice %892 {offsets = [0, 96], sizes = [8, 32], strides = [1, 1]} : vector<8x128xf32> to vector<8x32xf32>
    %954 = vector.extract_strided_slice %893 {offsets = [0, 96], sizes = [8, 32], strides = [1, 1]} : vector<8x128xf32> to vector<8x32xf32>
    %955 = vector.extract_strided_slice %894 {offsets = [0, 96], sizes = [8, 32], strides = [1, 1]} : vector<8x128xf32> to vector<8x32xf32>
    %956 = tpu.transpose %954, [1, 0] : vector<8x32xf32> -> vector<32x8xf32>
    %cst_333 = arith.constant dense<0.000000e+00> : vector<8x8xf32>
    %957 = tpu.matmul %953, %956, %cst_333 {dimension_numbers = #tpu.dot_dimension_numbers<[1], [0], [0], [1], [0, 0, 1, 1], [], []>} : vector<8x32xf32>, vector<32x8xf32>, vector<8x8xf32> -> vector<8x8xf32>
    %cst_334 = arith.constant 0.176776692 : f32
    %958 = vector.broadcast %cst_334 : f32 to vector<8x8xf32>
    %959 = arith.mulf %957, %958 : vector<8x8xf32>
    %960 = vector.broadcast %895 : vector<1x8xf32> to vector<8x8xf32>
    %961 = arith.addf %959, %960 : vector<8x8xf32>
    %cst_335 = arith.constant dense<0xFF800000> : vector<8xf32>
    %962 = vector.multi_reduction <maximumf>, %961, %cst_335 [1] : vector<8x8xf32> to vector<8xf32>
    %963 = vector.shape_cast %962 : vector<8xf32> to vector<8x1xf32>
    %964 = vector.broadcast %963 : vector<8x1xf32> to vector<8x8xf32>
    %965 = arith.subf %961, %964 : vector<8x8xf32>
    %966 = math.exp %965 : vector<8x8xf32>
    %cst_336 = arith.constant dense<0.000000e+00> : vector<8xf32>
    %967 = vector.multi_reduction <add>, %966, %cst_336 [1] : vector<8x8xf32> to vector<8xf32>
    %968 = vector.shape_cast %967 : vector<8xf32> to vector<8x1xf32>
    %969 = vector.broadcast %968 : vector<8x1xf32> to vector<8x8xf32>
    %970 = arith.divf %966, %969 : vector<8x8xf32>
    %cst_337 = arith.constant dense<0.000000e+00> : vector<8x32xf32>
    %971 = tpu.matmul %970, %955, %cst_337 {dimension_numbers = #tpu.dot_dimension_numbers<[1], [0], [0], [1], [0, 0, 1, 1], [], []>} : vector<8x8xf32>, vector<8x32xf32>, vector<8x32xf32> -> vector<8x32xf32>
    %972 = tpu.concatenate %914, %933, %952, %971 in 1 : vector<8x32xf32>, vector<8x32xf32>, vector<8x32xf32>, vector<8x32xf32> -> vector<8x128xf32>
    %973 = tpu.concatenate %891, %972 in 0 : vector<8x128xf32>, vector<8x128xf32> -> vector<16x128xf32>
    %c3_338 = arith.constant 3 : index
    %c0_339 = arith.constant 0 : index
    %c0_340 = arith.constant 0 : index
    %974 = vector.load %arg6[%c3_338, %c0_339, %c0_340] : memref<4x128x128xf32, #tpu.memory_space<vmem>>, vector<1x128x128xf32>
    %975 = vector.shape_cast %974 : vector<1x128x128xf32> to vector<128x128xf32>
    %cst_341 = arith.constant dense<0.000000e+00> : vector<16x128xf32>
    %976 = tpu.matmul %973, %975, %cst_341 {dimension_numbers = #tpu.dot_dimension_numbers<[1], [0], [0], [1], [0, 0, 1, 1], [], []>} : vector<16x128xf32>, vector<128x128xf32>, vector<16x128xf32> -> vector<16x128xf32>
    %c3_342 = arith.constant 3 : index
    %c0_343 = arith.constant 0 : index
    %c0_344 = arith.constant 0 : index
    %977 = vector.load %arg7[%c3_342, %c0_343, %c0_344] : memref<4x1x128xf32, #tpu.memory_space<vmem>>, vector<1x1x128xf32>
    %978 = vector.shape_cast %977 : vector<1x1x128xf32> to vector<1x128xf32>
    %979 = vector.broadcast %978 : vector<1x128xf32> to vector<16x128xf32>
    %980 = arith.addf %976, %979 : vector<16x128xf32>
    %981 = arith.addf %980, %802 : vector<16x128xf32>
    %c3_345 = arith.constant 3 : index
    %c0_346 = arith.constant 0 : index
    %c0_347 = arith.constant 0 : index
    %982 = vector.load %arg8[%c3_345, %c0_346, %c0_347] : memref<4x1x128xf32, #tpu.memory_space<vmem>>, vector<1x1x128xf32>
    %983 = vector.shape_cast %982 : vector<1x1x128xf32> to vector<1x128xf32>
    %c3_348 = arith.constant 3 : index
    %c0_349 = arith.constant 0 : index
    %c0_350 = arith.constant 0 : index
    %984 = vector.load %arg9[%c3_348, %c0_349, %c0_350] : memref<4x1x128xf32, #tpu.memory_space<vmem>>, vector<1x1x128xf32>
    %985 = vector.shape_cast %984 : vector<1x1x128xf32> to vector<1x128xf32>
    %cst_351 = arith.constant dense<0.000000e+00> : vector<16xf32>
    %986 = vector.multi_reduction <add>, %981, %cst_351 [1] : vector<16x128xf32> to vector<16xf32>
    %987 = vector.shape_cast %986 : vector<16xf32> to vector<16x1xf32>
    %cst_352 = arith.constant 1.280000e+02 : f32
    %988 = vector.broadcast %cst_352 : f32 to vector<16x1xf32>
    %989 = arith.divf %987, %988 : vector<16x1xf32>
    %990 = vector.broadcast %989 : vector<16x1xf32> to vector<16x128xf32>
    %991 = arith.subf %981, %990 : vector<16x128xf32>
    %992 = arith.mulf %991, %991 : vector<16x128xf32>
    %cst_353 = arith.constant dense<0.000000e+00> : vector<16xf32>
    %993 = vector.multi_reduction <add>, %992, %cst_353 [1] : vector<16x128xf32> to vector<16xf32>
    %994 = vector.shape_cast %993 : vector<16xf32> to vector<16x1xf32>
    %cst_354 = arith.constant 1.280000e+02 : f32
    %995 = vector.broadcast %cst_354 : f32 to vector<16x1xf32>
    %996 = arith.divf %994, %995 : vector<16x1xf32>
    %997 = vector.broadcast %989 : vector<16x1xf32> to vector<16x128xf32>
    %998 = arith.subf %981, %997 : vector<16x128xf32>
    %cst_355 = arith.constant 9.99999996E-13 : f32
    %999 = vector.broadcast %cst_355 : f32 to vector<16x1xf32>
    %1000 = arith.addf %996, %999 : vector<16x1xf32>
    %1001 = math.rsqrt %1000 : vector<16x1xf32>
    %1002 = vector.broadcast %1001 : vector<16x1xf32> to vector<16x128xf32>
    %1003 = arith.mulf %998, %1002 : vector<16x128xf32>
    %1004 = vector.broadcast %983 : vector<1x128xf32> to vector<16x128xf32>
    %1005 = arith.mulf %1003, %1004 : vector<16x128xf32>
    %1006 = vector.broadcast %985 : vector<1x128xf32> to vector<16x128xf32>
    %1007 = arith.addf %1005, %1006 : vector<16x128xf32>
    %c3_356 = arith.constant 3 : index
    %c0_357 = arith.constant 0 : index
    %c0_358 = arith.constant 0 : index
    %1008 = vector.load %arg10[%c3_356, %c0_357, %c0_358] : memref<4x128x256xf32, #tpu.memory_space<vmem>>, vector<1x128x256xf32>
    %1009 = vector.shape_cast %1008 : vector<1x128x256xf32> to vector<128x256xf32>
    %cst_359 = arith.constant dense<0.000000e+00> : vector<16x256xf32>
    %1010 = tpu.matmul %1007, %1009, %cst_359 {dimension_numbers = #tpu.dot_dimension_numbers<[1], [0], [0], [1], [0, 0, 1, 1], [], []>} : vector<16x128xf32>, vector<128x256xf32>, vector<16x256xf32> -> vector<16x256xf32>
    %c3_360 = arith.constant 3 : index
    %c0_361 = arith.constant 0 : index
    %c0_362 = arith.constant 0 : index
    %1011 = vector.load %arg11[%c3_360, %c0_361, %c0_362] : memref<4x1x256xf32, #tpu.memory_space<vmem>>, vector<1x1x256xf32>
    %1012 = vector.shape_cast %1011 : vector<1x1x256xf32> to vector<1x256xf32>
    %1013 = vector.broadcast %1012 : vector<1x256xf32> to vector<16x256xf32>
    %1014 = arith.addf %1010, %1013 : vector<16x256xf32>
    %1015 = arith.mulf %1014, %1014 : vector<16x256xf32>
    %1016 = arith.mulf %1014, %1015 : vector<16x256xf32>
    %cst_363 = arith.constant 4.471500e-02 : f32
    %1017 = vector.broadcast %cst_363 : f32 to vector<16x256xf32>
    %1018 = arith.mulf %1017, %1016 : vector<16x256xf32>
    %1019 = arith.addf %1014, %1018 : vector<16x256xf32>
    %cst_364 = arith.constant 0.797884583 : f32
    %1020 = vector.broadcast %cst_364 : f32 to vector<16x256xf32>
    %1021 = arith.mulf %1020, %1019 : vector<16x256xf32>
    %1022 = math.tanh %1021 : vector<16x256xf32>
    %cst_365 = arith.constant 1.000000e+00 : f32
    %1023 = vector.broadcast %cst_365 : f32 to vector<16x256xf32>
    %1024 = arith.addf %1023, %1022 : vector<16x256xf32>
    %cst_366 = arith.constant 5.000000e-01 : f32
    %1025 = vector.broadcast %cst_366 : f32 to vector<16x256xf32>
    %1026 = arith.mulf %1025, %1024 : vector<16x256xf32>
    %1027 = arith.mulf %1014, %1026 : vector<16x256xf32>
    %c3_367 = arith.constant 3 : index
    %c0_368 = arith.constant 0 : index
    %c0_369 = arith.constant 0 : index
    %1028 = vector.load %arg12[%c3_367, %c0_368, %c0_369] : memref<4x256x128xf32, #tpu.memory_space<vmem>>, vector<1x256x128xf32>
    %1029 = vector.shape_cast %1028 : vector<1x256x128xf32> to vector<256x128xf32>
    %cst_370 = arith.constant dense<0.000000e+00> : vector<16x128xf32>
    %1030 = tpu.matmul %1027, %1029, %cst_370 {dimension_numbers = #tpu.dot_dimension_numbers<[1], [0], [0], [1], [0, 0, 1, 1], [], []>} : vector<16x256xf32>, vector<256x128xf32>, vector<16x128xf32> -> vector<16x128xf32>
    %c3_371 = arith.constant 3 : index
    %c0_372 = arith.constant 0 : index
    %c0_373 = arith.constant 0 : index
    %1031 = vector.load %arg13[%c3_371, %c0_372, %c0_373] : memref<4x1x128xf32, #tpu.memory_space<vmem>>, vector<1x1x128xf32>
    %1032 = vector.shape_cast %1031 : vector<1x1x128xf32> to vector<1x128xf32>
    %1033 = vector.broadcast %1032 : vector<1x128xf32> to vector<16x128xf32>
    %1034 = arith.addf %1030, %1033 : vector<16x128xf32>
    %1035 = arith.addf %1034, %1007 : vector<16x128xf32>
    %c3_374 = arith.constant 3 : index
    %c0_375 = arith.constant 0 : index
    %c0_376 = arith.constant 0 : index
    %1036 = vector.load %arg14[%c3_374, %c0_375, %c0_376] : memref<4x1x128xf32, #tpu.memory_space<vmem>>, vector<1x1x128xf32>
    %1037 = vector.shape_cast %1036 : vector<1x1x128xf32> to vector<1x128xf32>
    %c3_377 = arith.constant 3 : index
    %c0_378 = arith.constant 0 : index
    %c0_379 = arith.constant 0 : index
    %1038 = vector.load %arg15[%c3_377, %c0_378, %c0_379] : memref<4x1x128xf32, #tpu.memory_space<vmem>>, vector<1x1x128xf32>
    %1039 = vector.shape_cast %1038 : vector<1x1x128xf32> to vector<1x128xf32>
    %cst_380 = arith.constant dense<0.000000e+00> : vector<16xf32>
    %1040 = vector.multi_reduction <add>, %1035, %cst_380 [1] : vector<16x128xf32> to vector<16xf32>
    %1041 = vector.shape_cast %1040 : vector<16xf32> to vector<16x1xf32>
    %cst_381 = arith.constant 1.280000e+02 : f32
    %1042 = vector.broadcast %cst_381 : f32 to vector<16x1xf32>
    %1043 = arith.divf %1041, %1042 : vector<16x1xf32>
    %1044 = vector.broadcast %1043 : vector<16x1xf32> to vector<16x128xf32>
    %1045 = arith.subf %1035, %1044 : vector<16x128xf32>
    %1046 = arith.mulf %1045, %1045 : vector<16x128xf32>
    %cst_382 = arith.constant dense<0.000000e+00> : vector<16xf32>
    %1047 = vector.multi_reduction <add>, %1046, %cst_382 [1] : vector<16x128xf32> to vector<16xf32>
    %1048 = vector.shape_cast %1047 : vector<16xf32> to vector<16x1xf32>
    %cst_383 = arith.constant 1.280000e+02 : f32
    %1049 = vector.broadcast %cst_383 : f32 to vector<16x1xf32>
    %1050 = arith.divf %1048, %1049 : vector<16x1xf32>
    %1051 = vector.broadcast %1043 : vector<16x1xf32> to vector<16x128xf32>
    %1052 = arith.subf %1035, %1051 : vector<16x128xf32>
    %cst_384 = arith.constant 9.99999996E-13 : f32
    %1053 = vector.broadcast %cst_384 : f32 to vector<16x1xf32>
    %1054 = arith.addf %1050, %1053 : vector<16x1xf32>
    %1055 = math.rsqrt %1054 : vector<16x1xf32>
    %1056 = vector.broadcast %1055 : vector<16x1xf32> to vector<16x128xf32>
    %1057 = arith.mulf %1052, %1056 : vector<16x128xf32>
    %1058 = vector.broadcast %1037 : vector<1x128xf32> to vector<16x128xf32>
    %1059 = arith.mulf %1057, %1058 : vector<16x128xf32>
    %1060 = vector.broadcast %1039 : vector<1x128xf32> to vector<16x128xf32>
    %1061 = arith.addf %1059, %1060 : vector<16x128xf32>
    %1062 = arith.addf %803, %1061 : vector<16x128xf32>
    %cst_385 = arith.constant 2.500000e-01 : f32
    %1063 = vector.broadcast %cst_385 : f32 to vector<16x128xf32>
    %1064 = arith.mulf %1062, %1063 : vector<16x128xf32>
    %c0_386 = arith.constant 0 : index
    %c0_387 = arith.constant 0 : index
    %1065 = vector.load %arg16[%c0_386, %c0_387] : memref<16x128xf32, #tpu.memory_space<vmem>>, vector<16x128xf32>
    tpu.vector_store %arg16[%c0_386, %c0_387], %1064 {strides = array<i32>} : memref<16x128xf32, #tpu.memory_space<vmem>>, vector<16x128xf32>,
    return
  }
}

</mosaic_0001>

<llo_original>
// kernel: bert_word_encoder_forward.1
$region0: #{bert_word_encoder_forward.1}
  #allocation0 [shape = 'u32[]', space=smem, size = 0x4, offset = 0x4, fixed_abs, tag = 'smem constant byte address 0x4 - core index']
  #allocation1 [shape = 'u32[72,128]{1,0:T(1,128)}', space=vmem, size = 0x9000, scoped, tag = 'internal scratch']
  %s0 = inlined_call_operand.vmem [shape: f32[16,128], index: 0, kind: input, shape index: {}]
  %s1 = inlined_call_operand.vmem [shape: f32[2,8], index: 1, kind: input, shape index: {}]
  %s2 = inlined_call_operand.vmem [shape: f32[1,128], index: 2, kind: input, shape index: {}]
  %s3 = inlined_call_operand.vmem [shape: f32[1,128], index: 3, kind: input, shape index: {}]
  %s4 = inlined_call_operand.hbm [shape: f32[4,128,384], index: 4, kind: input, shape index: {}]
  %s5 = inlined_call_operand.vmem [shape: f32[4,1,384], index: 5, kind: input, shape index: {}]
  %s6 = inlined_call_operand.hbm [shape: f32[4,128,128], index: 6, kind: input, shape index: {}]
  %s7 = inlined_call_operand.vmem [shape: f32[4,1,128], index: 7, kind: input, shape index: {}]
  %s8 = inlined_call_operand.vmem [shape: f32[4,1,128], index: 8, kind: input, shape index: {}]
  %s9 = inlined_call_operand.vmem [shape: f32[4,1,128], index: 9, kind: input, shape index: {}]
  %s10 = inlined_call_operand.hbm [shape: f32[4,128,256], index: 10, kind: input, shape index: {}]
  %s11 = inlined_call_operand.vmem [shape: f32[4,1,256], index: 11, kind: input, shape index: {}]
  %s12 = inlined_call_operand.hbm [shape: f32[4,256,128], index: 12, kind: input, shape index: {}]
  %s13 = inlined_call_operand.vmem [shape: f32[4,1,128], index: 13, kind: input, shape index: {}]
  %s14 = inlined_call_operand.vmem [shape: f32[4,1,128], index: 14, kind: input, shape index: {}]
  %s15 = inlined_call_operand.vmem [shape: f32[4,1,128], index: 15, kind: input, shape index: {}]
  %s16 = inlined_call_operand.hbm [shape: f32[16,128], index: 16, kind: output, shape index: {}]
  %s17 = sld [smem:[#allocation0]]
  $region90: #{bert_word_encoder_forward.1} parent=0
    _
  %s19 = ssub.s32 1, %s17
  %s20 = scalar_select 0, %s19, %s17
  $region1: #{bert_word_encoder_forward.1} parent=0
    #allocation2 [shape = 'u8[786432]{0}', space=vmem, size = 0xc0000, scoped, tag = 'input window, operand 4, single buffered']
    #allocation3 [shape = 's32[1]{0}', space=sflag, size = 0x4, scoped, tag = 'scoped memory for bert_word_encoder_forward.1']
    #allocation4 [shape = 's32[1]{0}', space=sflag, size = 0x4, scoped, tag = 'scoped memory for bert_word_encoder_forward.1']
    #allocation5 [shape = 'u8[262144]{0}', space=vmem, size = 0x40000, scoped, tag = 'input window, operand 6, single buffered']
    #allocation6 [shape = 's32[1]{0}', space=sflag, size = 0x4, scoped, tag = 'scoped memory for bert_word_encoder_forward.1']
    #allocation7 [shape = 'u8[524288]{0}', space=vmem, size = 0x80000, scoped, tag = 'input window, operand 10, single buffered']
    #allocation8 [shape = 'u8[524288]{0}', space=vmem, size = 0x80000, scoped, tag = 'input window, operand 12, single buffered']
    #allocation9 [shape = 's32[1]{0}', space=sflag, size = 0x4, scoped, tag = 'scoped memory for bert_word_encoder_forward.1']
    #allocation10 [shape = 'u8[8192]{0}', space=vmem, size = 0x2000, scoped, tag = 'output window, operand 0, single buffered']
    %21 = vsyncpa [#allocation3], 0
    %22 = vsyncpa [#allocation6], 0
    %23 = vsyncpa [#allocation9], 0
    %24 = vsyncpa [#allocation4], 0
    // Predicated region
    $region2: #{bert_word_encoder_forward.1} parent=1 // pred_check
      _
    $region3: #{bert_word_encoder_forward.1} parent=1 // pred_check_branch
      %26 = sbr.rel (0) target = $region5
    $region4: #{bert_word_encoder_forward.1} parent=1 // pred_region
      _
    $region5: #{bert_word_encoder_forward.1} parent=1 // pred_fallthru
      _
    // Predicated region
    $region6: #{bert_word_encoder_forward.1} parent=1 // pred_check
      _
    $region7: #{bert_word_encoder_forward.1} parent=1 // pred_check_branch
      %28 = sbr.rel (0) target = $region9
    $region8: #{bert_word_encoder_forward.1} parent=1 // pred_region
      _
    $region9: #{bert_word_encoder_forward.1} parent=1 // pred_fallthru
      _
    // Predicated region
    $region10: #{bert_word_encoder_forward.1} parent=1 // pred_check
      _
    $region11: #{bert_word_encoder_forward.1} parent=1 // pred_check_branch
      %30 = sbr.rel (0) target = $region13
    $region12: #{bert_word_encoder_forward.1} parent=1 // pred_region
      _
    $region13: #{bert_word_encoder_forward.1} parent=1 // pred_fallthru
      _
    // Predicated region
    $region14: #{bert_word_encoder_forward.1} parent=1 // pred_check
      _
    $region15: #{bert_word_encoder_forward.1} parent=1 // pred_check_branch
      %32 = sbr.rel (0) target = $region17
    $region16: #{bert_word_encoder_forward.1} parent=1 // pred_region
      _
    $region17: #{bert_word_encoder_forward.1} parent=1 // pred_fallthru
      _
    // Predicated region
    $region18: #{bert_word_encoder_forward.1} parent=1 // pred_check
      _
    $region19: #{bert_word_encoder_forward.1} parent=1 // pred_check_branch
      %34 = sbr.rel (0) target = $region21
    $region20: #{bert_word_encoder_forward.1} parent=1 // pred_region
      %36 = vsyncadd [#allocation3], 0
      %s37 = sshll.u32 %s4, 4
      %s38 = int_to_ptr.hbm [resolvable:$true] %s37
      %s39 = sshll.u32 [#allocation2], 4
      %s40 = int_to_ptr.vmem [resolvable:$true] %s39
      %45 = dma.hbm_to_vmem [thread:$0]  %s38, 24576, %s40, [#allocation3], 384, 384, 24
    $region21: #{bert_word_encoder_forward.1} parent=1 // pred_fallthru
      _
    // Predicated region
    $region22: #{bert_word_encoder_forward.1} parent=1 // pred_check
      _
    $region23: #{bert_word_encoder_forward.1} parent=1 // pred_check_branch
      %47 = sbr.rel (0) target = $region25
    $region24: #{bert_word_encoder_forward.1} parent=1 // pred_region
      _
    $region25: #{bert_word_encoder_forward.1} parent=1 // pred_fallthru
      _
    // Predicated region
    $region26: #{bert_word_encoder_forward.1} parent=1 // pred_check
      _
    $region27: #{bert_word_encoder_forward.1} parent=1 // pred_check_branch
      %49 = sbr.rel (0) target = $region29
    $region28: #{bert_word_encoder_forward.1} parent=1 // pred_region
      %51 = vsyncadd [#allocation6], 0
      %s52 = sshll.u32 %s6, 4
      %s53 = int_to_ptr.hbm [resolvable:$true] %s52
      %s54 = sshll.u32 [#allocation5], 4
      %s55 = int_to_ptr.vmem [resolvable:$true] %s54
      %60 = dma.hbm_to_vmem [thread:$0]  %s53, 8192, %s55, [#allocation6], 128, 128, 8
    $region29: #{bert_word_encoder_forward.1} parent=1 // pred_fallthru
      _
    // Predicated region
    $region30: #{bert_word_encoder_forward.1} parent=1 // pred_check
      _
    $region31: #{bert_word_encoder_forward.1} parent=1 // pred_check_branch
      %62 = sbr.rel (0) target = $region33
    $region32: #{bert_word_encoder_forward.1} parent=1 // pred_region
      _
    $region33: #{bert_word_encoder_forward.1} parent=1 // pred_fallthru
      _
    // Predicated region
    $region34: #{bert_word_encoder_forward.1} parent=1 // pred_check
      _
    $region35: #{bert_word_encoder_forward.1} parent=1 // pred_check_branch
      %64 = sbr.rel (0) target = $region37
    $region36: #{bert_word_encoder_forward.1} parent=1 // pred_region
      _
    $region37: #{bert_word_encoder_forward.1} parent=1 // pred_fallthru
      _
    // Predicated region
    $region38: #{bert_word_encoder_forward.1} parent=1 // pred_check
      _
    $region39: #{bert_word_encoder_forward.1} parent=1 // pred_check_branch
      %66 = sbr.rel (0) target = $region41
    $region40: #{bert_word_encoder_forward.1} parent=1 // pred_region
      _
    $region41: #{bert_word_encoder_forward.1} parent=1 // pred_fallthru
      _
    // Predicated region
    $region42: #{bert_word_encoder_forward.1} parent=1 // pred_check
      _
    $region43: #{bert_word_encoder_forward.1} parent=1 // pred_check_branch
      %68 = sbr.rel (0) target = $region45
    $region44: #{bert_word_encoder_forward.1} parent=1 // pred_region
      %70 = vsyncadd [#allocation6], 0
      %s71 = sshll.u32 %s10, 4
      %s72 = int_to_ptr.hbm [resolvable:$true] %s71
      %s73 = sshll.u32 [#allocation7], 4
      %s74 = int_to_ptr.vmem [resolvable:$true] %s73
      %79 = dma.hbm_to_vmem [thread:$0]  %s72, 16384, %s74, [#allocation6], 256, 256, 16
    $region45: #{bert_word_encoder_forward.1} parent=1 // pred_fallthru
      _
    // Predicated region
    $region46: #{bert_word_encoder_forward.1} parent=1 // pred_check
      _
    $region47: #{bert_word_encoder_forward.1} parent=1 // pred_check_branch
      %81 = sbr.rel (0) target = $region49
    $region48: #{bert_word_encoder_forward.1} parent=1 // pred_region
      _
    $region49: #{bert_word_encoder_forward.1} parent=1 // pred_fallthru
      _
    // Predicated region
    $region50: #{bert_word_encoder_forward.1} parent=1 // pred_check
      _
    $region51: #{bert_word_encoder_forward.1} parent=1 // pred_check_branch
      %83 = sbr.rel (0) target = $region53
    $region52: #{bert_word_encoder_forward.1} parent=1 // pred_region
      %85 = vsyncadd [#allocation9], 0
      %s86 = sshll.u32 %s12, 4
      %s87 = int_to_ptr.hbm [resolvable:$true] %s86
      %s88 = sshll.u32 [#allocation8], 4
      %s89 = int_to_ptr.vmem [resolvable:$true] %s88
      %94 = dma.hbm_to_vmem [thread:$0]  %s87, 16384, %s89, [#allocation9], 128, 128, 8
    $region53: #{bert_word_encoder_forward.1} parent=1 // pred_fallthru
      _
    // Predicated region
    $region54: #{bert_word_encoder_forward.1} parent=1 // pred_check
      _
    $region55: #{bert_word_encoder_forward.1} parent=1 // pred_check_branch
      %96 = sbr.rel (0) target = $region57
    $region56: #{bert_word_encoder_forward.1} parent=1 // pred_region
      _
    $region57: #{bert_word_encoder_forward.1} parent=1 // pred_fallthru
      _
    // Predicated region
    $region58: #{bert_word_encoder_forward.1} parent=1 // pred_check
      _
    $region59: #{bert_word_encoder_forward.1} parent=1 // pred_check_branch
      %98 = sbr.rel (0) target = $region61
    $region60: #{bert_word_encoder_forward.1} parent=1 // pred_region
      _
    $region61: #{bert_word_encoder_forward.1} parent=1 // pred_fallthru
      _
    // Predicated region
    $region62: #{bert_word_encoder_forward.1} parent=1 // pred_check
      _
    $region63: #{bert_word_encoder_forward.1} parent=1 // pred_check_branch
      %100 = sbr.rel (0) target = $region65
    $region64: #{bert_word_encoder_forward.1} parent=1 // pred_region
      _
    $region65: #{bert_word_encoder_forward.1} parent=1 // pred_fallthru
      _
    // Predicated region
    $region66: #{bert_word_encoder_forward.1} parent=1 // pred_check
      _
    $region67: #{bert_word_encoder_forward.1} parent=1 // pred_check_branch
      %102 = sbr.rel (0) target = $region69
    $region68: #{bert_word_encoder_forward.1} parent=1 // pred_region
      %104 = dma.done [#allocation3], 24576
    $region69: #{bert_word_encoder_forward.1} parent=1 // pred_fallthru
      _
    // Predicated region
    $region70: #{bert_word_encoder_forward.1} parent=1 // pred_check
      _
    $region71: #{bert_word_encoder_forward.1} parent=1 // pred_check_branch
      %106 = sbr.rel (0) target = $region73
    $region72: #{bert_word_encoder_forward.1} parent=1 // pred_region
      %108 = dma.done [#allocation6], 8192
    $region73: #{bert_word_encoder_forward.1} parent=1 // pred_fallthru
      _
    // Predicated region
    $region74: #{bert_word_encoder_forward.1} parent=1 // pred_check
      _
    $region75: #{bert_word_encoder_forward.1} parent=1 // pred_check_branch
      %110 = sbr.rel (0) target = $region77
    $region76: #{bert_word_encoder_forward.1} parent=1 // pred_region
      %112 = dma.done [#allocation6], 16384
    $region77: #{bert_word_encoder_forward.1} parent=1 // pred_fallthru
      _
    // Predicated region
    $region78: #{bert_word_encoder_forward.1} parent=1 // pred_check
      _
    $region79: #{bert_word_encoder_forward.1} parent=1 // pred_check_branch
      %114 = sbr.rel (0) target = $region81
    $region80: #{bert_word_encoder_forward.1} parent=1 // pred_region
      %116 = dma.done [#allocation9], 16384
    $region81: #{bert_word_encoder_forward.1} parent=1 // pred_fallthru
      _
    %v117 = vld [vmem:[%s1] sm:$0x3]
    %v118 = vld [vmem:[%s0] sm:$0xff]
    %v119 = vld [vmem:[%s0 + $0x8] sm:$0xff]
    %v120 = vld [vmem:[%s2] sm:$0x1]
    %v121 = vld [vmem:[%s3] sm:$0x1]
    %122 = vadd.xlane.f32.xlu0 %v118
    %v123 = vpop.xlane.xlu0 %122
    %124 = vadd.xlane.f32.xlu0 %v119
    %v125 = vpop.xlane.xlu0 %124
    %v126 = vrcp.pop 128.0
    %v127 = vmul.f32 128.0, %v126
    %v128 = vsub.f32 1.0, %v127
    %v129 = vmul.f32 %v126, %v128
    %v130 = vadd.f32 %v126, %v129
    %vm131 = vweird.f32 %v126
    %v132 = vsel %vm131, %v126, %v130
    %v133 = vmul.f32 %v123, %v132
    %v134 = vmul.f32 %v125, %v132
    %v135 = vsub.f32 %v118, %v133
    %v136 = vsub.f32 %v119, %v134
    %v137 = vmul.f32 %v135, %v135
    %v138 = vmul.f32 %v136, %v136
    %139 = vadd.xlane.f32.xlu0 %v137
    %v140 = vpop.xlane.xlu0 %139
    %141 = vadd.xlane.f32.xlu0 %v138
    %v142 = vpop.xlane.xlu0 %141
    %v143 = vmul.f32 %v140, %v132
    %v144 = vmul.f32 %v142, %v132
    %v145 = vadd.f32 %v143, 1e-12
    %v146 = vadd.f32 %v144, 1e-12
    %v147 = vrsqrt.pop %v145
    %v148 = vmul.f32 %v147, %v145
    %v149 = vmul.f32 %v148, %v147
    %v150 = vmul.f32 0.5, %v149
    %v151 = vsub.f32 1.5, %v150
    %v152 = vmul.f32 %v147, %v151
    %vm153 = vweird.f32 %v145
    %vm154 = vweird.f32 %v147
    %vm155 = vmor %vm153, %vm154
    %v156 = vsel %vm155, %v147, %v152
    %v157 = vrsqrt.pop %v146
    %v158 = vmul.f32 %v157, %v146
    %v159 = vmul.f32 %v158, %v157
    %v160 = vmul.f32 0.5, %v159
    %v161 = vsub.f32 1.5, %v160
    %v162 = vmul.f32 %v157, %v161
    %vm163 = vweird.f32 %v146
    %vm164 = vweird.f32 %v157
    %vm165 = vmor %vm163, %vm164
    %v166 = vsel %vm165, %v157, %v162
    %v167 = vmul.f32 %v135, %v156
    %v168 = vmul.f32 %v136, %v166
    %v170 = vperm.slane %v120, 0
    %v172 = vmul.f32 %v167, %v170
    %v173 = vmul.f32 %v168, %v170
    %v175 = vperm.slane %v121, 0
    %v177 = vadd.f32 %v172, %v175
    %v178 = vadd.f32 %v173, %v175
    %v179 = vld [vmem:[#allocation2] sm:$0xff]
    %v180 = vld [vmem:[#allocation2 + $0x8] sm:$0xff]
    %v181 = vld [vmem:[#allocation2 + $0x10] sm:$0xff]
    %v182 = vld [vmem:[#allocation2 + $0x18] sm:$0xff]
    %v183 = vld [vmem:[#allocation2 + $0x20] sm:$0xff]
    %v184 = vld [vmem:[#allocation2 + $0x28] sm:$0xff]
    %v185 = vld [vmem:[#allocation2 + $0x30] sm:$0xff]
    %v186 = vld [vmem:[#allocation2 + $0x38] sm:$0xff]
    %v187 = vld [vmem:[#allocation2 + $0x40] sm:$0xff]
    %v188 = vld [vmem:[#allocation2 + $0x48] sm:$0xff]
    %v189 = vld [vmem:[#allocation2 + $0x50] sm:$0xff]
    %v190 = vld [vmem:[#allocation2 + $0x58] sm:$0xff]
    %v191 = vld [vmem:[#allocation2 + $0x60] sm:$0xff]
    %v192 = vld [vmem:[#allocation2 + $0x68] sm:$0xff]
    %v193 = vld [vmem:[#allocation2 + $0x70] sm:$0xff]
    %v194 = vld [vmem:[#allocation2 + $0x78] sm:$0xff]
    %v195 = vld [vmem:[#allocation2 + $0x80] sm:$0xff]
    %v196 = vld [vmem:[#allocation2 + $0x88] sm:$0xff]
    %v197 = vld [vmem:[#allocation2 + $0x90] sm:$0xff]
    %v198 = vld [vmem:[#allocation2 + $0x98] sm:$0xff]
    %v199 = vld [vmem:[#allocation2 + $0xa0] sm:$0xff]
    %v200 = vld [vmem:[#allocation2 + $0xa8] sm:$0xff]
    %v201 = vld [vmem:[#allocation2 + $0xb0] sm:$0xff]
    %v202 = vld [vmem:[#allocation2 + $0xb8] sm:$0xff]
    %v203 = vld [vmem:[#allocation2 + $0xc0] sm:$0xff]
    %v204 = vld [vmem:[#allocation2 + $0xc8] sm:$0xff]
    %v205 = vld [vmem:[#allocation2 + $0xd0] sm:$0xff]
    %v206 = vld [vmem:[#allocation2 + $0xd8] sm:$0xff]
    %v207 = vld [vmem:[#allocation2 + $0xe0] sm:$0xff]
    %v208 = vld [vmem:[#allocation2 + $0xe8] sm:$0xff]
    %v209 = vld [vmem:[#allocation2 + $0xf0] sm:$0xff]
    %v210 = vld [vmem:[#allocation2 + $0xf8] sm:$0xff]
    %v211 = vld [vmem:[#allocation2 + $0x100] sm:$0xff]
    %v212 = vld [vmem:[#allocation2 + $0x108] sm:$0xff]
    %v213 = vld [vmem:[#allocation2 + $0x110] sm:$0xff]
    %v214 = vld [vmem:[#allocation2 + $0x118] sm:$0xff]
    %v215 = vld [vmem:[#allocation2 + $0x120] sm:$0xff]
    %v216 = vld [vmem:[#allocation2 + $0x128] sm:$0xff]
    %v217 = vld [vmem:[#allocation2 + $0x130] sm:$0xff]
    %v218 = vld [vmem:[#allocation2 + $0x138] sm:$0xff]
    %v219 = vld [vmem:[#allocation2 + $0x140] sm:$0xff]
    %v220 = vld [vmem:[#allocation2 + $0x148] sm:$0xff]
    %v221 = vld [vmem:[#allocation2 + $0x150] sm:$0xff]
    %v222 = vld [vmem:[#allocation2 + $0x158] sm:$0xff]
    %v223 = vld [vmem:[#allocation2 + $0x160] sm:$0xff]
    %v224 = vld [vmem:[#allocation2 + $0x168] sm:$0xff]
    %v225 = vld [vmem:[#allocation2 + $0x170] sm:$0xff]
    %v226 = vld [vmem:[#allocation2 + $0x178] sm:$0xff]
    %v227 = vld [vmem:[%s5] sm:$0x7]
    %v229 = vperm.slane %v227, 0
    %v230 = vperm.slane %v227, 1
    %v231 = vperm.slane %v227, 2
    %235 = vmatpush.msra.mxu0 %v224
    %236 = vmatpush.msra.mxu0 %v221
    %237 = vmatpush.msra.mxu0 %v218
    %238 = vmatpush.msra.mxu0 %v215
    %239 = vmatpush.msra.mxu0 %v212
    %240 = vmatpush.msra.mxu0 %v209
    %241 = vmatpush.msra.mxu0 %v206
    %242 = vmatpush.msra.mxu0 %v203
    %243 = vmatpush.msra.mxu0 %v200
    %244 = vmatpush.msra.mxu0 %v197
    %245 = vmatpush.msra.mxu0 %v194
    %246 = vmatpush.msra.mxu0 %v191
    %247 = vmatpush.msra.mxu0 %v188
    %248 = vmatpush.msra.mxu0 %v185
    %249 = vmatpush.msra.mxu0 %v182
    %250 = vmatpush.msra.mxu0 %v179
    %251 = vmatmul.f32.gmra.mxu0 %v177
    %v252 = vpop.f32.mrf.mxu0
    %v253 = vadd.f32 %v229, %v252
    %254 = vmatmul.f32.gmra.mxu0 %v178
    %v255 = vpop.f32.mrf.mxu0
    %v256 = vadd.f32 %v229, %v255
    %257 = vdwg.mxu0
    %258 = vmatpush.msra.mxu0 %v225
    %259 = vmatpush.msra.mxu0 %v222
    %260 = vmatpush.msra.mxu0 %v219
    %261 = vmatpush.msra.mxu0 %v216
    %262 = vmatpush.msra.mxu0 %v213
    %263 = vmatpush.msra.mxu0 %v210
    %264 = vmatpush.msra.mxu0 %v207
    %265 = vmatpush.msra.mxu0 %v204
    %266 = vmatpush.msra.mxu0 %v201
    %267 = vmatpush.msra.mxu0 %v198
    %268 = vmatpush.msra.mxu0 %v195
    %269 = vmatpush.msra.mxu0 %v192
    %270 = vmatpush.msra.mxu0 %v189
    %271 = vmatpush.msra.mxu0 %v186
    %272 = vmatpush.msra.mxu0 %v183
    %273 = vmatpush.msra.mxu0 %v180
    %274 = vmatmul.f32.gmra.mxu0 %v177
    %v275 = vpop.f32.mrf.mxu0
    %v276 = vadd.f32 %v230, %v275
    %277 = vmatmul.f32.gmra.mxu0 %v178
    %v278 = vpop.f32.mrf.mxu0
    %v279 = vadd.f32 %v230, %v278
    %280 = vdwg.mxu0
    %281 = vmatpush.msra.mxu0 %v226
    %282 = vmatpush.msra.mxu0 %v223
    %283 = vmatpush.msra.mxu0 %v220
    %284 = vmatpush.msra.mxu0 %v217
    %285 = vmatpush.msra.mxu0 %v214
    %286 = vmatpush.msra.mxu0 %v211
    %287 = vmatpush.msra.mxu0 %v208
    %288 = vmatpush.msra.mxu0 %v205
    %289 = vmatpush.msra.mxu0 %v202
    %290 = vmatpush.msra.mxu0 %v199
    %291 = vmatpush.msra.mxu0 %v196
    %292 = vmatpush.msra.mxu0 %v193
    %293 = vmatpush.msra.mxu0 %v190
    %294 = vmatpush.msra.mxu0 %v187
    %295 = vmatpush.msra.mxu0 %v184
    %296 = vmatpush.msra.mxu0 %v181
    %297 = vmatmul.f32.gmra.mxu0 %v177
    %v298 = vpop.f32.mrf.mxu0
    %v299 = vadd.f32 %v231, %v298
    %300 = vmatmul.f32.gmra.mxu0 %v178
    %v301 = vpop.f32.mrf.mxu0
    %v302 = vadd.f32 %v231, %v301
    %303 = vdwg.mxu0
    %vm304 = vcmask 261120
    %v306 = vsel %vm304, %v253, 0
    %v309 = vsel %vm304, %v276, 0
    %311 = vmatpush.xpose.msra.mxu0 0.0
    %312 = vmatpush.xpose.msra.mxu0 0.0
    %313 = vmatpush.xpose.msra.mxu0 0.0
    %314 = vmatpush.xpose.msra.mxu0 0.0
    %315 = vmatpush.xpose.msra.mxu0 0.0
    %316 = vmatpush.xpose.msra.mxu0 0.0
    %317 = vmatpush.xpose.msra.mxu0 0.0
    %318 = vmatpush.xpose.msra.mxu0 0.0
    %319 = vmatpush.xpose.msra.mxu0 0.0
    %320 = vmatpush.xpose.msra.mxu0 0.0
    %321 = vmatpush.xpose.msra.mxu0 0.0
    %322 = vmatpush.xpose.msra.mxu0 0.0
    %323 = vmatpush.xpose.msra.mxu0 0.0
    %324 = vmatpush.xpose.msra.mxu0 0.0
    %325 = vmatpush.xpose.msra.mxu0 0.0
    %326 = vmatpush.xpose.msra.mxu0 %v309
    %327 = vmatmul.f32.gmra.mxu0 %v306
    %v328 = vpop.f32.mrf.mxu0
    %v329 = vadd.f32 0.0, %v328
    %330 = vdwg.mxu0
    %v331 = vmul.f32 %v329, 0.17677669
    %v332 = vperm.slane %v117, 0
    %v333 = vadd.f32 %v331, %v332
    %vm334 = vcmask 64512
    %v335 = vsel %vm334, %v333, -inf
    %336 = vmax.xlane.f32.xlu0 %v335
    %v337 = vpop.xlane.xlu0 %336
    %v338 = vsub.f32 %v333, %v337
    %v339 = vmul.f32 %v338, 1.442695
    %v340 = vpow.pop %v339
    %v341 = vsel %vm334, %v340, 0.0
    %342 = vadd.xlane.f32.xlu0 %v341
    %v343 = vpop.xlane.xlu0 %342
    %v344 = vrcp.pop %v343
    %v345 = vmul.f32 %v343, %v344
    %v346 = vsub.f32 1.0, %v345
    %v347 = vmul.f32 %v344, %v346
    %v348 = vadd.f32 %v344, %v347
    %vm349 = vweird.f32 %v343
    %vm350 = vweird.f32 %v344
    %vm351 = vmor %vm349, %vm350
    %v352 = vsel %vm351, %v344, %v348
    %v353 = vand.u32 2147483647, %v343
    %vm354 = vcmp.eq.f32.partialorder %v353, 8.507059e+37
    %v355 = vand.u32 %v343, 2147483648
    %v356 = vor.u32 1.1754944e-38, %v355
    %v357 = vsel %vm354, %v356, %v352
    %v358 = vmul.f32 %v340, %v357
    %v360 = vsel %vm334, %v358, 0
    %362 = vmatpush.msra.mxu0 0.0
    %363 = vmatpush.msra.mxu0 0.0
    %364 = vmatpush.msra.mxu0 0.0
    %365 = vmatpush.msra.mxu0 0.0
    %366 = vmatpush.msra.mxu0 0.0
    %367 = vmatpush.msra.mxu0 0.0
    %368 = vmatpush.msra.mxu0 0.0
    %369 = vmatpush.msra.mxu0 0.0
    %370 = vmatpush.msra.mxu0 0.0
    %371 = vmatpush.msra.mxu0 0.0
    %372 = vmatpush.msra.mxu0 0.0
    %373 = vmatpush.msra.mxu0 0.0
    %374 = vmatpush.msra.mxu0 0.0
    %375 = vmatpush.msra.mxu0 0.0
    %376 = vmatpush.msra.mxu0 0.0
    %377 = vmatpush.msra.mxu0 %v299
    %378 = vmatmul.f32.gmra.mxu0 %v360
    %v379 = vpop.f32.mrf.mxu0
    %v380 = vadd.f32 0.0, %v379
    %381 = vdwg.mxu0
    %382 = vrot.lane.b32.xlu0 %v253, 96
    %v383 = vpop.permute.xlu0 %382
    %384 = vrot.lane.b32.xlu0 %v276, 96
    %v385 = vpop.permute.xlu0 %384
    %v386 = vsel %vm304, %v383, 0
    %v388 = vsel %vm304, %v385, 0
    %390 = vmatpush.xpose.msra.mxu0 0.0
    %391 = vmatpush.xpose.msra.mxu0 0.0
    %392 = vmatpush.xpose.msra.mxu0 0.0
    %393 = vmatpush.xpose.msra.mxu0 0.0
    %394 = vmatpush.xpose.msra.mxu0 0.0
    %395 = vmatpush.xpose.msra.mxu0 0.0
    %396 = vmatpush.xpose.msra.mxu0 0.0
    %397 = vmatpush.xpose.msra.mxu0 0.0
    %398 = vmatpush.xpose.msra.mxu0 0.0
    %399 = vmatpush.xpose.msra.mxu0 0.0
    %400 = vmatpush.xpose.msra.mxu0 0.0
    %401 = vmatpush.xpose.msra.mxu0 0.0
    %402 = vmatpush.xpose.msra.mxu0 0.0
    %403 = vmatpush.xpose.msra.mxu0 0.0
    %404 = vmatpush.xpose.msra.mxu0 0.0
    %405 = vmatpush.xpose.msra.mxu0 %v388
    %406 = vmatmul.f32.gmra.mxu0 %v386
    %v407 = vpop.f32.mrf.mxu0
    %v408 = vadd.f32 0.0, %v407
    %409 = vdwg.mxu0
    %v410 = vmul.f32 %v408, 0.17677669
    %v411 = vadd.f32 %v410, %v332
    %v412 = vsel %vm334, %v411, -inf
    %413 = vmax.xlane.f32.xlu0 %v412
    %v414 = vpop.xlane.xlu0 %413
    %v415 = vsub.f32 %v411, %v414
    %v416 = vmul.f32 %v415, 1.442695
    %v417 = vpow.pop %v416
    %v418 = vsel %vm334, %v417, 0.0
    %419 = vadd.xlane.f32.xlu0 %v418
    %v420 = vpop.xlane.xlu0 %419
    %v421 = vrcp.pop %v420
    %v422 = vmul.f32 %v420, %v421
    %v423 = vsub.f32 1.0, %v422
    %v424 = vmul.f32 %v421, %v423
    %v425 = vadd.f32 %v421, %v424
    %vm426 = vweird.f32 %v420
    %vm427 = vweird.f32 %v421
    %vm428 = vmor %vm426, %vm427
    %v429 = vsel %vm428, %v421, %v425
    %v430 = vand.u32 2147483647, %v420
    %vm431 = vcmp.eq.f32.partialorder %v430, 8.507059e+37
    %v432 = vand.u32 %v420, 2147483648
    %v433 = vor.u32 1.1754944e-38, %v432
    %v434 = vsel %vm431, %v433, %v429
    %v435 = vmul.f32 %v417, %v434
    %437 = vrot.lane.b32.xlu0 %v299, 96
    %v438 = vpop.permute.xlu0 %437
    %v441 = vsel %vm334, %v435, 0
    %443 = vmatpush.msra.mxu0 0.0
    %444 = vmatpush.msra.mxu0 0.0
    %445 = vmatpush.msra.mxu0 0.0
    %446 = vmatpush.msra.mxu0 0.0
    %447 = vmatpush.msra.mxu0 0.0
    %448 = vmatpush.msra.mxu0 0.0
    %449 = vmatpush.msra.mxu0 0.0
    %450 = vmatpush.msra.mxu0 0.0
    %451 = vmatpush.msra.mxu0 0.0
    %452 = vmatpush.msra.mxu0 0.0
    %453 = vmatpush.msra.mxu0 0.0
    %454 = vmatpush.msra.mxu0 0.0
    %455 = vmatpush.msra.mxu0 0.0
    %456 = vmatpush.msra.mxu0 0.0
    %457 = vmatpush.msra.mxu0 0.0
    %458 = vmatpush.msra.mxu0 %v438
    %459 = vmatmul.f32.gmra.mxu0 %v441
    %v460 = vpop.f32.mrf.mxu0
    %v461 = vadd.f32 0.0, %v460
    %462 = vdwg.mxu0
    %463 = vrot.lane.b32.xlu0 %v253, 64
    %v464 = vpop.permute.xlu0 %463
    %465 = vrot.lane.b32.xlu0 %v276, 64
    %v466 = vpop.permute.xlu0 %465
    %v467 = vsel %vm304, %v464, 0
    %v469 = vsel %vm304, %v466, 0
    %471 = vmatpush.xpose.msra.mxu0 0.0
    %472 = vmatpush.xpose.msra.mxu0 0.0
    %473 = vmatpush.xpose.msra.mxu0 0.0
    %474 = vmatpush.xpose.msra.mxu0 0.0
    %475 = vmatpush.xpose.msra.mxu0 0.0
    %476 = vmatpush.xpose.msra.mxu0 0.0
    %477 = vmatpush.xpose.msra.mxu0 0.0
    %478 = vmatpush.xpose.msra.mxu0 0.0
    %479 = vmatpush.xpose.msra.mxu0 0.0
    %480 = vmatpush.xpose.msra.mxu0 0.0
    %481 = vmatpush.xpose.msra.mxu0 0.0
    %482 = vmatpush.xpose.msra.mxu0 0.0
    %483 = vmatpush.xpose.msra.mxu0 0.0
    %484 = vmatpush.xpose.msra.mxu0 0.0
    %485 = vmatpush.xpose.msra.mxu0 0.0
    %486 = vmatpush.xpose.msra.mxu0 %v469
    %487 = vmatmul.f32.gmra.mxu0 %v467
    %v488 = vpop.f32.mrf.mxu0
    %v489 = vadd.f32 0.0, %v488
    %490 = vdwg.mxu0
    %v491 = vmul.f32 %v489, 0.17677669
    %v492 = vadd.f32 %v491, %v332
    %v493 = vsel %vm334, %v492, -inf
    %494 = vmax.xlane.f32.xlu0 %v493
    %v495 = vpop.xlane.xlu0 %494
    %v496 = vsub.f32 %v492, %v495
    %v497 = vmul.f32 %v496, 1.442695
    %v498 = vpow.pop %v497
    %v499 = vsel %vm334, %v498, 0.0
    %500 = vadd.xlane.f32.xlu0 %v499
    %v501 = vpop.xlane.xlu0 %500
    %v502 = vrcp.pop %v501
    %v503 = vmul.f32 %v501, %v502
    %v504 = vsub.f32 1.0, %v503
    %v505 = vmul.f32 %v502, %v504
    %v506 = vadd.f32 %v502, %v505
    %vm507 = vweird.f32 %v501
    %vm508 = vweird.f32 %v502
    %vm509 = vmor %vm507, %vm508
    %v510 = vsel %vm509, %v502, %v506
    %v511 = vand.u32 2147483647, %v501
    %vm512 = vcmp.eq.f32.partialorder %v511, 8.507059e+37
    %v513 = vand.u32 %v501, 2147483648
    %v514 = vor.u32 1.1754944e-38, %v513
    %v515 = vsel %vm512, %v514, %v510
    %v516 = vmul.f32 %v498, %v515
    %517 = vrot.lane.b32.xlu0 %v299, 64
    %v518 = vpop.permute.xlu0 %517
    %v521 = vsel %vm334, %v516, 0
    %523 = vmatpush.msra.mxu0 0.0
    %524 = vmatpush.msra.mxu0 0.0
    %525 = vmatpush.msra.mxu0 0.0
    %526 = vmatpush.msra.mxu0 0.0
    %527 = vmatpush.msra.mxu0 0.0
    %528 = vmatpush.msra.mxu0 0.0
    %529 = vmatpush.msra.mxu0 0.0
    %530 = vmatpush.msra.mxu0 0.0
    %531 = vmatpush.msra.mxu0 0.0
    %532 = vmatpush.msra.mxu0 0.0
    %533 = vmatpush.msra.mxu0 0.0
    %534 = vmatpush.msra.mxu0 0.0
    %535 = vmatpush.msra.mxu0 0.0
    %536 = vmatpush.msra.mxu0 0.0
    %537 = vmatpush.msra.mxu0 0.0
    %538 = vmatpush.msra.mxu0 %v518
    %539 = vmatmul.f32.gmra.mxu0 %v521
    %v540 = vpop.f32.mrf.mxu0
    %v541 = vadd.f32 0.0, %v540
    %542 = vdwg.mxu0
    %543 = vrot.lane.b32.xlu0 %v253, 32
    %v544 = vpop.permute.xlu0 %543
    %545 = vrot.lane.b32.xlu0 %v276, 32
    %v546 = vpop.permute.xlu0 %545
    %v547 = vsel %vm304, %v544, 0
    %v549 = vsel %vm304, %v546, 0
    %551 = vmatpush.xpose.msra.mxu0 0.0
    %552 = vmatpush.xpose.msra.mxu0 0.0
    %553 = vmatpush.xpose.msra.mxu0 0.0
    %554 = vmatpush.xpose.msra.mxu0 0.0
    %555 = vmatpush.xpose.msra.mxu0 0.0
    %556 = vmatpush.xpose.msra.mxu0 0.0
    %557 = vmatpush.xpose.msra.mxu0 0.0
    %558 = vmatpush.xpose.msra.mxu0 0.0
    %559 = vmatpush.xpose.msra.mxu0 0.0
    %560 = vmatpush.xpose.msra.mxu0 0.0
    %561 = vmatpush.xpose.msra.mxu0 0.0
    %562 = vmatpush.xpose.msra.mxu0 0.0
    %563 = vmatpush.xpose.msra.mxu0 0.0
    %564 = vmatpush.xpose.msra.mxu0 0.0
    %565 = vmatpush.xpose.msra.mxu0 0.0
    %566 = vmatpush.xpose.msra.mxu0 %v549
    %567 = vmatmul.f32.gmra.mxu0 %v547
    %v568 = vpop.f32.mrf.mxu0
    %v569 = vadd.f32 0.0, %v568
    %570 = vdwg.mxu0
    %v571 = vmul.f32 %v569, 0.17677669
    %v572 = vadd.f32 %v571, %v332
    %v573 = vsel %vm334, %v572, -inf
    %574 = vmax.xlane.f32.xlu0 %v573
    %v575 = vpop.xlane.xlu0 %574
    %v576 = vsub.f32 %v572, %v575
    %v577 = vmul.f32 %v576, 1.442695
    %v578 = vpow.pop %v577
    %v579 = vsel %vm334, %v578, 0.0
    %580 = vadd.xlane.f32.xlu0 %v579
    %v581 = vpop.xlane.xlu0 %580
    %v582 = vrcp.pop %v581
    %v583 = vmul.f32 %v581, %v582
    %v584 = vsub.f32 1.0, %v583
    %v585 = vmul.f32 %v582, %v584
    %v586 = vadd.f32 %v582, %v585
    %vm587 = vweird.f32 %v581
    %vm588 = vweird.f32 %v582
    %vm589 = vmor %vm587, %vm588
    %v590 = vsel %vm589, %v582, %v586
    %v591 = vand.u32 2147483647, %v581
    %vm592 = vcmp.eq.f32.partialorder %v591, 8.507059e+37
    %v593 = vand.u32 %v581, 2147483648
    %v594 = vor.u32 1.1754944e-38, %v593
    %v595 = vsel %vm592, %v594, %v590
    %v596 = vmul.f32 %v578, %v595
    %597 = vrot.lane.b32.xlu0 %v299, 32
    %v598 = vpop.permute.xlu0 %597
    %v601 = vsel %vm334, %v596, 0
    %603 = vmatpush.msra.mxu0 0.0
    %604 = vmatpush.msra.mxu0 0.0
    %605 = vmatpush.msra.mxu0 0.0
    %606 = vmatpush.msra.mxu0 0.0
    %607 = vmatpush.msra.mxu0 0.0
    %608 = vmatpush.msra.mxu0 0.0
    %609 = vmatpush.msra.mxu0 0.0
    %610 = vmatpush.msra.mxu0 0.0
    %611 = vmatpush.msra.mxu0 0.0
    %612 = vmatpush.msra.mxu0 0.0
    %613 = vmatpush.msra.mxu0 0.0
    %614 = vmatpush.msra.mxu0 0.0
    %615 = vmatpush.msra.mxu0 0.0
    %616 = vmatpush.msra.mxu0 0.0
    %617 = vmatpush.msra.mxu0 0.0
    %618 = vmatpush.msra.mxu0 %v598
    %619 = vmatmul.f32.gmra.mxu0 %v601
    %v620 = vpop.f32.mrf.mxu0
    %v621 = vadd.f32 0.0, %v620
    %622 = vdwg.mxu0
    %624 = vrot.lane.b32.xlu0 %v461, 32
    %v625 = vpop.permute.xlu0 %624
    %628 = vrot.lane.b32.xlu0 %v541, 64
    %v629 = vpop.permute.xlu0 %628
    %632 = vrot.lane.b32.xlu0 %v621, 96
    %v633 = vpop.permute.xlu0 %632
    %v635 = vsel %vm304, %v380, %v625
    %vm636 = vcmask 523264
    %v637 = vsel %vm636, %v635, %v629
    %vm638 = vcmask 785408
    %v639 = vsel %vm638, %v637, %v633
    %v641 = vsel %vm304, %v256, 0
    %v644 = vsel %vm304, %v279, 0
    %646 = vmatpush.xpose.msra.mxu0 0.0
    %647 = vmatpush.xpose.msra.mxu0 0.0
    %648 = vmatpush.xpose.msra.mxu0 0.0
    %649 = vmatpush.xpose.msra.mxu0 0.0
    %650 = vmatpush.xpose.msra.mxu0 0.0
    %651 = vmatpush.xpose.msra.mxu0 0.0
    %652 = vmatpush.xpose.msra.mxu0 0.0
    %653 = vmatpush.xpose.msra.mxu0 0.0
    %654 = vmatpush.xpose.msra.mxu0 0.0
    %655 = vmatpush.xpose.msra.mxu0 0.0
    %656 = vmatpush.xpose.msra.mxu0 0.0
    %657 = vmatpush.xpose.msra.mxu0 0.0
    %658 = vmatpush.xpose.msra.mxu0 0.0
    %659 = vmatpush.xpose.msra.mxu0 0.0
    %660 = vmatpush.xpose.msra.mxu0 0.0
    %661 = vmatpush.xpose.msra.mxu0 %v644
    %662 = vmatmul.f32.gmra.mxu0 %v641
    %v663 = vpop.f32.mrf.mxu0
    %v664 = vadd.f32 0.0, %v663
    %665 = vdwg.mxu0
    %v666 = vmul.f32 %v664, 0.17677669
    %v667 = vperm.slane %v117, 1
    %v668 = vadd.f32 %v666, %v667
    %v669 = vsel %vm334, %v668, -inf
    %670 = vmax.xlane.f32.xlu0 %v669
    %v671 = vpop.xlane.xlu0 %670
    %v672 = vsub.f32 %v668, %v671
    %v673 = vmul.f32 %v672, 1.442695
    %v674 = vpow.pop %v673
    %v675 = vsel %vm334, %v674, 0.0
    %676 = vadd.xlane.f32.xlu0 %v675
    %v677 = vpop.xlane.xlu0 %676
    %v678 = vrcp.pop %v677
    %v679 = vmul.f32 %v677, %v678
    %v680 = vsub.f32 1.0, %v679
    %v681 = vmul.f32 %v678, %v680
    %v682 = vadd.f32 %v678, %v681
    %vm683 = vweird.f32 %v677
    %vm684 = vweird.f32 %v678
    %vm685 = vmor %vm683, %vm684
    %v686 = vsel %vm685, %v678, %v682
    %v687 = vand.u32 2147483647, %v677
    %vm688 = vcmp.eq.f32.partialorder %v687, 8.507059e+37
    %v689 = vand.u32 %v677, 2147483648
    %v690 = vor.u32 1.1754944e-38, %v689
    %v691 = vsel %vm688, %v690, %v686
    %v692 = vmul.f32 %v674, %v691
    %v694 = vsel %vm334, %v692, 0
    %696 = vmatpush.msra.mxu0 0.0
    %697 = vmatpush.msra.mxu0 0.0
    %698 = vmatpush.msra.mxu0 0.0
    %699 = vmatpush.msra.mxu0 0.0
    %700 = vmatpush.msra.mxu0 0.0
    %701 = vmatpush.msra.mxu0 0.0
    %702 = vmatpush.msra.mxu0 0.0
    %703 = vmatpush.msra.mxu0 0.0
    %704 = vmatpush.msra.mxu0 0.0
    %705 = vmatpush.msra.mxu0 0.0
    %706 = vmatpush.msra.mxu0 0.0
    %707 = vmatpush.msra.mxu0 0.0
    %708 = vmatpush.msra.mxu0 0.0
    %709 = vmatpush.msra.mxu0 0.0
    %710 = vmatpush.msra.mxu0 0.0
    %711 = vmatpush.msra.mxu0 %v302
    %712 = vmatmul.f32.gmra.mxu0 %v694
    %v713 = vpop.f32.mrf.mxu0
    %v714 = vadd.f32 0.0, %v713
    %715 = vdwg.mxu0
    %716 = vrot.lane.b32.xlu0 %v256, 96
    %v717 = vpop.permute.xlu0 %716
    %718 = vrot.lane.b32.xlu0 %v279, 96
    %v719 = vpop.permute.xlu0 %718
    %v720 = vsel %vm304, %v717, 0
    %v722 = vsel %vm304, %v719, 0
    %724 = vmatpush.xpose.msra.mxu0 0.0
    %725 = vmatpush.xpose.msra.mxu0 0.0
    %726 = vmatpush.xpose.msra.mxu0 0.0
    %727 = vmatpush.xpose.msra.mxu0 0.0
    %728 = vmatpush.xpose.msra.mxu0 0.0
    %729 = vmatpush.xpose.msra.mxu0 0.0
    %730 = vmatpush.xpose.msra.mxu0 0.0
    %731 = vmatpush.xpose.msra.mxu0 0.0
    %732 = vmatpush.xpose.msra.mxu0 0.0
    %733 = vmatpush.xpose.msra.mxu0 0.0
    %734 = vmatpush.xpose.msra.mxu0 0.0
    %735 = vmatpush.xpose.msra.mxu0 0.0
    %736 = vmatpush.xpose.msra.mxu0 0.0
    %737 = vmatpush.xpose.msra.mxu0 0.0
    %738 = vmatpush.xpose.msra.mxu0 0.0
    %739 = vmatpush.xpose.msra.mxu0 %v722
    %740 = vmatmul.f32.gmra.mxu0 %v720
    %v741 = vpop.f32.mrf.mxu0
    %v742 = vadd.f32 0.0, %v741
    %743 = vdwg.mxu0
    %v744 = vmul.f32 %v742, 0.17677669
    %v745 = vadd.f32 %v744, %v667
    %v746 = vsel %vm334, %v745, -inf
    %747 = vmax.xlane.f32.xlu0 %v746
    %v748 = vpop.xlane.xlu0 %747
    %v749 = vsub.f32 %v745, %v748
    %v750 = vmul.f32 %v749, 1.442695
    %v751 = vpow.pop %v750
    %v752 = vsel %vm334, %v751, 0.0
    %753 = vadd.xlane.f32.xlu0 %v752
    %v754 = vpop.xlane.xlu0 %753
    %v755 = vrcp.pop %v754
    %v756 = vmul.f32 %v754, %v755
    %v757 = vsub.f32 1.0, %v756
    %v758 = vmul.f32 %v755, %v757
    %v759 = vadd.f32 %v755, %v758
    %vm760 = vweird.f32 %v754
    %vm761 = vweird.f32 %v755
    %vm762 = vmor %vm760, %vm761
    %v763 = vsel %vm762, %v755, %v759
    %v764 = vand.u32 2147483647, %v754
    %vm765 = vcmp.eq.f32.partialorder %v764, 8.507059e+37
    %v766 = vand.u32 %v754, 2147483648
    %v767 = vor.u32 1.1754944e-38, %v766
    %v768 = vsel %vm765, %v767, %v763
    %v769 = vmul.f32 %v751, %v768
    %771 = vrot.lane.b32.xlu0 %v302, 96
    %v772 = vpop.permute.xlu0 %771
    %v775 = vsel %vm334, %v769, 0
    %777 = vmatpush.msra.mxu0 0.0
    %778 = vmatpush.msra.mxu0 0.0
    %779 = vmatpush.msra.mxu0 0.0
    %780 = vmatpush.msra.mxu0 0.0
    %781 = vmatpush.msra.mxu0 0.0
    %782 = vmatpush.msra.mxu0 0.0
    %783 = vmatpush.msra.mxu0 0.0
    %784 = vmatpush.msra.mxu0 0.0
    %785 = vmatpush.msra.mxu0 0.0
    %786 = vmatpush.msra.mxu0 0.0
    %787 = vmatpush.msra.mxu0 0.0
    %788 = vmatpush.msra.mxu0 0.0
    %789 = vmatpush.msra.mxu0 0.0
    %790 = vmatpush.msra.mxu0 0.0
    %791 = vmatpush.msra.mxu0 0.0
    %792 = vmatpush.msra.mxu0 %v772
    %793 = vmatmul.f32.gmra.mxu0 %v775
    %v794 = vpop.f32.mrf.mxu0
    %v795 = vadd.f32 0.0, %v794
    %796 = vdwg.mxu0
    %797 = vrot.lane.b32.xlu0 %v256, 64
    %v798 = vpop.permute.xlu0 %797
    %799 = vrot.lane.b32.xlu0 %v279, 64
    %v800 = vpop.permute.xlu0 %799
    %v801 = vsel %vm304, %v798, 0
    %v803 = vsel %vm304, %v800, 0
    %805 = vmatpush.xpose.msra.mxu0 0.0
    %806 = vmatpush.xpose.msra.mxu0 0.0
    %807 = vmatpush.xpose.msra.mxu0 0.0
    %808 = vmatpush.xpose.msra.mxu0 0.0
    %809 = vmatpush.xpose.msra.mxu0 0.0
    %810 = vmatpush.xpose.msra.mxu0 0.0
    %811 = vmatpush.xpose.msra.mxu0 0.0
    %812 = vmatpush.xpose.msra.mxu0 0.0
    %813 = vmatpush.xpose.msra.mxu0 0.0
    %814 = vmatpush.xpose.msra.mxu0 0.0
    %815 = vmatpush.xpose.msra.mxu0 0.0
    %816 = vmatpush.xpose.msra.mxu0 0.0
    %817 = vmatpush.xpose.msra.mxu0 0.0
    %818 = vmatpush.xpose.msra.mxu0 0.0
    %819 = vmatpush.xpose.msra.mxu0 0.0
    %820 = vmatpush.xpose.msra.mxu0 %v803
    %821 = vmatmul.f32.gmra.mxu0 %v801
    %v822 = vpop.f32.mrf.mxu0
    %v823 = vadd.f32 0.0, %v822
    %824 = vdwg.mxu0
    %v825 = vmul.f32 %v823, 0.17677669
    %v826 = vadd.f32 %v825, %v667
    %v827 = vsel %vm334, %v826, -inf
    %828 = vmax.xlane.f32.xlu0 %v827
    %v829 = vpop.xlane.xlu0 %828
    %v830 = vsub.f32 %v826, %v829
    %v831 = vmul.f32 %v830, 1.442695
    %v832 = vpow.pop %v831
    %v833 = vsel %vm334, %v832, 0.0
    %834 = vadd.xlane.f32.xlu0 %v833
    %v835 = vpop.xlane.xlu0 %834
    %v836 = vrcp.pop %v835
    %v837 = vmul.f32 %v835, %v836
    %v838 = vsub.f32 1.0, %v837
    %v839 = vmul.f32 %v836, %v838
    %v840 = vadd.f32 %v836, %v839
    %vm841 = vweird.f32 %v835
    %vm842 = vweird.f32 %v836
    %vm843 = vmor %vm841, %vm842
    %v844 = vsel %vm843, %v836, %v840
    %v845 = vand.u32 2147483647, %v835
    %vm846 = vcmp.eq.f32.partialorder %v845, 8.507059e+37
    %v847 = vand.u32 %v835, 2147483648
    %v848 = vor.u32 1.1754944e-38, %v847
    %v849 = vsel %vm846, %v848, %v844
    %v850 = vmul.f32 %v832, %v849
    %851 = vrot.lane.b32.xlu0 %v302, 64
    %v852 = vpop.permute.xlu0 %851
    %v855 = vsel %vm334, %v850, 0
    %857 = vmatpush.msra.mxu0 0.0
    %858 = vmatpush.msra.mxu0 0.0
    %859 = vmatpush.msra.mxu0 0.0
    %860 = vmatpush.msra.mxu0 0.0
    %861 = vmatpush.msra.mxu0 0.0
    %862 = vmatpush.msra.mxu0 0.0
    %863 = vmatpush.msra.mxu0 0.0
    %864 = vmatpush.msra.mxu0 0.0
    %865 = vmatpush.msra.mxu0 0.0
    %866 = vmatpush.msra.mxu0 0.0
    %867 = vmatpush.msra.mxu0 0.0
    %868 = vmatpush.msra.mxu0 0.0
    %869 = vmatpush.msra.mxu0 0.0
    %870 = vmatpush.msra.mxu0 0.0
    %871 = vmatpush.msra.mxu0 0.0
    %872 = vmatpush.msra.mxu0 %v852
    %873 = vmatmul.f32.gmra.mxu0 %v855
    %v874 = vpop.f32.mrf.mxu0
    %v875 = vadd.f32 0.0, %v874
    %876 = vdwg.mxu0
    %877 = vrot.lane.b32.xlu0 %v256, 32
    %v878 = vpop.permute.xlu0 %877
    %879 = vrot.lane.b32.xlu0 %v279, 32
    %v880 = vpop.permute.xlu0 %879
    %v881 = vsel %vm304, %v878, 0
    %v883 = vsel %vm304, %v880, 0
    %885 = vmatpush.xpose.msra.mxu0 0.0
    %886 = vmatpush.xpose.msra.mxu0 0.0
    %887 = vmatpush.xpose.msra.mxu0 0.0
    %888 = vmatpush.xpose.msra.mxu0 0.0
    %889 = vmatpush.xpose.msra.mxu0 0.0
    %890 = vmatpush.xpose.msra.mxu0 0.0
    %891 = vmatpush.xpose.msra.mxu0 0.0
    %892 = vmatpush.xpose.msra.mxu0 0.0
    %893 = vmatpush.xpose.msra.mxu0 0.0
    %894 = vmatpush.xpose.msra.mxu0 0.0
    %895 = vmatpush.xpose.msra.mxu0 0.0
    %896 = vmatpush.xpose.msra.mxu0 0.0
    %897 = vmatpush.xpose.msra.mxu0 0.0
    %898 = vmatpush.xpose.msra.mxu0 0.0
    %899 = vmatpush.xpose.msra.mxu0 0.0
    %900 = vmatpush.xpose.msra.mxu0 %v883
    %901 = vmatmul.f32.gmra.mxu0 %v881
    %v902 = vpop.f32.mrf.mxu0
    %v903 = vadd.f32 0.0, %v902
    %904 = vdwg.mxu0
    %v905 = vmul.f32 %v903, 0.17677669
    %v906 = vadd.f32 %v905, %v667
    %v907 = vsel %vm334, %v906, -inf
    %908 = vmax.xlane.f32.xlu0 %v907
    %v909 = vpop.xlane.xlu0 %908
    %v910 = vsub.f32 %v906, %v909
    %v911 = vmul.f32 %v910, 1.442695
    %v912 = vpow.pop %v911
    %v913 = vsel %vm334, %v912, 0.0
    %914 = vadd.xlane.f32.xlu0 %v913
    %v915 = vpop.xlane.xlu0 %914
    %v916 = vrcp.pop %v915
    %v917 = vmul.f32 %v915, %v916
    %v918 = vsub.f32 1.0, %v917
    %v919 = vmul.f32 %v916, %v918
    %v920 = vadd.f32 %v916, %v919
    %vm921 = vweird.f32 %v915
    %vm922 = vweird.f32 %v916
    %vm923 = vmor %vm921, %vm922
    %v924 = vsel %vm923, %v916, %v920
    %v925 = vand.u32 2147483647, %v915
    %vm926 = vcmp.eq.f32.partialorder %v925, 8.507059e+37
    %v927 = vand.u32 %v915, 2147483648
    %v928 = vor.u32 1.1754944e-38, %v927
    %v929 = vsel %vm926, %v928, %v924
    %v930 = vmul.f32 %v912, %v929
    %931 = vrot.lane.b32.xlu0 %v302, 32
    %v932 = vpop.permute.xlu0 %931
    %v935 = vsel %vm334, %v930, 0
    %937 = vmatpush.msra.mxu0 0.0
    %938 = vmatpush.msra.mxu0 0.0
    %939 = vmatpush.msra.mxu0 0.0
    %940 = vmatpush.msra.mxu0 0.0
    %941 = vmatpush.msra.mxu0 0.0
    %942 = vmatpush.msra.mxu0 0.0
    %943 = vmatpush.msra.mxu0 0.0
    %944 = vmatpush.msra.mxu0 0.0
    %945 = vmatpush.msra.mxu0 0.0
    %946 = vmatpush.msra.mxu0 0.0
    %947 = vmatpush.msra.mxu0 0.0
    %948 = vmatpush.msra.mxu0 0.0
    %949 = vmatpush.msra.mxu0 0.0
    %950 = vmatpush.msra.mxu0 0.0
    %951 = vmatpush.msra.mxu0 0.0
    %952 = vmatpush.msra.mxu0 %v932
    %953 = vmatmul.f32.gmra.mxu0 %v935
    %v954 = vpop.f32.mrf.mxu0
    %v955 = vadd.f32 0.0, %v954
    %956 = vdwg.mxu0
    %958 = vrot.lane.b32.xlu0 %v795, 32
    %v959 = vpop.permute.xlu0 %958
    %962 = vrot.lane.b32.xlu0 %v875, 64
    %v963 = vpop.permute.xlu0 %962
    %966 = vrot.lane.b32.xlu0 %v955, 96
    %v967 = vpop.permute.xlu0 %966
    %v969 = vsel %vm304, %v714, %v959
    %v970 = vsel %vm636, %v969, %v963
    %v971 = vsel %vm638, %v970, %v967
    %v972 = vld [vmem:[#allocation5] sm:$0xff]
    %v973 = vld [vmem:[#allocation5 + $0x8] sm:$0xff]
    %v974 = vld [vmem:[#allocation5 + $0x10] sm:$0xff]
    %v975 = vld [vmem:[#allocation5 + $0x18] sm:$0xff]
    %v976 = vld [vmem:[#allocation5 + $0x20] sm:$0xff]
    %v977 = vld [vmem:[#allocation5 + $0x28] sm:$0xff]
    %v978 = vld [vmem:[#allocation5 + $0x30] sm:$0xff]
    %v979 = vld [vmem:[#allocation5 + $0x38] sm:$0xff]
    %v980 = vld [vmem:[#allocation5 + $0x40] sm:$0xff]
    %v981 = vld [vmem:[#allocation5 + $0x48] sm:$0xff]
    %v982 = vld [vmem:[#allocation5 + $0x50] sm:$0xff]
    %v983 = vld [vmem:[#allocation5 + $0x58] sm:$0xff]
    %v984 = vld [vmem:[#allocation5 + $0x60] sm:$0xff]
    %v985 = vld [vmem:[#allocation5 + $0x68] sm:$0xff]
    %v986 = vld [vmem:[#allocation5 + $0x70] sm:$0xff]
    %v987 = vld [vmem:[#allocation5 + $0x78] sm:$0xff]
    %v988 = vld [vmem:[%s7] sm:$0x1]
    %v990 = vperm.slane %v988, 0
    %992 = vmatpush.msra.mxu0 %v987
    %993 = vmatpush.msra.mxu0 %v986
    %994 = vmatpush.msra.mxu0 %v985
    %995 = vmatpush.msra.mxu0 %v984
    %996 = vmatpush.msra.mxu0 %v983
    %997 = vmatpush.msra.mxu0 %v982
    %998 = vmatpush.msra.mxu0 %v981
    %999 = vmatpush.msra.mxu0 %v980
    %1000 = vmatpush.msra.mxu0 %v979
    %1001 = vmatpush.msra.mxu0 %v978
    %1002 = vmatpush.msra.mxu0 %v977
    %1003 = vmatpush.msra.mxu0 %v976
    %1004 = vmatpush.msra.mxu0 %v975
    %1005 = vmatpush.msra.mxu0 %v974
    %1006 = vmatpush.msra.mxu0 %v973
    %1007 = vmatpush.msra.mxu0 %v972
    %1008 = vmatmul.f32.gmra.mxu0 %v639
    %v1009 = vpop.f32.mrf.mxu0
    %v1010 = vadd.f32 %v990, %v1009
    %1011 = vmatmul.f32.gmra.mxu0 %v971
    %v1012 = vpop.f32.mrf.mxu0
    %v1013 = vadd.f32 %v990, %v1012
    %1014 = vdwg.mxu0
    %v1015 = vadd.f32 %v1010, %v177
    %v1016 = vadd.f32 %v1013, %v178
    %v1017 = vld [vmem:[%s8] sm:$0x1]
    %v1018 = vld [vmem:[%s9] sm:$0x1]
    %1019 = vadd.xlane.f32.xlu0 %v1015
    %v1020 = vpop.xlane.xlu0 %1019
    %1021 = vadd.xlane.f32.xlu0 %v1016
    %v1022 = vpop.xlane.xlu0 %1021
    %v1023 = vmul.f32 %v1020, %v132
    %v1024 = vmul.f32 %v1022, %v132
    %v1025 = vsub.f32 %v1015, %v1023
    %v1026 = vsub.f32 %v1016, %v1024
    %v1027 = vmul.f32 %v1025, %v1025
    %v1028 = vmul.f32 %v1026, %v1026
    %1029 = vadd.xlane.f32.xlu0 %v1027
    %v1030 = vpop.xlane.xlu0 %1029
    %1031 = vadd.xlane.f32.xlu0 %v1028
    %v1032 = vpop.xlane.xlu0 %1031
    %v1033 = vmul.f32 %v1030, %v132
    %v1034 = vmul.f32 %v1032, %v132
    %v1035 = vadd.f32 %v1033, 1e-12
    %v1036 = vadd.f32 %v1034, 1e-12
    %v1037 = vrsqrt.pop %v1035
    %v1038 = vmul.f32 %v1037, %v1035
    %v1039 = vmul.f32 %v1038, %v1037
    %v1040 = vmul.f32 0.5, %v1039
    %v1041 = vsub.f32 1.5, %v1040
    %v1042 = vmul.f32 %v1037, %v1041
    %vm1043 = vweird.f32 %v1035
    %vm1044 = vweird.f32 %v1037
    %vm1045 = vmor %vm1043, %vm1044
    %v1046 = vsel %vm1045, %v1037, %v1042
    %v1047 = vrsqrt.pop %v1036
    %v1048 = vmul.f32 %v1047, %v1036
    %v1049 = vmul.f32 %v1048, %v1047
    %v1050 = vmul.f32 0.5, %v1049
    %v1051 = vsub.f32 1.5, %v1050
    %v1052 = vmul.f32 %v1047, %v1051
    %vm1053 = vweird.f32 %v1036
    %vm1054 = vweird.f32 %v1047
    %vm1055 = vmor %vm1053, %vm1054
    %v1056 = vsel %vm1055, %v1047, %v1052
    %v1057 = vmul.f32 %v1025, %v1046
    %v1058 = vmul.f32 %v1026, %v1056
    %v1060 = vperm.slane %v1017, 0
    %v1062 = vmul.f32 %v1057, %v1060
    %v1063 = vmul.f32 %v1058, %v1060
    %v1065 = vperm.slane %v1018, 0
    %v1067 = vadd.f32 %v1062, %v1065
    %v1068 = vadd.f32 %v1063, %v1065
    %v1069 = vld [vmem:[#allocation7] sm:$0xff]
    %v1070 = vld [vmem:[#allocation7 + $0x8] sm:$0xff]
    %v1071 = vld [vmem:[#allocation7 + $0x10] sm:$0xff]
    %v1072 = vld [vmem:[#allocation7 + $0x18] sm:$0xff]
    %v1073 = vld [vmem:[#allocation7 + $0x20] sm:$0xff]
    %v1074 = vld [vmem:[#allocation7 + $0x28] sm:$0xff]
    %v1075 = vld [vmem:[#allocation7 + $0x30] sm:$0xff]
    %v1076 = vld [vmem:[#allocation7 + $0x38] sm:$0xff]
    %v1077 = vld [vmem:[#allocation7 + $0x40] sm:$0xff]
    %v1078 = vld [vmem:[#allocation7 + $0x48] sm:$0xff]
    %v1079 = vld [vmem:[#allocation7 + $0x50] sm:$0xff]
    %v1080 = vld [vmem:[#allocation7 + $0x58] sm:$0xff]
    %v1081 = vld [vmem:[#allocation7 + $0x60] sm:$0xff]
    %v1082 = vld [vmem:[#allocation7 + $0x68] sm:$0xff]
    %v1083 = vld [vmem:[#allocation7 + $0x70] sm:$0xff]
    %v1084 = vld [vmem:[#allocation7 + $0x78] sm:$0xff]
    %v1085 = vld [vmem:[#allocation7 + $0x80] sm:$0xff]
    %v1086 = vld [vmem:[#allocation7 + $0x88] sm:$0xff]
    %v1087 = vld [vmem:[#allocation7 + $0x90] sm:$0xff]
    %v1088 = vld [vmem:[#allocation7 + $0x98] sm:$0xff]
    %v1089 = vld [vmem:[#allocation7 + $0xa0] sm:$0xff]
    %v1090 = vld [vmem:[#allocation7 + $0xa8] sm:$0xff]
    %v1091 = vld [vmem:[#allocation7 + $0xb0] sm:$0xff]
    %v1092 = vld [vmem:[#allocation7 + $0xb8] sm:$0xff]
    %v1093 = vld [vmem:[#allocation7 + $0xc0] sm:$0xff]
    %v1094 = vld [vmem:[#allocation7 + $0xc8] sm:$0xff]
    %v1095 = vld [vmem:[#allocation7 + $0xd0] sm:$0xff]
    %v1096 = vld [vmem:[#allocation7 + $0xd8] sm:$0xff]
    %v1097 = vld [vmem:[#allocation7 + $0xe0] sm:$0xff]
    %v1098 = vld [vmem:[#allocation7 + $0xe8] sm:$0xff]
    %v1099 = vld [vmem:[#allocation7 + $0xf0] sm:$0xff]
    %v1100 = vld [vmem:[#allocation7 + $0xf8] sm:$0xff]
    %v1101 = vld [vmem:[%s11] sm:$0x3]
    %v1103 = vperm.slane %v1101, 0
    %v1104 = vperm.slane %v1101, 1
    %1107 = vmatpush.msra.mxu0 %v1099
    %1108 = vmatpush.msra.mxu0 %v1097
    %1109 = vmatpush.msra.mxu0 %v1095
    %1110 = vmatpush.msra.mxu0 %v1093
    %1111 = vmatpush.msra.mxu0 %v1091
    %1112 = vmatpush.msra.mxu0 %v1089
    %1113 = vmatpush.msra.mxu0 %v1087
    %1114 = vmatpush.msra.mxu0 %v1085
    %1115 = vmatpush.msra.mxu0 %v1083
    %1116 = vmatpush.msra.mxu0 %v1081
    %1117 = vmatpush.msra.mxu0 %v1079
    %1118 = vmatpush.msra.mxu0 %v1077
    %1119 = vmatpush.msra.mxu0 %v1075
    %1120 = vmatpush.msra.mxu0 %v1073
    %1121 = vmatpush.msra.mxu0 %v1071
    %1122 = vmatpush.msra.mxu0 %v1069
    %1123 = vmatmul.f32.gmra.mxu0 %v1067
    %v1124 = vpop.f32.mrf.mxu0
    %v1125 = vadd.f32 %v1103, %v1124
    %1126 = vmatmul.f32.gmra.mxu0 %v1068
    %v1127 = vpop.f32.mrf.mxu0
    %v1128 = vadd.f32 %v1103, %v1127
    %1129 = vdwg.mxu0
    %1130 = vmatpush.msra.mxu0 %v1100
    %1131 = vmatpush.msra.mxu0 %v1098
    %1132 = vmatpush.msra.mxu0 %v1096
    %1133 = vmatpush.msra.mxu0 %v1094
    %1134 = vmatpush.msra.mxu0 %v1092
    %1135 = vmatpush.msra.mxu0 %v1090
    %1136 = vmatpush.msra.mxu0 %v1088
    %1137 = vmatpush.msra.mxu0 %v1086
    %1138 = vmatpush.msra.mxu0 %v1084
    %1139 = vmatpush.msra.mxu0 %v1082
    %1140 = vmatpush.msra.mxu0 %v1080
    %1141 = vmatpush.msra.mxu0 %v1078
    %1142 = vmatpush.msra.mxu0 %v1076
    %1143 = vmatpush.msra.mxu0 %v1074
    %1144 = vmatpush.msra.mxu0 %v1072
    %1145 = vmatpush.msra.mxu0 %v1070
    %1146 = vmatmul.f32.gmra.mxu0 %v1067
    %v1147 = vpop.f32.mrf.mxu0
    %v1148 = vadd.f32 %v1104, %v1147
    %1149 = vmatmul.f32.gmra.mxu0 %v1068
    %v1150 = vpop.f32.mrf.mxu0
    %v1151 = vadd.f32 %v1104, %v1150
    %1152 = vdwg.mxu0
    %v1153 = vmul.f32 %v1125, %v1125
    %v1154 = vmul.f32 %v1148, %v1148
    %v1155 = vmul.f32 %v1128, %v1128
    %v1156 = vmul.f32 %v1151, %v1151
    %v1157 = vmul.f32 %v1125, %v1153
    %v1158 = vmul.f32 %v1148, %v1154
    %v1159 = vmul.f32 %v1128, %v1155
    %v1160 = vmul.f32 %v1151, %v1156
    %v1161 = vmul.f32 %v1157, 0.044715
    %v1162 = vmul.f32 %v1158, 0.044715
    %v1163 = vmul.f32 %v1159, 0.044715
    %v1164 = vmul.f32 %v1160, 0.044715
    %v1165 = vadd.f32 %v1125, %v1161
    %v1166 = vadd.f32 %v1148, %v1162
    %v1167 = vadd.f32 %v1128, %v1163
    %v1168 = vadd.f32 %v1151, %v1164
    %v1169 = vmul.f32 %v1165, 0.7978846
    %v1170 = vmul.f32 %v1166, 0.7978846
    %v1171 = vmul.f32 %v1167, 0.7978846
    %v1172 = vmul.f32 %v1168, 0.7978846
    %v1173 = vtanh.pop %v1169
    %v1174 = vtanh.pop %v1170
    %v1175 = vtanh.pop %v1171
    %v1176 = vtanh.pop %v1172
    %v1177 = vadd.f32 %v1173, 1.0
    %v1178 = vadd.f32 %v1174, 1.0
    %v1179 = vadd.f32 %v1175, 1.0
    %v1180 = vadd.f32 %v1176, 1.0
    %v1181 = vmul.f32 %v1177, 0.5
    %v1182 = vmul.f32 %v1178, 0.5
    %v1183 = vmul.f32 %v1179, 0.5
    %v1184 = vmul.f32 %v1180, 0.5
    %v1185 = vmul.f32 %v1125, %v1181
    %v1186 = vmul.f32 %v1148, %v1182
    %v1187 = vmul.f32 %v1128, %v1183
    %v1188 = vmul.f32 %v1151, %v1184
    %v1189 = vld [vmem:[#allocation8] sm:$0xff]
    %v1190 = vld [vmem:[#allocation8 + $0x8] sm:$0xff]
    %v1191 = vld [vmem:[#allocation8 + $0x10] sm:$0xff]
    %v1192 = vld [vmem:[#allocation8 + $0x18] sm:$0xff]
    %v1193 = vld [vmem:[#allocation8 + $0x20] sm:$0xff]
    %v1194 = vld [vmem:[#allocation8 + $0x28] sm:$0xff]
    %v1195 = vld [vmem:[#allocation8 + $0x30] sm:$0xff]
    %v1196 = vld [vmem:[#allocation8 + $0x38] sm:$0xff]
    %v1197 = vld [vmem:[#allocation8 + $0x40] sm:$0xff]
    %v1198 = vld [vmem:[#allocation8 + $0x48] sm:$0xff]
    %v1199 = vld [vmem:[#allocation8 + $0x50] sm:$0xff]
    %v1200 = vld [vmem:[#allocation8 + $0x58] sm:$0xff]
    %v1201 = vld [vmem:[#allocation8 + $0x60] sm:$0xff]
    %v1202 = vld [vmem:[#allocation8 + $0x68] sm:$0xff]
    %v1203 = vld [vmem:[#allocation8 + $0x70] sm:$0xff]
    %v1204 = vld [vmem:[#allocation8 + $0x78] sm:$0xff]
    %v1205 = vld [vmem:[#allocation8 + $0x80] sm:$0xff]
    %v1206 = vld [vmem:[#allocation8 + $0x88] sm:$0xff]
    %v1207 = vld [vmem:[#allocation8 + $0x90] sm:$0xff]
    %v1208 = vld [vmem:[#allocation8 + $0x98] sm:$0xff]
    %v1209 = vld [vmem:[#allocation8 + $0xa0] sm:$0xff]
    %v1210 = vld [vmem:[#allocation8 + $0xa8] sm:$0xff]
    %v1211 = vld [vmem:[#allocation8 + $0xb0] sm:$0xff]
    %v1212 = vld [vmem:[#allocation8 + $0xb8] sm:$0xff]
    %v1213 = vld [vmem:[#allocation8 + $0xc0] sm:$0xff]
    %v1214 = vld [vmem:[#allocation8 + $0xc8] sm:$0xff]
    %v1215 = vld [vmem:[#allocation8 + $0xd0] sm:$0xff]
    %v1216 = vld [vmem:[#allocation8 + $0xd8] sm:$0xff]
    %v1217 = vld [vmem:[#allocation8 + $0xe0] sm:$0xff]
    %v1218 = vld [vmem:[#allocation8 + $0xe8] sm:$0xff]
    %v1219 = vld [vmem:[#allocation8 + $0xf0] sm:$0xff]
    %v1220 = vld [vmem:[#allocation8 + $0xf8] sm:$0xff]
    %v1221 = vld [vmem:[%s13] sm:$0x1]
    %v1223 = vperm.slane %v1221, 0
    %1225 = vmatpush.msra.mxu0 %v1204
    %1226 = vmatpush.msra.mxu0 %v1203
    %1227 = vmatpush.msra.mxu0 %v1202
    %1228 = vmatpush.msra.mxu0 %v1201
    %1229 = vmatpush.msra.mxu0 %v1200
    %1230 = vmatpush.msra.mxu0 %v1199
    %1231 = vmatpush.msra.mxu0 %v1198
    %1232 = vmatpush.msra.mxu0 %v1197
    %1233 = vmatpush.msra.mxu0 %v1196
    %1234 = vmatpush.msra.mxu0 %v1195
    %1235 = vmatpush.msra.mxu0 %v1194
    %1236 = vmatpush.msra.mxu0 %v1193
    %1237 = vmatpush.msra.mxu0 %v1192
    %1238 = vmatpush.msra.mxu0 %v1191
    %1239 = vmatpush.msra.mxu0 %v1190
    %1240 = vmatpush.msra.mxu0 %v1189
    %1241 = vmatmul.f32.gmra.mxu0 %v1185
    %v1242 = vpop.f32.mrf.mxu0
    %v1243 = vadd.f32 %v1223, %v1242
    %1244 = vmatmul.f32.gmra.mxu0 %v1187
    %v1245 = vpop.f32.mrf.mxu0
    %v1246 = vadd.f32 %v1223, %v1245
    %1247 = vdwg.mxu0
    %1248 = vmatpush.msra.mxu0 %v1220
    %1249 = vmatpush.msra.mxu0 %v1219
    %1250 = vmatpush.msra.mxu0 %v1218
    %1251 = vmatpush.msra.mxu0 %v1217
    %1252 = vmatpush.msra.mxu0 %v1216
    %1253 = vmatpush.msra.mxu0 %v1215
    %1254 = vmatpush.msra.mxu0 %v1214
    %1255 = vmatpush.msra.mxu0 %v1213
    %1256 = vmatpush.msra.mxu0 %v1212
    %1257 = vmatpush.msra.mxu0 %v1211
    %1258 = vmatpush.msra.mxu0 %v1210
    %1259 = vmatpush.msra.mxu0 %v1209
    %1260 = vmatpush.msra.mxu0 %v1208
    %1261 = vmatpush.msra.mxu0 %v1207
    %1262 = vmatpush.msra.mxu0 %v1206
    %1263 = vmatpush.msra.mxu0 %v1205
    %1264 = vmatmul.f32.gmra.mxu0 %v1186
    %v1265 = vpop.f32.mrf.mxu0
    %v1266 = vadd.f32 %v1243, %v1265
    %1267 = vmatmul.f32.gmra.mxu0 %v1188
    %v1268 = vpop.f32.mrf.mxu0
    %v1269 = vadd.f32 %v1246, %v1268
    %1270 = vdwg.mxu0
    %v1271 = vadd.f32 %v1266, %v1067
    %v1272 = vadd.f32 %v1269, %v1068
    %v1273 = vld [vmem:[%s14] sm:$0x1]
    %v1274 = vld [vmem:[%s15] sm:$0x1]
    %1275 = vadd.xlane.f32.xlu0 %v1271
    %v1276 = vpop.xlane.xlu0 %1275
    %1277 = vadd.xlane.f32.xlu0 %v1272
    %v1278 = vpop.xlane.xlu0 %1277
    %v1279 = vmul.f32 %v1276, %v132
    %v1280 = vmul.f32 %v1278, %v132
    %v1281 = vsub.f32 %v1271, %v1279
    %v1282 = vsub.f32 %v1272, %v1280
    %v1283 = vmul.f32 %v1281, %v1281
    %v1284 = vmul.f32 %v1282, %v1282
    %1285 = vadd.xlane.f32.xlu0 %v1283
    %v1286 = vpop.xlane.xlu0 %1285
    %1287 = vadd.xlane.f32.xlu0 %v1284
    %v1288 = vpop.xlane.xlu0 %1287
    %v1289 = vmul.f32 %v1286, %v132
    %v1290 = vmul.f32 %v1288, %v132
    %v1291 = vadd.f32 %v1289, 1e-12
    %v1292 = vadd.f32 %v1290, 1e-12
    %v1293 = vrsqrt.pop %v1291
    %v1294 = vmul.f32 %v1293, %v1291
    %v1295 = vmul.f32 %v1294, %v1293
    %v1296 = vmul.f32 0.5, %v1295
    %v1297 = vsub.f32 1.5, %v1296
    %v1298 = vmul.f32 %v1293, %v1297
    %vm1299 = vweird.f32 %v1291
    %vm1300 = vweird.f32 %v1293
    %vm1301 = vmor %vm1299, %vm1300
    %v1302 = vsel %vm1301, %v1293, %v1298
    %v1303 = vrsqrt.pop %v1292
    %v1304 = vmul.f32 %v1303, %v1292
    %v1305 = vmul.f32 %v1304, %v1303
    %v1306 = vmul.f32 0.5, %v1305
    %v1307 = vsub.f32 1.5, %v1306
    %v1308 = vmul.f32 %v1303, %v1307
    %vm1309 = vweird.f32 %v1292
    %vm1310 = vweird.f32 %v1303
    %vm1311 = vmor %vm1309, %vm1310
    %v1312 = vsel %vm1311, %v1303, %v1308
    %v1313 = vmul.f32 %v1281, %v1302
    %v1314 = vmul.f32 %v1282, %v1312
    %v1316 = vperm.slane %v1273, 0
    %v1318 = vmul.f32 %v1313, %v1316
    %v1319 = vmul.f32 %v1314, %v1316
    %v1321 = vperm.slane %v1274, 0
    %v1323 = vadd.f32 %v1318, %v1321
    %v1324 = vadd.f32 %v1319, %v1321
    %v1325 = vadd.f32 %v1323, 0.0
    %v1326 = vadd.f32 %v1324, 0.0
    %s1327 = scalar_lea.vmem [#allocation2], 384
    %v1328 = vld [vmem:[%s1327] sm:$0xff]
    %v1329 = vld [vmem:[%s1327 + $0x8] sm:$0xff]
    %v1330 = vld [vmem:[%s1327 + $0x10] sm:$0xff]
    %v1331 = vld [vmem:[%s1327 + $0x18] sm:$0xff]
    %v1332 = vld [vmem:[%s1327 + $0x20] sm:$0xff]
    %v1333 = vld [vmem:[%s1327 + $0x28] sm:$0xff]
    %v1334 = vld [vmem:[%s1327 + $0x30] sm:$0xff]
    %v1335 = vld [vmem:[%s1327 + $0x38] sm:$0xff]
    %v1336 = vld [vmem:[%s1327 + $0x40] sm:$0xff]
    %v1337 = vld [vmem:[%s1327 + $0x48] sm:$0xff]
    %v1338 = vld [vmem:[%s1327 + $0x50] sm:$0xff]
    %v1339 = vld [vmem:[%s1327 + $0x58] sm:$0xff]
    %v1340 = vld [vmem:[%s1327 + $0x60] sm:$0xff]
    %v1341 = vld [vmem:[%s1327 + $0x68] sm:$0xff]
    %v1342 = vld [vmem:[%s1327 + $0x70] sm:$0xff]
    %v1343 = vld [vmem:[%s1327 + $0x78] sm:$0xff]
    %v1344 = vld [vmem:[%s1327 + $0x80] sm:$0xff]
    %v1345 = vld [vmem:[%s1327 + $0x88] sm:$0xff]
    %v1346 = vld [vmem:[%s1327 + $0x90] sm:$0xff]
    %v1347 = vld [vmem:[%s1327 + $0x98] sm:$0xff]
    %v1348 = vld [vmem:[%s1327 + $0xa0] sm:$0xff]
    %v1349 = vld [vmem:[%s1327 + $0xa8] sm:$0xff]
    %v1350 = vld [vmem:[%s1327 + $0xb0] sm:$0xff]
    %v1351 = vld [vmem:[%s1327 + $0xb8] sm:$0xff]
    %v1352 = vld [vmem:[%s1327 + $0xc0] sm:$0xff]
    %v1353 = vld [vmem:[%s1327 + $0xc8] sm:$0xff]
    %v1354 = vld [vmem:[%s1327 + $0xd0] sm:$0xff]
    %v1355 = vld [vmem:[%s1327 + $0xd8] sm:$0xff]
    %v1356 = vld [vmem:[%s1327 + $0xe0] sm:$0xff]
    %v1357 = vld [vmem:[%s1327 + $0xe8] sm:$0xff]
    %v1358 = vld [vmem:[%s1327 + $0xf0] sm:$0xff]
    %v1359 = vld [vmem:[%s1327 + $0xf8] sm:$0xff]
    %v1360 = vld [vmem:[%s1327 + $0x100] sm:$0xff]
    %v1361 = vld [vmem:[%s1327 + $0x108] sm:$0xff]
    %v1362 = vld [vmem:[%s1327 + $0x110] sm:$0xff]
    %v1363 = vld [vmem:[%s1327 + $0x118] sm:$0xff]
    %v1364 = vld [vmem:[%s1327 + $0x120] sm:$0xff]
    %v1365 = vld [vmem:[%s1327 + $0x128] sm:$0xff]
    %v1366 = vld [vmem:[%s1327 + $0x130] sm:$0xff]
    %v1367 = vld [vmem:[%s1327 + $0x138] sm:$0xff]
    %v1368 = vld [vmem:[%s1327 + $0x140] sm:$0xff]
    %v1369 = vld [vmem:[%s1327 + $0x148] sm:$0xff]
    %v1370 = vld [vmem:[%s1327 + $0x150] sm:$0xff]
    %v1371 = vld [vmem:[%s1327 + $0x158] sm:$0xff]
    %v1372 = vld [vmem:[%s1327 + $0x160] sm:$0xff]
    %v1373 = vld [vmem:[%s1327 + $0x168] sm:$0xff]
    %v1374 = vld [vmem:[%s1327 + $0x170] sm:$0xff]
    %v1375 = vld [vmem:[%s1327 + $0x178] sm:$0xff]
    %s1376 = scalar_lea.vmem %s5, 3
    %v1377 = vld [vmem:[%s1376] sm:$0x7]
    %v1379 = vperm.slane %v1377, 0
    %v1380 = vperm.slane %v1377, 1
    %v1381 = vperm.slane %v1377, 2
    %1385 = vmatpush.msra.mxu0 %v1373
    %1386 = vmatpush.msra.mxu0 %v1370
    %1387 = vmatpush.msra.mxu0 %v1367
    %1388 = vmatpush.msra.mxu0 %v1364
    %1389 = vmatpush.msra.mxu0 %v1361
    %1390 = vmatpush.msra.mxu0 %v1358
    %1391 = vmatpush.msra.mxu0 %v1355
    %1392 = vmatpush.msra.mxu0 %v1352
    %1393 = vmatpush.msra.mxu0 %v1349
    %1394 = vmatpush.msra.mxu0 %v1346
    %1395 = vmatpush.msra.mxu0 %v1343
    %1396 = vmatpush.msra.mxu0 %v1340
    %1397 = vmatpush.msra.mxu0 %v1337
    %1398 = vmatpush.msra.mxu0 %v1334
    %1399 = vmatpush.msra.mxu0 %v1331
    %1400 = vmatpush.msra.mxu0 %v1328
    %1401 = vmatmul.f32.gmra.mxu0 %v1323
    %v1402 = vpop.f32.mrf.mxu0
    %v1403 = vadd.f32 %v1379, %v1402
    %1404 = vmatmul.f32.gmra.mxu0 %v1324
    %v1405 = vpop.f32.mrf.mxu0
    %v1406 = vadd.f32 %v1379, %v1405
    %1407 = vdwg.mxu0
    %1408 = vmatpush.msra.mxu0 %v1374
    %1409 = vmatpush.msra.mxu0 %v1371
    %1410 = vmatpush.msra.mxu0 %v1368
    %1411 = vmatpush.msra.mxu0 %v1365
    %1412 = vmatpush.msra.mxu0 %v1362
    %1413 = vmatpush.msra.mxu0 %v1359
    %1414 = vmatpush.msra.mxu0 %v1356
    %1415 = vmatpush.msra.mxu0 %v1353
    %1416 = vmatpush.msra.mxu0 %v1350
    %1417 = vmatpush.msra.mxu0 %v1347
    %1418 = vmatpush.msra.mxu0 %v1344
    %1419 = vmatpush.msra.mxu0 %v1341
    %1420 = vmatpush.msra.mxu0 %v1338
    %1421 = vmatpush.msra.mxu0 %v1335
    %1422 = vmatpush.msra.mxu0 %v1332
    %1423 = vmatpush.msra.mxu0 %v1329
    %1424 = vmatmul.f32.gmra.mxu0 %v1323
    %v1425 = vpop.f32.mrf.mxu0
    %v1426 = vadd.f32 %v1380, %v1425
    %1427 = vmatmul.f32.gmra.mxu0 %v1324
    %v1428 = vpop.f32.mrf.mxu0
    %v1429 = vadd.f32 %v1380, %v1428
    %1430 = vdwg.mxu0
    %1431 = vmatpush.msra.mxu0 %v1375
    %1432 = vmatpush.msra.mxu0 %v1372
    %1433 = vmatpush.msra.mxu0 %v1369
    %1434 = vmatpush.msra.mxu0 %v1366
    %1435 = vmatpush.msra.mxu0 %v1363
    %1436 = vmatpush.msra.mxu0 %v1360
    %1437 = vmatpush.msra.mxu0 %v1357
    %1438 = vmatpush.msra.mxu0 %v1354
    %1439 = vmatpush.msra.mxu0 %v1351
    %1440 = vmatpush.msra.mxu0 %v1348
    %1441 = vmatpush.msra.mxu0 %v1345
    %1442 = vmatpush.msra.mxu0 %v1342
    %1443 = vmatpush.msra.mxu0 %v1339
    %1444 = vmatpush.msra.mxu0 %v1336
    %1445 = vmatpush.msra.mxu0 %v1333
    %1446 = vmatpush.msra.mxu0 %v1330
    %1447 = vmatmul.f32.gmra.mxu0 %v1323
    %v1448 = vpop.f32.mrf.mxu0
    %v1449 = vadd.f32 %v1381, %v1448
    %1450 = vmatmul.f32.gmra.mxu0 %v1324
    %v1451 = vpop.f32.mrf.mxu0
    %v1452 = vadd.f32 %v1381, %v1451
    %1453 = vdwg.mxu0
    %v1455 = vsel %vm304, %v1403, 0
    %v1458 = vsel %vm304, %v1426, 0
    %1460 = vmatpush.xpose.msra.mxu0 0.0
    %1461 = vmatpush.xpose.msra.mxu0 0.0
    %1462 = vmatpush.xpose.msra.mxu0 0.0
    %1463 = vmatpush.xpose.msra.mxu0 0.0
    %1464 = vmatpush.xpose.msra.mxu0 0.0
    %1465 = vmatpush.xpose.msra.mxu0 0.0
    %1466 = vmatpush.xpose.msra.mxu0 0.0
    %1467 = vmatpush.xpose.msra.mxu0 0.0
    %1468 = vmatpush.xpose.msra.mxu0 0.0
    %1469 = vmatpush.xpose.msra.mxu0 0.0
    %1470 = vmatpush.xpose.msra.mxu0 0.0
    %1471 = vmatpush.xpose.msra.mxu0 0.0
    %1472 = vmatpush.xpose.msra.mxu0 0.0
    %1473 = vmatpush.xpose.msra.mxu0 0.0
    %1474 = vmatpush.xpose.msra.mxu0 0.0
    %1475 = vmatpush.xpose.msra.mxu0 %v1458
    %1476 = vmatmul.f32.gmra.mxu0 %v1455
    %v1477 = vpop.f32.mrf.mxu0
    %v1478 = vadd.f32 0.0, %v1477
    %1479 = vdwg.mxu0
    %v1480 = vmul.f32 %v1478, 0.17677669
    %v1481 = vadd.f32 %v1480, %v332
    %v1482 = vsel %vm334, %v1481, -inf
    %1483 = vmax.xlane.f32.xlu0 %v1482
    %v1484 = vpop.xlane.xlu0 %1483
    %v1485 = vsub.f32 %v1481, %v1484
    %v1486 = vmul.f32 %v1485, 1.442695
    %v1487 = vpow.pop %v1486
    %v1488 = vsel %vm334, %v1487, 0.0
    %1489 = vadd.xlane.f32.xlu0 %v1488
    %v1490 = vpop.xlane.xlu0 %1489
    %v1491 = vrcp.pop %v1490
    %v1492 = vmul.f32 %v1490, %v1491
    %v1493 = vsub.f32 1.0, %v1492
    %v1494 = vmul.f32 %v1491, %v1493
    %v1495 = vadd.f32 %v1491, %v1494
    %vm1496 = vweird.f32 %v1490
    %vm1497 = vweird.f32 %v1491
    %vm1498 = vmor %vm1496, %vm1497
    %v1499 = vsel %vm1498, %v1491, %v1495
    %v1500 = vand.u32 2147483647, %v1490
    %vm1501 = vcmp.eq.f32.partialorder %v1500, 8.507059e+37
    %v1502 = vand.u32 %v1490, 2147483648
    %v1503 = vor.u32 1.1754944e-38, %v1502
    %v1504 = vsel %vm1501, %v1503, %v1499
    %v1505 = vmul.f32 %v1487, %v1504
    %v1507 = vsel %vm334, %v1505, 0
    %1509 = vmatpush.msra.mxu0 0.0
    %1510 = vmatpush.msra.mxu0 0.0
    %1511 = vmatpush.msra.mxu0 0.0
    %1512 = vmatpush.msra.mxu0 0.0
    %1513 = vmatpush.msra.mxu0 0.0
    %1514 = vmatpush.msra.mxu0 0.0
    %1515 = vmatpush.msra.mxu0 0.0
    %1516 = vmatpush.msra.mxu0 0.0
    %1517 = vmatpush.msra.mxu0 0.0
    %1518 = vmatpush.msra.mxu0 0.0
    %1519 = vmatpush.msra.mxu0 0.0
    %1520 = vmatpush.msra.mxu0 0.0
    %1521 = vmatpush.msra.mxu0 0.0
    %1522 = vmatpush.msra.mxu0 0.0
    %1523 = vmatpush.msra.mxu0 0.0
    %1524 = vmatpush.msra.mxu0 %v1449
    %1525 = vmatmul.f32.gmra.mxu0 %v1507
    %v1526 = vpop.f32.mrf.mxu0
    %v1527 = vadd.f32 0.0, %v1526
    %1528 = vdwg.mxu0
    %1529 = vrot.lane.b32.xlu0 %v1403, 96
    %v1530 = vpop.permute.xlu0 %1529
    %1531 = vrot.lane.b32.xlu0 %v1426, 96
    %v1532 = vpop.permute.xlu0 %1531
    %v1533 = vsel %vm304, %v1530, 0
    %v1535 = vsel %vm304, %v1532, 0
    %1537 = vmatpush.xpose.msra.mxu0 0.0
    %1538 = vmatpush.xpose.msra.mxu0 0.0
    %1539 = vmatpush.xpose.msra.mxu0 0.0
    %1540 = vmatpush.xpose.msra.mxu0 0.0
    %1541 = vmatpush.xpose.msra.mxu0 0.0
    %1542 = vmatpush.xpose.msra.mxu0 0.0
    %1543 = vmatpush.xpose.msra.mxu0 0.0
    %1544 = vmatpush.xpose.msra.mxu0 0.0
    %1545 = vmatpush.xpose.msra.mxu0 0.0
    %1546 = vmatpush.xpose.msra.mxu0 0.0
    %1547 = vmatpush.xpose.msra.mxu0 0.0
    %1548 = vmatpush.xpose.msra.mxu0 0.0
    %1549 = vmatpush.xpose.msra.mxu0 0.0
    %1550 = vmatpush.xpose.msra.mxu0 0.0
    %1551 = vmatpush.xpose.msra.mxu0 0.0
    %1552 = vmatpush.xpose.msra.mxu0 %v1535
    %1553 = vmatmul.f32.gmra.mxu0 %v1533
    %v1554 = vpop.f32.mrf.mxu0
    %v1555 = vadd.f32 0.0, %v1554
    %1556 = vdwg.mxu0
    %v1557 = vmul.f32 %v1555, 0.17677669
    %v1558 = vadd.f32 %v1557, %v332
    %v1559 = vsel %vm334, %v1558, -inf
    %1560 = vmax.xlane.f32.xlu0 %v1559
    %v1561 = vpop.xlane.xlu0 %1560
    %v1562 = vsub.f32 %v1558, %v1561
    %v1563 = vmul.f32 %v1562, 1.442695
    %v1564 = vpow.pop %v1563
    %v1565 = vsel %vm334, %v1564, 0.0
    %1566 = vadd.xlane.f32.xlu0 %v1565
    %v1567 = vpop.xlane.xlu0 %1566
    %v1568 = vrcp.pop %v1567
    %v1569 = vmul.f32 %v1567, %v1568
    %v1570 = vsub.f32 1.0, %v1569
    %v1571 = vmul.f32 %v1568, %v1570
    %v1572 = vadd.f32 %v1568, %v1571
    %vm1573 = vweird.f32 %v1567
    %vm1574 = vweird.f32 %v1568
    %vm1575 = vmor %vm1573, %vm1574
    %v1576 = vsel %vm1575, %v1568, %v1572
    %v1577 = vand.u32 2147483647, %v1567
    %vm1578 = vcmp.eq.f32.partialorder %v1577, 8.507059e+37
    %v1579 = vand.u32 %v1567, 2147483648
    %v1580 = vor.u32 1.1754944e-38, %v1579
    %v1581 = vsel %vm1578, %v1580, %v1576
    %v1582 = vmul.f32 %v1564, %v1581
    %1584 = vrot.lane.b32.xlu0 %v1449, 96
    %v1585 = vpop.permute.xlu0 %1584
    %v1588 = vsel %vm334, %v1582, 0
    %1590 = vmatpush.msra.mxu0 0.0
    %1591 = vmatpush.msra.mxu0 0.0
    %1592 = vmatpush.msra.mxu0 0.0
    %1593 = vmatpush.msra.mxu0 0.0
    %1594 = vmatpush.msra.mxu0 0.0
    %1595 = vmatpush.msra.mxu0 0.0
    %1596 = vmatpush.msra.mxu0 0.0
    %1597 = vmatpush.msra.mxu0 0.0
    %1598 = vmatpush.msra.mxu0 0.0
    %1599 = vmatpush.msra.mxu0 0.0
    %1600 = vmatpush.msra.mxu0 0.0
    %1601 = vmatpush.msra.mxu0 0.0
    %1602 = vmatpush.msra.mxu0 0.0
    %1603 = vmatpush.msra.mxu0 0.0
    %1604 = vmatpush.msra.mxu0 0.0
    %1605 = vmatpush.msra.mxu0 %v1585
    %1606 = vmatmul.f32.gmra.mxu0 %v1588
    %v1607 = vpop.f32.mrf.mxu0
    %v1608 = vadd.f32 0.0, %v1607
    %1609 = vdwg.mxu0
    %1610 = vrot.lane.b32.xlu0 %v1403, 64
    %v1611 = vpop.permute.xlu0 %1610
    %1612 = vrot.lane.b32.xlu0 %v1426, 64
    %v1613 = vpop.permute.xlu0 %1612
    %v1614 = vsel %vm304, %v1611, 0
    %v1616 = vsel %vm304, %v1613, 0
    %1618 = vmatpush.xpose.msra.mxu0 0.0
    %1619 = vmatpush.xpose.msra.mxu0 0.0
    %1620 = vmatpush.xpose.msra.mxu0 0.0
    %1621 = vmatpush.xpose.msra.mxu0 0.0
    %1622 = vmatpush.xpose.msra.mxu0 0.0
    %1623 = vmatpush.xpose.msra.mxu0 0.0
    %1624 = vmatpush.xpose.msra.mxu0 0.0
    %1625 = vmatpush.xpose.msra.mxu0 0.0
    %1626 = vmatpush.xpose.msra.mxu0 0.0
    %1627 = vmatpush.xpose.msra.mxu0 0.0
    %1628 = vmatpush.xpose.msra.mxu0 0.0
    %1629 = vmatpush.xpose.msra.mxu0 0.0
    %1630 = vmatpush.xpose.msra.mxu0 0.0
    %1631 = vmatpush.xpose.msra.mxu0 0.0
    %1632 = vmatpush.xpose.msra.mxu0 0.0
    %1633 = vmatpush.xpose.msra.mxu0 %v1616
    %1634 = vmatmul.f32.gmra.mxu0 %v1614
    %v1635 = vpop.f32.mrf.mxu0
    %v1636 = vadd.f32 0.0, %v1635
    %1637 = vdwg.mxu0
    %v1638 = vmul.f32 %v1636, 0.17677669
    %v1639 = vadd.f32 %v1638, %v332
    %v1640 = vsel %vm334, %v1639, -inf
    %1641 = vmax.xlane.f32.xlu0 %v1640
    %v1642 = vpop.xlane.xlu0 %1641
    %v1643 = vsub.f32 %v1639, %v1642
    %v1644 = vmul.f32 %v1643, 1.442695
    %v1645 = vpow.pop %v1644
    %v1646 = vsel %vm334, %v1645, 0.0
    %1647 = vadd.xlane.f32.xlu0 %v1646
    %v1648 = vpop.xlane.xlu0 %1647
    %v1649 = vrcp.pop %v1648
    %v1650 = vmul.f32 %v1648, %v1649
    %v1651 = vsub.f32 1.0, %v1650
    %v1652 = vmul.f32 %v1649, %v1651
    %v1653 = vadd.f32 %v1649, %v1652
    %vm1654 = vweird.f32 %v1648
    %vm1655 = vweird.f32 %v1649
    %vm1656 = vmor %vm1654, %vm1655
    %v1657 = vsel %vm1656, %v1649, %v1653
    %v1658 = vand.u32 2147483647, %v1648
    %vm1659 = vcmp.eq.f32.partialorder %v1658, 8.507059e+37
    %v1660 = vand.u32 %v1648, 2147483648
    %v1661 = vor.u32 1.1754944e-38, %v1660
    %v1662 = vsel %vm1659, %v1661, %v1657
    %v1663 = vmul.f32 %v1645, %v1662
    %1664 = vrot.lane.b32.xlu0 %v1449, 64
    %v1665 = vpop.permute.xlu0 %1664
    %v1668 = vsel %vm334, %v1663, 0
    %1670 = vmatpush.msra.mxu0 0.0
    %1671 = vmatpush.msra.mxu0 0.0
    %1672 = vmatpush.msra.mxu0 0.0
    %1673 = vmatpush.msra.mxu0 0.0
    %1674 = vmatpush.msra.mxu0 0.0
    %1675 = vmatpush.msra.mxu0 0.0
    %1676 = vmatpush.msra.mxu0 0.0
    %1677 = vmatpush.msra.mxu0 0.0
    %1678 = vmatpush.msra.mxu0 0.0
    %1679 = vmatpush.msra.mxu0 0.0
    %1680 = vmatpush.msra.mxu0 0.0
    %1681 = vmatpush.msra.mxu0 0.0
    %1682 = vmatpush.msra.mxu0 0.0
    %1683 = vmatpush.msra.mxu0 0.0
    %1684 = vmatpush.msra.mxu0 0.0
    %1685 = vmatpush.msra.mxu0 %v1665
    %1686 = vmatmul.f32.gmra.mxu0 %v1668
    %v1687 = vpop.f32.mrf.mxu0
    %v1688 = vadd.f32 0.0, %v1687
    %1689 = vdwg.mxu0
    %1690 = vrot.lane.b32.xlu0 %v1403, 32
    %v1691 = vpop.permute.xlu0 %1690
    %1692 = vrot.lane.b32.xlu0 %v1426, 32
    %v1693 = vpop.permute.xlu0 %1692
    %v1694 = vsel %vm304, %v1691, 0
    %v1696 = vsel %vm304, %v1693, 0
    %1698 = vmatpush.xpose.msra.mxu0 0.0
    %1699 = vmatpush.xpose.msra.mxu0 0.0
    %1700 = vmatpush.xpose.msra.mxu0 0.0
    %1701 = vmatpush.xpose.msra.mxu0 0.0
    %1702 = vmatpush.xpose.msra.mxu0 0.0
    %1703 = vmatpush.xpose.msra.mxu0 0.0
    %1704 = vmatpush.xpose.msra.mxu0 0.0
    %1705 = vmatpush.xpose.msra.mxu0 0.0
    %1706 = vmatpush.xpose.msra.mxu0 0.0
    %1707 = vmatpush.xpose.msra.mxu0 0.0
    %1708 = vmatpush.xpose.msra.mxu0 0.0
    %1709 = vmatpush.xpose.msra.mxu0 0.0
    %1710 = vmatpush.xpose.msra.mxu0 0.0
    %1711 = vmatpush.xpose.msra.mxu0 0.0
    %1712 = vmatpush.xpose.msra.mxu0 0.0
    %1713 = vmatpush.xpose.msra.mxu0 %v1696
    %1714 = vmatmul.f32.gmra.mxu0 %v1694
    %v1715 = vpop.f32.mrf.mxu0
    %v1716 = vadd.f32 0.0, %v1715
    %1717 = vdwg.mxu0
    %v1718 = vmul.f32 %v1716, 0.17677669
    %v1719 = vadd.f32 %v1718, %v332
    %v1720 = vsel %vm334, %v1719, -inf
    %1721 = vmax.xlane.f32.xlu0 %v1720
    %v1722 = vpop.xlane.xlu0 %1721
    %v1723 = vsub.f32 %v1719, %v1722
    %v1724 = vmul.f32 %v1723, 1.442695
    %v1725 = vpow.pop %v1724
    %v1726 = vsel %vm334, %v1725, 0.0
    %1727 = vadd.xlane.f32.xlu0 %v1726
    %v1728 = vpop.xlane.xlu0 %1727
    %v1729 = vrcp.pop %v1728
    %v1730 = vmul.f32 %v1728, %v1729
    %v1731 = vsub.f32 1.0, %v1730
    %v1732 = vmul.f32 %v1729, %v1731
    %v1733 = vadd.f32 %v1729, %v1732
    %vm1734 = vweird.f32 %v1728
    %vm1735 = vweird.f32 %v1729
    %vm1736 = vmor %vm1734, %vm1735
    %v1737 = vsel %vm1736, %v1729, %v1733
    %v1738 = vand.u32 2147483647, %v1728
    %vm1739 = vcmp.eq.f32.partialorder %v1738, 8.507059e+37
    %v1740 = vand.u32 %v1728, 2147483648
    %v1741 = vor.u32 1.1754944e-38, %v1740
    %v1742 = vsel %vm1739, %v1741, %v1737
    %v1743 = vmul.f32 %v1725, %v1742
    %1744 = vrot.lane.b32.xlu0 %v1449, 32
    %v1745 = vpop.permute.xlu0 %1744
    %v1748 = vsel %vm334, %v1743, 0
    %1750 = vmatpush.msra.mxu0 0.0
    %1751 = vmatpush.msra.mxu0 0.0
    %1752 = vmatpush.msra.mxu0 0.0
    %1753 = vmatpush.msra.mxu0 0.0
    %1754 = vmatpush.msra.mxu0 0.0
    %1755 = vmatpush.msra.mxu0 0.0
    %1756 = vmatpush.msra.mxu0 0.0
    %1757 = vmatpush.msra.mxu0 0.0
    %1758 = vmatpush.msra.mxu0 0.0
    %1759 = vmatpush.msra.mxu0 0.0
    %1760 = vmatpush.msra.mxu0 0.0
    %1761 = vmatpush.msra.mxu0 0.0
    %1762 = vmatpush.msra.mxu0 0.0
    %1763 = vmatpush.msra.mxu0 0.0
    %1764 = vmatpush.msra.mxu0 0.0
    %1765 = vmatpush.msra.mxu0 %v1745
    %1766 = vmatmul.f32.gmra.mxu0 %v1748
    %v1767 = vpop.f32.mrf.mxu0
    %v1768 = vadd.f32 0.0, %v1767
    %1769 = vdwg.mxu0
    %1771 = vrot.lane.b32.xlu0 %v1608, 32
    %v1772 = vpop.permute.xlu0 %1771
    %1775 = vrot.lane.b32.xlu0 %v1688, 64
    %v1776 = vpop.permute.xlu0 %1775
    %1779 = vrot.lane.b32.xlu0 %v1768, 96
    %v1780 = vpop.permute.xlu0 %1779
    %v1782 = vsel %vm304, %v1527, %v1772
    %v1783 = vsel %vm636, %v1782, %v1776
    %v1784 = vsel %vm638, %v1783, %v1780
    %v1786 = vsel %vm304, %v1406, 0
    %v1789 = vsel %vm304, %v1429, 0
    %1791 = vmatpush.xpose.msra.mxu0 0.0
    %1792 = vmatpush.xpose.msra.mxu0 0.0
    %1793 = vmatpush.xpose.msra.mxu0 0.0
    %1794 = vmatpush.xpose.msra.mxu0 0.0
    %1795 = vmatpush.xpose.msra.mxu0 0.0
    %1796 = vmatpush.xpose.msra.mxu0 0.0
    %1797 = vmatpush.xpose.msra.mxu0 0.0
    %1798 = vmatpush.xpose.msra.mxu0 0.0
    %1799 = vmatpush.xpose.msra.mxu0 0.0
    %1800 = vmatpush.xpose.msra.mxu0 0.0
    %1801 = vmatpush.xpose.msra.mxu0 0.0
    %1802 = vmatpush.xpose.msra.mxu0 0.0
    %1803 = vmatpush.xpose.msra.mxu0 0.0
    %1804 = vmatpush.xpose.msra.mxu0 0.0
    %1805 = vmatpush.xpose.msra.mxu0 0.0
    %1806 = vmatpush.xpose.msra.mxu0 %v1789
    %1807 = vmatmul.f32.gmra.mxu0 %v1786
    %v1808 = vpop.f32.mrf.mxu0
    %v1809 = vadd.f32 0.0, %v1808
    %1810 = vdwg.mxu0
    %v1811 = vmul.f32 %v1809, 0.17677669
    %v1812 = vadd.f32 %v1811, %v667
    %v1813 = vsel %vm334, %v1812, -inf
    %1814 = vmax.xlane.f32.xlu0 %v1813
    %v1815 = vpop.xlane.xlu0 %1814
    %v1816 = vsub.f32 %v1812, %v1815
    %v1817 = vmul.f32 %v1816, 1.442695
    %v1818 = vpow.pop %v1817
    %v1819 = vsel %vm334, %v1818, 0.0
    %1820 = vadd.xlane.f32.xlu0 %v1819
    %v1821 = vpop.xlane.xlu0 %1820
    %v1822 = vrcp.pop %v1821
    %v1823 = vmul.f32 %v1821, %v1822
    %v1824 = vsub.f32 1.0, %v1823
    %v1825 = vmul.f32 %v1822, %v1824
    %v1826 = vadd.f32 %v1822, %v1825
    %vm1827 = vweird.f32 %v1821
    %vm1828 = vweird.f32 %v1822
    %vm1829 = vmor %vm1827, %vm1828
    %v1830 = vsel %vm1829, %v1822, %v1826
    %v1831 = vand.u32 2147483647, %v1821
    %vm1832 = vcmp.eq.f32.partialorder %v1831, 8.507059e+37
    %v1833 = vand.u32 %v1821, 2147483648
    %v1834 = vor.u32 1.1754944e-38, %v1833
    %v1835 = vsel %vm1832, %v1834, %v1830
    %v1836 = vmul.f32 %v1818, %v1835
    %v1838 = vsel %vm334, %v1836, 0
    %1840 = vmatpush.msra.mxu0 0.0
    %1841 = vmatpush.msra.mxu0 0.0
    %1842 = vmatpush.msra.mxu0 0.0
    %1843 = vmatpush.msra.mxu0 0.0
    %1844 = vmatpush.msra.mxu0 0.0
    %1845 = vmatpush.msra.mxu0 0.0
    %1846 = vmatpush.msra.mxu0 0.0
    %1847 = vmatpush.msra.mxu0 0.0
    %1848 = vmatpush.msra.mxu0 0.0
    %1849 = vmatpush.msra.mxu0 0.0
    %1850 = vmatpush.msra.mxu0 0.0
    %1851 = vmatpush.msra.mxu0 0.0
    %1852 = vmatpush.msra.mxu0 0.0
    %1853 = vmatpush.msra.mxu0 0.0
    %1854 = vmatpush.msra.mxu0 0.0
    %1855 = vmatpush.msra.mxu0 %v1452
    %1856 = vmatmul.f32.gmra.mxu0 %v1838
    %v1857 = vpop.f32.mrf.mxu0
    %v1858 = vadd.f32 0.0, %v1857
    %1859 = vdwg.mxu0
    %1860 = vrot.lane.b32.xlu0 %v1406, 96
    %v1861 = vpop.permute.xlu0 %1860
    %1862 = vrot.lane.b32.xlu0 %v1429, 96
    %v1863 = vpop.permute.xlu0 %1862
    %v1864 = vsel %vm304, %v1861, 0
    %v1866 = vsel %vm304, %v1863, 0
    %1868 = vmatpush.xpose.msra.mxu0 0.0
    %1869 = vmatpush.xpose.msra.mxu0 0.0
    %1870 = vmatpush.xpose.msra.mxu0 0.0
    %1871 = vmatpush.xpose.msra.mxu0 0.0
    %1872 = vmatpush.xpose.msra.mxu0 0.0
    %1873 = vmatpush.xpose.msra.mxu0 0.0
    %1874 = vmatpush.xpose.msra.mxu0 0.0
    %1875 = vmatpush.xpose.msra.mxu0 0.0
    %1876 = vmatpush.xpose.msra.mxu0 0.0
    %1877 = vmatpush.xpose.msra.mxu0 0.0
    %1878 = vmatpush.xpose.msra.mxu0 0.0
    %1879 = vmatpush.xpose.msra.mxu0 0.0
    %1880 = vmatpush.xpose.msra.mxu0 0.0
    %1881 = vmatpush.xpose.msra.mxu0 0.0
    %1882 = vmatpush.xpose.msra.mxu0 0.0
    %1883 = vmatpush.xpose.msra.mxu0 %v1866
    %1884 = vmatmul.f32.gmra.mxu0 %v1864
    %v1885 = vpop.f32.mrf.mxu0
    %v1886 = vadd.f32 0.0, %v1885
    %1887 = vdwg.mxu0
    %v1888 = vmul.f32 %v1886, 0.17677669
    %v1889 = vadd.f32 %v1888, %v667
    %v1890 = vsel %vm334, %v1889, -inf
    %1891 = vmax.xlane.f32.xlu0 %v1890
    %v1892 = vpop.xlane.xlu0 %1891
    %v1893 = vsub.f32 %v1889, %v1892
    %v1894 = vmul.f32 %v1893, 1.442695
    %v1895 = vpow.pop %v1894
    %v1896 = vsel %vm334, %v1895, 0.0
    %1897 = vadd.xlane.f32.xlu0 %v1896
    %v1898 = vpop.xlane.xlu0 %1897
    %v1899 = vrcp.pop %v1898
    %v1900 = vmul.f32 %v1898, %v1899
    %v1901 = vsub.f32 1.0, %v1900
    %v1902 = vmul.f32 %v1899, %v1901
    %v1903 = vadd.f32 %v1899, %v1902
    %vm1904 = vweird.f32 %v1898
    %vm1905 = vweird.f32 %v1899
    %vm1906 = vmor %vm1904, %vm1905
    %v1907 = vsel %vm1906, %v1899, %v1903
    %v1908 = vand.u32 2147483647, %v1898
    %vm1909 = vcmp.eq.f32.partialorder %v1908, 8.507059e+37
    %v1910 = vand.u32 %v1898, 2147483648
    %v1911 = vor.u32 1.1754944e-38, %v1910
    %v1912 = vsel %vm1909, %v1911, %v1907
    %v1913 = vmul.f32 %v1895, %v1912
    %1915 = vrot.lane.b32.xlu0 %v1452, 96
    %v1916 = vpop.permute.xlu0 %1915
    %v1919 = vsel %vm334, %v1913, 0
    %1921 = vmatpush.msra.mxu0 0.0
    %1922 = vmatpush.msra.mxu0 0.0
    %1923 = vmatpush.msra.mxu0 0.0
    %1924 = vmatpush.msra.mxu0 0.0
    %1925 = vmatpush.msra.mxu0 0.0
    %1926 = vmatpush.msra.mxu0 0.0
    %1927 = vmatpush.msra.mxu0 0.0
    %1928 = vmatpush.msra.mxu0 0.0
    %1929 = vmatpush.msra.mxu0 0.0
    %1930 = vmatpush.msra.mxu0 0.0
    %1931 = vmatpush.msra.mxu0 0.0
    %1932 = vmatpush.msra.mxu0 0.0
    %1933 = vmatpush.msra.mxu0 0.0
    %1934 = vmatpush.msra.mxu0 0.0
    %1935 = vmatpush.msra.mxu0 0.0
    %1936 = vmatpush.msra.mxu0 %v1916
    %1937 = vmatmul.f32.gmra.mxu0 %v1919
    %v1938 = vpop.f32.mrf.mxu0
    %v1939 = vadd.f32 0.0, %v1938
    %1940 = vdwg.mxu0
    %1941 = vrot.lane.b32.xlu0 %v1406, 64
    %v1942 = vpop.permute.xlu0 %1941
    %1943 = vrot.lane.b32.xlu0 %v1429, 64
    %v1944 = vpop.permute.xlu0 %1943
    %v1945 = vsel %vm304, %v1942, 0
    %v1947 = vsel %vm304, %v1944, 0
    %1949 = vmatpush.xpose.msra.mxu0 0.0
    %1950 = vmatpush.xpose.msra.mxu0 0.0
    %1951 = vmatpush.xpose.msra.mxu0 0.0
    %1952 = vmatpush.xpose.msra.mxu0 0.0
    %1953 = vmatpush.xpose.msra.mxu0 0.0
    %1954 = vmatpush.xpose.msra.mxu0 0.0
    %1955 = vmatpush.xpose.msra.mxu0 0.0
    %1956 = vmatpush.xpose.msra.mxu0 0.0
    %1957 = vmatpush.xpose.msra.mxu0 0.0
    %1958 = vmatpush.xpose.msra.mxu0 0.0
    %1959 = vmatpush.xpose.msra.mxu0 0.0
    %1960 = vmatpush.xpose.msra.mxu0 0.0
    %1961 = vmatpush.xpose.msra.mxu0 0.0
    %1962 = vmatpush.xpose.msra.mxu0 0.0
    %1963 = vmatpush.xpose.msra.mxu0 0.0
    %1964 = vmatpush.xpose.msra.mxu0 %v1947
    %1965 = vmatmul.f32.gmra.mxu0 %v1945
    %v1966 = vpop.f32.mrf.mxu0
    %v1967 = vadd.f32 0.0, %v1966
    %1968 = vdwg.mxu0
    %v1969 = vmul.f32 %v1967, 0.17677669
    %v1970 = vadd.f32 %v1969, %v667
    %v1971 = vsel %vm334, %v1970, -inf
    %1972 = vmax.xlane.f32.xlu0 %v1971
    %v1973 = vpop.xlane.xlu0 %1972
    %v1974 = vsub.f32 %v1970, %v1973
    %v1975 = vmul.f32 %v1974, 1.442695
    %v1976 = vpow.pop %v1975
    %v1977 = vsel %vm334, %v1976, 0.0
    %1978 = vadd.xlane.f32.xlu0 %v1977
    %v1979 = vpop.xlane.xlu0 %1978
    %v1980 = vrcp.pop %v1979
    %v1981 = vmul.f32 %v1979, %v1980
    %v1982 = vsub.f32 1.0, %v1981
    %v1983 = vmul.f32 %v1980, %v1982
    %v1984 = vadd.f32 %v1980, %v1983
    %vm1985 = vweird.f32 %v1979
    %vm1986 = vweird.f32 %v1980
    %vm1987 = vmor %vm1985, %vm1986
    %v1988 = vsel %vm1987, %v1980, %v1984
    %v1989 = vand.u32 2147483647, %v1979
    %vm1990 = vcmp.eq.f32.partialorder %v1989, 8.507059e+37
    %v1991 = vand.u32 %v1979, 2147483648
    %v1992 = vor.u32 1.1754944e-38, %v1991
    %v1993 = vsel %vm1990, %v1992, %v1988
    %v1994 = vmul.f32 %v1976, %v1993
    %1995 = vrot.lane.b32.xlu0 %v1452, 64
    %v1996 = vpop.permute.xlu0 %1995
    %v1999 = vsel %vm334, %v1994, 0
    %2001 = vmatpush.msra.mxu0 0.0
    %2002 = vmatpush.msra.mxu0 0.0
    %2003 = vmatpush.msra.mxu0 0.0
    %2004 = vmatpush.msra.mxu0 0.0
    %2005 = vmatpush.msra.mxu0 0.0
    %2006 = vmatpush.msra.mxu0 0.0
    %2007 = vmatpush.msra.mxu0 0.0
    %2008 = vmatpush.msra.mxu0 0.0
    %2009 = vmatpush.msra.mxu0 0.0
    %2010 = vmatpush.msra.mxu0 0.0
    %2011 = vmatpush.msra.mxu0 0.0
    %2012 = vmatpush.msra.mxu0 0.0
    %2013 = vmatpush.msra.mxu0 0.0
    %2014 = vmatpush.msra.mxu0 0.0
    %2015 = vmatpush.msra.mxu0 0.0
    %2016 = vmatpush.msra.mxu0 %v1996
    %2017 = vmatmul.f32.gmra.mxu0 %v1999
    %v2018 = vpop.f32.mrf.mxu0
    %v2019 = vadd.f32 0.0, %v2018
    %2020 = vdwg.mxu0
    %2021 = vrot.lane.b32.xlu0 %v1406, 32
    %v2022 = vpop.permute.xlu0 %2021
    %2023 = vrot.lane.b32.xlu0 %v1429, 32
    %v2024 = vpop.permute.xlu0 %2023
    %v2025 = vsel %vm304, %v2022, 0
    %v2027 = vsel %vm304, %v2024, 0
    %2029 = vmatpush.xpose.msra.mxu0 0.0
    %2030 = vmatpush.xpose.msra.mxu0 0.0
    %2031 = vmatpush.xpose.msra.mxu0 0.0
    %2032 = vmatpush.xpose.msra.mxu0 0.0
    %2033 = vmatpush.xpose.msra.mxu0 0.0
    %2034 = vmatpush.xpose.msra.mxu0 0.0
    %2035 = vmatpush.xpose.msra.mxu0 0.0
    %2036 = vmatpush.xpose.msra.mxu0 0.0
    %2037 = vmatpush.xpose.msra.mxu0 0.0
    %2038 = vmatpush.xpose.msra.mxu0 0.0
    %2039 = vmatpush.xpose.msra.mxu0 0.0
    %2040 = vmatpush.xpose.msra.mxu0 0.0
    %2041 = vmatpush.xpose.msra.mxu0 0.0
    %2042 = vmatpush.xpose.msra.mxu0 0.0
    %2043 = vmatpush.xpose.msra.mxu0 0.0
    %2044 = vmatpush.xpose.msra.mxu0 %v2027
    %2045 = vmatmul.f32.gmra.mxu0 %v2025
    %v2046 = vpop.f32.mrf.mxu0
    %v2047 = vadd.f32 0.0, %v2046
    %2048 = vdwg.mxu0
    %v2049 = vmul.f32 %v2047, 0.17677669
    %v2050 = vadd.f32 %v2049, %v667
    %v2051 = vsel %vm334, %v2050, -inf
    %2052 = vmax.xlane.f32.xlu0 %v2051
    %v2053 = vpop.xlane.xlu0 %2052
    %v2054 = vsub.f32 %v2050, %v2053
    %v2055 = vmul.f32 %v2054, 1.442695
    %v2056 = vpow.pop %v2055
    %v2057 = vsel %vm334, %v2056, 0.0
    %2058 = vadd.xlane.f32.xlu0 %v2057
    %v2059 = vpop.xlane.xlu0 %2058
    %v2060 = vrcp.pop %v2059
    %v2061 = vmul.f32 %v2059, %v2060
    %v2062 = vsub.f32 1.0, %v2061
    %v2063 = vmul.f32 %v2060, %v2062
    %v2064 = vadd.f32 %v2060, %v2063
    %vm2065 = vweird.f32 %v2059
    %vm2066 = vweird.f32 %v2060
    %vm2067 = vmor %vm2065, %vm2066
    %v2068 = vsel %vm2067, %v2060, %v2064
    %v2069 = vand.u32 2147483647, %v2059
    %vm2070 = vcmp.eq.f32.partialorder %v2069, 8.507059e+37
    %v2071 = vand.u32 %v2059, 2147483648
    %v2072 = vor.u32 1.1754944e-38, %v2071
    %v2073 = vsel %vm2070, %v2072, %v2068
    %v2074 = vmul.f32 %v2056, %v2073
    %2075 = vrot.lane.b32.xlu0 %v1452, 32
    %v2076 = vpop.permute.xlu0 %2075
    %v2079 = vsel %vm334, %v2074, 0
    %2081 = vmatpush.msra.mxu0 0.0
    %2082 = vmatpush.msra.mxu0 0.0
    %2083 = vmatpush.msra.mxu0 0.0
    %2084 = vmatpush.msra.mxu0 0.0
    %2085 = vmatpush.msra.mxu0 0.0
    %2086 = vmatpush.msra.mxu0 0.0
    %2087 = vmatpush.msra.mxu0 0.0
    %2088 = vmatpush.msra.mxu0 0.0
    %2089 = vmatpush.msra.mxu0 0.0
    %2090 = vmatpush.msra.mxu0 0.0
    %2091 = vmatpush.msra.mxu0 0.0
    %2092 = vmatpush.msra.mxu0 0.0
    %2093 = vmatpush.msra.mxu0 0.0
    %2094 = vmatpush.msra.mxu0 0.0
    %2095 = vmatpush.msra.mxu0 0.0
    %2096 = vmatpush.msra.mxu0 %v2076
    %2097 = vmatmul.f32.gmra.mxu0 %v2079
    %v2098 = vpop.f32.mrf.mxu0
    %v2099 = vadd.f32 0.0, %v2098
    %2100 = vdwg.mxu0
    %2102 = vrot.lane.b32.xlu0 %v1939, 32
    %v2103 = vpop.permute.xlu0 %2102
    %2106 = vrot.lane.b32.xlu0 %v2019, 64
    %v2107 = vpop.permute.xlu0 %2106
    %2110 = vrot.lane.b32.xlu0 %v2099, 96
    %v2111 = vpop.permute.xlu0 %2110
    %v2113 = vsel %vm304, %v1858, %v2103
    %v2114 = vsel %vm636, %v2113, %v2107
    %v2115 = vsel %vm638, %v2114, %v2111
    %s2116 = scalar_lea.vmem [#allocation5], 128
    %v2117 = vld [vmem:[%s2116] sm:$0xff]
    %v2118 = vld [vmem:[%s2116 + $0x8] sm:$0xff]
    %v2119 = vld [vmem:[%s2116 + $0x10] sm:$0xff]
    %v2120 = vld [vmem:[%s2116 + $0x18] sm:$0xff]
    %v2121 = vld [vmem:[%s2116 + $0x20] sm:$0xff]
    %v2122 = vld [vmem:[%s2116 + $0x28] sm:$0xff]
    %v2123 = vld [vmem:[%s2116 + $0x30] sm:$0xff]
    %v2124 = vld [vmem:[%s2116 + $0x38] sm:$0xff]
    %v2125 = vld [vmem:[%s2116 + $0x40] sm:$0xff]
    %v2126 = vld [vmem:[%s2116 + $0x48] sm:$0xff]
    %v2127 = vld [vmem:[%s2116 + $0x50] sm:$0xff]
    %v2128 = vld [vmem:[%s2116 + $0x58] sm:$0xff]
    %v2129 = vld [vmem:[%s2116 + $0x60] sm:$0xff]
    %v2130 = vld [vmem:[%s2116 + $0x68] sm:$0xff]
    %v2131 = vld [vmem:[%s2116 + $0x70] sm:$0xff]
    %v2132 = vld [vmem:[%s2116 + $0x78] sm:$0xff]
    %s2133 = scalar_lea.vmem %s7, 1
    %v2134 = vld [vmem:[%s2133] sm:$0x1]
    %v2136 = vperm.slane %v2134, 0
    %2138 = vmatpush.msra.mxu0 %v2132
    %2139 = vmatpush.msra.mxu0 %v2131
    %2140 = vmatpush.msra.mxu0 %v2130
    %2141 = vmatpush.msra.mxu0 %v2129
    %2142 = vmatpush.msra.mxu0 %v2128
    %2143 = vmatpush.msra.mxu0 %v2127
    %2144 = vmatpush.msra.mxu0 %v2126
    %2145 = vmatpush.msra.mxu0 %v2125
    %2146 = vmatpush.msra.mxu0 %v2124
    %2147 = vmatpush.msra.mxu0 %v2123
    %2148 = vmatpush.msra.mxu0 %v2122
    %2149 = vmatpush.msra.mxu0 %v2121
    %2150 = vmatpush.msra.mxu0 %v2120
    %2151 = vmatpush.msra.mxu0 %v2119
    %2152 = vmatpush.msra.mxu0 %v2118
    %2153 = vmatpush.msra.mxu0 %v2117
    %2154 = vmatmul.f32.gmra.mxu0 %v1784
    %v2155 = vpop.f32.mrf.mxu0
    %v2156 = vadd.f32 %v2136, %v2155
    %2157 = vmatmul.f32.gmra.mxu0 %v2115
    %v2158 = vpop.f32.mrf.mxu0
    %v2159 = vadd.f32 %v2136, %v2158
    %2160 = vdwg.mxu0
    %v2161 = vadd.f32 %v2156, %v1323
    %v2162 = vadd.f32 %v2159, %v1324
    %s2163 = scalar_lea.vmem %s8, 1
    %v2164 = vld [vmem:[%s2163] sm:$0x1]
    %s2165 = scalar_lea.vmem %s9, 1
    %v2166 = vld [vmem:[%s2165] sm:$0x1]
    %2167 = vadd.xlane.f32.xlu0 %v2161
    %v2168 = vpop.xlane.xlu0 %2167
    %2169 = vadd.xlane.f32.xlu0 %v2162
    %v2170 = vpop.xlane.xlu0 %2169
    %v2171 = vmul.f32 %v2168, %v132
    %v2172 = vmul.f32 %v2170, %v132
    %v2173 = vsub.f32 %v2161, %v2171
    %v2174 = vsub.f32 %v2162, %v2172
    %v2175 = vmul.f32 %v2173, %v2173
    %v2176 = vmul.f32 %v2174, %v2174
    %2177 = vadd.xlane.f32.xlu0 %v2175
    %v2178 = vpop.xlane.xlu0 %2177
    %2179 = vadd.xlane.f32.xlu0 %v2176
    %v2180 = vpop.xlane.xlu0 %2179
    %v2181 = vmul.f32 %v2178, %v132
    %v2182 = vmul.f32 %v2180, %v132
    %v2183 = vadd.f32 %v2181, 1e-12
    %v2184 = vadd.f32 %v2182, 1e-12
    %v2185 = vrsqrt.pop %v2183
    %v2186 = vmul.f32 %v2185, %v2183
    %v2187 = vmul.f32 %v2186, %v2185
    %v2188 = vmul.f32 0.5, %v2187
    %v2189 = vsub.f32 1.5, %v2188
    %v2190 = vmul.f32 %v2185, %v2189
    %vm2191 = vweird.f32 %v2183
    %vm2192 = vweird.f32 %v2185
    %vm2193 = vmor %vm2191, %vm2192
    %v2194 = vsel %vm2193, %v2185, %v2190
    %v2195 = vrsqrt.pop %v2184
    %v2196 = vmul.f32 %v2195, %v2184
    %v2197 = vmul.f32 %v2196, %v2195
    %v2198 = vmul.f32 0.5, %v2197
    %v2199 = vsub.f32 1.5, %v2198
    %v2200 = vmul.f32 %v2195, %v2199
    %vm2201 = vweird.f32 %v2184
    %vm2202 = vweird.f32 %v2195
    %vm2203 = vmor %vm2201, %vm2202
    %v2204 = vsel %vm2203, %v2195, %v2200
    %v2205 = vmul.f32 %v2173, %v2194
    %v2206 = vmul.f32 %v2174, %v2204
    %v2208 = vperm.slane %v2164, 0
    %v2210 = vmul.f32 %v2205, %v2208
    %v2211 = vmul.f32 %v2206, %v2208
    %v2213 = vperm.slane %v2166, 0
    %v2215 = vadd.f32 %v2210, %v2213
    %v2216 = vadd.f32 %v2211, %v2213
    %s2217 = scalar_lea.vmem [#allocation7], 256
    %v2218 = vld [vmem:[%s2217] sm:$0xff]
    %v2219 = vld [vmem:[%s2217 + $0x8] sm:$0xff]
    %v2220 = vld [vmem:[%s2217 + $0x10] sm:$0xff]
    %v2221 = vld [vmem:[%s2217 + $0x18] sm:$0xff]
    %v2222 = vld [vmem:[%s2217 + $0x20] sm:$0xff]
    %v2223 = vld [vmem:[%s2217 + $0x28] sm:$0xff]
    %v2224 = vld [vmem:[%s2217 + $0x30] sm:$0xff]
    %v2225 = vld [vmem:[%s2217 + $0x38] sm:$0xff]
    %v2226 = vld [vmem:[%s2217 + $0x40] sm:$0xff]
    %v2227 = vld [vmem:[%s2217 + $0x48] sm:$0xff]
    %v2228 = vld [vmem:[%s2217 + $0x50] sm:$0xff]
    %v2229 = vld [vmem:[%s2217 + $0x58] sm:$0xff]
    %v2230 = vld [vmem:[%s2217 + $0x60] sm:$0xff]
    %v2231 = vld [vmem:[%s2217 + $0x68] sm:$0xff]
    %v2232 = vld [vmem:[%s2217 + $0x70] sm:$0xff]
    %v2233 = vld [vmem:[%s2217 + $0x78] sm:$0xff]
    %v2234 = vld [vmem:[%s2217 + $0x80] sm:$0xff]
    %v2235 = vld [vmem:[%s2217 + $0x88] sm:$0xff]
    %v2236 = vld [vmem:[%s2217 + $0x90] sm:$0xff]
    %v2237 = vld [vmem:[%s2217 + $0x98] sm:$0xff]
    %v2238 = vld [vmem:[%s2217 + $0xa0] sm:$0xff]
    %v2239 = vld [vmem:[%s2217 + $0xa8] sm:$0xff]
    %v2240 = vld [vmem:[%s2217 + $0xb0] sm:$0xff]
    %v2241 = vld [vmem:[%s2217 + $0xb8] sm:$0xff]
    %v2242 = vld [vmem:[%s2217 + $0xc0] sm:$0xff]
    %v2243 = vld [vmem:[%s2217 + $0xc8] sm:$0xff]
    %v2244 = vld [vmem:[%s2217 + $0xd0] sm:$0xff]
    %v2245 = vld [vmem:[%s2217 + $0xd8] sm:$0xff]
    %v2246 = vld [vmem:[%s2217 + $0xe0] sm:$0xff]
    %v2247 = vld [vmem:[%s2217 + $0xe8] sm:$0xff]
    %v2248 = vld [vmem:[%s2217 + $0xf0] sm:$0xff]
    %v2249 = vld [vmem:[%s2217 + $0xf8] sm:$0xff]
    %s2250 = scalar_lea.vmem %s11, 2
    %v2251 = vld [vmem:[%s2250] sm:$0x3]
    %v2253 = vperm.slane %v2251, 0
    %v2254 = vperm.slane %v2251, 1
    %2257 = vmatpush.msra.mxu0 %v2248
    %2258 = vmatpush.msra.mxu0 %v2246
    %2259 = vmatpush.msra.mxu0 %v2244
    %2260 = vmatpush.msra.mxu0 %v2242
    %2261 = vmatpush.msra.mxu0 %v2240
    %2262 = vmatpush.msra.mxu0 %v2238
    %2263 = vmatpush.msra.mxu0 %v2236
    %2264 = vmatpush.msra.mxu0 %v2234
    %2265 = vmatpush.msra.mxu0 %v2232
    %2266 = vmatpush.msra.mxu0 %v2230
    %2267 = vmatpush.msra.mxu0 %v2228
    %2268 = vmatpush.msra.mxu0 %v2226
    %2269 = vmatpush.msra.mxu0 %v2224
    %2270 = vmatpush.msra.mxu0 %v2222
    %2271 = vmatpush.msra.mxu0 %v2220
    %2272 = vmatpush.msra.mxu0 %v2218
    %2273 = vmatmul.f32.gmra.mxu0 %v2215
    %v2274 = vpop.f32.mrf.mxu0
    %v2275 = vadd.f32 %v2253, %v2274
    %2276 = vmatmul.f32.gmra.mxu0 %v2216
    %v2277 = vpop.f32.mrf.mxu0
    %v2278 = vadd.f32 %v2253, %v2277
    %2279 = vdwg.mxu0
    %2280 = vmatpush.msra.mxu0 %v2249
    %2281 = vmatpush.msra.mxu0 %v2247
    %2282 = vmatpush.msra.mxu0 %v2245
    %2283 = vmatpush.msra.mxu0 %v2243
    %2284 = vmatpush.msra.mxu0 %v2241
    %2285 = vmatpush.msra.mxu0 %v2239
    %2286 = vmatpush.msra.mxu0 %v2237
    %2287 = vmatpush.msra.mxu0 %v2235
    %2288 = vmatpush.msra.mxu0 %v2233
    %2289 = vmatpush.msra.mxu0 %v2231
    %2290 = vmatpush.msra.mxu0 %v2229
    %2291 = vmatpush.msra.mxu0 %v2227
    %2292 = vmatpush.msra.mxu0 %v2225
    %2293 = vmatpush.msra.mxu0 %v2223
    %2294 = vmatpush.msra.mxu0 %v2221
    %2295 = vmatpush.msra.mxu0 %v2219
    %2296 = vmatmul.f32.gmra.mxu0 %v2215
    %v2297 = vpop.f32.mrf.mxu0
    %v2298 = vadd.f32 %v2254, %v2297
    %2299 = vmatmul.f32.gmra.mxu0 %v2216
    %v2300 = vpop.f32.mrf.mxu0
    %v2301 = vadd.f32 %v2254, %v2300
    %2302 = vdwg.mxu0
    %v2303 = vmul.f32 %v2275, %v2275
    %v2304 = vmul.f32 %v2298, %v2298
    %v2305 = vmul.f32 %v2278, %v2278
    %v2306 = vmul.f32 %v2301, %v2301
    %v2307 = vmul.f32 %v2275, %v2303
    %v2308 = vmul.f32 %v2298, %v2304
    %v2309 = vmul.f32 %v2278, %v2305
    %v2310 = vmul.f32 %v2301, %v2306
    %v2311 = vmul.f32 %v2307, 0.044715
    %v2312 = vmul.f32 %v2308, 0.044715
    %v2313 = vmul.f32 %v2309, 0.044715
    %v2314 = vmul.f32 %v2310, 0.044715
    %v2315 = vadd.f32 %v2275, %v2311
    %v2316 = vadd.f32 %v2298, %v2312
    %v2317 = vadd.f32 %v2278, %v2313
    %v2318 = vadd.f32 %v2301, %v2314
    %v2319 = vmul.f32 %v2315, 0.7978846
    %v2320 = vmul.f32 %v2316, 0.7978846
    %v2321 = vmul.f32 %v2317, 0.7978846
    %v2322 = vmul.f32 %v2318, 0.7978846
    %v2323 = vtanh.pop %v2319
    %v2324 = vtanh.pop %v2320
    %v2325 = vtanh.pop %v2321
    %v2326 = vtanh.pop %v2322
    %v2327 = vadd.f32 %v2323, 1.0
    %v2328 = vadd.f32 %v2324, 1.0
    %v2329 = vadd.f32 %v2325, 1.0
    %v2330 = vadd.f32 %v2326, 1.0
    %v2331 = vmul.f32 %v2327, 0.5
    %v2332 = vmul.f32 %v2328, 0.5
    %v2333 = vmul.f32 %v2329, 0.5
    %v2334 = vmul.f32 %v2330, 0.5
    %v2335 = vmul.f32 %v2275, %v2331
    %v2336 = vmul.f32 %v2298, %v2332
    %v2337 = vmul.f32 %v2278, %v2333
    %v2338 = vmul.f32 %v2301, %v2334
    %s2339 = scalar_lea.vmem [#allocation8], 256
    %v2340 = vld [vmem:[%s2339] sm:$0xff]
    %v2341 = vld [vmem:[%s2339 + $0x8] sm:$0xff]
    %v2342 = vld [vmem:[%s2339 + $0x10] sm:$0xff]
    %v2343 = vld [vmem:[%s2339 + $0x18] sm:$0xff]
    %v2344 = vld [vmem:[%s2339 + $0x20] sm:$0xff]
    %v2345 = vld [vmem:[%s2339 + $0x28] sm:$0xff]
    %v2346 = vld [vmem:[%s2339 + $0x30] sm:$0xff]
    %v2347 = vld [vmem:[%s2339 + $0x38] sm:$0xff]
    %v2348 = vld [vmem:[%s2339 + $0x40] sm:$0xff]
    %v2349 = vld [vmem:[%s2339 + $0x48] sm:$0xff]
    %v2350 = vld [vmem:[%s2339 + $0x50] sm:$0xff]
    %v2351 = vld [vmem:[%s2339 + $0x58] sm:$0xff]
    %v2352 = vld [vmem:[%s2339 + $0x60] sm:$0xff]
    %v2353 = vld [vmem:[%s2339 + $0x68] sm:$0xff]
    %v2354 = vld [vmem:[%s2339 + $0x70] sm:$0xff]
    %v2355 = vld [vmem:[%s2339 + $0x78] sm:$0xff]
    %v2356 = vld [vmem:[%s2339 + $0x80] sm:$0xff]
    %v2357 = vld [vmem:[%s2339 + $0x88] sm:$0xff]
    %v2358 = vld [vmem:[%s2339 + $0x90] sm:$0xff]
    %v2359 = vld [vmem:[%s2339 + $0x98] sm:$0xff]
    %v2360 = vld [vmem:[%s2339 + $0xa0] sm:$0xff]
    %v2361 = vld [vmem:[%s2339 + $0xa8] sm:$0xff]
    %v2362 = vld [vmem:[%s2339 + $0xb0] sm:$0xff]
    %v2363 = vld [vmem:[%s2339 + $0xb8] sm:$0xff]
    %v2364 = vld [vmem:[%s2339 + $0xc0] sm:$0xff]
    %v2365 = vld [vmem:[%s2339 + $0xc8] sm:$0xff]
    %v2366 = vld [vmem:[%s2339 + $0xd0] sm:$0xff]
    %v2367 = vld [vmem:[%s2339 + $0xd8] sm:$0xff]
    %v2368 = vld [vmem:[%s2339 + $0xe0] sm:$0xff]
    %v2369 = vld [vmem:[%s2339 + $0xe8] sm:$0xff]
    %v2370 = vld [vmem:[%s2339 + $0xf0] sm:$0xff]
    %v2371 = vld [vmem:[%s2339 + $0xf8] sm:$0xff]
    %s2372 = scalar_lea.vmem %s13, 1
    %v2373 = vld [vmem:[%s2372] sm:$0x1]
    %v2375 = vperm.slane %v2373, 0
    %2377 = vmatpush.msra.mxu0 %v2355
    %2378 = vmatpush.msra.mxu0 %v2354
    %2379 = vmatpush.msra.mxu0 %v2353
    %2380 = vmatpush.msra.mxu0 %v2352
    %2381 = vmatpush.msra.mxu0 %v2351
    %2382 = vmatpush.msra.mxu0 %v2350
    %2383 = vmatpush.msra.mxu0 %v2349
    %2384 = vmatpush.msra.mxu0 %v2348
    %2385 = vmatpush.msra.mxu0 %v2347
    %2386 = vmatpush.msra.mxu0 %v2346
    %2387 = vmatpush.msra.mxu0 %v2345
    %2388 = vmatpush.msra.mxu0 %v2344
    %2389 = vmatpush.msra.mxu0 %v2343
    %2390 = vmatpush.msra.mxu0 %v2342
    %2391 = vmatpush.msra.mxu0 %v2341
    %2392 = vmatpush.msra.mxu0 %v2340
    %2393 = vmatmul.f32.gmra.mxu0 %v2335
    %v2394 = vpop.f32.mrf.mxu0
    %v2395 = vadd.f32 %v2375, %v2394
    %2396 = vmatmul.f32.gmra.mxu0 %v2337
    %v2397 = vpop.f32.mrf.mxu0
    %v2398 = vadd.f32 %v2375, %v2397
    %2399 = vdwg.mxu0
    %2400 = vmatpush.msra.mxu0 %v2371
    %2401 = vmatpush.msra.mxu0 %v2370
    %2402 = vmatpush.msra.mxu0 %v2369
    %2403 = vmatpush.msra.mxu0 %v2368
    %2404 = vmatpush.msra.mxu0 %v2367
    %2405 = vmatpush.msra.mxu0 %v2366
    %2406 = vmatpush.msra.mxu0 %v2365
    %2407 = vmatpush.msra.mxu0 %v2364
    %2408 = vmatpush.msra.mxu0 %v2363
    %2409 = vmatpush.msra.mxu0 %v2362
    %2410 = vmatpush.msra.mxu0 %v2361
    %2411 = vmatpush.msra.mxu0 %v2360
    %2412 = vmatpush.msra.mxu0 %v2359
    %2413 = vmatpush.msra.mxu0 %v2358
    %2414 = vmatpush.msra.mxu0 %v2357
    %2415 = vmatpush.msra.mxu0 %v2356
    %2416 = vmatmul.f32.gmra.mxu0 %v2336
    %v2417 = vpop.f32.mrf.mxu0
    %v2418 = vadd.f32 %v2395, %v2417
    %2419 = vmatmul.f32.gmra.mxu0 %v2338
    %v2420 = vpop.f32.mrf.mxu0
    %v2421 = vadd.f32 %v2398, %v2420
    %2422 = vdwg.mxu0
    %v2423 = vadd.f32 %v2418, %v2215
    %v2424 = vadd.f32 %v2421, %v2216
    %s2425 = scalar_lea.vmem %s14, 1
    %v2426 = vld [vmem:[%s2425] sm:$0x1]
    %s2427 = scalar_lea.vmem %s15, 1
    %v2428 = vld [vmem:[%s2427] sm:$0x1]
    %2429 = vadd.xlane.f32.xlu0 %v2423
    %v2430 = vpop.xlane.xlu0 %2429
    %2431 = vadd.xlane.f32.xlu0 %v2424
    %v2432 = vpop.xlane.xlu0 %2431
    %v2433 = vmul.f32 %v2430, %v132
    %v2434 = vmul.f32 %v2432, %v132
    %v2435 = vsub.f32 %v2423, %v2433
    %v2436 = vsub.f32 %v2424, %v2434
    %v2437 = vmul.f32 %v2435, %v2435
    %v2438 = vmul.f32 %v2436, %v2436
    %2439 = vadd.xlane.f32.xlu0 %v2437
    %v2440 = vpop.xlane.xlu0 %2439
    %2441 = vadd.xlane.f32.xlu0 %v2438
    %v2442 = vpop.xlane.xlu0 %2441
    %v2443 = vmul.f32 %v2440, %v132
    %v2444 = vmul.f32 %v2442, %v132
    %v2445 = vadd.f32 %v2443, 1e-12
    %v2446 = vadd.f32 %v2444, 1e-12
    %v2447 = vrsqrt.pop %v2445
    %v2448 = vmul.f32 %v2447, %v2445
    %v2449 = vmul.f32 %v2448, %v2447
    %v2450 = vmul.f32 0.5, %v2449
    %v2451 = vsub.f32 1.5, %v2450
    %v2452 = vmul.f32 %v2447, %v2451
    %vm2453 = vweird.f32 %v2445
    %vm2454 = vweird.f32 %v2447
    %vm2455 = vmor %vm2453, %vm2454
    %v2456 = vsel %vm2455, %v2447, %v2452
    %v2457 = vrsqrt.pop %v2446
    %v2458 = vmul.f32 %v2457, %v2446
    %v2459 = vmul.f32 %v2458, %v2457
    %v2460 = vmul.f32 0.5, %v2459
    %v2461 = vsub.f32 1.5, %v2460
    %v2462 = vmul.f32 %v2457, %v2461
    %vm2463 = vweird.f32 %v2446
    %vm2464 = vweird.f32 %v2457
    %vm2465 = vmor %vm2463, %vm2464
    %v2466 = vsel %vm2465, %v2457, %v2462
    %v2467 = vmul.f32 %v2435, %v2456
    %v2468 = vmul.f32 %v2436, %v2466
    %v2470 = vperm.slane %v2426, 0
    %v2472 = vmul.f32 %v2467, %v2470
    %v2473 = vmul.f32 %v2468, %v2470
    %v2475 = vperm.slane %v2428, 0
    %v2477 = vadd.f32 %v2472, %v2475
    %v2478 = vadd.f32 %v2473, %v2475
    %v2479 = vadd.f32 %v1325, %v2477
    %v2480 = vadd.f32 %v1326, %v2478
    %s2481 = scalar_lea.vmem [#allocation2], 768
    %v2482 = vld [vmem:[%s2481] sm:$0xff]
    %v2483 = vld [vmem:[%s2481 + $0x8] sm:$0xff]
    %v2484 = vld [vmem:[%s2481 + $0x10] sm:$0xff]
    %v2485 = vld [vmem:[%s2481 + $0x18] sm:$0xff]
    %v2486 = vld [vmem:[%s2481 + $0x20] sm:$0xff]
    %v2487 = vld [vmem:[%s2481 + $0x28] sm:$0xff]
    %v2488 = vld [vmem:[%s2481 + $0x30] sm:$0xff]
    %v2489 = vld [vmem:[%s2481 + $0x38] sm:$0xff]
    %v2490 = vld [vmem:[%s2481 + $0x40] sm:$0xff]
    %v2491 = vld [vmem:[%s2481 + $0x48] sm:$0xff]
    %v2492 = vld [vmem:[%s2481 + $0x50] sm:$0xff]
    %v2493 = vld [vmem:[%s2481 + $0x58] sm:$0xff]
    %v2494 = vld [vmem:[%s2481 + $0x60] sm:$0xff]
    %v2495 = vld [vmem:[%s2481 + $0x68] sm:$0xff]
    %v2496 = vld [vmem:[%s2481 + $0x70] sm:$0xff]
    %v2497 = vld [vmem:[%s2481 + $0x78] sm:$0xff]
    %v2498 = vld [vmem:[%s2481 + $0x80] sm:$0xff]
    %v2499 = vld [vmem:[%s2481 + $0x88] sm:$0xff]
    %v2500 = vld [vmem:[%s2481 + $0x90] sm:$0xff]
    %v2501 = vld [vmem:[%s2481 + $0x98] sm:$0xff]
    %v2502 = vld [vmem:[%s2481 + $0xa0] sm:$0xff]
    %v2503 = vld [vmem:[%s2481 + $0xa8] sm:$0xff]
    %v2504 = vld [vmem:[%s2481 + $0xb0] sm:$0xff]
    %v2505 = vld [vmem:[%s2481 + $0xb8] sm:$0xff]
    %v2506 = vld [vmem:[%s2481 + $0xc0] sm:$0xff]
    %v2507 = vld [vmem:[%s2481 + $0xc8] sm:$0xff]
    %v2508 = vld [vmem:[%s2481 + $0xd0] sm:$0xff]
    %v2509 = vld [vmem:[%s2481 + $0xd8] sm:$0xff]
    %v2510 = vld [vmem:[%s2481 + $0xe0] sm:$0xff]
    %v2511 = vld [vmem:[%s2481 + $0xe8] sm:$0xff]
    %v2512 = vld [vmem:[%s2481 + $0xf0] sm:$0xff]
    %v2513 = vld [vmem:[%s2481 + $0xf8] sm:$0xff]
    %v2514 = vld [vmem:[%s2481 + $0x100] sm:$0xff]
    %v2515 = vld [vmem:[%s2481 + $0x108] sm:$0xff]
    %v2516 = vld [vmem:[%s2481 + $0x110] sm:$0xff]
    %v2517 = vld [vmem:[%s2481 + $0x118] sm:$0xff]
    %v2518 = vld [vmem:[%s2481 + $0x120] sm:$0xff]
    %v2519 = vld [vmem:[%s2481 + $0x128] sm:$0xff]
    %v2520 = vld [vmem:[%s2481 + $0x130] sm:$0xff]
    %v2521 = vld [vmem:[%s2481 + $0x138] sm:$0xff]
    %v2522 = vld [vmem:[%s2481 + $0x140] sm:$0xff]
    %v2523 = vld [vmem:[%s2481 + $0x148] sm:$0xff]
    %v2524 = vld [vmem:[%s2481 + $0x150] sm:$0xff]
    %v2525 = vld [vmem:[%s2481 + $0x158] sm:$0xff]
    %v2526 = vld [vmem:[%s2481 + $0x160] sm:$0xff]
    %v2527 = vld [vmem:[%s2481 + $0x168] sm:$0xff]
    %v2528 = vld [vmem:[%s2481 + $0x170] sm:$0xff]
    %v2529 = vld [vmem:[%s2481 + $0x178] sm:$0xff]
    %s2530 = scalar_lea.vmem %s5, 6
    %v2531 = vld [vmem:[%s2530] sm:$0x7]
    %v2533 = vperm.slane %v2531, 0
    %v2534 = vperm.slane %v2531, 1
    %v2535 = vperm.slane %v2531, 2
    %2539 = vmatpush.msra.mxu0 %v2527
    %2540 = vmatpush.msra.mxu0 %v2524
    %2541 = vmatpush.msra.mxu0 %v2521
    %2542 = vmatpush.msra.mxu0 %v2518
    %2543 = vmatpush.msra.mxu0 %v2515
    %2544 = vmatpush.msra.mxu0 %v2512
    %2545 = vmatpush.msra.mxu0 %v2509
    %2546 = vmatpush.msra.mxu0 %v2506
    %2547 = vmatpush.msra.mxu0 %v2503
    %2548 = vmatpush.msra.mxu0 %v2500
    %2549 = vmatpush.msra.mxu0 %v2497
    %2550 = vmatpush.msra.mxu0 %v2494
    %2551 = vmatpush.msra.mxu0 %v2491
    %2552 = vmatpush.msra.mxu0 %v2488
    %2553 = vmatpush.msra.mxu0 %v2485
    %2554 = vmatpush.msra.mxu0 %v2482
    %2555 = vmatmul.f32.gmra.mxu0 %v2477
    %v2556 = vpop.f32.mrf.mxu0
    %v2557 = vadd.f32 %v2533, %v2556
    %2558 = vmatmul.f32.gmra.mxu0 %v2478
    %v2559 = vpop.f32.mrf.mxu0
    %v2560 = vadd.f32 %v2533, %v2559
    %2561 = vdwg.mxu0
    %2562 = vmatpush.msra.mxu0 %v2528
    %2563 = vmatpush.msra.mxu0 %v2525
    %2564 = vmatpush.msra.mxu0 %v2522
    %2565 = vmatpush.msra.mxu0 %v2519
    %2566 = vmatpush.msra.mxu0 %v2516
    %2567 = vmatpush.msra.mxu0 %v2513
    %2568 = vmatpush.msra.mxu0 %v2510
    %2569 = vmatpush.msra.mxu0 %v2507
    %2570 = vmatpush.msra.mxu0 %v2504
    %2571 = vmatpush.msra.mxu0 %v2501
    %2572 = vmatpush.msra.mxu0 %v2498
    %2573 = vmatpush.msra.mxu0 %v2495
    %2574 = vmatpush.msra.mxu0 %v2492
    %2575 = vmatpush.msra.mxu0 %v2489
    %2576 = vmatpush.msra.mxu0 %v2486
    %2577 = vmatpush.msra.mxu0 %v2483
    %2578 = vmatmul.f32.gmra.mxu0 %v2477
    %v2579 = vpop.f32.mrf.mxu0
    %v2580 = vadd.f32 %v2534, %v2579
    %2581 = vmatmul.f32.gmra.mxu0 %v2478
    %v2582 = vpop.f32.mrf.mxu0
    %v2583 = vadd.f32 %v2534, %v2582
    %2584 = vdwg.mxu0
    %2585 = vmatpush.msra.mxu0 %v2529
    %2586 = vmatpush.msra.mxu0 %v2526
    %2587 = vmatpush.msra.mxu0 %v2523
    %2588 = vmatpush.msra.mxu0 %v2520
    %2589 = vmatpush.msra.mxu0 %v2517
    %2590 = vmatpush.msra.mxu0 %v2514
    %2591 = vmatpush.msra.mxu0 %v2511
    %2592 = vmatpush.msra.mxu0 %v2508
    %2593 = vmatpush.msra.mxu0 %v2505
    %2594 = vmatpush.msra.mxu0 %v2502
    %2595 = vmatpush.msra.mxu0 %v2499
    %2596 = vmatpush.msra.mxu0 %v2496
    %2597 = vmatpush.msra.mxu0 %v2493
    %2598 = vmatpush.msra.mxu0 %v2490
    %2599 = vmatpush.msra.mxu0 %v2487
    %2600 = vmatpush.msra.mxu0 %v2484
    %2601 = vmatmul.f32.gmra.mxu0 %v2477
    %v2602 = vpop.f32.mrf.mxu0
    %v2603 = vadd.f32 %v2535, %v2602
    %2604 = vmatmul.f32.gmra.mxu0 %v2478
    %v2605 = vpop.f32.mrf.mxu0
    %v2606 = vadd.f32 %v2535, %v2605
    %2607 = vdwg.mxu0
    %v2609 = vsel %vm304, %v2557, 0
    %v2612 = vsel %vm304, %v2580, 0
    %2614 = vmatpush.xpose.msra.mxu0 0.0
    %2615 = vmatpush.xpose.msra.mxu0 0.0
    %2616 = vmatpush.xpose.msra.mxu0 0.0
    %2617 = vmatpush.xpose.msra.mxu0 0.0
    %2618 = vmatpush.xpose.msra.mxu0 0.0
    %2619 = vmatpush.xpose.msra.mxu0 0.0
    %2620 = vmatpush.xpose.msra.mxu0 0.0
    %2621 = vmatpush.xpose.msra.mxu0 0.0
    %2622 = vmatpush.xpose.msra.mxu0 0.0
    %2623 = vmatpush.xpose.msra.mxu0 0.0
    %2624 = vmatpush.xpose.msra.mxu0 0.0
    %2625 = vmatpush.xpose.msra.mxu0 0.0
    %2626 = vmatpush.xpose.msra.mxu0 0.0
    %2627 = vmatpush.xpose.msra.mxu0 0.0
    %2628 = vmatpush.xpose.msra.mxu0 0.0
    %2629 = vmatpush.xpose.msra.mxu0 %v2612
    %2630 = vmatmul.f32.gmra.mxu0 %v2609
    %v2631 = vpop.f32.mrf.mxu0
    %v2632 = vadd.f32 0.0, %v2631
    %2633 = vdwg.mxu0
    %v2634 = vmul.f32 %v2632, 0.17677669
    %v2635 = vadd.f32 %v2634, %v332
    %v2636 = vsel %vm334, %v2635, -inf
    %2637 = vmax.xlane.f32.xlu0 %v2636
    %v2638 = vpop.xlane.xlu0 %2637
    %v2639 = vsub.f32 %v2635, %v2638
    %v2640 = vmul.f32 %v2639, 1.442695
    %v2641 = vpow.pop %v2640
    %v2642 = vsel %vm334, %v2641, 0.0
    %2643 = vadd.xlane.f32.xlu0 %v2642
    %v2644 = vpop.xlane.xlu0 %2643
    %v2645 = vrcp.pop %v2644
    %v2646 = vmul.f32 %v2644, %v2645
    %v2647 = vsub.f32 1.0, %v2646
    %v2648 = vmul.f32 %v2645, %v2647
    %v2649 = vadd.f32 %v2645, %v2648
    %vm2650 = vweird.f32 %v2644
    %vm2651 = vweird.f32 %v2645
    %vm2652 = vmor %vm2650, %vm2651
    %v2653 = vsel %vm2652, %v2645, %v2649
    %v2654 = vand.u32 2147483647, %v2644
    %vm2655 = vcmp.eq.f32.partialorder %v2654, 8.507059e+37
    %v2656 = vand.u32 %v2644, 2147483648
    %v2657 = vor.u32 1.1754944e-38, %v2656
    %v2658 = vsel %vm2655, %v2657, %v2653
    %v2659 = vmul.f32 %v2641, %v2658
    %v2661 = vsel %vm334, %v2659, 0
    %2663 = vmatpush.msra.mxu0 0.0
    %2664 = vmatpush.msra.mxu0 0.0
    %2665 = vmatpush.msra.mxu0 0.0
    %2666 = vmatpush.msra.mxu0 0.0
    %2667 = vmatpush.msra.mxu0 0.0
    %2668 = vmatpush.msra.mxu0 0.0
    %2669 = vmatpush.msra.mxu0 0.0
    %2670 = vmatpush.msra.mxu0 0.0
    %2671 = vmatpush.msra.mxu0 0.0
    %2672 = vmatpush.msra.mxu0 0.0
    %2673 = vmatpush.msra.mxu0 0.0
    %2674 = vmatpush.msra.mxu0 0.0
    %2675 = vmatpush.msra.mxu0 0.0
    %2676 = vmatpush.msra.mxu0 0.0
    %2677 = vmatpush.msra.mxu0 0.0
    %2678 = vmatpush.msra.mxu0 %v2603
    %2679 = vmatmul.f32.gmra.mxu0 %v2661
    %v2680 = vpop.f32.mrf.mxu0
    %v2681 = vadd.f32 0.0, %v2680
    %2682 = vdwg.mxu0
    %2683 = vrot.lane.b32.xlu0 %v2557, 96
    %v2684 = vpop.permute.xlu0 %2683
    %2685 = vrot.lane.b32.xlu0 %v2580, 96
    %v2686 = vpop.permute.xlu0 %2685
    %v2687 = vsel %vm304, %v2684, 0
    %v2689 = vsel %vm304, %v2686, 0
    %2691 = vmatpush.xpose.msra.mxu0 0.0
    %2692 = vmatpush.xpose.msra.mxu0 0.0
    %2693 = vmatpush.xpose.msra.mxu0 0.0
    %2694 = vmatpush.xpose.msra.mxu0 0.0
    %2695 = vmatpush.xpose.msra.mxu0 0.0
    %2696 = vmatpush.xpose.msra.mxu0 0.0
    %2697 = vmatpush.xpose.msra.mxu0 0.0
    %2698 = vmatpush.xpose.msra.mxu0 0.0
    %2699 = vmatpush.xpose.msra.mxu0 0.0
    %2700 = vmatpush.xpose.msra.mxu0 0.0
    %2701 = vmatpush.xpose.msra.mxu0 0.0
    %2702 = vmatpush.xpose.msra.mxu0 0.0
    %2703 = vmatpush.xpose.msra.mxu0 0.0
    %2704 = vmatpush.xpose.msra.mxu0 0.0
    %2705 = vmatpush.xpose.msra.mxu0 0.0
    %2706 = vmatpush.xpose.msra.mxu0 %v2689
    %2707 = vmatmul.f32.gmra.mxu0 %v2687
    %v2708 = vpop.f32.mrf.mxu0
    %v2709 = vadd.f32 0.0, %v2708
    %2710 = vdwg.mxu0
    %v2711 = vmul.f32 %v2709, 0.17677669
    %v2712 = vadd.f32 %v2711, %v332
    %v2713 = vsel %vm334, %v2712, -inf
    %2714 = vmax.xlane.f32.xlu0 %v2713
    %v2715 = vpop.xlane.xlu0 %2714
    %v2716 = vsub.f32 %v2712, %v2715
    %v2717 = vmul.f32 %v2716, 1.442695
    %v2718 = vpow.pop %v2717
    %v2719 = vsel %vm334, %v2718, 0.0
    %2720 = vadd.xlane.f32.xlu0 %v2719
    %v2721 = vpop.xlane.xlu0 %2720
    %v2722 = vrcp.pop %v2721
    %v2723 = vmul.f32 %v2721, %v2722
    %v2724 = vsub.f32 1.0, %v2723
    %v2725 = vmul.f32 %v2722, %v2724
    %v2726 = vadd.f32 %v2722, %v2725
    %vm2727 = vweird.f32 %v2721
    %vm2728 = vweird.f32 %v2722
    %vm2729 = vmor %vm2727, %vm2728
    %v2730 = vsel %vm2729, %v2722, %v2726
    %v2731 = vand.u32 2147483647, %v2721
    %vm2732 = vcmp.eq.f32.partialorder %v2731, 8.507059e+37
    %v2733 = vand.u32 %v2721, 2147483648
    %v2734 = vor.u32 1.1754944e-38, %v2733
    %v2735 = vsel %vm2732, %v2734, %v2730
    %v2736 = vmul.f32 %v2718, %v2735
    %2738 = vrot.lane.b32.xlu0 %v2603, 96
    %v2739 = vpop.permute.xlu0 %2738
    %v2742 = vsel %vm334, %v2736, 0
    %2744 = vmatpush.msra.mxu0 0.0
    %2745 = vmatpush.msra.mxu0 0.0
    %2746 = vmatpush.msra.mxu0 0.0
    %2747 = vmatpush.msra.mxu0 0.0
    %2748 = vmatpush.msra.mxu0 0.0
    %2749 = vmatpush.msra.mxu0 0.0
    %2750 = vmatpush.msra.mxu0 0.0
    %2751 = vmatpush.msra.mxu0 0.0
    %2752 = vmatpush.msra.mxu0 0.0
    %2753 = vmatpush.msra.mxu0 0.0
    %2754 = vmatpush.msra.mxu0 0.0
    %2755 = vmatpush.msra.mxu0 0.0
    %2756 = vmatpush.msra.mxu0 0.0
    %2757 = vmatpush.msra.mxu0 0.0
    %2758 = vmatpush.msra.mxu0 0.0
    %2759 = vmatpush.msra.mxu0 %v2739
    %2760 = vmatmul.f32.gmra.mxu0 %v2742
    %v2761 = vpop.f32.mrf.mxu0
    %v2762 = vadd.f32 0.0, %v2761
    %2763 = vdwg.mxu0
    %2764 = vrot.lane.b32.xlu0 %v2557, 64
    %v2765 = vpop.permute.xlu0 %2764
    %2766 = vrot.lane.b32.xlu0 %v2580, 64
    %v2767 = vpop.permute.xlu0 %2766
    %v2768 = vsel %vm304, %v2765, 0
    %v2770 = vsel %vm304, %v2767, 0
    %2772 = vmatpush.xpose.msra.mxu0 0.0
    %2773 = vmatpush.xpose.msra.mxu0 0.0
    %2774 = vmatpush.xpose.msra.mxu0 0.0
    %2775 = vmatpush.xpose.msra.mxu0 0.0
    %2776 = vmatpush.xpose.msra.mxu0 0.0
    %2777 = vmatpush.xpose.msra.mxu0 0.0
    %2778 = vmatpush.xpose.msra.mxu0 0.0
    %2779 = vmatpush.xpose.msra.mxu0 0.0
    %2780 = vmatpush.xpose.msra.mxu0 0.0
    %2781 = vmatpush.xpose.msra.mxu0 0.0
    %2782 = vmatpush.xpose.msra.mxu0 0.0
    %2783 = vmatpush.xpose.msra.mxu0 0.0
    %2784 = vmatpush.xpose.msra.mxu0 0.0
    %2785 = vmatpush.xpose.msra.mxu0 0.0
    %2786 = vmatpush.xpose.msra.mxu0 0.0
    %2787 = vmatpush.xpose.msra.mxu0 %v2770
    %2788 = vmatmul.f32.gmra.mxu0 %v2768
    %v2789 = vpop.f32.mrf.mxu0
    %v2790 = vadd.f32 0.0, %v2789
    %2791 = vdwg.mxu0
    %v2792 = vmul.f32 %v2790, 0.17677669
    %v2793 = vadd.f32 %v2792, %v332
    %v2794 = vsel %vm334, %v2793, -inf
    %2795 = vmax.xlane.f32.xlu0 %v2794
    %v2796 = vpop.xlane.xlu0 %2795
    %v2797 = vsub.f32 %v2793, %v2796
    %v2798 = vmul.f32 %v2797, 1.442695
    %v2799 = vpow.pop %v2798
    %v2800 = vsel %vm334, %v2799, 0.0
    %2801 = vadd.xlane.f32.xlu0 %v2800
    %v2802 = vpop.xlane.xlu0 %2801
    %v2803 = vrcp.pop %v2802
    %v2804 = vmul.f32 %v2802, %v2803
    %v2805 = vsub.f32 1.0, %v2804
    %v2806 = vmul.f32 %v2803, %v2805
    %v2807 = vadd.f32 %v2803, %v2806
    %vm2808 = vweird.f32 %v2802
    %vm2809 = vweird.f32 %v2803
    %vm2810 = vmor %vm2808, %vm2809
    %v2811 = vsel %vm2810, %v2803, %v2807
    %v2812 = vand.u32 2147483647, %v2802
    %vm2813 = vcmp.eq.f32.partialorder %v2812, 8.507059e+37
    %v2814 = vand.u32 %v2802, 2147483648
    %v2815 = vor.u32 1.1754944e-38, %v2814
    %v2816 = vsel %vm2813, %v2815, %v2811
    %v2817 = vmul.f32 %v2799, %v2816
    %2818 = vrot.lane.b32.xlu0 %v2603, 64
    %v2819 = vpop.permute.xlu0 %2818
    %v2822 = vsel %vm334, %v2817, 0
    %2824 = vmatpush.msra.mxu0 0.0
    %2825 = vmatpush.msra.mxu0 0.0
    %2826 = vmatpush.msra.mxu0 0.0
    %2827 = vmatpush.msra.mxu0 0.0
    %2828 = vmatpush.msra.mxu0 0.0
    %2829 = vmatpush.msra.mxu0 0.0
    %2830 = vmatpush.msra.mxu0 0.0
    %2831 = vmatpush.msra.mxu0 0.0
    %2832 = vmatpush.msra.mxu0 0.0
    %2833 = vmatpush.msra.mxu0 0.0
    %2834 = vmatpush.msra.mxu0 0.0
    %2835 = vmatpush.msra.mxu0 0.0
    %2836 = vmatpush.msra.mxu0 0.0
    %2837 = vmatpush.msra.mxu0 0.0
    %2838 = vmatpush.msra.mxu0 0.0
    %2839 = vmatpush.msra.mxu0 %v2819
    %2840 = vmatmul.f32.gmra.mxu0 %v2822
    %v2841 = vpop.f32.mrf.mxu0
    %v2842 = vadd.f32 0.0, %v2841
    %2843 = vdwg.mxu0
    %2844 = vrot.lane.b32.xlu0 %v2557, 32
    %v2845 = vpop.permute.xlu0 %2844
    %2846 = vrot.lane.b32.xlu0 %v2580, 32
    %v2847 = vpop.permute.xlu0 %2846
    %v2848 = vsel %vm304, %v2845, 0
    %v2850 = vsel %vm304, %v2847, 0
    %2852 = vmatpush.xpose.msra.mxu0 0.0
    %2853 = vmatpush.xpose.msra.mxu0 0.0
    %2854 = vmatpush.xpose.msra.mxu0 0.0
    %2855 = vmatpush.xpose.msra.mxu0 0.0
    %2856 = vmatpush.xpose.msra.mxu0 0.0
    %2857 = vmatpush.xpose.msra.mxu0 0.0
    %2858 = vmatpush.xpose.msra.mxu0 0.0
    %2859 = vmatpush.xpose.msra.mxu0 0.0
    %2860 = vmatpush.xpose.msra.mxu0 0.0
    %2861 = vmatpush.xpose.msra.mxu0 0.0
    %2862 = vmatpush.xpose.msra.mxu0 0.0
    %2863 = vmatpush.xpose.msra.mxu0 0.0
    %2864 = vmatpush.xpose.msra.mxu0 0.0
    %2865 = vmatpush.xpose.msra.mxu0 0.0
    %2866 = vmatpush.xpose.msra.mxu0 0.0
    %2867 = vmatpush.xpose.msra.mxu0 %v2850
    %2868 = vmatmul.f32.gmra.mxu0 %v2848
    %v2869 = vpop.f32.mrf.mxu0
    %v2870 = vadd.f32 0.0, %v2869
    %2871 = vdwg.mxu0
    %v2872 = vmul.f32 %v2870, 0.17677669
    %v2873 = vadd.f32 %v2872, %v332
    %v2874 = vsel %vm334, %v2873, -inf
    %2875 = vmax.xlane.f32.xlu0 %v2874
    %v2876 = vpop.xlane.xlu0 %2875
    %v2877 = vsub.f32 %v2873, %v2876
    %v2878 = vmul.f32 %v2877, 1.442695
    %v2879 = vpow.pop %v2878
    %v2880 = vsel %vm334, %v2879, 0.0
    %2881 = vadd.xlane.f32.xlu0 %v2880
    %v2882 = vpop.xlane.xlu0 %2881
    %v2883 = vrcp.pop %v2882
    %v2884 = vmul.f32 %v2882, %v2883
    %v2885 = vsub.f32 1.0, %v2884
    %v2886 = vmul.f32 %v2883, %v2885
    %v2887 = vadd.f32 %v2883, %v2886
    %vm2888 = vweird.f32 %v2882
    %vm2889 = vweird.f32 %v2883
    %vm2890 = vmor %vm2888, %vm2889
    %v2891 = vsel %vm2890, %v2883, %v2887
    %v2892 = vand.u32 2147483647, %v2882
    %vm2893 = vcmp.eq.f32.partialorder %v2892, 8.507059e+37
    %v2894 = vand.u32 %v2882, 2147483648
    %v2895 = vor.u32 1.1754944e-38, %v2894
    %v2896 = vsel %vm2893, %v2895, %v2891
    %v2897 = vmul.f32 %v2879, %v2896
    %2898 = vrot.lane.b32.xlu0 %v2603, 32
    %v2899 = vpop.permute.xlu0 %2898
    %v2902 = vsel %vm334, %v2897, 0
    %2904 = vmatpush.msra.mxu0 0.0
    %2905 = vmatpush.msra.mxu0 0.0
    %2906 = vmatpush.msra.mxu0 0.0
    %2907 = vmatpush.msra.mxu0 0.0
    %2908 = vmatpush.msra.mxu0 0.0
    %2909 = vmatpush.msra.mxu0 0.0
    %2910 = vmatpush.msra.mxu0 0.0
    %2911 = vmatpush.msra.mxu0 0.0
    %2912 = vmatpush.msra.mxu0 0.0
    %2913 = vmatpush.msra.mxu0 0.0
    %2914 = vmatpush.msra.mxu0 0.0
    %2915 = vmatpush.msra.mxu0 0.0
    %2916 = vmatpush.msra.mxu0 0.0
    %2917 = vmatpush.msra.mxu0 0.0
    %2918 = vmatpush.msra.mxu0 0.0
    %2919 = vmatpush.msra.mxu0 %v2899
    %2920 = vmatmul.f32.gmra.mxu0 %v2902
    %v2921 = vpop.f32.mrf.mxu0
    %v2922 = vadd.f32 0.0, %v2921
    %2923 = vdwg.mxu0
    %2925 = vrot.lane.b32.xlu0 %v2762, 32
    %v2926 = vpop.permute.xlu0 %2925
    %2929 = vrot.lane.b32.xlu0 %v2842, 64
    %v2930 = vpop.permute.xlu0 %2929
    %2933 = vrot.lane.b32.xlu0 %v2922, 96
    %v2934 = vpop.permute.xlu0 %2933
    %v2936 = vsel %vm304, %v2681, %v2926
    %v2937 = vsel %vm636, %v2936, %v2930
    %v2938 = vsel %vm638, %v2937, %v2934
    %v2940 = vsel %vm304, %v2560, 0
    %v2943 = vsel %vm304, %v2583, 0
    %2945 = vmatpush.xpose.msra.mxu0 0.0
    %2946 = vmatpush.xpose.msra.mxu0 0.0
    %2947 = vmatpush.xpose.msra.mxu0 0.0
    %2948 = vmatpush.xpose.msra.mxu0 0.0
    %2949 = vmatpush.xpose.msra.mxu0 0.0
    %2950 = vmatpush.xpose.msra.mxu0 0.0
    %2951 = vmatpush.xpose.msra.mxu0 0.0
    %2952 = vmatpush.xpose.msra.mxu0 0.0
    %2953 = vmatpush.xpose.msra.mxu0 0.0
    %2954 = vmatpush.xpose.msra.mxu0 0.0
    %2955 = vmatpush.xpose.msra.mxu0 0.0
    %2956 = vmatpush.xpose.msra.mxu0 0.0
    %2957 = vmatpush.xpose.msra.mxu0 0.0
    %2958 = vmatpush.xpose.msra.mxu0 0.0
    %2959 = vmatpush.xpose.msra.mxu0 0.0
    %2960 = vmatpush.xpose.msra.mxu0 %v2943
    %2961 = vmatmul.f32.gmra.mxu0 %v2940
    %v2962 = vpop.f32.mrf.mxu0
    %v2963 = vadd.f32 0.0, %v2962
    %2964 = vdwg.mxu0
    %v2965 = vmul.f32 %v2963, 0.17677669
    %v2966 = vadd.f32 %v2965, %v667
    %v2967 = vsel %vm334, %v2966, -inf
    %2968 = vmax.xlane.f32.xlu0 %v2967
    %v2969 = vpop.xlane.xlu0 %2968
    %v2970 = vsub.f32 %v2966, %v2969
    %v2971 = vmul.f32 %v2970, 1.442695
    %v2972 = vpow.pop %v2971
    %v2973 = vsel %vm334, %v2972, 0.0
    %2974 = vadd.xlane.f32.xlu0 %v2973
    %v2975 = vpop.xlane.xlu0 %2974
    %v2976 = vrcp.pop %v2975
    %v2977 = vmul.f32 %v2975, %v2976
    %v2978 = vsub.f32 1.0, %v2977
    %v2979 = vmul.f32 %v2976, %v2978
    %v2980 = vadd.f32 %v2976, %v2979
    %vm2981 = vweird.f32 %v2975
    %vm2982 = vweird.f32 %v2976
    %vm2983 = vmor %vm2981, %vm2982
    %v2984 = vsel %vm2983, %v2976, %v2980
    %v2985 = vand.u32 2147483647, %v2975
    %vm2986 = vcmp.eq.f32.partialorder %v2985, 8.507059e+37
    %v2987 = vand.u32 %v2975, 2147483648
    %v2988 = vor.u32 1.1754944e-38, %v2987
    %v2989 = vsel %vm2986, %v2988, %v2984
    %v2990 = vmul.f32 %v2972, %v2989
    %v2992 = vsel %vm334, %v2990, 0
    %2994 = vmatpush.msra.mxu0 0.0
    %2995 = vmatpush.msra.mxu0 0.0
    %2996 = vmatpush.msra.mxu0 0.0
    %2997 = vmatpush.msra.mxu0 0.0
    %2998 = vmatpush.msra.mxu0 0.0
    %2999 = vmatpush.msra.mxu0 0.0
    %3000 = vmatpush.msra.mxu0 0.0
    %3001 = vmatpush.msra.mxu0 0.0
    %3002 = vmatpush.msra.mxu0 0.0
    %3003 = vmatpush.msra.mxu0 0.0
    %3004 = vmatpush.msra.mxu0 0.0
    %3005 = vmatpush.msra.mxu0 0.0
    %3006 = vmatpush.msra.mxu0 0.0
    %3007 = vmatpush.msra.mxu0 0.0
    %3008 = vmatpush.msra.mxu0 0.0
    %3009 = vmatpush.msra.mxu0 %v2606
    %3010 = vmatmul.f32.gmra.mxu0 %v2992
    %v3011 = vpop.f32.mrf.mxu0
    %v3012 = vadd.f32 0.0, %v3011
    %3013 = vdwg.mxu0
    %3014 = vrot.lane.b32.xlu0 %v2560, 96
    %v3015 = vpop.permute.xlu0 %3014
    %3016 = vrot.lane.b32.xlu0 %v2583, 96
    %v3017 = vpop.permute.xlu0 %3016
    %v3018 = vsel %vm304, %v3015, 0
    %v3020 = vsel %vm304, %v3017, 0
    %3022 = vmatpush.xpose.msra.mxu0 0.0
    %3023 = vmatpush.xpose.msra.mxu0 0.0
    %3024 = vmatpush.xpose.msra.mxu0 0.0
    %3025 = vmatpush.xpose.msra.mxu0 0.0
    %3026 = vmatpush.xpose.msra.mxu0 0.0
    %3027 = vmatpush.xpose.msra.mxu0 0.0
    %3028 = vmatpush.xpose.msra.mxu0 0.0
    %3029 = vmatpush.xpose.msra.mxu0 0.0
    %3030 = vmatpush.xpose.msra.mxu0 0.0
    %3031 = vmatpush.xpose.msra.mxu0 0.0
    %3032 = vmatpush.xpose.msra.mxu0 0.0
    %3033 = vmatpush.xpose.msra.mxu0 0.0
    %3034 = vmatpush.xpose.msra.mxu0 0.0
    %3035 = vmatpush.xpose.msra.mxu0 0.0
    %3036 = vmatpush.xpose.msra.mxu0 0.0
    %3037 = vmatpush.xpose.msra.mxu0 %v3020
    %3038 = vmatmul.f32.gmra.mxu0 %v3018
    %v3039 = vpop.f32.mrf.mxu0
    %v3040 = vadd.f32 0.0, %v3039
    %3041 = vdwg.mxu0
    %v3042 = vmul.f32 %v3040, 0.17677669
    %v3043 = vadd.f32 %v3042, %v667
    %v3044 = vsel %vm334, %v3043, -inf
    %3045 = vmax.xlane.f32.xlu0 %v3044
    %v3046 = vpop.xlane.xlu0 %3045
    %v3047 = vsub.f32 %v3043, %v3046
    %v3048 = vmul.f32 %v3047, 1.442695
    %v3049 = vpow.pop %v3048
    %v3050 = vsel %vm334, %v3049, 0.0
    %3051 = vadd.xlane.f32.xlu0 %v3050
    %v3052 = vpop.xlane.xlu0 %3051
    %v3053 = vrcp.pop %v3052
    %v3054 = vmul.f32 %v3052, %v3053
    %v3055 = vsub.f32 1.0, %v3054
    %v3056 = vmul.f32 %v3053, %v3055
    %v3057 = vadd.f32 %v3053, %v3056
    %vm3058 = vweird.f32 %v3052
    %vm3059 = vweird.f32 %v3053
    %vm3060 = vmor %vm3058, %vm3059
    %v3061 = vsel %vm3060, %v3053, %v3057
    %v3062 = vand.u32 2147483647, %v3052
    %vm3063 = vcmp.eq.f32.partialorder %v3062, 8.507059e+37
    %v3064 = vand.u32 %v3052, 2147483648
    %v3065 = vor.u32 1.1754944e-38, %v3064
    %v3066 = vsel %vm3063, %v3065, %v3061
    %v3067 = vmul.f32 %v3049, %v3066
    %3069 = vrot.lane.b32.xlu0 %v2606, 96
    %v3070 = vpop.permute.xlu0 %3069
    %v3073 = vsel %vm334, %v3067, 0
    %3075 = vmatpush.msra.mxu0 0.0
    %3076 = vmatpush.msra.mxu0 0.0
    %3077 = vmatpush.msra.mxu0 0.0
    %3078 = vmatpush.msra.mxu0 0.0
    %3079 = vmatpush.msra.mxu0 0.0
    %3080 = vmatpush.msra.mxu0 0.0
    %3081 = vmatpush.msra.mxu0 0.0
    %3082 = vmatpush.msra.mxu0 0.0
    %3083 = vmatpush.msra.mxu0 0.0
    %3084 = vmatpush.msra.mxu0 0.0
    %3085 = vmatpush.msra.mxu0 0.0
    %3086 = vmatpush.msra.mxu0 0.0
    %3087 = vmatpush.msra.mxu0 0.0
    %3088 = vmatpush.msra.mxu0 0.0
    %3089 = vmatpush.msra.mxu0 0.0
    %3090 = vmatpush.msra.mxu0 %v3070
    %3091 = vmatmul.f32.gmra.mxu0 %v3073
    %v3092 = vpop.f32.mrf.mxu0
    %v3093 = vadd.f32 0.0, %v3092
    %3094 = vdwg.mxu0
    %3095 = vrot.lane.b32.xlu0 %v2560, 64
    %v3096 = vpop.permute.xlu0 %3095
    %3097 = vrot.lane.b32.xlu0 %v2583, 64
    %v3098 = vpop.permute.xlu0 %3097
    %v3099 = vsel %vm304, %v3096, 0
    %v3101 = vsel %vm304, %v3098, 0
    %3103 = vmatpush.xpose.msra.mxu0 0.0
    %3104 = vmatpush.xpose.msra.mxu0 0.0
    %3105 = vmatpush.xpose.msra.mxu0 0.0
    %3106 = vmatpush.xpose.msra.mxu0 0.0
    %3107 = vmatpush.xpose.msra.mxu0 0.0
    %3108 = vmatpush.xpose.msra.mxu0 0.0
    %3109 = vmatpush.xpose.msra.mxu0 0.0
    %3110 = vmatpush.xpose.msra.mxu0 0.0
    %3111 = vmatpush.xpose.msra.mxu0 0.0
    %3112 = vmatpush.xpose.msra.mxu0 0.0
    %3113 = vmatpush.xpose.msra.mxu0 0.0
    %3114 = vmatpush.xpose.msra.mxu0 0.0
    %3115 = vmatpush.xpose.msra.mxu0 0.0
    %3116 = vmatpush.xpose.msra.mxu0 0.0
    %3117 = vmatpush.xpose.msra.mxu0 0.0
    %3118 = vmatpush.xpose.msra.mxu0 %v3101
    %3119 = vmatmul.f32.gmra.mxu0 %v3099
    %v3120 = vpop.f32.mrf.mxu0
    %v3121 = vadd.f32 0.0, %v3120
    %3122 = vdwg.mxu0
    %v3123 = vmul.f32 %v3121, 0.17677669
    %v3124 = vadd.f32 %v3123, %v667
    %v3125 = vsel %vm334, %v3124, -inf
    %3126 = vmax.xlane.f32.xlu0 %v3125
    %v3127 = vpop.xlane.xlu0 %3126
    %v3128 = vsub.f32 %v3124, %v3127
    %v3129 = vmul.f32 %v3128, 1.442695
    %v3130 = vpow.pop %v3129
    %v3131 = vsel %vm334, %v3130, 0.0
    %3132 = vadd.xlane.f32.xlu0 %v3131
    %v3133 = vpop.xlane.xlu0 %3132
    %v3134 = vrcp.pop %v3133
    %v3135 = vmul.f32 %v3133, %v3134
    %v3136 = vsub.f32 1.0, %v3135
    %v3137 = vmul.f32 %v3134, %v3136
    %v3138 = vadd.f32 %v3134, %v3137
    %vm3139 = vweird.f32 %v3133
    %vm3140 = vweird.f32 %v3134
    %vm3141 = vmor %vm3139, %vm3140
    %v3142 = vsel %vm3141, %v3134, %v3138
    %v3143 = vand.u32 2147483647, %v3133
    %vm3144 = vcmp.eq.f32.partialorder %v3143, 8.507059e+37
    %v3145 = vand.u32 %v3133, 2147483648
    %v3146 = vor.u32 1.1754944e-38, %v3145
    %v3147 = vsel %vm3144, %v3146, %v3142
    %v3148 = vmul.f32 %v3130, %v3147
    %3149 = vrot.lane.b32.xlu0 %v2606, 64
    %v3150 = vpop.permute.xlu0 %3149
    %v3153 = vsel %vm334, %v3148, 0
    %3155 = vmatpush.msra.mxu0 0.0
    %3156 = vmatpush.msra.mxu0 0.0
    %3157 = vmatpush.msra.mxu0 0.0
    %3158 = vmatpush.msra.mxu0 0.0
    %3159 = vmatpush.msra.mxu0 0.0
    %3160 = vmatpush.msra.mxu0 0.0
    %3161 = vmatpush.msra.mxu0 0.0
    %3162 = vmatpush.msra.mxu0 0.0
    %3163 = vmatpush.msra.mxu0 0.0
    %3164 = vmatpush.msra.mxu0 0.0
    %3165 = vmatpush.msra.mxu0 0.0
    %3166 = vmatpush.msra.mxu0 0.0
    %3167 = vmatpush.msra.mxu0 0.0
    %3168 = vmatpush.msra.mxu0 0.0
    %3169 = vmatpush.msra.mxu0 0.0
    %3170 = vmatpush.msra.mxu0 %v3150
    %3171 = vmatmul.f32.gmra.mxu0 %v3153
    %v3172 = vpop.f32.mrf.mxu0
    %v3173 = vadd.f32 0.0, %v3172
    %3174 = vdwg.mxu0
    %3175 = vrot.lane.b32.xlu0 %v2560, 32
    %v3176 = vpop.permute.xlu0 %3175
    %3177 = vrot.lane.b32.xlu0 %v2583, 32
    %v3178 = vpop.permute.xlu0 %3177
    %v3179 = vsel %vm304, %v3176, 0
    %v3181 = vsel %vm304, %v3178, 0
    %3183 = vmatpush.xpose.msra.mxu0 0.0
    %3184 = vmatpush.xpose.msra.mxu0 0.0
    %3185 = vmatpush.xpose.msra.mxu0 0.0
    %3186 = vmatpush.xpose.msra.mxu0 0.0
    %3187 = vmatpush.xpose.msra.mxu0 0.0
    %3188 = vmatpush.xpose.msra.mxu0 0.0
    %3189 = vmatpush.xpose.msra.mxu0 0.0
    %3190 = vmatpush.xpose.msra.mxu0 0.0
    %3191 = vmatpush.xpose.msra.mxu0 0.0
    %3192 = vmatpush.xpose.msra.mxu0 0.0
    %3193 = vmatpush.xpose.msra.mxu0 0.0
    %3194 = vmatpush.xpose.msra.mxu0 0.0
    %3195 = vmatpush.xpose.msra.mxu0 0.0
    %3196 = vmatpush.xpose.msra.mxu0 0.0
    %3197 = vmatpush.xpose.msra.mxu0 0.0
    %3198 = vmatpush.xpose.msra.mxu0 %v3181
    %3199 = vmatmul.f32.gmra.mxu0 %v3179
    %v3200 = vpop.f32.mrf.mxu0
    %v3201 = vadd.f32 0.0, %v3200
    %3202 = vdwg.mxu0
    %v3203 = vmul.f32 %v3201, 0.17677669
    %v3204 = vadd.f32 %v3203, %v667
    %v3205 = vsel %vm334, %v3204, -inf
    %3206 = vmax.xlane.f32.xlu0 %v3205
    %v3207 = vpop.xlane.xlu0 %3206
    %v3208 = vsub.f32 %v3204, %v3207
    %v3209 = vmul.f32 %v3208, 1.442695
    %v3210 = vpow.pop %v3209
    %v3211 = vsel %vm334, %v3210, 0.0
    %3212 = vadd.xlane.f32.xlu0 %v3211
    %v3213 = vpop.xlane.xlu0 %3212
    %v3214 = vrcp.pop %v3213
    %v3215 = vmul.f32 %v3213, %v3214
    %v3216 = vsub.f32 1.0, %v3215
    %v3217 = vmul.f32 %v3214, %v3216
    %v3218 = vadd.f32 %v3214, %v3217
    %vm3219 = vweird.f32 %v3213
    %vm3220 = vweird.f32 %v3214
    %vm3221 = vmor %vm3219, %vm3220
    %v3222 = vsel %vm3221, %v3214, %v3218
    %v3223 = vand.u32 2147483647, %v3213
    %vm3224 = vcmp.eq.f32.partialorder %v3223, 8.507059e+37
    %v3225 = vand.u32 %v3213, 2147483648
    %v3226 = vor.u32 1.1754944e-38, %v3225
    %v3227 = vsel %vm3224, %v3226, %v3222
    %v3228 = vmul.f32 %v3210, %v3227
    %3229 = vrot.lane.b32.xlu0 %v2606, 32
    %v3230 = vpop.permute.xlu0 %3229
    %v3233 = vsel %vm334, %v3228, 0
    %3235 = vmatpush.msra.mxu0 0.0
    %3236 = vmatpush.msra.mxu0 0.0
    %3237 = vmatpush.msra.mxu0 0.0
    %3238 = vmatpush.msra.mxu0 0.0
    %3239 = vmatpush.msra.mxu0 0.0
    %3240 = vmatpush.msra.mxu0 0.0
    %3241 = vmatpush.msra.mxu0 0.0
    %3242 = vmatpush.msra.mxu0 0.0
    %3243 = vmatpush.msra.mxu0 0.0
    %3244 = vmatpush.msra.mxu0 0.0
    %3245 = vmatpush.msra.mxu0 0.0
    %3246 = vmatpush.msra.mxu0 0.0
    %3247 = vmatpush.msra.mxu0 0.0
    %3248 = vmatpush.msra.mxu0 0.0
    %3249 = vmatpush.msra.mxu0 0.0
    %3250 = vmatpush.msra.mxu0 %v3230
    %3251 = vmatmul.f32.gmra.mxu0 %v3233
    %v3252 = vpop.f32.mrf.mxu0
    %v3253 = vadd.f32 0.0, %v3252
    %3254 = vdwg.mxu0
    %3256 = vrot.lane.b32.xlu0 %v3093, 32
    %v3257 = vpop.permute.xlu0 %3256
    %3260 = vrot.lane.b32.xlu0 %v3173, 64
    %v3261 = vpop.permute.xlu0 %3260
    %3264 = vrot.lane.b32.xlu0 %v3253, 96
    %v3265 = vpop.permute.xlu0 %3264
    %v3267 = vsel %vm304, %v3012, %v3257
    %v3268 = vsel %vm636, %v3267, %v3261
    %v3269 = vsel %vm638, %v3268, %v3265
    %s3270 = scalar_lea.vmem [#allocation5], 256
    %v3271 = vld [vmem:[%s3270] sm:$0xff]
    %v3272 = vld [vmem:[%s3270 + $0x8] sm:$0xff]
    %v3273 = vld [vmem:[%s3270 + $0x10] sm:$0xff]
    %v3274 = vld [vmem:[%s3270 + $0x18] sm:$0xff]
    %v3275 = vld [vmem:[%s3270 + $0x20] sm:$0xff]
    %v3276 = vld [vmem:[%s3270 + $0x28] sm:$0xff]
    %v3277 = vld [vmem:[%s3270 + $0x30] sm:$0xff]
    %v3278 = vld [vmem:[%s3270 + $0x38] sm:$0xff]
    %v3279 = vld [vmem:[%s3270 + $0x40] sm:$0xff]
    %v3280 = vld [vmem:[%s3270 + $0x48] sm:$0xff]
    %v3281 = vld [vmem:[%s3270 + $0x50] sm:$0xff]
    %v3282 = vld [vmem:[%s3270 + $0x58] sm:$0xff]
    %v3283 = vld [vmem:[%s3270 + $0x60] sm:$0xff]
    %v3284 = vld [vmem:[%s3270 + $0x68] sm:$0xff]
    %v3285 = vld [vmem:[%s3270 + $0x70] sm:$0xff]
    %v3286 = vld [vmem:[%s3270 + $0x78] sm:$0xff]
    %s3287 = scalar_lea.vmem %s7, 2
    %v3288 = vld [vmem:[%s3287] sm:$0x1]
    %v3290 = vperm.slane %v3288, 0
    %3292 = vmatpush.msra.mxu0 %v3286
    %3293 = vmatpush.msra.mxu0 %v3285
    %3294 = vmatpush.msra.mxu0 %v3284
    %3295 = vmatpush.msra.mxu0 %v3283
    %3296 = vmatpush.msra.mxu0 %v3282
    %3297 = vmatpush.msra.mxu0 %v3281
    %3298 = vmatpush.msra.mxu0 %v3280
    %3299 = vmatpush.msra.mxu0 %v3279
    %3300 = vmatpush.msra.mxu0 %v3278
    %3301 = vmatpush.msra.mxu0 %v3277
    %3302 = vmatpush.msra.mxu0 %v3276
    %3303 = vmatpush.msra.mxu0 %v3275
    %3304 = vmatpush.msra.mxu0 %v3274
    %3305 = vmatpush.msra.mxu0 %v3273
    %3306 = vmatpush.msra.mxu0 %v3272
    %3307 = vmatpush.msra.mxu0 %v3271
    %3308 = vmatmul.f32.gmra.mxu0 %v2938
    %v3309 = vpop.f32.mrf.mxu0
    %v3310 = vadd.f32 %v3290, %v3309
    %3311 = vmatmul.f32.gmra.mxu0 %v3269
    %v3312 = vpop.f32.mrf.mxu0
    %v3313 = vadd.f32 %v3290, %v3312
    %3314 = vdwg.mxu0
    %v3315 = vadd.f32 %v3310, %v2477
    %v3316 = vadd.f32 %v3313, %v2478
    %s3317 = scalar_lea.vmem %s8, 2
    %v3318 = vld [vmem:[%s3317] sm:$0x1]
    %s3319 = scalar_lea.vmem %s9, 2
    %v3320 = vld [vmem:[%s3319] sm:$0x1]
    %3321 = vadd.xlane.f32.xlu0 %v3315
    %v3322 = vpop.xlane.xlu0 %3321
    %3323 = vadd.xlane.f32.xlu0 %v3316
    %v3324 = vpop.xlane.xlu0 %3323
    %v3325 = vmul.f32 %v3322, %v132
    %v3326 = vmul.f32 %v3324, %v132
    %v3327 = vsub.f32 %v3315, %v3325
    %v3328 = vsub.f32 %v3316, %v3326
    %v3329 = vmul.f32 %v3327, %v3327
    %v3330 = vmul.f32 %v3328, %v3328
    %3331 = vadd.xlane.f32.xlu0 %v3329
    %v3332 = vpop.xlane.xlu0 %3331
    %3333 = vadd.xlane.f32.xlu0 %v3330
    %v3334 = vpop.xlane.xlu0 %3333
    %v3335 = vmul.f32 %v3332, %v132
    %v3336 = vmul.f32 %v3334, %v132
    %v3337 = vadd.f32 %v3335, 1e-12
    %v3338 = vadd.f32 %v3336, 1e-12
    %v3339 = vrsqrt.pop %v3337
    %v3340 = vmul.f32 %v3339, %v3337
    %v3341 = vmul.f32 %v3340, %v3339
    %v3342 = vmul.f32 0.5, %v3341
    %v3343 = vsub.f32 1.5, %v3342
    %v3344 = vmul.f32 %v3339, %v3343
    %vm3345 = vweird.f32 %v3337
    %vm3346 = vweird.f32 %v3339
    %vm3347 = vmor %vm3345, %vm3346
    %v3348 = vsel %vm3347, %v3339, %v3344
    %v3349 = vrsqrt.pop %v3338
    %v3350 = vmul.f32 %v3349, %v3338
    %v3351 = vmul.f32 %v3350, %v3349
    %v3352 = vmul.f32 0.5, %v3351
    %v3353 = vsub.f32 1.5, %v3352
    %v3354 = vmul.f32 %v3349, %v3353
    %vm3355 = vweird.f32 %v3338
    %vm3356 = vweird.f32 %v3349
    %vm3357 = vmor %vm3355, %vm3356
    %v3358 = vsel %vm3357, %v3349, %v3354
    %v3359 = vmul.f32 %v3327, %v3348
    %v3360 = vmul.f32 %v3328, %v3358
    %v3362 = vperm.slane %v3318, 0
    %v3364 = vmul.f32 %v3359, %v3362
    %v3365 = vmul.f32 %v3360, %v3362
    %v3367 = vperm.slane %v3320, 0
    %v3369 = vadd.f32 %v3364, %v3367
    %v3370 = vadd.f32 %v3365, %v3367
    %s3371 = scalar_lea.vmem [#allocation7], 512
    %v3372 = vld [vmem:[%s3371] sm:$0xff]
    %v3373 = vld [vmem:[%s3371 + $0x8] sm:$0xff]
    %v3374 = vld [vmem:[%s3371 + $0x10] sm:$0xff]
    %v3375 = vld [vmem:[%s3371 + $0x18] sm:$0xff]
    %v3376 = vld [vmem:[%s3371 + $0x20] sm:$0xff]
    %v3377 = vld [vmem:[%s3371 + $0x28] sm:$0xff]
    %v3378 = vld [vmem:[%s3371 + $0x30] sm:$0xff]
    %v3379 = vld [vmem:[%s3371 + $0x38] sm:$0xff]
    %v3380 = vld [vmem:[%s3371 + $0x40] sm:$0xff]
    %v3381 = vld [vmem:[%s3371 + $0x48] sm:$0xff]
    %v3382 = vld [vmem:[%s3371 + $0x50] sm:$0xff]
    %v3383 = vld [vmem:[%s3371 + $0x58] sm:$0xff]
    %v3384 = vld [vmem:[%s3371 + $0x60] sm:$0xff]
    %v3385 = vld [vmem:[%s3371 + $0x68] sm:$0xff]
    %v3386 = vld [vmem:[%s3371 + $0x70] sm:$0xff]
    %v3387 = vld [vmem:[%s3371 + $0x78] sm:$0xff]
    %v3388 = vld [vmem:[%s3371 + $0x80] sm:$0xff]
    %v3389 = vld [vmem:[%s3371 + $0x88] sm:$0xff]
    %v3390 = vld [vmem:[%s3371 + $0x90] sm:$0xff]
    %v3391 = vld [vmem:[%s3371 + $0x98] sm:$0xff]
    %v3392 = vld [vmem:[%s3371 + $0xa0] sm:$0xff]
    %v3393 = vld [vmem:[%s3371 + $0xa8] sm:$0xff]
    %v3394 = vld [vmem:[%s3371 + $0xb0] sm:$0xff]
    %v3395 = vld [vmem:[%s3371 + $0xb8] sm:$0xff]
    %v3396 = vld [vmem:[%s3371 + $0xc0] sm:$0xff]
    %v3397 = vld [vmem:[%s3371 + $0xc8] sm:$0xff]
    %v3398 = vld [vmem:[%s3371 + $0xd0] sm:$0xff]
    %v3399 = vld [vmem:[%s3371 + $0xd8] sm:$0xff]
    %v3400 = vld [vmem:[%s3371 + $0xe0] sm:$0xff]
    %v3401 = vld [vmem:[%s3371 + $0xe8] sm:$0xff]
    %v3402 = vld [vmem:[%s3371 + $0xf0] sm:$0xff]
    %v3403 = vld [vmem:[%s3371 + $0xf8] sm:$0xff]
    %s3404 = scalar_lea.vmem %s11, 4
    %v3405 = vld [vmem:[%s3404] sm:$0x3]
    %v3407 = vperm.slane %v3405, 0
    %v3408 = vperm.slane %v3405, 1
    %3411 = vmatpush.msra.mxu0 %v3402
    %3412 = vmatpush.msra.mxu0 %v3400
    %3413 = vmatpush.msra.mxu0 %v3398
    %3414 = vmatpush.msra.mxu0 %v3396
    %3415 = vmatpush.msra.mxu0 %v3394
    %3416 = vmatpush.msra.mxu0 %v3392
    %3417 = vmatpush.msra.mxu0 %v3390
    %3418 = vmatpush.msra.mxu0 %v3388
    %3419 = vmatpush.msra.mxu0 %v3386
    %3420 = vmatpush.msra.mxu0 %v3384
    %3421 = vmatpush.msra.mxu0 %v3382
    %3422 = vmatpush.msra.mxu0 %v3380
    %3423 = vmatpush.msra.mxu0 %v3378
    %3424 = vmatpush.msra.mxu0 %v3376
    %3425 = vmatpush.msra.mxu0 %v3374
    %3426 = vmatpush.msra.mxu0 %v3372
    %3427 = vmatmul.f32.gmra.mxu0 %v3369
    %v3428 = vpop.f32.mrf.mxu0
    %v3429 = vadd.f32 %v3407, %v3428
    %3430 = vmatmul.f32.gmra.mxu0 %v3370
    %v3431 = vpop.f32.mrf.mxu0
    %v3432 = vadd.f32 %v3407, %v3431
    %3433 = vdwg.mxu0
    %3434 = vmatpush.msra.mxu0 %v3403
    %3435 = vmatpush.msra.mxu0 %v3401
    %3436 = vmatpush.msra.mxu0 %v3399
    %3437 = vmatpush.msra.mxu0 %v3397
    %3438 = vmatpush.msra.mxu0 %v3395
    %3439 = vmatpush.msra.mxu0 %v3393
    %3440 = vmatpush.msra.mxu0 %v3391
    %3441 = vmatpush.msra.mxu0 %v3389
    %3442 = vmatpush.msra.mxu0 %v3387
    %3443 = vmatpush.msra.mxu0 %v3385
    %3444 = vmatpush.msra.mxu0 %v3383
    %3445 = vmatpush.msra.mxu0 %v3381
    %3446 = vmatpush.msra.mxu0 %v3379
    %3447 = vmatpush.msra.mxu0 %v3377
    %3448 = vmatpush.msra.mxu0 %v3375
    %3449 = vmatpush.msra.mxu0 %v3373
    %3450 = vmatmul.f32.gmra.mxu0 %v3369
    %v3451 = vpop.f32.mrf.mxu0
    %v3452 = vadd.f32 %v3408, %v3451
    %3453 = vmatmul.f32.gmra.mxu0 %v3370
    %v3454 = vpop.f32.mrf.mxu0
    %v3455 = vadd.f32 %v3408, %v3454
    %3456 = vdwg.mxu0
    %v3457 = vmul.f32 %v3429, %v3429
    %v3458 = vmul.f32 %v3452, %v3452
    %v3459 = vmul.f32 %v3432, %v3432
    %v3460 = vmul.f32 %v3455, %v3455
    %v3461 = vmul.f32 %v3429, %v3457
    %v3462 = vmul.f32 %v3452, %v3458
    %v3463 = vmul.f32 %v3432, %v3459
    %v3464 = vmul.f32 %v3455, %v3460
    %v3465 = vmul.f32 %v3461, 0.044715
    %v3466 = vmul.f32 %v3462, 0.044715
    %v3467 = vmul.f32 %v3463, 0.044715
    %v3468 = vmul.f32 %v3464, 0.044715
    %v3469 = vadd.f32 %v3429, %v3465
    %v3470 = vadd.f32 %v3452, %v3466
    %v3471 = vadd.f32 %v3432, %v3467
    %v3472 = vadd.f32 %v3455, %v3468
    %v3473 = vmul.f32 %v3469, 0.7978846
    %v3474 = vmul.f32 %v3470, 0.7978846
    %v3475 = vmul.f32 %v3471, 0.7978846
    %v3476 = vmul.f32 %v3472, 0.7978846
    %v3477 = vtanh.pop %v3473
    %v3478 = vtanh.pop %v3474
    %v3479 = vtanh.pop %v3475
    %v3480 = vtanh.pop %v3476
    %v3481 = vadd.f32 %v3477, 1.0
    %v3482 = vadd.f32 %v3478, 1.0
    %v3483 = vadd.f32 %v3479, 1.0
    %v3484 = vadd.f32 %v3480, 1.0
    %v3485 = vmul.f32 %v3481, 0.5
    %v3486 = vmul.f32 %v3482, 0.5
    %v3487 = vmul.f32 %v3483, 0.5
    %v3488 = vmul.f32 %v3484, 0.5
    %v3489 = vmul.f32 %v3429, %v3485
    %v3490 = vmul.f32 %v3452, %v3486
    %v3491 = vmul.f32 %v3432, %v3487
    %v3492 = vmul.f32 %v3455, %v3488
    %s3493 = scalar_lea.vmem [#allocation8], 512
    %v3494 = vld [vmem:[%s3493] sm:$0xff]
    %v3495 = vld [vmem:[%s3493 + $0x8] sm:$0xff]
    %v3496 = vld [vmem:[%s3493 + $0x10] sm:$0xff]
    %v3497 = vld [vmem:[%s3493 + $0x18] sm:$0xff]
    %v3498 = vld [vmem:[%s3493 + $0x20] sm:$0xff]
    %v3499 = vld [vmem:[%s3493 + $0x28] sm:$0xff]
    %v3500 = vld [vmem:[%s3493 + $0x30] sm:$0xff]
    %v3501 = vld [vmem:[%s3493 + $0x38] sm:$0xff]
    %v3502 = vld [vmem:[%s3493 + $0x40] sm:$0xff]
    %v3503 = vld [vmem:[%s3493 + $0x48] sm:$0xff]
    %v3504 = vld [vmem:[%s3493 + $0x50] sm:$0xff]
    %v3505 = vld [vmem:[%s3493 + $0x58] sm:$0xff]
    %v3506 = vld [vmem:[%s3493 + $0x60] sm:$0xff]
    %v3507 = vld [vmem:[%s3493 + $0x68] sm:$0xff]
    %v3508 = vld [vmem:[%s3493 + $0x70] sm:$0xff]
    %v3509 = vld [vmem:[%s3493 + $0x78] sm:$0xff]
    %v3510 = vld [vmem:[%s3493 + $0x80] sm:$0xff]
    %v3511 = vld [vmem:[%s3493 + $0x88] sm:$0xff]
    %v3512 = vld [vmem:[%s3493 + $0x90] sm:$0xff]
    %v3513 = vld [vmem:[%s3493 + $0x98] sm:$0xff]
    %v3514 = vld [vmem:[%s3493 + $0xa0] sm:$0xff]
    %v3515 = vld [vmem:[%s3493 + $0xa8] sm:$0xff]
    %v3516 = vld [vmem:[%s3493 + $0xb0] sm:$0xff]
    %v3517 = vld [vmem:[%s3493 + $0xb8] sm:$0xff]
    %v3518 = vld [vmem:[%s3493 + $0xc0] sm:$0xff]
    %v3519 = vld [vmem:[%s3493 + $0xc8] sm:$0xff]
    %v3520 = vld [vmem:[%s3493 + $0xd0] sm:$0xff]
    %v3521 = vld [vmem:[%s3493 + $0xd8] sm:$0xff]
    %v3522 = vld [vmem:[%s3493 + $0xe0] sm:$0xff]
    %v3523 = vld [vmem:[%s3493 + $0xe8] sm:$0xff]
    %v3524 = vld [vmem:[%s3493 + $0xf0] sm:$0xff]
    %v3525 = vld [vmem:[%s3493 + $0xf8] sm:$0xff]
    %s3526 = scalar_lea.vmem %s13, 2
    %v3527 = vld [vmem:[%s3526] sm:$0x1]
    %v3529 = vperm.slane %v3527, 0
    %3531 = vmatpush.msra.mxu0 %v3509
    %3532 = vmatpush.msra.mxu0 %v3508
    %3533 = vmatpush.msra.mxu0 %v3507
    %3534 = vmatpush.msra.mxu0 %v3506
    %3535 = vmatpush.msra.mxu0 %v3505
    %3536 = vmatpush.msra.mxu0 %v3504
    %3537 = vmatpush.msra.mxu0 %v3503
    %3538 = vmatpush.msra.mxu0 %v3502
    %3539 = vmatpush.msra.mxu0 %v3501
    %3540 = vmatpush.msra.mxu0 %v3500
    %3541 = vmatpush.msra.mxu0 %v3499
    %3542 = vmatpush.msra.mxu0 %v3498
    %3543 = vmatpush.msra.mxu0 %v3497
    %3544 = vmatpush.msra.mxu0 %v3496
    %3545 = vmatpush.msra.mxu0 %v3495
    %3546 = vmatpush.msra.mxu0 %v3494
    %3547 = vmatmul.f32.gmra.mxu0 %v3489
    %v3548 = vpop.f32.mrf.mxu0
    %v3549 = vadd.f32 %v3529, %v3548
    %3550 = vmatmul.f32.gmra.mxu0 %v3491
    %v3551 = vpop.f32.mrf.mxu0
    %v3552 = vadd.f32 %v3529, %v3551
    %3553 = vdwg.mxu0
    %3554 = vmatpush.msra.mxu0 %v3525
    %3555 = vmatpush.msra.mxu0 %v3524
    %3556 = vmatpush.msra.mxu0 %v3523
    %3557 = vmatpush.msra.mxu0 %v3522
    %3558 = vmatpush.msra.mxu0 %v3521
    %3559 = vmatpush.msra.mxu0 %v3520
    %3560 = vmatpush.msra.mxu0 %v3519
    %3561 = vmatpush.msra.mxu0 %v3518
    %3562 = vmatpush.msra.mxu0 %v3517
    %3563 = vmatpush.msra.mxu0 %v3516
    %3564 = vmatpush.msra.mxu0 %v3515
    %3565 = vmatpush.msra.mxu0 %v3514
    %3566 = vmatpush.msra.mxu0 %v3513
    %3567 = vmatpush.msra.mxu0 %v3512
    %3568 = vmatpush.msra.mxu0 %v3511
    %3569 = vmatpush.msra.mxu0 %v3510
    %3570 = vmatmul.f32.gmra.mxu0 %v3490
    %v3571 = vpop.f32.mrf.mxu0
    %v3572 = vadd.f32 %v3549, %v3571
    %3573 = vmatmul.f32.gmra.mxu0 %v3492
    %v3574 = vpop.f32.mrf.mxu0
    %v3575 = vadd.f32 %v3552, %v3574
    %3576 = vdwg.mxu0
    %v3577 = vadd.f32 %v3572, %v3369
    %v3578 = vadd.f32 %v3575, %v3370
    %s3579 = scalar_lea.vmem %s14, 2
    %v3580 = vld [vmem:[%s3579] sm:$0x1]
    %s3581 = scalar_lea.vmem %s15, 2
    %v3582 = vld [vmem:[%s3581] sm:$0x1]
    %3583 = vadd.xlane.f32.xlu0 %v3577
    %v3584 = vpop.xlane.xlu0 %3583
    %3585 = vadd.xlane.f32.xlu0 %v3578
    %v3586 = vpop.xlane.xlu0 %3585
    %v3587 = vmul.f32 %v3584, %v132
    %v3588 = vmul.f32 %v3586, %v132
    %v3589 = vsub.f32 %v3577, %v3587
    %v3590 = vsub.f32 %v3578, %v3588
    %v3591 = vmul.f32 %v3589, %v3589
    %v3592 = vmul.f32 %v3590, %v3590
    %3593 = vadd.xlane.f32.xlu0 %v3591
    %v3594 = vpop.xlane.xlu0 %3593
    %3595 = vadd.xlane.f32.xlu0 %v3592
    %v3596 = vpop.xlane.xlu0 %3595
    %v3597 = vmul.f32 %v3594, %v132
    %v3598 = vmul.f32 %v3596, %v132
    %v3599 = vadd.f32 %v3597, 1e-12
    %v3600 = vadd.f32 %v3598, 1e-12
    %v3601 = vrsqrt.pop %v3599
    %v3602 = vmul.f32 %v3601, %v3599
    %v3603 = vmul.f32 %v3602, %v3601
    %v3604 = vmul.f32 0.5, %v3603
    %v3605 = vsub.f32 1.5, %v3604
    %v3606 = vmul.f32 %v3601, %v3605
    %vm3607 = vweird.f32 %v3599
    %vm3608 = vweird.f32 %v3601
    %vm3609 = vmor %vm3607, %vm3608
    %v3610 = vsel %vm3609, %v3601, %v3606
    %v3611 = vrsqrt.pop %v3600
    %v3612 = vmul.f32 %v3611, %v3600
    %v3613 = vmul.f32 %v3612, %v3611
    %v3614 = vmul.f32 0.5, %v3613
    %v3615 = vsub.f32 1.5, %v3614
    %v3616 = vmul.f32 %v3611, %v3615
    %vm3617 = vweird.f32 %v3600
    %vm3618 = vweird.f32 %v3611
    %vm3619 = vmor %vm3617, %vm3618
    %v3620 = vsel %vm3619, %v3611, %v3616
    %v3621 = vmul.f32 %v3589, %v3610
    %v3622 = vmul.f32 %v3590, %v3620
    %v3624 = vperm.slane %v3580, 0
    %v3626 = vmul.f32 %v3621, %v3624
    %v3627 = vmul.f32 %v3622, %v3624
    %v3629 = vperm.slane %v3582, 0
    %v3631 = vadd.f32 %v3626, %v3629
    %v3632 = vadd.f32 %v3627, %v3629
    %v3633 = vadd.f32 %v2479, %v3631
    %v3634 = vadd.f32 %v2480, %v3632
    %s3635 = scalar_lea.vmem [#allocation2], 1152
    %v3636 = vld [vmem:[%s3635] sm:$0xff]
    %v3637 = vld [vmem:[%s3635 + $0x8] sm:$0xff]
    %v3638 = vld [vmem:[%s3635 + $0x10] sm:$0xff]
    %v3639 = vld [vmem:[%s3635 + $0x18] sm:$0xff]
    %v3640 = vld [vmem:[%s3635 + $0x20] sm:$0xff]
    %v3641 = vld [vmem:[%s3635 + $0x28] sm:$0xff]
    %v3642 = vld [vmem:[%s3635 + $0x30] sm:$0xff]
    %v3643 = vld [vmem:[%s3635 + $0x38] sm:$0xff]
    %v3644 = vld [vmem:[%s3635 + $0x40] sm:$0xff]
    %v3645 = vld [vmem:[%s3635 + $0x48] sm:$0xff]
    %v3646 = vld [vmem:[%s3635 + $0x50] sm:$0xff]
    %v3647 = vld [vmem:[%s3635 + $0x58] sm:$0xff]
    %v3648 = vld [vmem:[%s3635 + $0x60] sm:$0xff]
    %v3649 = vld [vmem:[%s3635 + $0x68] sm:$0xff]
    %v3650 = vld [vmem:[%s3635 + $0x70] sm:$0xff]
    %v3651 = vld [vmem:[%s3635 + $0x78] sm:$0xff]
    %v3652 = vld [vmem:[%s3635 + $0x80] sm:$0xff]
    %v3653 = vld [vmem:[%s3635 + $0x88] sm:$0xff]
    %v3654 = vld [vmem:[%s3635 + $0x90] sm:$0xff]
    %v3655 = vld [vmem:[%s3635 + $0x98] sm:$0xff]
    %v3656 = vld [vmem:[%s3635 + $0xa0] sm:$0xff]
    %v3657 = vld [vmem:[%s3635 + $0xa8] sm:$0xff]
    %v3658 = vld [vmem:[%s3635 + $0xb0] sm:$0xff]
    %v3659 = vld [vmem:[%s3635 + $0xb8] sm:$0xff]
    %v3660 = vld [vmem:[%s3635 + $0xc0] sm:$0xff]
    %v3661 = vld [vmem:[%s3635 + $0xc8] sm:$0xff]
    %v3662 = vld [vmem:[%s3635 + $0xd0] sm:$0xff]
    %v3663 = vld [vmem:[%s3635 + $0xd8] sm:$0xff]
    %v3664 = vld [vmem:[%s3635 + $0xe0] sm:$0xff]
    %v3665 = vld [vmem:[%s3635 + $0xe8] sm:$0xff]
    %v3666 = vld [vmem:[%s3635 + $0xf0] sm:$0xff]
    %v3667 = vld [vmem:[%s3635 + $0xf8] sm:$0xff]
    %v3668 = vld [vmem:[%s3635 + $0x100] sm:$0xff]
    %v3669 = vld [vmem:[%s3635 + $0x108] sm:$0xff]
    %v3670 = vld [vmem:[%s3635 + $0x110] sm:$0xff]
    %v3671 = vld [vmem:[%s3635 + $0x118] sm:$0xff]
    %v3672 = vld [vmem:[%s3635 + $0x120] sm:$0xff]
    %v3673 = vld [vmem:[%s3635 + $0x128] sm:$0xff]
    %v3674 = vld [vmem:[%s3635 + $0x130] sm:$0xff]
    %v3675 = vld [vmem:[%s3635 + $0x138] sm:$0xff]
    %v3676 = vld [vmem:[%s3635 + $0x140] sm:$0xff]
    %v3677 = vld [vmem:[%s3635 + $0x148] sm:$0xff]
    %v3678 = vld [vmem:[%s3635 + $0x150] sm:$0xff]
    %v3679 = vld [vmem:[%s3635 + $0x158] sm:$0xff]
    %v3680 = vld [vmem:[%s3635 + $0x160] sm:$0xff]
    %v3681 = vld [vmem:[%s3635 + $0x168] sm:$0xff]
    %v3682 = vld [vmem:[%s3635 + $0x170] sm:$0xff]
    %v3683 = vld [vmem:[%s3635 + $0x178] sm:$0xff]
    %s3684 = scalar_lea.vmem %s5, 9
    %v3685 = vld [vmem:[%s3684] sm:$0x7]
    %v3687 = vperm.slane %v3685, 0
    %v3688 = vperm.slane %v3685, 1
    %v3689 = vperm.slane %v3685, 2
    %3693 = vmatpush.msra.mxu0 %v3681
    %3694 = vmatpush.msra.mxu0 %v3678
    %3695 = vmatpush.msra.mxu0 %v3675
    %3696 = vmatpush.msra.mxu0 %v3672
    %3697 = vmatpush.msra.mxu0 %v3669
    %3698 = vmatpush.msra.mxu0 %v3666
    %3699 = vmatpush.msra.mxu0 %v3663
    %3700 = vmatpush.msra.mxu0 %v3660
    %3701 = vmatpush.msra.mxu0 %v3657
    %3702 = vmatpush.msra.mxu0 %v3654
    %3703 = vmatpush.msra.mxu0 %v3651
    %3704 = vmatpush.msra.mxu0 %v3648
    %3705 = vmatpush.msra.mxu0 %v3645
    %3706 = vmatpush.msra.mxu0 %v3642
    %3707 = vmatpush.msra.mxu0 %v3639
    %3708 = vmatpush.msra.mxu0 %v3636
    %3709 = vmatmul.f32.gmra.mxu0 %v3631
    %v3710 = vpop.f32.mrf.mxu0
    %v3711 = vadd.f32 %v3687, %v3710
    %3712 = vmatmul.f32.gmra.mxu0 %v3632
    %v3713 = vpop.f32.mrf.mxu0
    %v3714 = vadd.f32 %v3687, %v3713
    %3715 = vdwg.mxu0
    %3716 = vmatpush.msra.mxu0 %v3682
    %3717 = vmatpush.msra.mxu0 %v3679
    %3718 = vmatpush.msra.mxu0 %v3676
    %3719 = vmatpush.msra.mxu0 %v3673
    %3720 = vmatpush.msra.mxu0 %v3670
    %3721 = vmatpush.msra.mxu0 %v3667
    %3722 = vmatpush.msra.mxu0 %v3664
    %3723 = vmatpush.msra.mxu0 %v3661
    %3724 = vmatpush.msra.mxu0 %v3658
    %3725 = vmatpush.msra.mxu0 %v3655
    %3726 = vmatpush.msra.mxu0 %v3652
    %3727 = vmatpush.msra.mxu0 %v3649
    %3728 = vmatpush.msra.mxu0 %v3646
    %3729 = vmatpush.msra.mxu0 %v3643
    %3730 = vmatpush.msra.mxu0 %v3640
    %3731 = vmatpush.msra.mxu0 %v3637
    %3732 = vmatmul.f32.gmra.mxu0 %v3631
    %v3733 = vpop.f32.mrf.mxu0
    %v3734 = vadd.f32 %v3688, %v3733
    %3735 = vmatmul.f32.gmra.mxu0 %v3632
    %v3736 = vpop.f32.mrf.mxu0
    %v3737 = vadd.f32 %v3688, %v3736
    %3738 = vdwg.mxu0
    %3739 = vmatpush.msra.mxu0 %v3683
    %3740 = vmatpush.msra.mxu0 %v3680
    %3741 = vmatpush.msra.mxu0 %v3677
    %3742 = vmatpush.msra.mxu0 %v3674
    %3743 = vmatpush.msra.mxu0 %v3671
    %3744 = vmatpush.msra.mxu0 %v3668
    %3745 = vmatpush.msra.mxu0 %v3665
    %3746 = vmatpush.msra.mxu0 %v3662
    %3747 = vmatpush.msra.mxu0 %v3659
    %3748 = vmatpush.msra.mxu0 %v3656
    %3749 = vmatpush.msra.mxu0 %v3653
    %3750 = vmatpush.msra.mxu0 %v3650
    %3751 = vmatpush.msra.mxu0 %v3647
    %3752 = vmatpush.msra.mxu0 %v3644
    %3753 = vmatpush.msra.mxu0 %v3641
    %3754 = vmatpush.msra.mxu0 %v3638
    %3755 = vmatmul.f32.gmra.mxu0 %v3631
    %v3756 = vpop.f32.mrf.mxu0
    %v3757 = vadd.f32 %v3689, %v3756
    %3758 = vmatmul.f32.gmra.mxu0 %v3632
    %v3759 = vpop.f32.mrf.mxu0
    %v3760 = vadd.f32 %v3689, %v3759
    %3761 = vdwg.mxu0
    %v3763 = vsel %vm304, %v3711, 0
    %v3766 = vsel %vm304, %v3734, 0
    %3768 = vmatpush.xpose.msra.mxu0 0.0
    %3769 = vmatpush.xpose.msra.mxu0 0.0
    %3770 = vmatpush.xpose.msra.mxu0 0.0
    %3771 = vmatpush.xpose.msra.mxu0 0.0
    %3772 = vmatpush.xpose.msra.mxu0 0.0
    %3773 = vmatpush.xpose.msra.mxu0 0.0
    %3774 = vmatpush.xpose.msra.mxu0 0.0
    %3775 = vmatpush.xpose.msra.mxu0 0.0
    %3776 = vmatpush.xpose.msra.mxu0 0.0
    %3777 = vmatpush.xpose.msra.mxu0 0.0
    %3778 = vmatpush.xpose.msra.mxu0 0.0
    %3779 = vmatpush.xpose.msra.mxu0 0.0
    %3780 = vmatpush.xpose.msra.mxu0 0.0
    %3781 = vmatpush.xpose.msra.mxu0 0.0
    %3782 = vmatpush.xpose.msra.mxu0 0.0
    %3783 = vmatpush.xpose.msra.mxu0 %v3766
    %3784 = vmatmul.f32.gmra.mxu0 %v3763
    %v3785 = vpop.f32.mrf.mxu0
    %v3786 = vadd.f32 0.0, %v3785
    %3787 = vdwg.mxu0
    %v3788 = vmul.f32 %v3786, 0.17677669
    %v3789 = vadd.f32 %v3788, %v332
    %v3790 = vsel %vm334, %v3789, -inf
    %3791 = vmax.xlane.f32.xlu0 %v3790
    %v3792 = vpop.xlane.xlu0 %3791
    %v3793 = vsub.f32 %v3789, %v3792
    %v3794 = vmul.f32 %v3793, 1.442695
    %v3795 = vpow.pop %v3794
    %v3796 = vsel %vm334, %v3795, 0.0
    %3797 = vadd.xlane.f32.xlu0 %v3796
    %v3798 = vpop.xlane.xlu0 %3797
    %v3799 = vrcp.pop %v3798
    %v3800 = vmul.f32 %v3798, %v3799
    %v3801 = vsub.f32 1.0, %v3800
    %v3802 = vmul.f32 %v3799, %v3801
    %v3803 = vadd.f32 %v3799, %v3802
    %vm3804 = vweird.f32 %v3798
    %vm3805 = vweird.f32 %v3799
    %vm3806 = vmor %vm3804, %vm3805
    %v3807 = vsel %vm3806, %v3799, %v3803
    %v3808 = vand.u32 2147483647, %v3798
    %vm3809 = vcmp.eq.f32.partialorder %v3808, 8.507059e+37
    %v3810 = vand.u32 %v3798, 2147483648
    %v3811 = vor.u32 1.1754944e-38, %v3810
    %v3812 = vsel %vm3809, %v3811, %v3807
    %v3813 = vmul.f32 %v3795, %v3812
    %v3815 = vsel %vm334, %v3813, 0
    %3817 = vmatpush.msra.mxu0 0.0
    %3818 = vmatpush.msra.mxu0 0.0
    %3819 = vmatpush.msra.mxu0 0.0
    %3820 = vmatpush.msra.mxu0 0.0
    %3821 = vmatpush.msra.mxu0 0.0
    %3822 = vmatpush.msra.mxu0 0.0
    %3823 = vmatpush.msra.mxu0 0.0
    %3824 = vmatpush.msra.mxu0 0.0
    %3825 = vmatpush.msra.mxu0 0.0
    %3826 = vmatpush.msra.mxu0 0.0
    %3827 = vmatpush.msra.mxu0 0.0
    %3828 = vmatpush.msra.mxu0 0.0
    %3829 = vmatpush.msra.mxu0 0.0
    %3830 = vmatpush.msra.mxu0 0.0
    %3831 = vmatpush.msra.mxu0 0.0
    %3832 = vmatpush.msra.mxu0 %v3757
    %3833 = vmatmul.f32.gmra.mxu0 %v3815
    %v3834 = vpop.f32.mrf.mxu0
    %v3835 = vadd.f32 0.0, %v3834
    %3836 = vdwg.mxu0
    %3837 = vrot.lane.b32.xlu0 %v3711, 96
    %v3838 = vpop.permute.xlu0 %3837
    %3839 = vrot.lane.b32.xlu0 %v3734, 96
    %v3840 = vpop.permute.xlu0 %3839
    %v3841 = vsel %vm304, %v3838, 0
    %v3843 = vsel %vm304, %v3840, 0
    %3845 = vmatpush.xpose.msra.mxu0 0.0
    %3846 = vmatpush.xpose.msra.mxu0 0.0
    %3847 = vmatpush.xpose.msra.mxu0 0.0
    %3848 = vmatpush.xpose.msra.mxu0 0.0
    %3849 = vmatpush.xpose.msra.mxu0 0.0
    %3850 = vmatpush.xpose.msra.mxu0 0.0
    %3851 = vmatpush.xpose.msra.mxu0 0.0
    %3852 = vmatpush.xpose.msra.mxu0 0.0
    %3853 = vmatpush.xpose.msra.mxu0 0.0
    %3854 = vmatpush.xpose.msra.mxu0 0.0
    %3855 = vmatpush.xpose.msra.mxu0 0.0
    %3856 = vmatpush.xpose.msra.mxu0 0.0
    %3857 = vmatpush.xpose.msra.mxu0 0.0
    %3858 = vmatpush.xpose.msra.mxu0 0.0
    %3859 = vmatpush.xpose.msra.mxu0 0.0
    %3860 = vmatpush.xpose.msra.mxu0 %v3843
    %3861 = vmatmul.f32.gmra.mxu0 %v3841
    %v3862 = vpop.f32.mrf.mxu0
    %v3863 = vadd.f32 0.0, %v3862
    %3864 = vdwg.mxu0
    %v3865 = vmul.f32 %v3863, 0.17677669
    %v3866 = vadd.f32 %v3865, %v332
    %v3867 = vsel %vm334, %v3866, -inf
    %3868 = vmax.xlane.f32.xlu0 %v3867
    %v3869 = vpop.xlane.xlu0 %3868
    %v3870 = vsub.f32 %v3866, %v3869
    %v3871 = vmul.f32 %v3870, 1.442695
    %v3872 = vpow.pop %v3871
    %v3873 = vsel %vm334, %v3872, 0.0
    %3874 = vadd.xlane.f32.xlu0 %v3873
    %v3875 = vpop.xlane.xlu0 %3874
    %v3876 = vrcp.pop %v3875
    %v3877 = vmul.f32 %v3875, %v3876
    %v3878 = vsub.f32 1.0, %v3877
    %v3879 = vmul.f32 %v3876, %v3878
    %v3880 = vadd.f32 %v3876, %v3879
    %vm3881 = vweird.f32 %v3875
    %vm3882 = vweird.f32 %v3876
    %vm3883 = vmor %vm3881, %vm3882
    %v3884 = vsel %vm3883, %v3876, %v3880
    %v3885 = vand.u32 2147483647, %v3875
    %vm3886 = vcmp.eq.f32.partialorder %v3885, 8.507059e+37
    %v3887 = vand.u32 %v3875, 2147483648
    %v3888 = vor.u32 1.1754944e-38, %v3887
    %v3889 = vsel %vm3886, %v3888, %v3884
    %v3890 = vmul.f32 %v3872, %v3889
    %3892 = vrot.lane.b32.xlu0 %v3757, 96
    %v3893 = vpop.permute.xlu0 %3892
    %v3896 = vsel %vm334, %v3890, 0
    %3898 = vmatpush.msra.mxu0 0.0
    %3899 = vmatpush.msra.mxu0 0.0
    %3900 = vmatpush.msra.mxu0 0.0
    %3901 = vmatpush.msra.mxu0 0.0
    %3902 = vmatpush.msra.mxu0 0.0
    %3903 = vmatpush.msra.mxu0 0.0
    %3904 = vmatpush.msra.mxu0 0.0
    %3905 = vmatpush.msra.mxu0 0.0
    %3906 = vmatpush.msra.mxu0 0.0
    %3907 = vmatpush.msra.mxu0 0.0
    %3908 = vmatpush.msra.mxu0 0.0
    %3909 = vmatpush.msra.mxu0 0.0
    %3910 = vmatpush.msra.mxu0 0.0
    %3911 = vmatpush.msra.mxu0 0.0
    %3912 = vmatpush.msra.mxu0 0.0
    %3913 = vmatpush.msra.mxu0 %v3893
    %3914 = vmatmul.f32.gmra.mxu0 %v3896
    %v3915 = vpop.f32.mrf.mxu0
    %v3916 = vadd.f32 0.0, %v3915
    %3917 = vdwg.mxu0
    %3918 = vrot.lane.b32.xlu0 %v3711, 64
    %v3919 = vpop.permute.xlu0 %3918
    %3920 = vrot.lane.b32.xlu0 %v3734, 64
    %v3921 = vpop.permute.xlu0 %3920
    %v3922 = vsel %vm304, %v3919, 0
    %v3924 = vsel %vm304, %v3921, 0
    %3926 = vmatpush.xpose.msra.mxu0 0.0
    %3927 = vmatpush.xpose.msra.mxu0 0.0
    %3928 = vmatpush.xpose.msra.mxu0 0.0
    %3929 = vmatpush.xpose.msra.mxu0 0.0
    %3930 = vmatpush.xpose.msra.mxu0 0.0
    %3931 = vmatpush.xpose.msra.mxu0 0.0
    %3932 = vmatpush.xpose.msra.mxu0 0.0
    %3933 = vmatpush.xpose.msra.mxu0 0.0
    %3934 = vmatpush.xpose.msra.mxu0 0.0
    %3935 = vmatpush.xpose.msra.mxu0 0.0
    %3936 = vmatpush.xpose.msra.mxu0 0.0
    %3937 = vmatpush.xpose.msra.mxu0 0.0
    %3938 = vmatpush.xpose.msra.mxu0 0.0
    %3939 = vmatpush.xpose.msra.mxu0 0.0
    %3940 = vmatpush.xpose.msra.mxu0 0.0
    %3941 = vmatpush.xpose.msra.mxu0 %v3924
    %3942 = vmatmul.f32.gmra.mxu0 %v3922
    %v3943 = vpop.f32.mrf.mxu0
    %v3944 = vadd.f32 0.0, %v3943
    %3945 = vdwg.mxu0
    %v3946 = vmul.f32 %v3944, 0.17677669
    %v3947 = vadd.f32 %v3946, %v332
    %v3948 = vsel %vm334, %v3947, -inf
    %3949 = vmax.xlane.f32.xlu0 %v3948
    %v3950 = vpop.xlane.xlu0 %3949
    %v3951 = vsub.f32 %v3947, %v3950
    %v3952 = vmul.f32 %v3951, 1.442695
    %v3953 = vpow.pop %v3952
    %v3954 = vsel %vm334, %v3953, 0.0
    %3955 = vadd.xlane.f32.xlu0 %v3954
    %v3956 = vpop.xlane.xlu0 %3955
    %v3957 = vrcp.pop %v3956
    %v3958 = vmul.f32 %v3956, %v3957
    %v3959 = vsub.f32 1.0, %v3958
    %v3960 = vmul.f32 %v3957, %v3959
    %v3961 = vadd.f32 %v3957, %v3960
    %vm3962 = vweird.f32 %v3956
    %vm3963 = vweird.f32 %v3957
    %vm3964 = vmor %vm3962, %vm3963
    %v3965 = vsel %vm3964, %v3957, %v3961
    %v3966 = vand.u32 2147483647, %v3956
    %vm3967 = vcmp.eq.f32.partialorder %v3966, 8.507059e+37
    %v3968 = vand.u32 %v3956, 2147483648
    %v3969 = vor.u32 1.1754944e-38, %v3968
    %v3970 = vsel %vm3967, %v3969, %v3965
    %v3971 = vmul.f32 %v3953, %v3970
    %3972 = vrot.lane.b32.xlu0 %v3757, 64
    %v3973 = vpop.permute.xlu0 %3972
    %v3976 = vsel %vm334, %v3971, 0
    %3978 = vmatpush.msra.mxu0 0.0
    %3979 = vmatpush.msra.mxu0 0.0
    %3980 = vmatpush.msra.mxu0 0.0
    %3981 = vmatpush.msra.mxu0 0.0
    %3982 = vmatpush.msra.mxu0 0.0
    %3983 = vmatpush.msra.mxu0 0.0
    %3984 = vmatpush.msra.mxu0 0.0
    %3985 = vmatpush.msra.mxu0 0.0
    %3986 = vmatpush.msra.mxu0 0.0
    %3987 = vmatpush.msra.mxu0 0.0
    %3988 = vmatpush.msra.mxu0 0.0
    %3989 = vmatpush.msra.mxu0 0.0
    %3990 = vmatpush.msra.mxu0 0.0
    %3991 = vmatpush.msra.mxu0 0.0
    %3992 = vmatpush.msra.mxu0 0.0
    %3993 = vmatpush.msra.mxu0 %v3973
    %3994 = vmatmul.f32.gmra.mxu0 %v3976
    %v3995 = vpop.f32.mrf.mxu0
    %v3996 = vadd.f32 0.0, %v3995
    %3997 = vdwg.mxu0
    %3998 = vrot.lane.b32.xlu0 %v3711, 32
    %v3999 = vpop.permute.xlu0 %3998
    %4000 = vrot.lane.b32.xlu0 %v3734, 32
    %v4001 = vpop.permute.xlu0 %4000
    %v4002 = vsel %vm304, %v3999, 0
    %v4004 = vsel %vm304, %v4001, 0
    %4006 = vmatpush.xpose.msra.mxu0 0.0
    %4007 = vmatpush.xpose.msra.mxu0 0.0
    %4008 = vmatpush.xpose.msra.mxu0 0.0
    %4009 = vmatpush.xpose.msra.mxu0 0.0
    %4010 = vmatpush.xpose.msra.mxu0 0.0
    %4011 = vmatpush.xpose.msra.mxu0 0.0
    %4012 = vmatpush.xpose.msra.mxu0 0.0
    %4013 = vmatpush.xpose.msra.mxu0 0.0
    %4014 = vmatpush.xpose.msra.mxu0 0.0
    %4015 = vmatpush.xpose.msra.mxu0 0.0
    %4016 = vmatpush.xpose.msra.mxu0 0.0
    %4017 = vmatpush.xpose.msra.mxu0 0.0
    %4018 = vmatpush.xpose.msra.mxu0 0.0
    %4019 = vmatpush.xpose.msra.mxu0 0.0
    %4020 = vmatpush.xpose.msra.mxu0 0.0
    %4021 = vmatpush.xpose.msra.mxu0 %v4004
    %4022 = vmatmul.f32.gmra.mxu0 %v4002
    %v4023 = vpop.f32.mrf.mxu0
    %v4024 = vadd.f32 0.0, %v4023
    %4025 = vdwg.mxu0
    %v4026 = vmul.f32 %v4024, 0.17677669
    %v4027 = vadd.f32 %v4026, %v332
    %v4028 = vsel %vm334, %v4027, -inf
    %4029 = vmax.xlane.f32.xlu0 %v4028
    %v4030 = vpop.xlane.xlu0 %4029
    %v4031 = vsub.f32 %v4027, %v4030
    %v4032 = vmul.f32 %v4031, 1.442695
    %v4033 = vpow.pop %v4032
    %v4034 = vsel %vm334, %v4033, 0.0
    %4035 = vadd.xlane.f32.xlu0 %v4034
    %v4036 = vpop.xlane.xlu0 %4035
    %v4037 = vrcp.pop %v4036
    %v4038 = vmul.f32 %v4036, %v4037
    %v4039 = vsub.f32 1.0, %v4038
    %v4040 = vmul.f32 %v4037, %v4039
    %v4041 = vadd.f32 %v4037, %v4040
    %vm4042 = vweird.f32 %v4036
    %vm4043 = vweird.f32 %v4037
    %vm4044 = vmor %vm4042, %vm4043
    %v4045 = vsel %vm4044, %v4037, %v4041
    %v4046 = vand.u32 2147483647, %v4036
    %vm4047 = vcmp.eq.f32.partialorder %v4046, 8.507059e+37
    %v4048 = vand.u32 %v4036, 2147483648
    %v4049 = vor.u32 1.1754944e-38, %v4048
    %v4050 = vsel %vm4047, %v4049, %v4045
    %v4051 = vmul.f32 %v4033, %v4050
    %4052 = vrot.lane.b32.xlu0 %v3757, 32
    %v4053 = vpop.permute.xlu0 %4052
    %v4056 = vsel %vm334, %v4051, 0
    %4058 = vmatpush.msra.mxu0 0.0
    %4059 = vmatpush.msra.mxu0 0.0
    %4060 = vmatpush.msra.mxu0 0.0
    %4061 = vmatpush.msra.mxu0 0.0
    %4062 = vmatpush.msra.mxu0 0.0
    %4063 = vmatpush.msra.mxu0 0.0
    %4064 = vmatpush.msra.mxu0 0.0
    %4065 = vmatpush.msra.mxu0 0.0
    %4066 = vmatpush.msra.mxu0 0.0
    %4067 = vmatpush.msra.mxu0 0.0
    %4068 = vmatpush.msra.mxu0 0.0
    %4069 = vmatpush.msra.mxu0 0.0
    %4070 = vmatpush.msra.mxu0 0.0
    %4071 = vmatpush.msra.mxu0 0.0
    %4072 = vmatpush.msra.mxu0 0.0
    %4073 = vmatpush.msra.mxu0 %v4053
    %4074 = vmatmul.f32.gmra.mxu0 %v4056
    %v4075 = vpop.f32.mrf.mxu0
    %v4076 = vadd.f32 0.0, %v4075
    %4077 = vdwg.mxu0
    %4079 = vrot.lane.b32.xlu0 %v3916, 32
    %v4080 = vpop.permute.xlu0 %4079
    %4083 = vrot.lane.b32.xlu0 %v3996, 64
    %v4084 = vpop.permute.xlu0 %4083
    %4087 = vrot.lane.b32.xlu0 %v4076, 96
    %v4088 = vpop.permute.xlu0 %4087
    %v4090 = vsel %vm304, %v3835, %v4080
    %v4091 = vsel %vm636, %v4090, %v4084
    %v4092 = vsel %vm638, %v4091, %v4088
    %v4094 = vsel %vm304, %v3714, 0
    %v4097 = vsel %vm304, %v3737, 0
    %4099 = vmatpush.xpose.msra.mxu0 0.0
    %4100 = vmatpush.xpose.msra.mxu0 0.0
    %4101 = vmatpush.xpose.msra.mxu0 0.0
    %4102 = vmatpush.xpose.msra.mxu0 0.0
    %4103 = vmatpush.xpose.msra.mxu0 0.0
    %4104 = vmatpush.xpose.msra.mxu0 0.0
    %4105 = vmatpush.xpose.msra.mxu0 0.0
    %4106 = vmatpush.xpose.msra.mxu0 0.0
    %4107 = vmatpush.xpose.msra.mxu0 0.0
    %4108 = vmatpush.xpose.msra.mxu0 0.0
    %4109 = vmatpush.xpose.msra.mxu0 0.0
    %4110 = vmatpush.xpose.msra.mxu0 0.0
    %4111 = vmatpush.xpose.msra.mxu0 0.0
    %4112 = vmatpush.xpose.msra.mxu0 0.0
    %4113 = vmatpush.xpose.msra.mxu0 0.0
    %4114 = vmatpush.xpose.msra.mxu0 %v4097
    %4115 = vmatmul.f32.gmra.mxu0 %v4094
    %v4116 = vpop.f32.mrf.mxu0
    %v4117 = vadd.f32 0.0, %v4116
    %4118 = vdwg.mxu0
    %v4119 = vmul.f32 %v4117, 0.17677669
    %v4120 = vadd.f32 %v4119, %v667
    %v4121 = vsel %vm334, %v4120, -inf
    %4122 = vmax.xlane.f32.xlu0 %v4121
    %v4123 = vpop.xlane.xlu0 %4122
    %v4124 = vsub.f32 %v4120, %v4123
    %v4125 = vmul.f32 %v4124, 1.442695
    %v4126 = vpow.pop %v4125
    %v4127 = vsel %vm334, %v4126, 0.0
    %4128 = vadd.xlane.f32.xlu0 %v4127
    %v4129 = vpop.xlane.xlu0 %4128
    %v4130 = vrcp.pop %v4129
    %v4131 = vmul.f32 %v4129, %v4130
    %v4132 = vsub.f32 1.0, %v4131
    %v4133 = vmul.f32 %v4130, %v4132
    %v4134 = vadd.f32 %v4130, %v4133
    %vm4135 = vweird.f32 %v4129
    %vm4136 = vweird.f32 %v4130
    %vm4137 = vmor %vm4135, %vm4136
    %v4138 = vsel %vm4137, %v4130, %v4134
    %v4139 = vand.u32 2147483647, %v4129
    %vm4140 = vcmp.eq.f32.partialorder %v4139, 8.507059e+37
    %v4141 = vand.u32 %v4129, 2147483648
    %v4142 = vor.u32 1.1754944e-38, %v4141
    %v4143 = vsel %vm4140, %v4142, %v4138
    %v4144 = vmul.f32 %v4126, %v4143
    %v4146 = vsel %vm334, %v4144, 0
    %4148 = vmatpush.msra.mxu0 0.0
    %4149 = vmatpush.msra.mxu0 0.0
    %4150 = vmatpush.msra.mxu0 0.0
    %4151 = vmatpush.msra.mxu0 0.0
    %4152 = vmatpush.msra.mxu0 0.0
    %4153 = vmatpush.msra.mxu0 0.0
    %4154 = vmatpush.msra.mxu0 0.0
    %4155 = vmatpush.msra.mxu0 0.0
    %4156 = vmatpush.msra.mxu0 0.0
    %4157 = vmatpush.msra.mxu0 0.0
    %4158 = vmatpush.msra.mxu0 0.0
    %4159 = vmatpush.msra.mxu0 0.0
    %4160 = vmatpush.msra.mxu0 0.0
    %4161 = vmatpush.msra.mxu0 0.0
    %4162 = vmatpush.msra.mxu0 0.0
    %4163 = vmatpush.msra.mxu0 %v3760
    %4164 = vmatmul.f32.gmra.mxu0 %v4146
    %v4165 = vpop.f32.mrf.mxu0
    %v4166 = vadd.f32 0.0, %v4165
    %4167 = vdwg.mxu0
    %4168 = vrot.lane.b32.xlu0 %v3714, 96
    %v4169 = vpop.permute.xlu0 %4168
    %4170 = vrot.lane.b32.xlu0 %v3737, 96
    %v4171 = vpop.permute.xlu0 %4170
    %v4172 = vsel %vm304, %v4169, 0
    %v4174 = vsel %vm304, %v4171, 0
    %4176 = vmatpush.xpose.msra.mxu0 0.0
    %4177 = vmatpush.xpose.msra.mxu0 0.0
    %4178 = vmatpush.xpose.msra.mxu0 0.0
    %4179 = vmatpush.xpose.msra.mxu0 0.0
    %4180 = vmatpush.xpose.msra.mxu0 0.0
    %4181 = vmatpush.xpose.msra.mxu0 0.0
    %4182 = vmatpush.xpose.msra.mxu0 0.0
    %4183 = vmatpush.xpose.msra.mxu0 0.0
    %4184 = vmatpush.xpose.msra.mxu0 0.0
    %4185 = vmatpush.xpose.msra.mxu0 0.0
    %4186 = vmatpush.xpose.msra.mxu0 0.0
    %4187 = vmatpush.xpose.msra.mxu0 0.0
    %4188 = vmatpush.xpose.msra.mxu0 0.0
    %4189 = vmatpush.xpose.msra.mxu0 0.0
    %4190 = vmatpush.xpose.msra.mxu0 0.0
    %4191 = vmatpush.xpose.msra.mxu0 %v4174
    %4192 = vmatmul.f32.gmra.mxu0 %v4172
    %v4193 = vpop.f32.mrf.mxu0
    %v4194 = vadd.f32 0.0, %v4193
    %4195 = vdwg.mxu0
    %v4196 = vmul.f32 %v4194, 0.17677669
    %v4197 = vadd.f32 %v4196, %v667
    %v4198 = vsel %vm334, %v4197, -inf
    %4199 = vmax.xlane.f32.xlu0 %v4198
    %v4200 = vpop.xlane.xlu0 %4199
    %v4201 = vsub.f32 %v4197, %v4200
    %v4202 = vmul.f32 %v4201, 1.442695
    %v4203 = vpow.pop %v4202
    %v4204 = vsel %vm334, %v4203, 0.0
    %4205 = vadd.xlane.f32.xlu0 %v4204
    %v4206 = vpop.xlane.xlu0 %4205
    %v4207 = vrcp.pop %v4206
    %v4208 = vmul.f32 %v4206, %v4207
    %v4209 = vsub.f32 1.0, %v4208
    %v4210 = vmul.f32 %v4207, %v4209
    %v4211 = vadd.f32 %v4207, %v4210
    %vm4212 = vweird.f32 %v4206
    %vm4213 = vweird.f32 %v4207
    %vm4214 = vmor %vm4212, %vm4213
    %v4215 = vsel %vm4214, %v4207, %v4211
    %v4216 = vand.u32 2147483647, %v4206
    %vm4217 = vcmp.eq.f32.partialorder %v4216, 8.507059e+37
    %v4218 = vand.u32 %v4206, 2147483648
    %v4219 = vor.u32 1.1754944e-38, %v4218
    %v4220 = vsel %vm4217, %v4219, %v4215
    %v4221 = vmul.f32 %v4203, %v4220
    %4223 = vrot.lane.b32.xlu0 %v3760, 96
    %v4224 = vpop.permute.xlu0 %4223
    %v4227 = vsel %vm334, %v4221, 0
    %4229 = vmatpush.msra.mxu0 0.0
    %4230 = vmatpush.msra.mxu0 0.0
    %4231 = vmatpush.msra.mxu0 0.0
    %4232 = vmatpush.msra.mxu0 0.0
    %4233 = vmatpush.msra.mxu0 0.0
    %4234 = vmatpush.msra.mxu0 0.0
    %4235 = vmatpush.msra.mxu0 0.0
    %4236 = vmatpush.msra.mxu0 0.0
    %4237 = vmatpush.msra.mxu0 0.0
    %4238 = vmatpush.msra.mxu0 0.0
    %4239 = vmatpush.msra.mxu0 0.0
    %4240 = vmatpush.msra.mxu0 0.0
    %4241 = vmatpush.msra.mxu0 0.0
    %4242 = vmatpush.msra.mxu0 0.0
    %4243 = vmatpush.msra.mxu0 0.0
    %4244 = vmatpush.msra.mxu0 %v4224
    %4245 = vmatmul.f32.gmra.mxu0 %v4227
    %v4246 = vpop.f32.mrf.mxu0
    %v4247 = vadd.f32 0.0, %v4246
    %4248 = vdwg.mxu0
    %4249 = vrot.lane.b32.xlu0 %v3714, 64
    %v4250 = vpop.permute.xlu0 %4249
    %4251 = vrot.lane.b32.xlu0 %v3737, 64
    %v4252 = vpop.permute.xlu0 %4251
    %v4253 = vsel %vm304, %v4250, 0
    %v4255 = vsel %vm304, %v4252, 0
    %4257 = vmatpush.xpose.msra.mxu0 0.0
    %4258 = vmatpush.xpose.msra.mxu0 0.0
    %4259 = vmatpush.xpose.msra.mxu0 0.0
    %4260 = vmatpush.xpose.msra.mxu0 0.0
    %4261 = vmatpush.xpose.msra.mxu0 0.0
    %4262 = vmatpush.xpose.msra.mxu0 0.0
    %4263 = vmatpush.xpose.msra.mxu0 0.0
    %4264 = vmatpush.xpose.msra.mxu0 0.0
    %4265 = vmatpush.xpose.msra.mxu0 0.0
    %4266 = vmatpush.xpose.msra.mxu0 0.0
    %4267 = vmatpush.xpose.msra.mxu0 0.0
    %4268 = vmatpush.xpose.msra.mxu0 0.0
    %4269 = vmatpush.xpose.msra.mxu0 0.0
    %4270 = vmatpush.xpose.msra.mxu0 0.0
    %4271 = vmatpush.xpose.msra.mxu0 0.0
    %4272 = vmatpush.xpose.msra.mxu0 %v4255
    %4273 = vmatmul.f32.gmra.mxu0 %v4253
    %v4274 = vpop.f32.mrf.mxu0
    %v4275 = vadd.f32 0.0, %v4274
    %4276 = vdwg.mxu0
    %v4277 = vmul.f32 %v4275, 0.17677669
    %v4278 = vadd.f32 %v4277, %v667
    %v4279 = vsel %vm334, %v4278, -inf
    %4280 = vmax.xlane.f32.xlu0 %v4279
    %v4281 = vpop.xlane.xlu0 %4280
    %v4282 = vsub.f32 %v4278, %v4281
    %v4283 = vmul.f32 %v4282, 1.442695
    %v4284 = vpow.pop %v4283
    %v4285 = vsel %vm334, %v4284, 0.0
    %4286 = vadd.xlane.f32.xlu0 %v4285
    %v4287 = vpop.xlane.xlu0 %4286
    %v4288 = vrcp.pop %v4287
    %v4289 = vmul.f32 %v4287, %v4288
    %v4290 = vsub.f32 1.0, %v4289
    %v4291 = vmul.f32 %v4288, %v4290
    %v4292 = vadd.f32 %v4288, %v4291
    %vm4293 = vweird.f32 %v4287
    %vm4294 = vweird.f32 %v4288
    %vm4295 = vmor %vm4293, %vm4294
    %v4296 = vsel %vm4295, %v4288, %v4292
    %v4297 = vand.u32 2147483647, %v4287
    %vm4298 = vcmp.eq.f32.partialorder %v4297, 8.507059e+37
    %v4299 = vand.u32 %v4287, 2147483648
    %v4300 = vor.u32 1.1754944e-38, %v4299
    %v4301 = vsel %vm4298, %v4300, %v4296
    %v4302 = vmul.f32 %v4284, %v4301
    %4303 = vrot.lane.b32.xlu0 %v3760, 64
    %v4304 = vpop.permute.xlu0 %4303
    %v4307 = vsel %vm334, %v4302, 0
    %4309 = vmatpush.msra.mxu0 0.0
    %4310 = vmatpush.msra.mxu0 0.0
    %4311 = vmatpush.msra.mxu0 0.0
    %4312 = vmatpush.msra.mxu0 0.0
    %4313 = vmatpush.msra.mxu0 0.0
    %4314 = vmatpush.msra.mxu0 0.0
    %4315 = vmatpush.msra.mxu0 0.0
    %4316 = vmatpush.msra.mxu0 0.0
    %4317 = vmatpush.msra.mxu0 0.0
    %4318 = vmatpush.msra.mxu0 0.0
    %4319 = vmatpush.msra.mxu0 0.0
    %4320 = vmatpush.msra.mxu0 0.0
    %4321 = vmatpush.msra.mxu0 0.0
    %4322 = vmatpush.msra.mxu0 0.0
    %4323 = vmatpush.msra.mxu0 0.0
    %4324 = vmatpush.msra.mxu0 %v4304
    %4325 = vmatmul.f32.gmra.mxu0 %v4307
    %v4326 = vpop.f32.mrf.mxu0
    %v4327 = vadd.f32 0.0, %v4326
    %4328 = vdwg.mxu0
    %4329 = vrot.lane.b32.xlu0 %v3714, 32
    %v4330 = vpop.permute.xlu0 %4329
    %4331 = vrot.lane.b32.xlu0 %v3737, 32
    %v4332 = vpop.permute.xlu0 %4331
    %v4333 = vsel %vm304, %v4330, 0
    %v4335 = vsel %vm304, %v4332, 0
    %4337 = vmatpush.xpose.msra.mxu0 0.0
    %4338 = vmatpush.xpose.msra.mxu0 0.0
    %4339 = vmatpush.xpose.msra.mxu0 0.0
    %4340 = vmatpush.xpose.msra.mxu0 0.0
    %4341 = vmatpush.xpose.msra.mxu0 0.0
    %4342 = vmatpush.xpose.msra.mxu0 0.0
    %4343 = vmatpush.xpose.msra.mxu0 0.0
    %4344 = vmatpush.xpose.msra.mxu0 0.0
    %4345 = vmatpush.xpose.msra.mxu0 0.0
    %4346 = vmatpush.xpose.msra.mxu0 0.0
    %4347 = vmatpush.xpose.msra.mxu0 0.0
    %4348 = vmatpush.xpose.msra.mxu0 0.0
    %4349 = vmatpush.xpose.msra.mxu0 0.0
    %4350 = vmatpush.xpose.msra.mxu0 0.0
    %4351 = vmatpush.xpose.msra.mxu0 0.0
    %4352 = vmatpush.xpose.msra.mxu0 %v4335
    %4353 = vmatmul.f32.gmra.mxu0 %v4333
    %v4354 = vpop.f32.mrf.mxu0
    %v4355 = vadd.f32 0.0, %v4354
    %4356 = vdwg.mxu0
    %v4357 = vmul.f32 %v4355, 0.17677669
    %v4358 = vadd.f32 %v4357, %v667
    %v4359 = vsel %vm334, %v4358, -inf
    %4360 = vmax.xlane.f32.xlu0 %v4359
    %v4361 = vpop.xlane.xlu0 %4360
    %v4362 = vsub.f32 %v4358, %v4361
    %v4363 = vmul.f32 %v4362, 1.442695
    %v4364 = vpow.pop %v4363
    %v4365 = vsel %vm334, %v4364, 0.0
    %4366 = vadd.xlane.f32.xlu0 %v4365
    %v4367 = vpop.xlane.xlu0 %4366
    %v4368 = vrcp.pop %v4367
    %v4369 = vmul.f32 %v4367, %v4368
    %v4370 = vsub.f32 1.0, %v4369
    %v4371 = vmul.f32 %v4368, %v4370
    %v4372 = vadd.f32 %v4368, %v4371
    %vm4373 = vweird.f32 %v4367
    %vm4374 = vweird.f32 %v4368
    %vm4375 = vmor %vm4373, %vm4374
    %v4376 = vsel %vm4375, %v4368, %v4372
    %v4377 = vand.u32 2147483647, %v4367
    %vm4378 = vcmp.eq.f32.partialorder %v4377, 8.507059e+37
    %v4379 = vand.u32 %v4367, 2147483648
    %v4380 = vor.u32 1.1754944e-38, %v4379
    %v4381 = vsel %vm4378, %v4380, %v4376
    %v4382 = vmul.f32 %v4364, %v4381
    %4383 = vrot.lane.b32.xlu0 %v3760, 32
    %v4384 = vpop.permute.xlu0 %4383
    %v4387 = vsel %vm334, %v4382, 0
    %4389 = vmatpush.msra.mxu0 0.0
    %4390 = vmatpush.msra.mxu0 0.0
    %4391 = vmatpush.msra.mxu0 0.0
    %4392 = vmatpush.msra.mxu0 0.0
    %4393 = vmatpush.msra.mxu0 0.0
    %4394 = vmatpush.msra.mxu0 0.0
    %4395 = vmatpush.msra.mxu0 0.0
    %4396 = vmatpush.msra.mxu0 0.0
    %4397 = vmatpush.msra.mxu0 0.0
    %4398 = vmatpush.msra.mxu0 0.0
    %4399 = vmatpush.msra.mxu0 0.0
    %4400 = vmatpush.msra.mxu0 0.0
    %4401 = vmatpush.msra.mxu0 0.0
    %4402 = vmatpush.msra.mxu0 0.0
    %4403 = vmatpush.msra.mxu0 0.0
    %4404 = vmatpush.msra.mxu0 %v4384
    %4405 = vmatmul.f32.gmra.mxu0 %v4387
    %v4406 = vpop.f32.mrf.mxu0
    %v4407 = vadd.f32 0.0, %v4406
    %4408 = vdwg.mxu0
    %4410 = vrot.lane.b32.xlu0 %v4247, 32
    %v4411 = vpop.permute.xlu0 %4410
    %4414 = vrot.lane.b32.xlu0 %v4327, 64
    %v4415 = vpop.permute.xlu0 %4414
    %4418 = vrot.lane.b32.xlu0 %v4407, 96
    %v4419 = vpop.permute.xlu0 %4418
    %v4421 = vsel %vm304, %v4166, %v4411
    %v4422 = vsel %vm636, %v4421, %v4415
    %v4423 = vsel %vm638, %v4422, %v4419
    %s4424 = scalar_lea.vmem [#allocation5], 384
    %v4425 = vld [vmem:[%s4424] sm:$0xff]
    %v4426 = vld [vmem:[%s4424 + $0x8] sm:$0xff]
    %v4427 = vld [vmem:[%s4424 + $0x10] sm:$0xff]
    %v4428 = vld [vmem:[%s4424 + $0x18] sm:$0xff]
    %v4429 = vld [vmem:[%s4424 + $0x20] sm:$0xff]
    %v4430 = vld [vmem:[%s4424 + $0x28] sm:$0xff]
    %v4431 = vld [vmem:[%s4424 + $0x30] sm:$0xff]
    %v4432 = vld [vmem:[%s4424 + $0x38] sm:$0xff]
    %v4433 = vld [vmem:[%s4424 + $0x40] sm:$0xff]
    %v4434 = vld [vmem:[%s4424 + $0x48] sm:$0xff]
    %v4435 = vld [vmem:[%s4424 + $0x50] sm:$0xff]
    %v4436 = vld [vmem:[%s4424 + $0x58] sm:$0xff]
    %v4437 = vld [vmem:[%s4424 + $0x60] sm:$0xff]
    %v4438 = vld [vmem:[%s4424 + $0x68] sm:$0xff]
    %v4439 = vld [vmem:[%s4424 + $0x70] sm:$0xff]
    %v4440 = vld [vmem:[%s4424 + $0x78] sm:$0xff]
    %s4441 = scalar_lea.vmem %s7, 3
    %v4442 = vld [vmem:[%s4441] sm:$0x1]
    %v4444 = vperm.slane %v4442, 0
    %4446 = vmatpush.msra.mxu0 %v4440
    %4447 = vmatpush.msra.mxu0 %v4439
    %4448 = vmatpush.msra.mxu0 %v4438
    %4449 = vmatpush.msra.mxu0 %v4437
    %4450 = vmatpush.msra.mxu0 %v4436
    %4451 = vmatpush.msra.mxu0 %v4435
    %4452 = vmatpush.msra.mxu0 %v4434
    %4453 = vmatpush.msra.mxu0 %v4433
    %4454 = vmatpush.msra.mxu0 %v4432
    %4455 = vmatpush.msra.mxu0 %v4431
    %4456 = vmatpush.msra.mxu0 %v4430
    %4457 = vmatpush.msra.mxu0 %v4429
    %4458 = vmatpush.msra.mxu0 %v4428
    %4459 = vmatpush.msra.mxu0 %v4427
    %4460 = vmatpush.msra.mxu0 %v4426
    %4461 = vmatpush.msra.mxu0 %v4425
    %4462 = vmatmul.f32.gmra.mxu0 %v4092
    %v4463 = vpop.f32.mrf.mxu0
    %v4464 = vadd.f32 %v4444, %v4463
    %4465 = vmatmul.f32.gmra.mxu0 %v4423
    %v4466 = vpop.f32.mrf.mxu0
    %v4467 = vadd.f32 %v4444, %v4466
    %4468 = vdwg.mxu0
    %v4469 = vadd.f32 %v4464, %v3631
    %v4470 = vadd.f32 %v4467, %v3632
    %s4471 = scalar_lea.vmem %s8, 3
    %v4472 = vld [vmem:[%s4471] sm:$0x1]
    %s4473 = scalar_lea.vmem %s9, 3
    %v4474 = vld [vmem:[%s4473] sm:$0x1]
    %4475 = vadd.xlane.f32.xlu0 %v4469
    %v4476 = vpop.xlane.xlu0 %4475
    %4477 = vadd.xlane.f32.xlu0 %v4470
    %v4478 = vpop.xlane.xlu0 %4477
    %v4479 = vmul.f32 %v4476, %v132
    %v4480 = vmul.f32 %v4478, %v132
    %v4481 = vsub.f32 %v4469, %v4479
    %v4482 = vsub.f32 %v4470, %v4480
    %v4483 = vmul.f32 %v4481, %v4481
    %v4484 = vmul.f32 %v4482, %v4482
    %4485 = vadd.xlane.f32.xlu0 %v4483
    %v4486 = vpop.xlane.xlu0 %4485
    %4487 = vadd.xlane.f32.xlu0 %v4484
    %v4488 = vpop.xlane.xlu0 %4487
    %v4489 = vmul.f32 %v4486, %v132
    %v4490 = vmul.f32 %v4488, %v132
    %v4491 = vadd.f32 %v4489, 1e-12
    %v4492 = vadd.f32 %v4490, 1e-12
    %v4493 = vrsqrt.pop %v4491
    %v4494 = vmul.f32 %v4493, %v4491
    %v4495 = vmul.f32 %v4494, %v4493
    %v4496 = vmul.f32 0.5, %v4495
    %v4497 = vsub.f32 1.5, %v4496
    %v4498 = vmul.f32 %v4493, %v4497
    %vm4499 = vweird.f32 %v4491
    %vm4500 = vweird.f32 %v4493
    %vm4501 = vmor %vm4499, %vm4500
    %v4502 = vsel %vm4501, %v4493, %v4498
    %v4503 = vrsqrt.pop %v4492
    %v4504 = vmul.f32 %v4503, %v4492
    %v4505 = vmul.f32 %v4504, %v4503
    %v4506 = vmul.f32 0.5, %v4505
    %v4507 = vsub.f32 1.5, %v4506
    %v4508 = vmul.f32 %v4503, %v4507
    %vm4509 = vweird.f32 %v4492
    %vm4510 = vweird.f32 %v4503
    %vm4511 = vmor %vm4509, %vm4510
    %v4512 = vsel %vm4511, %v4503, %v4508
    %v4513 = vmul.f32 %v4481, %v4502
    %v4514 = vmul.f32 %v4482, %v4512
    %v4516 = vperm.slane %v4472, 0
    %v4518 = vmul.f32 %v4513, %v4516
    %v4519 = vmul.f32 %v4514, %v4516
    %v4521 = vperm.slane %v4474, 0
    %v4523 = vadd.f32 %v4518, %v4521
    %v4524 = vadd.f32 %v4519, %v4521
    %s4525 = scalar_lea.vmem [#allocation7], 768
    %v4526 = vld [vmem:[%s4525] sm:$0xff]
    %v4527 = vld [vmem:[%s4525 + $0x8] sm:$0xff]
    %v4528 = vld [vmem:[%s4525 + $0x10] sm:$0xff]
    %v4529 = vld [vmem:[%s4525 + $0x18] sm:$0xff]
    %v4530 = vld [vmem:[%s4525 + $0x20] sm:$0xff]
    %v4531 = vld [vmem:[%s4525 + $0x28] sm:$0xff]
    %v4532 = vld [vmem:[%s4525 + $0x30] sm:$0xff]
    %v4533 = vld [vmem:[%s4525 + $0x38] sm:$0xff]
    %v4534 = vld [vmem:[%s4525 + $0x40] sm:$0xff]
    %v4535 = vld [vmem:[%s4525 + $0x48] sm:$0xff]
    %v4536 = vld [vmem:[%s4525 + $0x50] sm:$0xff]
    %v4537 = vld [vmem:[%s4525 + $0x58] sm:$0xff]
    %v4538 = vld [vmem:[%s4525 + $0x60] sm:$0xff]
    %v4539 = vld [vmem:[%s4525 + $0x68] sm:$0xff]
    %v4540 = vld [vmem:[%s4525 + $0x70] sm:$0xff]
    %v4541 = vld [vmem:[%s4525 + $0x78] sm:$0xff]
    %v4542 = vld [vmem:[%s4525 + $0x80] sm:$0xff]
    %v4543 = vld [vmem:[%s4525 + $0x88] sm:$0xff]
    %v4544 = vld [vmem:[%s4525 + $0x90] sm:$0xff]
    %v4545 = vld [vmem:[%s4525 + $0x98] sm:$0xff]
    %v4546 = vld [vmem:[%s4525 + $0xa0] sm:$0xff]
    %v4547 = vld [vmem:[%s4525 + $0xa8] sm:$0xff]
    %v4548 = vld [vmem:[%s4525 + $0xb0] sm:$0xff]
    %v4549 = vld [vmem:[%s4525 + $0xb8] sm:$0xff]
    %v4550 = vld [vmem:[%s4525 + $0xc0] sm:$0xff]
    %v4551 = vld [vmem:[%s4525 + $0xc8] sm:$0xff]
    %v4552 = vld [vmem:[%s4525 + $0xd0] sm:$0xff]
    %v4553 = vld [vmem:[%s4525 + $0xd8] sm:$0xff]
    %v4554 = vld [vmem:[%s4525 + $0xe0] sm:$0xff]
    %v4555 = vld [vmem:[%s4525 + $0xe8] sm:$0xff]
    %v4556 = vld [vmem:[%s4525 + $0xf0] sm:$0xff]
    %v4557 = vld [vmem:[%s4525 + $0xf8] sm:$0xff]
    %s4558 = scalar_lea.vmem %s11, 6
    %v4559 = vld [vmem:[%s4558] sm:$0x3]
    %v4561 = vperm.slane %v4559, 0
    %v4562 = vperm.slane %v4559, 1
    %4565 = vmatpush.msra.mxu0 %v4556
    %4566 = vmatpush.msra.mxu0 %v4554
    %4567 = vmatpush.msra.mxu0 %v4552
    %4568 = vmatpush.msra.mxu0 %v4550
    %4569 = vmatpush.msra.mxu0 %v4548
    %4570 = vmatpush.msra.mxu0 %v4546
    %4571 = vmatpush.msra.mxu0 %v4544
    %4572 = vmatpush.msra.mxu0 %v4542
    %4573 = vmatpush.msra.mxu0 %v4540
    %4574 = vmatpush.msra.mxu0 %v4538
    %4575 = vmatpush.msra.mxu0 %v4536
    %4576 = vmatpush.msra.mxu0 %v4534
    %4577 = vmatpush.msra.mxu0 %v4532
    %4578 = vmatpush.msra.mxu0 %v4530
    %4579 = vmatpush.msra.mxu0 %v4528
    %4580 = vmatpush.msra.mxu0 %v4526
    %4581 = vmatmul.f32.gmra.mxu0 %v4523
    %v4582 = vpop.f32.mrf.mxu0
    %v4583 = vadd.f32 %v4561, %v4582
    %4584 = vmatmul.f32.gmra.mxu0 %v4524
    %v4585 = vpop.f32.mrf.mxu0
    %v4586 = vadd.f32 %v4561, %v4585
    %4587 = vdwg.mxu0
    %4588 = vmatpush.msra.mxu0 %v4557
    %4589 = vmatpush.msra.mxu0 %v4555
    %4590 = vmatpush.msra.mxu0 %v4553
    %4591 = vmatpush.msra.mxu0 %v4551
    %4592 = vmatpush.msra.mxu0 %v4549
    %4593 = vmatpush.msra.mxu0 %v4547
    %4594 = vmatpush.msra.mxu0 %v4545
    %4595 = vmatpush.msra.mxu0 %v4543
    %4596 = vmatpush.msra.mxu0 %v4541
    %4597 = vmatpush.msra.mxu0 %v4539
    %4598 = vmatpush.msra.mxu0 %v4537
    %4599 = vmatpush.msra.mxu0 %v4535
    %4600 = vmatpush.msra.mxu0 %v4533
    %4601 = vmatpush.msra.mxu0 %v4531
    %4602 = vmatpush.msra.mxu0 %v4529
    %4603 = vmatpush.msra.mxu0 %v4527
    %4604 = vmatmul.f32.gmra.mxu0 %v4523
    %v4605 = vpop.f32.mrf.mxu0
    %v4606 = vadd.f32 %v4562, %v4605
    %4607 = vmatmul.f32.gmra.mxu0 %v4524
    %v4608 = vpop.f32.mrf.mxu0
    %v4609 = vadd.f32 %v4562, %v4608
    %4610 = vdwg.mxu0
    %v4611 = vmul.f32 %v4583, %v4583
    %v4612 = vmul.f32 %v4606, %v4606
    %v4613 = vmul.f32 %v4586, %v4586
    %v4614 = vmul.f32 %v4609, %v4609
    %v4615 = vmul.f32 %v4583, %v4611
    %v4616 = vmul.f32 %v4606, %v4612
    %v4617 = vmul.f32 %v4586, %v4613
    %v4618 = vmul.f32 %v4609, %v4614
    %v4619 = vmul.f32 %v4615, 0.044715
    %v4620 = vmul.f32 %v4616, 0.044715
    %v4621 = vmul.f32 %v4617, 0.044715
    %v4622 = vmul.f32 %v4618, 0.044715
    %v4623 = vadd.f32 %v4583, %v4619
    %v4624 = vadd.f32 %v4606, %v4620
    %v4625 = vadd.f32 %v4586, %v4621
    %v4626 = vadd.f32 %v4609, %v4622
    %v4627 = vmul.f32 %v4623, 0.7978846
    %v4628 = vmul.f32 %v4624, 0.7978846
    %v4629 = vmul.f32 %v4625, 0.7978846
    %v4630 = vmul.f32 %v4626, 0.7978846
    %v4631 = vtanh.pop %v4627
    %v4632 = vtanh.pop %v4628
    %v4633 = vtanh.pop %v4629
    %v4634 = vtanh.pop %v4630
    %v4635 = vadd.f32 %v4631, 1.0
    %v4636 = vadd.f32 %v4632, 1.0
    %v4637 = vadd.f32 %v4633, 1.0
    %v4638 = vadd.f32 %v4634, 1.0
    %v4639 = vmul.f32 %v4635, 0.5
    %v4640 = vmul.f32 %v4636, 0.5
    %v4641 = vmul.f32 %v4637, 0.5
    %v4642 = vmul.f32 %v4638, 0.5
    %v4643 = vmul.f32 %v4583, %v4639
    %v4644 = vmul.f32 %v4606, %v4640
    %v4645 = vmul.f32 %v4586, %v4641
    %v4646 = vmul.f32 %v4609, %v4642
    %s4647 = scalar_lea.vmem [#allocation8], 768
    %v4648 = vld [vmem:[%s4647] sm:$0xff]
    %v4649 = vld [vmem:[%s4647 + $0x8] sm:$0xff]
    %v4650 = vld [vmem:[%s4647 + $0x10] sm:$0xff]
    %v4651 = vld [vmem:[%s4647 + $0x18] sm:$0xff]
    %v4652 = vld [vmem:[%s4647 + $0x20] sm:$0xff]
    %v4653 = vld [vmem:[%s4647 + $0x28] sm:$0xff]
    %v4654 = vld [vmem:[%s4647 + $0x30] sm:$0xff]
    %v4655 = vld [vmem:[%s4647 + $0x38] sm:$0xff]
    %v4656 = vld [vmem:[%s4647 + $0x40] sm:$0xff]
    %v4657 = vld [vmem:[%s4647 + $0x48] sm:$0xff]
    %v4658 = vld [vmem:[%s4647 + $0x50] sm:$0xff]
    %v4659 = vld [vmem:[%s4647 + $0x58] sm:$0xff]
    %v4660 = vld [vmem:[%s4647 + $0x60] sm:$0xff]
    %v4661 = vld [vmem:[%s4647 + $0x68] sm:$0xff]
    %v4662 = vld [vmem:[%s4647 + $0x70] sm:$0xff]
    %v4663 = vld [vmem:[%s4647 + $0x78] sm:$0xff]
    %v4664 = vld [vmem:[%s4647 + $0x80] sm:$0xff]
    %v4665 = vld [vmem:[%s4647 + $0x88] sm:$0xff]
    %v4666 = vld [vmem:[%s4647 + $0x90] sm:$0xff]
    %v4667 = vld [vmem:[%s4647 + $0x98] sm:$0xff]
    %v4668 = vld [vmem:[%s4647 + $0xa0] sm:$0xff]
    %v4669 = vld [vmem:[%s4647 + $0xa8] sm:$0xff]
    %v4670 = vld [vmem:[%s4647 + $0xb0] sm:$0xff]
    %v4671 = vld [vmem:[%s4647 + $0xb8] sm:$0xff]
    %v4672 = vld [vmem:[%s4647 + $0xc0] sm:$0xff]
    %v4673 = vld [vmem:[%s4647 + $0xc8] sm:$0xff]
    %v4674 = vld [vmem:[%s4647 + $0xd0] sm:$0xff]
    %v4675 = vld [vmem:[%s4647 + $0xd8] sm:$0xff]
    %v4676 = vld [vmem:[%s4647 + $0xe0] sm:$0xff]
    %v4677 = vld [vmem:[%s4647 + $0xe8] sm:$0xff]
    %v4678 = vld [vmem:[%s4647 + $0xf0] sm:$0xff]
    %v4679 = vld [vmem:[%s4647 + $0xf8] sm:$0xff]
    %s4680 = scalar_lea.vmem %s13, 3
    %v4681 = vld [vmem:[%s4680] sm:$0x1]
    %v4683 = vperm.slane %v4681, 0
    %4685 = vmatpush.msra.mxu0 %v4663
    %4686 = vmatpush.msra.mxu0 %v4662
    %4687 = vmatpush.msra.mxu0 %v4661
    %4688 = vmatpush.msra.mxu0 %v4660
    %4689 = vmatpush.msra.mxu0 %v4659
    %4690 = vmatpush.msra.mxu0 %v4658
    %4691 = vmatpush.msra.mxu0 %v4657
    %4692 = vmatpush.msra.mxu0 %v4656
    %4693 = vmatpush.msra.mxu0 %v4655
    %4694 = vmatpush.msra.mxu0 %v4654
    %4695 = vmatpush.msra.mxu0 %v4653
    %4696 = vmatpush.msra.mxu0 %v4652
    %4697 = vmatpush.msra.mxu0 %v4651
    %4698 = vmatpush.msra.mxu0 %v4650
    %4699 = vmatpush.msra.mxu0 %v4649
    %4700 = vmatpush.msra.mxu0 %v4648
    %4701 = vmatmul.f32.gmra.mxu0 %v4643
    %v4702 = vpop.f32.mrf.mxu0
    %v4703 = vadd.f32 %v4683, %v4702
    %4704 = vmatmul.f32.gmra.mxu0 %v4645
    %v4705 = vpop.f32.mrf.mxu0
    %v4706 = vadd.f32 %v4683, %v4705
    %4707 = vdwg.mxu0
    %4708 = vmatpush.msra.mxu0 %v4679
    %4709 = vmatpush.msra.mxu0 %v4678
    %4710 = vmatpush.msra.mxu0 %v4677
    %4711 = vmatpush.msra.mxu0 %v4676
    %4712 = vmatpush.msra.mxu0 %v4675
    %4713 = vmatpush.msra.mxu0 %v4674
    %4714 = vmatpush.msra.mxu0 %v4673
    %4715 = vmatpush.msra.mxu0 %v4672
    %4716 = vmatpush.msra.mxu0 %v4671
    %4717 = vmatpush.msra.mxu0 %v4670
    %4718 = vmatpush.msra.mxu0 %v4669
    %4719 = vmatpush.msra.mxu0 %v4668
    %4720 = vmatpush.msra.mxu0 %v4667
    %4721 = vmatpush.msra.mxu0 %v4666
    %4722 = vmatpush.msra.mxu0 %v4665
    %4723 = vmatpush.msra.mxu0 %v4664
    %4724 = vmatmul.f32.gmra.mxu0 %v4644
    %v4725 = vpop.f32.mrf.mxu0
    %v4726 = vadd.f32 %v4703, %v4725
    %4727 = vmatmul.f32.gmra.mxu0 %v4646
    %v4728 = vpop.f32.mrf.mxu0
    %v4729 = vadd.f32 %v4706, %v4728
    %4730 = vdwg.mxu0
    %v4731 = vadd.f32 %v4726, %v4523
    %v4732 = vadd.f32 %v4729, %v4524
    %s4733 = scalar_lea.vmem %s14, 3
    %v4734 = vld [vmem:[%s4733] sm:$0x1]
    %s4735 = scalar_lea.vmem %s15, 3
    %v4736 = vld [vmem:[%s4735] sm:$0x1]
    %4737 = vadd.xlane.f32.xlu0 %v4731
    %v4738 = vpop.xlane.xlu0 %4737
    %4739 = vadd.xlane.f32.xlu0 %v4732
    %v4740 = vpop.xlane.xlu0 %4739
    %v4741 = vmul.f32 %v4738, %v132
    %v4742 = vmul.f32 %v4740, %v132
    %v4743 = vsub.f32 %v4731, %v4741
    %v4744 = vsub.f32 %v4732, %v4742
    %v4745 = vmul.f32 %v4743, %v4743
    %v4746 = vmul.f32 %v4744, %v4744
    %4747 = vadd.xlane.f32.xlu0 %v4745
    %v4748 = vpop.xlane.xlu0 %4747
    %4749 = vadd.xlane.f32.xlu0 %v4746
    %v4750 = vpop.xlane.xlu0 %4749
    %v4751 = vmul.f32 %v4748, %v132
    %v4752 = vmul.f32 %v4750, %v132
    %v4753 = vadd.f32 %v4751, 1e-12
    %v4754 = vadd.f32 %v4752, 1e-12
    %v4755 = vrsqrt.pop %v4753
    %v4756 = vmul.f32 %v4755, %v4753
    %v4757 = vmul.f32 %v4756, %v4755
    %v4758 = vmul.f32 0.5, %v4757
    %v4759 = vsub.f32 1.5, %v4758
    %v4760 = vmul.f32 %v4755, %v4759
    %vm4761 = vweird.f32 %v4753
    %vm4762 = vweird.f32 %v4755
    %vm4763 = vmor %vm4761, %vm4762
    %v4764 = vsel %vm4763, %v4755, %v4760
    %v4765 = vrsqrt.pop %v4754
    %v4766 = vmul.f32 %v4765, %v4754
    %v4767 = vmul.f32 %v4766, %v4765
    %v4768 = vmul.f32 0.5, %v4767
    %v4769 = vsub.f32 1.5, %v4768
    %v4770 = vmul.f32 %v4765, %v4769
    %vm4771 = vweird.f32 %v4754
    %vm4772 = vweird.f32 %v4765
    %vm4773 = vmor %vm4771, %vm4772
    %v4774 = vsel %vm4773, %v4765, %v4770
    %v4775 = vmul.f32 %v4743, %v4764
    %v4776 = vmul.f32 %v4744, %v4774
    %v4778 = vperm.slane %v4734, 0
    %v4780 = vmul.f32 %v4775, %v4778
    %v4781 = vmul.f32 %v4776, %v4778
    %v4783 = vperm.slane %v4736, 0
    %v4785 = vadd.f32 %v4780, %v4783
    %v4786 = vadd.f32 %v4781, %v4783
    %v4787 = vadd.f32 %v3633, %v4785
    %v4788 = vadd.f32 %v3634, %v4786
    %v4789 = vmul.f32 %v4787, 0.25
    %v4790 = vmul.f32 %v4788, 0.25
    %4791 = vst [vmem:[#allocation10] sm:$0xff] %v4789
    %4792 = vst [vmem:[#allocation10 + $0x8] sm:$0xff] %v4790
    // Predicated region
    $region82: #{bert_word_encoder_forward.1} parent=1 // pred_check
      _
    $region83: #{bert_word_encoder_forward.1} parent=1 // pred_check_branch
      %4794 = sbr.rel (0) target = $region85
    $region84: #{bert_word_encoder_forward.1} parent=1 // pred_region
      %4796 = vsyncadd [#allocation4], 0
      %s4797 = sshll.u32 [#allocation10], 4
      %s4798 = int_to_ptr.vmem [resolvable:$true] %s4797
      %s4799 = sshll.u32 %s16, 4
      %s4800 = int_to_ptr.hbm [resolvable:$true] %s4799
      %4805 = dma.vmem_to_hbm [thread:$0]  %s4798, 256, %s4800, [#allocation4], 128, 128, 8
    $region85: #{bert_word_encoder_forward.1} parent=1 // pred_fallthru
      _
    // Predicated region
    $region86: #{bert_word_encoder_forward.1} parent=1 // pred_check
      _
    $region87: #{bert_word_encoder_forward.1} parent=1 // pred_check_branch
      %4807 = sbr.rel (0) target = $region89
    $region88: #{bert_word_encoder_forward.1} parent=1 // pred_region
      %4809 = dma.done [#allocation4], 256
    $region89: #{bert_word_encoder_forward.1} parent=1 // pred_fallthru
      _
    %4810 = vsyncpa [#allocation3], 1
    %4811 = vsyncpa [#allocation6], 1
    %4812 = vsyncpa [#allocation9], 1
    %4813 = vsyncpa [#allocation4], 1

</llo_original>
